<compile_context>
chip_gen: v6e
topology: v6e:2x2x1
jax: 0.10.0
libtpu: 0.0.40
codegen_flags: <defaults>
</compile_context>

<pallas_src>
import functools

import numpy as np
import jax
import jax.numpy as jnp
from jax import lax
from jax.experimental import pallas as pl
from jax.experimental.pallas import tpu as pltpu

# ----------------------------- static problem geometry -----------------------
K = 3                    # conv kernel size
POOL = 3                 # max-pool kernel == stride
C1, C2 = 8, 16           # conv channel counts
H_IN, W_IN = 48, 64      # input spatial size (gives 16*4*6 = 384 fc1 features)
H1, W1 = 15, 20          # stage-1 pooled grid:   (48-2)//3 x (64-2)//3
PH2, PW2 = 4, 6          # stage-2 pooled grid:   (15-2)//3 x (20-2)//3
RS = 2 * K - 1           # 5: range of combined stage-2 (pool tap + conv tap) offsets
N_RS = RS * RS           # 25 duplicated column blocks in the stage-1 result
SUB = 32                 # per-image columns inside a block (24 real + 8 pad)
FC1_IN, FC1_OUT = C2 * PH2 * PW2, 256
FC2_OUT = 128
NC_PAD = 128             # lane-dense logits tile


# ------------------------- XLA-side prep: a single gather --------------------

@functools.lru_cache(maxsize=None)
def _gather_indices(batch):
    """(9, 9, 25*batch*SUB) int32 index arrays: p1[t1, k1, col] = x2d[b, h, w].

    Column layout: 25 blocks, one per combined stage-2 offset (r, s); inside a
    block, batch sub-blocks of SUB columns ordered (ph2, pw2) + pad.  Column
    (r, s, b, ph2, pw2) holds the conv1 input pixel for stage-1 pooled position
    (h1, w1) = (3*ph2+r, 3*pw2+s), stage-1 pool tap t1=(dy1,dx1), conv tap
    k1=(ky1,kx1):  x2d[b, 3*h1+dy1+ky1, 3*w1+dx1+kx1].
    """
    ncol = N_RS * batch * SUB
    b_of = np.zeros(ncol, np.int32)
    h_of = np.zeros(ncol, np.int32)
    w_of = np.zeros(ncol, np.int32)
    for r in range(RS):
        for s in range(RS):
            base = (r * RS + s) * batch * SUB
            for b in range(batch):
                for ph in range(PH2):
                    for pw in range(PW2):
                        col = base + b * SUB + ph * PW2 + pw
                        b_of[col] = b
                        h_of[col] = 3 * ph + r
                        w_of[col] = 3 * pw + s
    dy1 = np.repeat(np.arange(POOL), POOL)[:, None, None]     # (9,1,1)
    dx1 = np.tile(np.arange(POOL), POOL)[:, None, None]
    ky1 = np.repeat(np.arange(K), K)[None, :, None]            # (1,9,1)
    kx1 = np.tile(np.arange(K), K)[None, :, None]
    b_idx = np.broadcast_to(b_of[None, None, :], (POOL * POOL, K * K, ncol))
    h_idx = 3 * h_of[None, None, :] + dy1 + ky1
    w_idx = 3 * w_of[None, None, :] + dx1 + kx1
    return (np.ascontiguousarray(b_idx).astype(np.int32),
            h_idx.astype(np.int32),
            w_idx.astype(np.int32))


# --------------------------------- the fused kernel --------------------------

def _nn2d_kernel(p1_ref, w1_ref, b1_ref, w2_ref, b2_ref,
                 wf1_ref, bf1_ref, wf2_ref, bf2_ref, wf3_ref, bf3_ref,
                 out_ref, *, batch):
    blk_w = batch * SUB                                   # columns per (r, s) block

    # ---- stage 1: conv1 + bias + ReLU + 3x3/stride-3 max-pool ---------------
    # p1_ref[t1] is (9, ncol): rows = conv taps, cols = duplicated pooled columns.
    w1 = w1_ref[...]                                      # (8, 9)
    a1 = None
    for t1 in range(POOL * POOL):                         # stage-1 pool tap
        c = jnp.dot(w1, p1_ref[t1], preferred_element_type=jnp.float32)
        a1 = c if a1 is None else jnp.maximum(a1, c)
    a1 = jnp.maximum(a1 + b1_ref[...], 0.0)               # (8, 25*blk_w)

    # ---- stage 2: conv2 + bias + ReLU + 3x3/stride-3 max-pool (MXU) ---------
    # Each im2col patch block is a contiguous 64-lane-aligned slice of a1.
    w2 = w2_ref[...]                                      # (16, 72)
    pooled = None
    for dy2 in range(POOL):
        for dx2 in range(POOL):                           # stage-2 pool tap
            rows = []
            for ky in range(K):
                for kx in range(K):
                    blk = (dy2 + ky) * RS + (dx2 + kx)
                    rows.append(a1[:, blk * blk_w:(blk + 1) * blk_w])  # (8, blk_w)
            patch = jnp.concatenate(rows, axis=0)          # (72, blk_w)
            o = jnp.dot(w2, patch, preferred_element_type=jnp.float32)
            pooled = o if pooled is None else jnp.maximum(pooled, o)
    pooled = jnp.maximum(pooled + b2_ref[...], 0.0)        # (16, batch*SUB)

    # ---- flatten (absorbed into padded fc1 blocks) + fc1/fc2/fc3 ------------
    wf1 = wf1_ref[...]                                     # (16*SUB, 256), pad rows = 0
    wf2 = wf2_ref[...]                                     # (256, 128)
    wf3 = wf3_ref[...]                                     # (128, NC_PAD), pad cols = 0
    bf1 = bf1_ref[...]
    bf2 = bf2_ref[...]
    bf3 = bf3_ref[...]
    for b in range(batch):
        h = None
        for c2 in range(C2):                               # PyTorch NCHW flatten order
            xs = pooled[c2:c2 + 1, b * SUB:(b + 1) * SUB]  # (1, 32)
            t = jnp.dot(xs, wf1[c2 * SUB:(c2 + 1) * SUB, :],
                        preferred_element_type=jnp.float32)
            h = t if h is None else h + t
        h = jnp.maximum(h + bf1, 0.0)                      # (1, 256)
        h = jnp.maximum(
            jnp.dot(h, wf2, preferred_element_type=jnp.float32) + bf2, 0.0)
        out_ref[b:b + 1, :] = (
            jnp.dot(h, wf3, preferred_element_type=jnp.float32) + bf3)


# ------------------------------ forward wrapper ------------------------------

def nn2d_forward(packed, x_nchw, num_class):
    batch = x_nchw.shape[0]
    assert x_nchw.shape[1:] == (1, H_IN, W_IN), x_nchw.shape
    assert num_class <= NC_PAD

    x2d = x_nchw[:, 0, :, :]                               # (B, 48, 64), Cin = 1
    b_idx, h_idx, w_idx = _gather_indices(batch)
    p1 = x2d[b_idx, h_idx, w_idx]                          # (9, 9, 25*batch*SUB)

    args = (p1, packed["w1"], packed["b1"], packed["w2"], packed["b2"],
            packed["wf1"], packed["bf1"], packed["wf2"], packed["bf2"],
            packed["wf3"], packed["bf3"])
    in_specs = [pl.BlockSpec(p1.shape, lambda i: (0, 0, 0))] + [
        pl.BlockSpec(a.shape, lambda i: (0, 0)) for a in args[1:]]

    out = pl.pallas_call(
        functools.partial(_nn2d_kernel, batch=batch),
        out_shape=jax.ShapeDtypeStruct((batch, NC_PAD), jnp.float32),
        grid=(1,),
        in_specs=in_specs,
        out_specs=pl.BlockSpec((batch, NC_PAD), lambda i: (0, 0)),
        compiler_params=pltpu.CompilerParams(dimension_semantics=("arbitrary",)),
    )(*args)
    return out[:, :num_class]


# ------------------------- pure-JAX reference (PyTorch semantics) ------------

def nn2d_reference(params, x_nchw):
    hi = jax.lax.Precision.HIGHEST

    def conv2d(x, w, bias):
        y = lax.conv_general_dilated(x, w, (1, 1), "VALID",
                                     dimension_numbers=("NCHW", "OIHW", "NCHW"),
                                     precision=hi)
        return y + bias[None, :, None, None]

    def maxpool3(x):  # kernel=3, stride=3, floor mode (PyTorch default)
        b, c, h, w = x.shape
        hp, wp = h // POOL, w // POOL
        x = x[:, :, :hp * POOL, :wp * POOL].reshape(b, c, hp, POOL, wp, POOL)
        return x.max(axis=(3, 5))

    x = maxpool3(jnp.maximum(conv2d(x_nchw, params["conv1_w"], params["conv1_b"]), 0.0))
    x = maxpool3(jnp.maximum(conv2d(x, params["conv2_w"], params["conv2_b"]), 0.0))
    x = x.reshape(x.shape[0], -1)
    x = jnp.maximum(jnp.dot(x, params["fc1_w"].T, precision=hi) + params["fc1_b"], 0.0)
    x = jnp.maximum(jnp.dot(x, params["fc2_w"].T, precision=hi) + params["fc2_b"], 0.0)
    return jnp.dot(x, params["fc3_w"].T, precision=hi) + params["fc3_b"]


# ------------------------------ parameters -----------------------------------

def init_params(key, num_class):
    """Deterministic synthetic weights in canonical PyTorch layouts."""
    shapes = {
        "conv1_w": (C1, 1, K, K),        "conv1_b": (C1,),
        "conv2_w": (C2, C1, K, K),       "conv2_b": (C2,),
        "fc1_w": (FC1_OUT, FC1_IN),      "fc1_b": (FC1_OUT,),
        "fc2_w": (FC2_OUT, FC1_OUT),     "fc2_b": (FC2_OUT,),
        "fc3_w": (num_class, FC2_OUT),   "fc3_b": (num_class,),
    }
    fan_in = {"conv1_w": K * K, "conv2_w": K * K * C1,
              "fc1_w": FC1_IN, "fc2_w": FC1_OUT, "fc3_w": FC2_OUT}
    params = {}
    for name, shape in shapes.items():
        key, sub = jax.random.split(key)
        scale = (1.0 / jnp.sqrt(jnp.float32(fan_in[name]))) if name.endswith("_w") else 0.01
        params[name] = scale * jax.random.normal(sub, shape, dtype=jnp.float32)
    return params, key


def pack_params(params, num_class):
    """One-time (off the hot path) repack into kernel layouts.

    conv weights -> (Cout, taps) with tap order matching the kernel's patch
    rows; fc1 -> (16*SUB, 256) with each channel's 24 features padded to SUB=32
    rows of zeros (so the stage-2 pad columns are annihilated and no in-kernel
    flatten/reshape is needed); fc3 zero-padded to a 128-lane-dense output.
    """
    wf1 = params["fc1_w"].T.reshape(C2, PH2 * PW2, FC1_OUT)
    wf1 = jnp.pad(wf1, ((0, 0), (0, SUB - PH2 * PW2), (0, 0))).reshape(C2 * SUB, FC1_OUT)
    return {
        "w1": params["conv1_w"].reshape(C1, K * K),
        "b1": params["conv1_b"].reshape(C1, 1),
        "w2": jnp.transpose(params["conv2_w"], (0, 2, 3, 1)).reshape(C2, K * K * C1),
        "b2": params["conv2_b"].reshape(C2, 1),
        "wf1": wf1,
        "bf1": params["fc1_b"].reshape(1, FC1_OUT),
        "wf2": params["fc2_w"].T,
        "bf2": params["fc2_b"].reshape(1, FC2_OUT),
        "wf3": jnp.pad(params["fc3_w"].T, ((0, 0), (0, NC_PAD - num_class))),
        "bf3": jnp.pad(params["fc3_b"], (0, NC_PAD - num_class)).reshape(1, NC_PAD),
    }


# --------------------------------- main ---------------------------------------

if __name__ == "__main__":
    num_class = 10
    key = jax.random.PRNGKey(0)
    params, key = init_params(key, num_class)
    packed = pack_params(params, num_class)    # one-time weight repack

    key, sub = jax.random.split(key)
    # (B=2, C=1, H=48, W=64): conv/pool stack -> (B, 16, 4, 6) -> 384 features.
    x = jax.random.normal(sub, (2, 1, H_IN, W_IN), dtype=jnp.float32)

    fwd = jax.jit(functools.partial(nn2d_forward, num_class=num_class))
    out = jax.block_until_ready(fwd(packed, x))

    ref = jax.block_until_ready(nn2d_reference(params, x))
    assert out.shape == (2, num_class), out.shape
    # 4x tighter than before; leaves headroom for multi-pass f32 MXU rounding
    # while still catching any layout/indexing bug (those are O(0.1+) errors).
    assert jnp.allclose(out, ref, atol=5e-3, rtol=5e-3), float(jnp.max(jnp.abs(out - ref)))

    print("KERNEL_OK")
</pallas_src>

<mosaic_0001>
module attributes {stable_mosaic.version = 11 : i64} {
  func.func @_nn2d_kernel(%arg0: i32, %arg1: memref<9x9x1600xf32, #tpu.memory_space<vmem>>, %arg2: memref<8x9xf32, #tpu.memory_space<vmem>>, %arg3: memref<8x1xf32, #tpu.memory_space<vmem>>, %arg4: memref<16x72xf32, #tpu.memory_space<vmem>>, %arg5: memref<16x1xf32, #tpu.memory_space<vmem>>, %arg6: memref<512x256xf32, #tpu.memory_space<vmem>>, %arg7: memref<1x256xf32, #tpu.memory_space<vmem>>, %arg8: memref<256x128xf32, #tpu.memory_space<vmem>>, %arg9: memref<1x128xf32, #tpu.memory_space<vmem>>, %arg10: memref<128x128xf32, #tpu.memory_space<vmem>>, %arg11: memref<1x128xf32, #tpu.memory_space<vmem>>, %arg12: memref<2x128xf32, #tpu.memory_space<vmem>>) attributes {dimension_semantics = [#tpu.dimension_semantics<arbitrary>], iteration_bounds = array<i64: 1>, scalar_prefetch = 0 : i64, scratch_operands = 0 : i64, tpu.core_type = #tpu.core_type<tc>, window_params = [{pipeline_mode = #tpu.pipeline_mode<synchronous>, transform_indices = @transform_0, window_bounds = array<i64: 9, 9, 1600>}, {pipeline_mode = #tpu.pipeline_mode<synchronous>, transform_indices = @transform_1, window_bounds = array<i64: 8, 9>}, {pipeline_mode = #tpu.pipeline_mode<synchronous>, transform_indices = @transform_2, window_bounds = array<i64: 8, 1>}, {pipeline_mode = #tpu.pipeline_mode<synchronous>, transform_indices = @transform_3, window_bounds = array<i64: 16, 72>}, {pipeline_mode = #tpu.pipeline_mode<synchronous>, transform_indices = @transform_4, window_bounds = array<i64: 16, 1>}, {pipeline_mode = #tpu.pipeline_mode<synchronous>, transform_indices = @transform_5, window_bounds = array<i64: 512, 256>}, {pipeline_mode = #tpu.pipeline_mode<synchronous>, transform_indices = @transform_6, window_bounds = array<i64: 1, 256>}, {pipeline_mode = #tpu.pipeline_mode<synchronous>, transform_indices = @transform_7, window_bounds = array<i64: 256, 128>}, {pipeline_mode = #tpu.pipeline_mode<synchronous>, transform_indices = @transform_8, window_bounds = array<i64: 1, 128>}, {pipeline_mode = #tpu.pipeline_mode<synchronous>, transform_indices = @transform_9, window_bounds = array<i64: 128, 128>}, {pipeline_mode = #tpu.pipeline_mode<synchronous>, transform_indices = @transform_10, window_bounds = array<i64: 1, 128>}, {pipeline_mode = #tpu.pipeline_mode<synchronous>, transform_indices = @transform_11, window_bounds = array<i64: 2, 128>}]} {
    %c0 = arith.constant 0 : index
    %c0_0 = arith.constant 0 : index
    %0 = vector.load %arg2[%c0, %c0_0] : memref<8x9xf32, #tpu.memory_space<vmem>>, vector<8x9xf32>
    %c0_1 = arith.constant 0 : index
    %c0_2 = arith.constant 0 : index
    %c0_3 = arith.constant 0 : index
    %1 = vector.load %arg1[%c0_1, %c0_2, %c0_3] : memref<9x9x1600xf32, #tpu.memory_space<vmem>>, vector<1x9x1600xf32>
    %2 = vector.shape_cast %1 : vector<1x9x1600xf32> to vector<9x1600xf32>
    %cst = arith.constant dense<0.000000e+00> : vector<8x1600xf32>
    %3 = tpu.matmul %0, %2, %cst {dimension_numbers = #tpu.dot_dimension_numbers<[1], [0], [0], [1], [0, 0, 1, 1], [], []>} : vector<8x9xf32>, vector<9x1600xf32>, vector<8x1600xf32> -> vector<8x1600xf32>
    %c1 = arith.constant 1 : index
    %c0_4 = arith.constant 0 : index
    %c0_5 = arith.constant 0 : index
    %4 = vector.load %arg1[%c1, %c0_4, %c0_5] : memref<9x9x1600xf32, #tpu.memory_space<vmem>>, vector<1x9x1600xf32>
    %5 = vector.shape_cast %4 : vector<1x9x1600xf32> to vector<9x1600xf32>
    %cst_6 = arith.constant dense<0.000000e+00> : vector<8x1600xf32>
    %6 = tpu.matmul %0, %5, %cst_6 {dimension_numbers = #tpu.dot_dimension_numbers<[1], [0], [0], [1], [0, 0, 1, 1], [], []>} : vector<8x9xf32>, vector<9x1600xf32>, vector<8x1600xf32> -> vector<8x1600xf32>
    %7 = arith.maximumf %3, %6 : vector<8x1600xf32>
    %c2 = arith.constant 2 : index
    %c0_7 = arith.constant 0 : index
    %c0_8 = arith.constant 0 : index
    %8 = vector.load %arg1[%c2, %c0_7, %c0_8] : memref<9x9x1600xf32, #tpu.memory_space<vmem>>, vector<1x9x1600xf32>
    %9 = vector.shape_cast %8 : vector<1x9x1600xf32> to vector<9x1600xf32>
    %cst_9 = arith.constant dense<0.000000e+00> : vector<8x1600xf32>
    %10 = tpu.matmul %0, %9, %cst_9 {dimension_numbers = #tpu.dot_dimension_numbers<[1], [0], [0], [1], [0, 0, 1, 1], [], []>} : vector<8x9xf32>, vector<9x1600xf32>, vector<8x1600xf32> -> vector<8x1600xf32>
    %11 = arith.maximumf %7, %10 : vector<8x1600xf32>
    %c3 = arith.constant 3 : index
    %c0_10 = arith.constant 0 : index
    %c0_11 = arith.constant 0 : index
    %12 = vector.load %arg1[%c3, %c0_10, %c0_11] : memref<9x9x1600xf32, #tpu.memory_space<vmem>>, vector<1x9x1600xf32>
    %13 = vector.shape_cast %12 : vector<1x9x1600xf32> to vector<9x1600xf32>
    %cst_12 = arith.constant dense<0.000000e+00> : vector<8x1600xf32>
    %14 = tpu.matmul %0, %13, %cst_12 {dimension_numbers = #tpu.dot_dimension_numbers<[1], [0], [0], [1], [0, 0, 1, 1], [], []>} : vector<8x9xf32>, vector<9x1600xf32>, vector<8x1600xf32> -> vector<8x1600xf32>
    %15 = arith.maximumf %11, %14 : vector<8x1600xf32>
    %c4 = arith.constant 4 : index
    %c0_13 = arith.constant 0 : index
    %c0_14 = arith.constant 0 : index
    %16 = vector.load %arg1[%c4, %c0_13, %c0_14] : memref<9x9x1600xf32, #tpu.memory_space<vmem>>, vector<1x9x1600xf32>
    %17 = vector.shape_cast %16 : vector<1x9x1600xf32> to vector<9x1600xf32>
    %cst_15 = arith.constant dense<0.000000e+00> : vector<8x1600xf32>
    %18 = tpu.matmul %0, %17, %cst_15 {dimension_numbers = #tpu.dot_dimension_numbers<[1], [0], [0], [1], [0, 0, 1, 1], [], []>} : vector<8x9xf32>, vector<9x1600xf32>, vector<8x1600xf32> -> vector<8x1600xf32>
    %19 = arith.maximumf %15, %18 : vector<8x1600xf32>
    %c5 = arith.constant 5 : index
    %c0_16 = arith.constant 0 : index
    %c0_17 = arith.constant 0 : index
    %20 = vector.load %arg1[%c5, %c0_16, %c0_17] : memref<9x9x1600xf32, #tpu.memory_space<vmem>>, vector<1x9x1600xf32>
    %21 = vector.shape_cast %20 : vector<1x9x1600xf32> to vector<9x1600xf32>
    %cst_18 = arith.constant dense<0.000000e+00> : vector<8x1600xf32>
    %22 = tpu.matmul %0, %21, %cst_18 {dimension_numbers = #tpu.dot_dimension_numbers<[1], [0], [0], [1], [0, 0, 1, 1], [], []>} : vector<8x9xf32>, vector<9x1600xf32>, vector<8x1600xf32> -> vector<8x1600xf32>
    %23 = arith.maximumf %19, %22 : vector<8x1600xf32>
    %c6 = arith.constant 6 : index
    %c0_19 = arith.constant 0 : index
    %c0_20 = arith.constant 0 : index
    %24 = vector.load %arg1[%c6, %c0_19, %c0_20] : memref<9x9x1600xf32, #tpu.memory_space<vmem>>, vector<1x9x1600xf32>
    %25 = vector.shape_cast %24 : vector<1x9x1600xf32> to vector<9x1600xf32>
    %cst_21 = arith.constant dense<0.000000e+00> : vector<8x1600xf32>
    %26 = tpu.matmul %0, %25, %cst_21 {dimension_numbers = #tpu.dot_dimension_numbers<[1], [0], [0], [1], [0, 0, 1, 1], [], []>} : vector<8x9xf32>, vector<9x1600xf32>, vector<8x1600xf32> -> vector<8x1600xf32>
    %27 = arith.maximumf %23, %26 : vector<8x1600xf32>
    %c7 = arith.constant 7 : index
    %c0_22 = arith.constant 0 : index
    %c0_23 = arith.constant 0 : index
    %28 = vector.load %arg1[%c7, %c0_22, %c0_23] : memref<9x9x1600xf32, #tpu.memory_space<vmem>>, vector<1x9x1600xf32>
    %29 = vector.shape_cast %28 : vector<1x9x1600xf32> to vector<9x1600xf32>
    %cst_24 = arith.constant dense<0.000000e+00> : vector<8x1600xf32>
    %30 = tpu.matmul %0, %29, %cst_24 {dimension_numbers = #tpu.dot_dimension_numbers<[1], [0], [0], [1], [0, 0, 1, 1], [], []>} : vector<8x9xf32>, vector<9x1600xf32>, vector<8x1600xf32> -> vector<8x1600xf32>
    %31 = arith.maximumf %27, %30 : vector<8x1600xf32>
    %c8 = arith.constant 8 : index
    %c0_25 = arith.constant 0 : index
    %c0_26 = arith.constant 0 : index
    %32 = vector.load %arg1[%c8, %c0_25, %c0_26] : memref<9x9x1600xf32, #tpu.memory_space<vmem>>, vector<1x9x1600xf32>
    %33 = vector.shape_cast %32 : vector<1x9x1600xf32> to vector<9x1600xf32>
    %cst_27 = arith.constant dense<0.000000e+00> : vector<8x1600xf32>
    %34 = tpu.matmul %0, %33, %cst_27 {dimension_numbers = #tpu.dot_dimension_numbers<[1], [0], [0], [1], [0, 0, 1, 1], [], []>} : vector<8x9xf32>, vector<9x1600xf32>, vector<8x1600xf32> -> vector<8x1600xf32>
    %35 = arith.maximumf %31, %34 : vector<8x1600xf32>
    %c0_28 = arith.constant 0 : index
    %c0_29 = arith.constant 0 : index
    %36 = vector.load %arg3[%c0_28, %c0_29] : memref<8x1xf32, #tpu.memory_space<vmem>>, vector<8x1xf32>
    %37 = vector.broadcast %36 : vector<8x1xf32> to vector<8x1600xf32>
    %38 = arith.addf %35, %37 : vector<8x1600xf32>
    %cst_30 = arith.constant 0.000000e+00 : f32
    %39 = vector.broadcast %cst_30 : f32 to vector<8x1600xf32>
    %40 = arith.maximumf %38, %39 : vector<8x1600xf32>
    %c0_31 = arith.constant 0 : index
    %c0_32 = arith.constant 0 : index
    %41 = vector.load %arg4[%c0_31, %c0_32] : memref<16x72xf32, #tpu.memory_space<vmem>>, vector<16x72xf32>
    %42 = vector.extract_strided_slice %40 {offsets = [0, 0], sizes = [8, 64], strides = [1, 1]} : vector<8x1600xf32> to vector<8x64xf32>
    %43 = vector.extract_strided_slice %40 {offsets = [0, 64], sizes = [8, 64], strides = [1, 1]} : vector<8x1600xf32> to vector<8x64xf32>
    %44 = vector.extract_strided_slice %40 {offsets = [0, 128], sizes = [8, 64], strides = [1, 1]} : vector<8x1600xf32> to vector<8x64xf32>
    %45 = vector.extract_strided_slice %40 {offsets = [0, 320], sizes = [8, 64], strides = [1, 1]} : vector<8x1600xf32> to vector<8x64xf32>
    %46 = vector.extract_strided_slice %40 {offsets = [0, 384], sizes = [8, 64], strides = [1, 1]} : vector<8x1600xf32> to vector<8x64xf32>
    %47 = vector.extract_strided_slice %40 {offsets = [0, 448], sizes = [8, 64], strides = [1, 1]} : vector<8x1600xf32> to vector<8x64xf32>
    %48 = vector.extract_strided_slice %40 {offsets = [0, 640], sizes = [8, 64], strides = [1, 1]} : vector<8x1600xf32> to vector<8x64xf32>
    %49 = vector.extract_strided_slice %40 {offsets = [0, 704], sizes = [8, 64], strides = [1, 1]} : vector<8x1600xf32> to vector<8x64xf32>
    %50 = vector.extract_strided_slice %40 {offsets = [0, 768], sizes = [8, 64], strides = [1, 1]} : vector<8x1600xf32> to vector<8x64xf32>
    %51 = tpu.concatenate %42, %43, %44, %45, %46, %47, %48, %49, %50 in 0 : vector<8x64xf32>, vector<8x64xf32>, vector<8x64xf32>, vector<8x64xf32>, vector<8x64xf32>, vector<8x64xf32>, vector<8x64xf32>, vector<8x64xf32>, vector<8x64xf32> -> vector<72x64xf32>
    %cst_33 = arith.constant dense<0.000000e+00> : vector<16x64xf32>
    %52 = tpu.matmul %41, %51, %cst_33 {dimension_numbers = #tpu.dot_dimension_numbers<[1], [0], [0], [1], [0, 0, 1, 1], [], []>} : vector<16x72xf32>, vector<72x64xf32>, vector<16x64xf32> -> vector<16x64xf32>
    %53 = vector.extract_strided_slice %40 {offsets = [0, 64], sizes = [8, 64], strides = [1, 1]} : vector<8x1600xf32> to vector<8x64xf32>
    %54 = vector.extract_strided_slice %40 {offsets = [0, 128], sizes = [8, 64], strides = [1, 1]} : vector<8x1600xf32> to vector<8x64xf32>
    %55 = vector.extract_strided_slice %40 {offsets = [0, 192], sizes = [8, 64], strides = [1, 1]} : vector<8x1600xf32> to vector<8x64xf32>
    %56 = vector.extract_strided_slice %40 {offsets = [0, 384], sizes = [8, 64], strides = [1, 1]} : vector<8x1600xf32> to vector<8x64xf32>
    %57 = vector.extract_strided_slice %40 {offsets = [0, 448], sizes = [8, 64], strides = [1, 1]} : vector<8x1600xf32> to vector<8x64xf32>
    %58 = vector.extract_strided_slice %40 {offsets = [0, 512], sizes = [8, 64], strides = [1, 1]} : vector<8x1600xf32> to vector<8x64xf32>
    %59 = vector.extract_strided_slice %40 {offsets = [0, 704], sizes = [8, 64], strides = [1, 1]} : vector<8x1600xf32> to vector<8x64xf32>
    %60 = vector.extract_strided_slice %40 {offsets = [0, 768], sizes = [8, 64], strides = [1, 1]} : vector<8x1600xf32> to vector<8x64xf32>
    %61 = vector.extract_strided_slice %40 {offsets = [0, 832], sizes = [8, 64], strides = [1, 1]} : vector<8x1600xf32> to vector<8x64xf32>
    %62 = tpu.concatenate %53, %54, %55, %56, %57, %58, %59, %60, %61 in 0 : vector<8x64xf32>, vector<8x64xf32>, vector<8x64xf32>, vector<8x64xf32>, vector<8x64xf32>, vector<8x64xf32>, vector<8x64xf32>, vector<8x64xf32>, vector<8x64xf32> -> vector<72x64xf32>
    %cst_34 = arith.constant dense<0.000000e+00> : vector<16x64xf32>
    %63 = tpu.matmul %41, %62, %cst_34 {dimension_numbers = #tpu.dot_dimension_numbers<[1], [0], [0], [1], [0, 0, 1, 1], [], []>} : vector<16x72xf32>, vector<72x64xf32>, vector<16x64xf32> -> vector<16x64xf32>
    %64 = arith.maximumf %52, %63 : vector<16x64xf32>
    %65 = vector.extract_strided_slice %40 {offsets = [0, 128], sizes = [8, 64], strides = [1, 1]} : vector<8x1600xf32> to vector<8x64xf32>
    %66 = vector.extract_strided_slice %40 {offsets = [0, 192], sizes = [8, 64], strides = [1, 1]} : vector<8x1600xf32> to vector<8x64xf32>
    %67 = vector.extract_strided_slice %40 {offsets = [0, 256], sizes = [8, 64], strides = [1, 1]} : vector<8x1600xf32> to vector<8x64xf32>
    %68 = vector.extract_strided_slice %40 {offsets = [0, 448], sizes = [8, 64], strides = [1, 1]} : vector<8x1600xf32> to vector<8x64xf32>
    %69 = vector.extract_strided_slice %40 {offsets = [0, 512], sizes = [8, 64], strides = [1, 1]} : vector<8x1600xf32> to vector<8x64xf32>
    %70 = vector.extract_strided_slice %40 {offsets = [0, 576], sizes = [8, 64], strides = [1, 1]} : vector<8x1600xf32> to vector<8x64xf32>
    %71 = vector.extract_strided_slice %40 {offsets = [0, 768], sizes = [8, 64], strides = [1, 1]} : vector<8x1600xf32> to vector<8x64xf32>
    %72 = vector.extract_strided_slice %40 {offsets = [0, 832], sizes = [8, 64], strides = [1, 1]} : vector<8x1600xf32> to vector<8x64xf32>
    %73 = vector.extract_strided_slice %40 {offsets = [0, 896], sizes = [8, 64], strides = [1, 1]} : vector<8x1600xf32> to vector<8x64xf32>
    %74 = tpu.concatenate %65, %66, %67, %68, %69, %70, %71, %72, %73 in 0 : vector<8x64xf32>, vector<8x64xf32>, vector<8x64xf32>, vector<8x64xf32>, vector<8x64xf32>, vector<8x64xf32>, vector<8x64xf32>, vector<8x64xf32>, vector<8x64xf32> -> vector<72x64xf32>
    %cst_35 = arith.constant dense<0.000000e+00> : vector<16x64xf32>
    %75 = tpu.matmul %41, %74, %cst_35 {dimension_numbers = #tpu.dot_dimension_numbers<[1], [0], [0], [1], [0, 0, 1, 1], [], []>} : vector<16x72xf32>, vector<72x64xf32>, vector<16x64xf32> -> vector<16x64xf32>
    %76 = arith.maximumf %64, %75 : vector<16x64xf32>
    %77 = vector.extract_strided_slice %40 {offsets = [0, 320], sizes = [8, 64], strides = [1, 1]} : vector<8x1600xf32> to vector<8x64xf32>
    %78 = vector.extract_strided_slice %40 {offsets = [0, 384], sizes = [8, 64], strides = [1, 1]} : vector<8x1600xf32> to vector<8x64xf32>
    %79 = vector.extract_strided_slice %40 {offsets = [0, 448], sizes = [8, 64], strides = [1, 1]} : vector<8x1600xf32> to vector<8x64xf32>
    %80 = vector.extract_strided_slice %40 {offsets = [0, 640], sizes = [8, 64], strides = [1, 1]} : vector<8x1600xf32> to vector<8x64xf32>
    %81 = vector.extract_strided_slice %40 {offsets = [0, 704], sizes = [8, 64], strides = [1, 1]} : vector<8x1600xf32> to vector<8x64xf32>
    %82 = vector.extract_strided_slice %40 {offsets = [0, 768], sizes = [8, 64], strides = [1, 1]} : vector<8x1600xf32> to vector<8x64xf32>
    %83 = vector.extract_strided_slice %40 {offsets = [0, 960], sizes = [8, 64], strides = [1, 1]} : vector<8x1600xf32> to vector<8x64xf32>
    %84 = vector.extract_strided_slice %40 {offsets = [0, 1024], sizes = [8, 64], strides = [1, 1]} : vector<8x1600xf32> to vector<8x64xf32>
    %85 = vector.extract_strided_slice %40 {offsets = [0, 1088], sizes = [8, 64], strides = [1, 1]} : vector<8x1600xf32> to vector<8x64xf32>
    %86 = tpu.concatenate %77, %78, %79, %80, %81, %82, %83, %84, %85 in 0 : vector<8x64xf32>, vector<8x64xf32>, vector<8x64xf32>, vector<8x64xf32>, vector<8x64xf32>, vector<8x64xf32>, vector<8x64xf32>, vector<8x64xf32>, vector<8x64xf32> -> vector<72x64xf32>
    %cst_36 = arith.constant dense<0.000000e+00> : vector<16x64xf32>
    %87 = tpu.matmul %41, %86, %cst_36 {dimension_numbers = #tpu.dot_dimension_numbers<[1], [0], [0], [1], [0, 0, 1, 1], [], []>} : vector<16x72xf32>, vector<72x64xf32>, vector<16x64xf32> -> vector<16x64xf32>
    %88 = arith.maximumf %76, %87 : vector<16x64xf32>
    %89 = vector.extract_strided_slice %40 {offsets = [0, 384], sizes = [8, 64], strides = [1, 1]} : vector<8x1600xf32> to vector<8x64xf32>
    %90 = vector.extract_strided_slice %40 {offsets = [0, 448], sizes = [8, 64], strides = [1, 1]} : vector<8x1600xf32> to vector<8x64xf32>
    %91 = vector.extract_strided_slice %40 {offsets = [0, 512], sizes = [8, 64], strides = [1, 1]} : vector<8x1600xf32> to vector<8x64xf32>
    %92 = vector.extract_strided_slice %40 {offsets = [0, 704], sizes = [8, 64], strides = [1, 1]} : vector<8x1600xf32> to vector<8x64xf32>
    %93 = vector.extract_strided_slice %40 {offsets = [0, 768], sizes = [8, 64], strides = [1, 1]} : vector<8x1600xf32> to vector<8x64xf32>
    %94 = vector.extract_strided_slice %40 {offsets = [0, 832], sizes = [8, 64], strides = [1, 1]} : vector<8x1600xf32> to vector<8x64xf32>
    %95 = vector.extract_strided_slice %40 {offsets = [0, 1024], sizes = [8, 64], strides = [1, 1]} : vector<8x1600xf32> to vector<8x64xf32>
    %96 = vector.extract_strided_slice %40 {offsets = [0, 1088], sizes = [8, 64], strides = [1, 1]} : vector<8x1600xf32> to vector<8x64xf32>
    %97 = vector.extract_strided_slice %40 {offsets = [0, 1152], sizes = [8, 64], strides = [1, 1]} : vector<8x1600xf32> to vector<8x64xf32>
    %98 = tpu.concatenate %89, %90, %91, %92, %93, %94, %95, %96, %97 in 0 : vector<8x64xf32>, vector<8x64xf32>, vector<8x64xf32>, vector<8x64xf32>, vector<8x64xf32>, vector<8x64xf32>, vector<8x64xf32>, vector<8x64xf32>, vector<8x64xf32> -> vector<72x64xf32>
    %cst_37 = arith.constant dense<0.000000e+00> : vector<16x64xf32>
    %99 = tpu.matmul %41, %98, %cst_37 {dimension_numbers = #tpu.dot_dimension_numbers<[1], [0], [0], [1], [0, 0, 1, 1], [], []>} : vector<16x72xf32>, vector<72x64xf32>, vector<16x64xf32> -> vector<16x64xf32>
    %100 = arith.maximumf %88, %99 : vector<16x64xf32>
    %101 = vector.extract_strided_slice %40 {offsets = [0, 448], sizes = [8, 64], strides = [1, 1]} : vector<8x1600xf32> to vector<8x64xf32>
    %102 = vector.extract_strided_slice %40 {offsets = [0, 512], sizes = [8, 64], strides = [1, 1]} : vector<8x1600xf32> to vector<8x64xf32>
    %103 = vector.extract_strided_slice %40 {offsets = [0, 576], sizes = [8, 64], strides = [1, 1]} : vector<8x1600xf32> to vector<8x64xf32>
    %104 = vector.extract_strided_slice %40 {offsets = [0, 768], sizes = [8, 64], strides = [1, 1]} : vector<8x1600xf32> to vector<8x64xf32>
    %105 = vector.extract_strided_slice %40 {offsets = [0, 832], sizes = [8, 64], strides = [1, 1]} : vector<8x1600xf32> to vector<8x64xf32>
    %106 = vector.extract_strided_slice %40 {offsets = [0, 896], sizes = [8, 64], strides = [1, 1]} : vector<8x1600xf32> to vector<8x64xf32>
    %107 = vector.extract_strided_slice %40 {offsets = [0, 1088], sizes = [8, 64], strides = [1, 1]} : vector<8x1600xf32> to vector<8x64xf32>
    %108 = vector.extract_strided_slice %40 {offsets = [0, 1152], sizes = [8, 64], strides = [1, 1]} : vector<8x1600xf32> to vector<8x64xf32>
    %109 = vector.extract_strided_slice %40 {offsets = [0, 1216], sizes = [8, 64], strides = [1, 1]} : vector<8x1600xf32> to vector<8x64xf32>
    %110 = tpu.concatenate %101, %102, %103, %104, %105, %106, %107, %108, %109 in 0 : vector<8x64xf32>, vector<8x64xf32>, vector<8x64xf32>, vector<8x64xf32>, vector<8x64xf32>, vector<8x64xf32>, vector<8x64xf32>, vector<8x64xf32>, vector<8x64xf32> -> vector<72x64xf32>
    %cst_38 = arith.constant dense<0.000000e+00> : vector<16x64xf32>
    %111 = tpu.matmul %41, %110, %cst_38 {dimension_numbers = #tpu.dot_dimension_numbers<[1], [0], [0], [1], [0, 0, 1, 1], [], []>} : vector<16x72xf32>, vector<72x64xf32>, vector<16x64xf32> -> vector<16x64xf32>
    %112 = arith.maximumf %100, %111 : vector<16x64xf32>
    %113 = vector.extract_strided_slice %40 {offsets = [0, 640], sizes = [8, 64], strides = [1, 1]} : vector<8x1600xf32> to vector<8x64xf32>
    %114 = vector.extract_strided_slice %40 {offsets = [0, 704], sizes = [8, 64], strides = [1, 1]} : vector<8x1600xf32> to vector<8x64xf32>
    %115 = vector.extract_strided_slice %40 {offsets = [0, 768], sizes = [8, 64], strides = [1, 1]} : vector<8x1600xf32> to vector<8x64xf32>
    %116 = vector.extract_strided_slice %40 {offsets = [0, 960], sizes = [8, 64], strides = [1, 1]} : vector<8x1600xf32> to vector<8x64xf32>
    %117 = vector.extract_strided_slice %40 {offsets = [0, 1024], sizes = [8, 64], strides = [1, 1]} : vector<8x1600xf32> to vector<8x64xf32>
    %118 = vector.extract_strided_slice %40 {offsets = [0, 1088], sizes = [8, 64], strides = [1, 1]} : vector<8x1600xf32> to vector<8x64xf32>
    %119 = vector.extract_strided_slice %40 {offsets = [0, 1280], sizes = [8, 64], strides = [1, 1]} : vector<8x1600xf32> to vector<8x64xf32>
    %120 = vector.extract_strided_slice %40 {offsets = [0, 1344], sizes = [8, 64], strides = [1, 1]} : vector<8x1600xf32> to vector<8x64xf32>
    %121 = vector.extract_strided_slice %40 {offsets = [0, 1408], sizes = [8, 64], strides = [1, 1]} : vector<8x1600xf32> to vector<8x64xf32>
    %122 = tpu.concatenate %113, %114, %115, %116, %117, %118, %119, %120, %121 in 0 : vector<8x64xf32>, vector<8x64xf32>, vector<8x64xf32>, vector<8x64xf32>, vector<8x64xf32>, vector<8x64xf32>, vector<8x64xf32>, vector<8x64xf32>, vector<8x64xf32> -> vector<72x64xf32>
    %cst_39 = arith.constant dense<0.000000e+00> : vector<16x64xf32>
    %123 = tpu.matmul %41, %122, %cst_39 {dimension_numbers = #tpu.dot_dimension_numbers<[1], [0], [0], [1], [0, 0, 1, 1], [], []>} : vector<16x72xf32>, vector<72x64xf32>, vector<16x64xf32> -> vector<16x64xf32>
    %124 = arith.maximumf %112, %123 : vector<16x64xf32>
    %125 = vector.extract_strided_slice %40 {offsets = [0, 704], sizes = [8, 64], strides = [1, 1]} : vector<8x1600xf32> to vector<8x64xf32>
    %126 = vector.extract_strided_slice %40 {offsets = [0, 768], sizes = [8, 64], strides = [1, 1]} : vector<8x1600xf32> to vector<8x64xf32>
    %127 = vector.extract_strided_slice %40 {offsets = [0, 832], sizes = [8, 64], strides = [1, 1]} : vector<8x1600xf32> to vector<8x64xf32>
    %128 = vector.extract_strided_slice %40 {offsets = [0, 1024], sizes = [8, 64], strides = [1, 1]} : vector<8x1600xf32> to vector<8x64xf32>
    %129 = vector.extract_strided_slice %40 {offsets = [0, 1088], sizes = [8, 64], strides = [1, 1]} : vector<8x1600xf32> to vector<8x64xf32>
    %130 = vector.extract_strided_slice %40 {offsets = [0, 1152], sizes = [8, 64], strides = [1, 1]} : vector<8x1600xf32> to vector<8x64xf32>
    %131 = vector.extract_strided_slice %40 {offsets = [0, 1344], sizes = [8, 64], strides = [1, 1]} : vector<8x1600xf32> to vector<8x64xf32>
    %132 = vector.extract_strided_slice %40 {offsets = [0, 1408], sizes = [8, 64], strides = [1, 1]} : vector<8x1600xf32> to vector<8x64xf32>
    %133 = vector.extract_strided_slice %40 {offsets = [0, 1472], sizes = [8, 64], strides = [1, 1]} : vector<8x1600xf32> to vector<8x64xf32>
    %134 = tpu.concatenate %125, %126, %127, %128, %129, %130, %131, %132, %133 in 0 : vector<8x64xf32>, vector<8x64xf32>, vector<8x64xf32>, vector<8x64xf32>, vector<8x64xf32>, vector<8x64xf32>, vector<8x64xf32>, vector<8x64xf32>, vector<8x64xf32> -> vector<72x64xf32>
    %cst_40 = arith.constant dense<0.000000e+00> : vector<16x64xf32>
    %135 = tpu.matmul %41, %134, %cst_40 {dimension_numbers = #tpu.dot_dimension_numbers<[1], [0], [0], [1], [0, 0, 1, 1], [], []>} : vector<16x72xf32>, vector<72x64xf32>, vector<16x64xf32> -> vector<16x64xf32>
    %136 = arith.maximumf %124, %135 : vector<16x64xf32>
    %137 = vector.extract_strided_slice %40 {offsets = [0, 768], sizes = [8, 64], strides = [1, 1]} : vector<8x1600xf32> to vector<8x64xf32>
    %138 = vector.extract_strided_slice %40 {offsets = [0, 832], sizes = [8, 64], strides = [1, 1]} : vector<8x1600xf32> to vector<8x64xf32>
    %139 = vector.extract_strided_slice %40 {offsets = [0, 896], sizes = [8, 64], strides = [1, 1]} : vector<8x1600xf32> to vector<8x64xf32>
    %140 = vector.extract_strided_slice %40 {offsets = [0, 1088], sizes = [8, 64], strides = [1, 1]} : vector<8x1600xf32> to vector<8x64xf32>
    %141 = vector.extract_strided_slice %40 {offsets = [0, 1152], sizes = [8, 64], strides = [1, 1]} : vector<8x1600xf32> to vector<8x64xf32>
    %142 = vector.extract_strided_slice %40 {offsets = [0, 1216], sizes = [8, 64], strides = [1, 1]} : vector<8x1600xf32> to vector<8x64xf32>
    %143 = vector.extract_strided_slice %40 {offsets = [0, 1408], sizes = [8, 64], strides = [1, 1]} : vector<8x1600xf32> to vector<8x64xf32>
    %144 = vector.extract_strided_slice %40 {offsets = [0, 1472], sizes = [8, 64], strides = [1, 1]} : vector<8x1600xf32> to vector<8x64xf32>
    %145 = vector.extract_strided_slice %40 {offsets = [0, 1536], sizes = [8, 64], strides = [1, 1]} : vector<8x1600xf32> to vector<8x64xf32>
    %146 = tpu.concatenate %137, %138, %139, %140, %141, %142, %143, %144, %145 in 0 : vector<8x64xf32>, vector<8x64xf32>, vector<8x64xf32>, vector<8x64xf32>, vector<8x64xf32>, vector<8x64xf32>, vector<8x64xf32>, vector<8x64xf32>, vector<8x64xf32> -> vector<72x64xf32>
    %cst_41 = arith.constant dense<0.000000e+00> : vector<16x64xf32>
    %147 = tpu.matmul %41, %146, %cst_41 {dimension_numbers = #tpu.dot_dimension_numbers<[1], [0], [0], [1], [0, 0, 1, 1], [], []>} : vector<16x72xf32>, vector<72x64xf32>, vector<16x64xf32> -> vector<16x64xf32>
    %148 = arith.maximumf %136, %147 : vector<16x64xf32>
    %c0_42 = arith.constant 0 : index
    %c0_43 = arith.constant 0 : index
    %149 = vector.load %arg5[%c0_42, %c0_43] : memref<16x1xf32, #tpu.memory_space<vmem>>, vector<16x1xf32>
    %150 = vector.broadcast %149 : vector<16x1xf32> to vector<16x64xf32>
    %151 = arith.addf %148, %150 : vector<16x64xf32>
    %cst_44 = arith.constant 0.000000e+00 : f32
    %152 = vector.broadcast %cst_44 : f32 to vector<16x64xf32>
    %153 = arith.maximumf %151, %152 : vector<16x64xf32>
    %c0_45 = arith.constant 0 : index
    %c0_46 = arith.constant 0 : index
    %154 = vector.load %arg6[%c0_45, %c0_46] : memref<512x256xf32, #tpu.memory_space<vmem>>, vector<512x256xf32>
    %c0_47 = arith.constant 0 : index
    %c0_48 = arith.constant 0 : index
    %155 = vector.load %arg8[%c0_47, %c0_48] : memref<256x128xf32, #tpu.memory_space<vmem>>, vector<256x128xf32>
    %c0_49 = arith.constant 0 : index
    %c0_50 = arith.constant 0 : index
    %156 = vector.load %arg10[%c0_49, %c0_50] : memref<128x128xf32, #tpu.memory_space<vmem>>, vector<128x128xf32>
    %c0_51 = arith.constant 0 : index
    %c0_52 = arith.constant 0 : index
    %157 = vector.load %arg7[%c0_51, %c0_52] : memref<1x256xf32, #tpu.memory_space<vmem>>, vector<1x256xf32>
    %c0_53 = arith.constant 0 : index
    %c0_54 = arith.constant 0 : index
    %158 = vector.load %arg9[%c0_53, %c0_54] : memref<1x128xf32, #tpu.memory_space<vmem>>, vector<1x128xf32>
    %c0_55 = arith.constant 0 : index
    %c0_56 = arith.constant 0 : index
    %159 = vector.load %arg11[%c0_55, %c0_56] : memref<1x128xf32, #tpu.memory_space<vmem>>, vector<1x128xf32>
    %160 = vector.extract_strided_slice %153 {offsets = [0, 0], sizes = [1, 32], strides = [1, 1]} : vector<16x64xf32> to vector<1x32xf32>
    %161 = vector.extract_strided_slice %154 {offsets = [0, 0], sizes = [32, 256], strides = [1, 1]} : vector<512x256xf32> to vector<32x256xf32>
    %cst_57 = arith.constant dense<0.000000e+00> : vector<1x256xf32>
    %162 = tpu.matmul %160, %161, %cst_57 {dimension_numbers = #tpu.dot_dimension_numbers<[1], [0], [0], [1], [0, 0, 1, 1], [], []>} : vector<1x32xf32>, vector<32x256xf32>, vector<1x256xf32> -> vector<1x256xf32>
    %163 = vector.extract_strided_slice %153 {offsets = [1, 0], sizes = [1, 32], strides = [1, 1]} : vector<16x64xf32> to vector<1x32xf32>
    %164 = vector.extract_strided_slice %154 {offsets = [32, 0], sizes = [32, 256], strides = [1, 1]} : vector<512x256xf32> to vector<32x256xf32>
    %cst_58 = arith.constant dense<0.000000e+00> : vector<1x256xf32>
    %165 = tpu.matmul %163, %164, %cst_58 {dimension_numbers = #tpu.dot_dimension_numbers<[1], [0], [0], [1], [0, 0, 1, 1], [], []>} : vector<1x32xf32>, vector<32x256xf32>, vector<1x256xf32> -> vector<1x256xf32>
    %166 = arith.addf %162, %165 : vector<1x256xf32>
    %167 = vector.extract_strided_slice %153 {offsets = [2, 0], sizes = [1, 32], strides = [1, 1]} : vector<16x64xf32> to vector<1x32xf32>
    %168 = vector.extract_strided_slice %154 {offsets = [64, 0], sizes = [32, 256], strides = [1, 1]} : vector<512x256xf32> to vector<32x256xf32>
    %cst_59 = arith.constant dense<0.000000e+00> : vector<1x256xf32>
    %169 = tpu.matmul %167, %168, %cst_59 {dimension_numbers = #tpu.dot_dimension_numbers<[1], [0], [0], [1], [0, 0, 1, 1], [], []>} : vector<1x32xf32>, vector<32x256xf32>, vector<1x256xf32> -> vector<1x256xf32>
    %170 = arith.addf %166, %169 : vector<1x256xf32>
    %171 = vector.extract_strided_slice %153 {offsets = [3, 0], sizes = [1, 32], strides = [1, 1]} : vector<16x64xf32> to vector<1x32xf32>
    %172 = vector.extract_strided_slice %154 {offsets = [96, 0], sizes = [32, 256], strides = [1, 1]} : vector<512x256xf32> to vector<32x256xf32>
    %cst_60 = arith.constant dense<0.000000e+00> : vector<1x256xf32>
    %173 = tpu.matmul %171, %172, %cst_60 {dimension_numbers = #tpu.dot_dimension_numbers<[1], [0], [0], [1], [0, 0, 1, 1], [], []>} : vector<1x32xf32>, vector<32x256xf32>, vector<1x256xf32> -> vector<1x256xf32>
    %174 = arith.addf %170, %173 : vector<1x256xf32>
    %175 = vector.extract_strided_slice %153 {offsets = [4, 0], sizes = [1, 32], strides = [1, 1]} : vector<16x64xf32> to vector<1x32xf32>
    %176 = vector.extract_strided_slice %154 {offsets = [128, 0], sizes = [32, 256], strides = [1, 1]} : vector<512x256xf32> to vector<32x256xf32>
    %cst_61 = arith.constant dense<0.000000e+00> : vector<1x256xf32>
    %177 = tpu.matmul %175, %176, %cst_61 {dimension_numbers = #tpu.dot_dimension_numbers<[1], [0], [0], [1], [0, 0, 1, 1], [], []>} : vector<1x32xf32>, vector<32x256xf32>, vector<1x256xf32> -> vector<1x256xf32>
    %178 = arith.addf %174, %177 : vector<1x256xf32>
    %179 = vector.extract_strided_slice %153 {offsets = [5, 0], sizes = [1, 32], strides = [1, 1]} : vector<16x64xf32> to vector<1x32xf32>
    %180 = vector.extract_strided_slice %154 {offsets = [160, 0], sizes = [32, 256], strides = [1, 1]} : vector<512x256xf32> to vector<32x256xf32>
    %cst_62 = arith.constant dense<0.000000e+00> : vector<1x256xf32>
    %181 = tpu.matmul %179, %180, %cst_62 {dimension_numbers = #tpu.dot_dimension_numbers<[1], [0], [0], [1], [0, 0, 1, 1], [], []>} : vector<1x32xf32>, vector<32x256xf32>, vector<1x256xf32> -> vector<1x256xf32>
    %182 = arith.addf %178, %181 : vector<1x256xf32>
    %183 = vector.extract_strided_slice %153 {offsets = [6, 0], sizes = [1, 32], strides = [1, 1]} : vector<16x64xf32> to vector<1x32xf32>
    %184 = vector.extract_strided_slice %154 {offsets = [192, 0], sizes = [32, 256], strides = [1, 1]} : vector<512x256xf32> to vector<32x256xf32>
    %cst_63 = arith.constant dense<0.000000e+00> : vector<1x256xf32>
    %185 = tpu.matmul %183, %184, %cst_63 {dimension_numbers = #tpu.dot_dimension_numbers<[1], [0], [0], [1], [0, 0, 1, 1], [], []>} : vector<1x32xf32>, vector<32x256xf32>, vector<1x256xf32> -> vector<1x256xf32>
    %186 = arith.addf %182, %185 : vector<1x256xf32>
    %187 = vector.extract_strided_slice %153 {offsets = [7, 0], sizes = [1, 32], strides = [1, 1]} : vector<16x64xf32> to vector<1x32xf32>
    %188 = vector.extract_strided_slice %154 {offsets = [224, 0], sizes = [32, 256], strides = [1, 1]} : vector<512x256xf32> to vector<32x256xf32>
    %cst_64 = arith.constant dense<0.000000e+00> : vector<1x256xf32>
    %189 = tpu.matmul %187, %188, %cst_64 {dimension_numbers = #tpu.dot_dimension_numbers<[1], [0], [0], [1], [0, 0, 1, 1], [], []>} : vector<1x32xf32>, vector<32x256xf32>, vector<1x256xf32> -> vector<1x256xf32>
    %190 = arith.addf %186, %189 : vector<1x256xf32>
    %191 = vector.extract_strided_slice %153 {offsets = [8, 0], sizes = [1, 32], strides = [1, 1]} : vector<16x64xf32> to vector<1x32xf32>
    %192 = vector.extract_strided_slice %154 {offsets = [256, 0], sizes = [32, 256], strides = [1, 1]} : vector<512x256xf32> to vector<32x256xf32>
    %cst_65 = arith.constant dense<0.000000e+00> : vector<1x256xf32>
    %193 = tpu.matmul %191, %192, %cst_65 {dimension_numbers = #tpu.dot_dimension_numbers<[1], [0], [0], [1], [0, 0, 1, 1], [], []>} : vector<1x32xf32>, vector<32x256xf32>, vector<1x256xf32> -> vector<1x256xf32>
    %194 = arith.addf %190, %193 : vector<1x256xf32>
    %195 = vector.extract_strided_slice %153 {offsets = [9, 0], sizes = [1, 32], strides = [1, 1]} : vector<16x64xf32> to vector<1x32xf32>
    %196 = vector.extract_strided_slice %154 {offsets = [288, 0], sizes = [32, 256], strides = [1, 1]} : vector<512x256xf32> to vector<32x256xf32>
    %cst_66 = arith.constant dense<0.000000e+00> : vector<1x256xf32>
    %197 = tpu.matmul %195, %196, %cst_66 {dimension_numbers = #tpu.dot_dimension_numbers<[1], [0], [0], [1], [0, 0, 1, 1], [], []>} : vector<1x32xf32>, vector<32x256xf32>, vector<1x256xf32> -> vector<1x256xf32>
    %198 = arith.addf %194, %197 : vector<1x256xf32>
    %199 = vector.extract_strided_slice %153 {offsets = [10, 0], sizes = [1, 32], strides = [1, 1]} : vector<16x64xf32> to vector<1x32xf32>
    %200 = vector.extract_strided_slice %154 {offsets = [320, 0], sizes = [32, 256], strides = [1, 1]} : vector<512x256xf32> to vector<32x256xf32>
    %cst_67 = arith.constant dense<0.000000e+00> : vector<1x256xf32>
    %201 = tpu.matmul %199, %200, %cst_67 {dimension_numbers = #tpu.dot_dimension_numbers<[1], [0], [0], [1], [0, 0, 1, 1], [], []>} : vector<1x32xf32>, vector<32x256xf32>, vector<1x256xf32> -> vector<1x256xf32>
    %202 = arith.addf %198, %201 : vector<1x256xf32>
    %203 = vector.extract_strided_slice %153 {offsets = [11, 0], sizes = [1, 32], strides = [1, 1]} : vector<16x64xf32> to vector<1x32xf32>
    %204 = vector.extract_strided_slice %154 {offsets = [352, 0], sizes = [32, 256], strides = [1, 1]} : vector<512x256xf32> to vector<32x256xf32>
    %cst_68 = arith.constant dense<0.000000e+00> : vector<1x256xf32>
    %205 = tpu.matmul %203, %204, %cst_68 {dimension_numbers = #tpu.dot_dimension_numbers<[1], [0], [0], [1], [0, 0, 1, 1], [], []>} : vector<1x32xf32>, vector<32x256xf32>, vector<1x256xf32> -> vector<1x256xf32>
    %206 = arith.addf %202, %205 : vector<1x256xf32>
    %207 = vector.extract_strided_slice %153 {offsets = [12, 0], sizes = [1, 32], strides = [1, 1]} : vector<16x64xf32> to vector<1x32xf32>
    %208 = vector.extract_strided_slice %154 {offsets = [384, 0], sizes = [32, 256], strides = [1, 1]} : vector<512x256xf32> to vector<32x256xf32>
    %cst_69 = arith.constant dense<0.000000e+00> : vector<1x256xf32>
    %209 = tpu.matmul %207, %208, %cst_69 {dimension_numbers = #tpu.dot_dimension_numbers<[1], [0], [0], [1], [0, 0, 1, 1], [], []>} : vector<1x32xf32>, vector<32x256xf32>, vector<1x256xf32> -> vector<1x256xf32>
    %210 = arith.addf %206, %209 : vector<1x256xf32>
    %211 = vector.extract_strided_slice %153 {offsets = [13, 0], sizes = [1, 32], strides = [1, 1]} : vector<16x64xf32> to vector<1x32xf32>
    %212 = vector.extract_strided_slice %154 {offsets = [416, 0], sizes = [32, 256], strides = [1, 1]} : vector<512x256xf32> to vector<32x256xf32>
    %cst_70 = arith.constant dense<0.000000e+00> : vector<1x256xf32>
    %213 = tpu.matmul %211, %212, %cst_70 {dimension_numbers = #tpu.dot_dimension_numbers<[1], [0], [0], [1], [0, 0, 1, 1], [], []>} : vector<1x32xf32>, vector<32x256xf32>, vector<1x256xf32> -> vector<1x256xf32>
    %214 = arith.addf %210, %213 : vector<1x256xf32>
    %215 = vector.extract_strided_slice %153 {offsets = [14, 0], sizes = [1, 32], strides = [1, 1]} : vector<16x64xf32> to vector<1x32xf32>
    %216 = vector.extract_strided_slice %154 {offsets = [448, 0], sizes = [32, 256], strides = [1, 1]} : vector<512x256xf32> to vector<32x256xf32>
    %cst_71 = arith.constant dense<0.000000e+00> : vector<1x256xf32>
    %217 = tpu.matmul %215, %216, %cst_71 {dimension_numbers = #tpu.dot_dimension_numbers<[1], [0], [0], [1], [0, 0, 1, 1], [], []>} : vector<1x32xf32>, vector<32x256xf32>, vector<1x256xf32> -> vector<1x256xf32>
    %218 = arith.addf %214, %217 : vector<1x256xf32>
    %219 = vector.extract_strided_slice %153 {offsets = [15, 0], sizes = [1, 32], strides = [1, 1]} : vector<16x64xf32> to vector<1x32xf32>
    %220 = vector.extract_strided_slice %154 {offsets = [480, 0], sizes = [32, 256], strides = [1, 1]} : vector<512x256xf32> to vector<32x256xf32>
    %cst_72 = arith.constant dense<0.000000e+00> : vector<1x256xf32>
    %221 = tpu.matmul %219, %220, %cst_72 {dimension_numbers = #tpu.dot_dimension_numbers<[1], [0], [0], [1], [0, 0, 1, 1], [], []>} : vector<1x32xf32>, vector<32x256xf32>, vector<1x256xf32> -> vector<1x256xf32>
    %222 = arith.addf %218, %221 : vector<1x256xf32>
    %223 = arith.addf %222, %157 : vector<1x256xf32>
    %cst_73 = arith.constant 0.000000e+00 : f32
    %224 = vector.broadcast %cst_73 : f32 to vector<1x256xf32>
    %225 = arith.maximumf %223, %224 : vector<1x256xf32>
    %cst_74 = arith.constant dense<0.000000e+00> : vector<1x128xf32>
    %226 = tpu.matmul %225, %155, %cst_74 {dimension_numbers = #tpu.dot_dimension_numbers<[1], [0], [0], [1], [0, 0, 1, 1], [], []>} : vector<1x256xf32>, vector<256x128xf32>, vector<1x128xf32> -> vector<1x128xf32>
    %227 = arith.addf %226, %158 : vector<1x128xf32>
    %cst_75 = arith.constant 0.000000e+00 : f32
    %228 = vector.broadcast %cst_75 : f32 to vector<1x128xf32>
    %229 = arith.maximumf %227, %228 : vector<1x128xf32>
    %cst_76 = arith.constant dense<0.000000e+00> : vector<1x128xf32>
    %230 = tpu.matmul %229, %156, %cst_76 {dimension_numbers = #tpu.dot_dimension_numbers<[1], [0], [0], [1], [0, 0, 1, 1], [], []>} : vector<1x128xf32>, vector<128x128xf32>, vector<1x128xf32> -> vector<1x128xf32>
    %231 = arith.addf %230, %159 : vector<1x128xf32>
    %c0_77 = arith.constant 0 : index
    %c0_78 = arith.constant 0 : index
    %232 = vector.load %arg12[%c0_77, %c0_78] : memref<2x128xf32, #tpu.memory_space<vmem>>, vector<1x128xf32>
    tpu.vector_store %arg12[%c0_77, %c0_78], %231 {strides = array<i32>} : memref<2x128xf32, #tpu.memory_space<vmem>>, vector<1x128xf32>,
    %233 = vector.extract_strided_slice %153 {offsets = [0, 32], sizes = [1, 32], strides = [1, 1]} : vector<16x64xf32> to vector<1x32xf32>
    %234 = vector.extract_strided_slice %154 {offsets = [0, 0], sizes = [32, 256], strides = [1, 1]} : vector<512x256xf32> to vector<32x256xf32>
    %cst_79 = arith.constant dense<0.000000e+00> : vector<1x256xf32>
    %235 = tpu.matmul %233, %234, %cst_79 {dimension_numbers = #tpu.dot_dimension_numbers<[1], [0], [0], [1], [0, 0, 1, 1], [], []>} : vector<1x32xf32>, vector<32x256xf32>, vector<1x256xf32> -> vector<1x256xf32>
    %236 = vector.extract_strided_slice %153 {offsets = [1, 32], sizes = [1, 32], strides = [1, 1]} : vector<16x64xf32> to vector<1x32xf32>
    %237 = vector.extract_strided_slice %154 {offsets = [32, 0], sizes = [32, 256], strides = [1, 1]} : vector<512x256xf32> to vector<32x256xf32>
    %cst_80 = arith.constant dense<0.000000e+00> : vector<1x256xf32>
    %238 = tpu.matmul %236, %237, %cst_80 {dimension_numbers = #tpu.dot_dimension_numbers<[1], [0], [0], [1], [0, 0, 1, 1], [], []>} : vector<1x32xf32>, vector<32x256xf32>, vector<1x256xf32> -> vector<1x256xf32>
    %239 = arith.addf %235, %238 : vector<1x256xf32>
    %240 = vector.extract_strided_slice %153 {offsets = [2, 32], sizes = [1, 32], strides = [1, 1]} : vector<16x64xf32> to vector<1x32xf32>
    %241 = vector.extract_strided_slice %154 {offsets = [64, 0], sizes = [32, 256], strides = [1, 1]} : vector<512x256xf32> to vector<32x256xf32>
    %cst_81 = arith.constant dense<0.000000e+00> : vector<1x256xf32>
    %242 = tpu.matmul %240, %241, %cst_81 {dimension_numbers = #tpu.dot_dimension_numbers<[1], [0], [0], [1], [0, 0, 1, 1], [], []>} : vector<1x32xf32>, vector<32x256xf32>, vector<1x256xf32> -> vector<1x256xf32>
    %243 = arith.addf %239, %242 : vector<1x256xf32>
    %244 = vector.extract_strided_slice %153 {offsets = [3, 32], sizes = [1, 32], strides = [1, 1]} : vector<16x64xf32> to vector<1x32xf32>
    %245 = vector.extract_strided_slice %154 {offsets = [96, 0], sizes = [32, 256], strides = [1, 1]} : vector<512x256xf32> to vector<32x256xf32>
    %cst_82 = arith.constant dense<0.000000e+00> : vector<1x256xf32>
    %246 = tpu.matmul %244, %245, %cst_82 {dimension_numbers = #tpu.dot_dimension_numbers<[1], [0], [0], [1], [0, 0, 1, 1], [], []>} : vector<1x32xf32>, vector<32x256xf32>, vector<1x256xf32> -> vector<1x256xf32>
    %247 = arith.addf %243, %246 : vector<1x256xf32>
    %248 = vector.extract_strided_slice %153 {offsets = [4, 32], sizes = [1, 32], strides = [1, 1]} : vector<16x64xf32> to vector<1x32xf32>
    %249 = vector.extract_strided_slice %154 {offsets = [128, 0], sizes = [32, 256], strides = [1, 1]} : vector<512x256xf32> to vector<32x256xf32>
    %cst_83 = arith.constant dense<0.000000e+00> : vector<1x256xf32>
    %250 = tpu.matmul %248, %249, %cst_83 {dimension_numbers = #tpu.dot_dimension_numbers<[1], [0], [0], [1], [0, 0, 1, 1], [], []>} : vector<1x32xf32>, vector<32x256xf32>, vector<1x256xf32> -> vector<1x256xf32>
    %251 = arith.addf %247, %250 : vector<1x256xf32>
    %252 = vector.extract_strided_slice %153 {offsets = [5, 32], sizes = [1, 32], strides = [1, 1]} : vector<16x64xf32> to vector<1x32xf32>
    %253 = vector.extract_strided_slice %154 {offsets = [160, 0], sizes = [32, 256], strides = [1, 1]} : vector<512x256xf32> to vector<32x256xf32>
    %cst_84 = arith.constant dense<0.000000e+00> : vector<1x256xf32>
    %254 = tpu.matmul %252, %253, %cst_84 {dimension_numbers = #tpu.dot_dimension_numbers<[1], [0], [0], [1], [0, 0, 1, 1], [], []>} : vector<1x32xf32>, vector<32x256xf32>, vector<1x256xf32> -> vector<1x256xf32>
    %255 = arith.addf %251, %254 : vector<1x256xf32>
    %256 = vector.extract_strided_slice %153 {offsets = [6, 32], sizes = [1, 32], strides = [1, 1]} : vector<16x64xf32> to vector<1x32xf32>
    %257 = vector.extract_strided_slice %154 {offsets = [192, 0], sizes = [32, 256], strides = [1, 1]} : vector<512x256xf32> to vector<32x256xf32>
    %cst_85 = arith.constant dense<0.000000e+00> : vector<1x256xf32>
    %258 = tpu.matmul %256, %257, %cst_85 {dimension_numbers = #tpu.dot_dimension_numbers<[1], [0], [0], [1], [0, 0, 1, 1], [], []>} : vector<1x32xf32>, vector<32x256xf32>, vector<1x256xf32> -> vector<1x256xf32>
    %259 = arith.addf %255, %258 : vector<1x256xf32>
    %260 = vector.extract_strided_slice %153 {offsets = [7, 32], sizes = [1, 32], strides = [1, 1]} : vector<16x64xf32> to vector<1x32xf32>
    %261 = vector.extract_strided_slice %154 {offsets = [224, 0], sizes = [32, 256], strides = [1, 1]} : vector<512x256xf32> to vector<32x256xf32>
    %cst_86 = arith.constant dense<0.000000e+00> : vector<1x256xf32>
    %262 = tpu.matmul %260, %261, %cst_86 {dimension_numbers = #tpu.dot_dimension_numbers<[1], [0], [0], [1], [0, 0, 1, 1], [], []>} : vector<1x32xf32>, vector<32x256xf32>, vector<1x256xf32> -> vector<1x256xf32>
    %263 = arith.addf %259, %262 : vector<1x256xf32>
    %264 = vector.extract_strided_slice %153 {offsets = [8, 32], sizes = [1, 32], strides = [1, 1]} : vector<16x64xf32> to vector<1x32xf32>
    %265 = vector.extract_strided_slice %154 {offsets = [256, 0], sizes = [32, 256], strides = [1, 1]} : vector<512x256xf32> to vector<32x256xf32>
    %cst_87 = arith.constant dense<0.000000e+00> : vector<1x256xf32>
    %266 = tpu.matmul %264, %265, %cst_87 {dimension_numbers = #tpu.dot_dimension_numbers<[1], [0], [0], [1], [0, 0, 1, 1], [], []>} : vector<1x32xf32>, vector<32x256xf32>, vector<1x256xf32> -> vector<1x256xf32>
    %267 = arith.addf %263, %266 : vector<1x256xf32>
    %268 = vector.extract_strided_slice %153 {offsets = [9, 32], sizes = [1, 32], strides = [1, 1]} : vector<16x64xf32> to vector<1x32xf32>
    %269 = vector.extract_strided_slice %154 {offsets = [288, 0], sizes = [32, 256], strides = [1, 1]} : vector<512x256xf32> to vector<32x256xf32>
    %cst_88 = arith.constant dense<0.000000e+00> : vector<1x256xf32>
    %270 = tpu.matmul %268, %269, %cst_88 {dimension_numbers = #tpu.dot_dimension_numbers<[1], [0], [0], [1], [0, 0, 1, 1], [], []>} : vector<1x32xf32>, vector<32x256xf32>, vector<1x256xf32> -> vector<1x256xf32>
    %271 = arith.addf %267, %270 : vector<1x256xf32>
    %272 = vector.extract_strided_slice %153 {offsets = [10, 32], sizes = [1, 32], strides = [1, 1]} : vector<16x64xf32> to vector<1x32xf32>
    %273 = vector.extract_strided_slice %154 {offsets = [320, 0], sizes = [32, 256], strides = [1, 1]} : vector<512x256xf32> to vector<32x256xf32>
    %cst_89 = arith.constant dense<0.000000e+00> : vector<1x256xf32>
    %274 = tpu.matmul %272, %273, %cst_89 {dimension_numbers = #tpu.dot_dimension_numbers<[1], [0], [0], [1], [0, 0, 1, 1], [], []>} : vector<1x32xf32>, vector<32x256xf32>, vector<1x256xf32> -> vector<1x256xf32>
    %275 = arith.addf %271, %274 : vector<1x256xf32>
    %276 = vector.extract_strided_slice %153 {offsets = [11, 32], sizes = [1, 32], strides = [1, 1]} : vector<16x64xf32> to vector<1x32xf32>
    %277 = vector.extract_strided_slice %154 {offsets = [352, 0], sizes = [32, 256], strides = [1, 1]} : vector<512x256xf32> to vector<32x256xf32>
    %cst_90 = arith.constant dense<0.000000e+00> : vector<1x256xf32>
    %278 = tpu.matmul %276, %277, %cst_90 {dimension_numbers = #tpu.dot_dimension_numbers<[1], [0], [0], [1], [0, 0, 1, 1], [], []>} : vector<1x32xf32>, vector<32x256xf32>, vector<1x256xf32> -> vector<1x256xf32>
    %279 = arith.addf %275, %278 : vector<1x256xf32>
    %280 = vector.extract_strided_slice %153 {offsets = [12, 32], sizes = [1, 32], strides = [1, 1]} : vector<16x64xf32> to vector<1x32xf32>
    %281 = vector.extract_strided_slice %154 {offsets = [384, 0], sizes = [32, 256], strides = [1, 1]} : vector<512x256xf32> to vector<32x256xf32>
    %cst_91 = arith.constant dense<0.000000e+00> : vector<1x256xf32>
    %282 = tpu.matmul %280, %281, %cst_91 {dimension_numbers = #tpu.dot_dimension_numbers<[1], [0], [0], [1], [0, 0, 1, 1], [], []>} : vector<1x32xf32>, vector<32x256xf32>, vector<1x256xf32> -> vector<1x256xf32>
    %283 = arith.addf %279, %282 : vector<1x256xf32>
    %284 = vector.extract_strided_slice %153 {offsets = [13, 32], sizes = [1, 32], strides = [1, 1]} : vector<16x64xf32> to vector<1x32xf32>
    %285 = vector.extract_strided_slice %154 {offsets = [416, 0], sizes = [32, 256], strides = [1, 1]} : vector<512x256xf32> to vector<32x256xf32>
    %cst_92 = arith.constant dense<0.000000e+00> : vector<1x256xf32>
    %286 = tpu.matmul %284, %285, %cst_92 {dimension_numbers = #tpu.dot_dimension_numbers<[1], [0], [0], [1], [0, 0, 1, 1], [], []>} : vector<1x32xf32>, vector<32x256xf32>, vector<1x256xf32> -> vector<1x256xf32>
    %287 = arith.addf %283, %286 : vector<1x256xf32>
    %288 = vector.extract_strided_slice %153 {offsets = [14, 32], sizes = [1, 32], strides = [1, 1]} : vector<16x64xf32> to vector<1x32xf32>
    %289 = vector.extract_strided_slice %154 {offsets = [448, 0], sizes = [32, 256], strides = [1, 1]} : vector<512x256xf32> to vector<32x256xf32>
    %cst_93 = arith.constant dense<0.000000e+00> : vector<1x256xf32>
    %290 = tpu.matmul %288, %289, %cst_93 {dimension_numbers = #tpu.dot_dimension_numbers<[1], [0], [0], [1], [0, 0, 1, 1], [], []>} : vector<1x32xf32>, vector<32x256xf32>, vector<1x256xf32> -> vector<1x256xf32>
    %291 = arith.addf %287, %290 : vector<1x256xf32>
    %292 = vector.extract_strided_slice %153 {offsets = [15, 32], sizes = [1, 32], strides = [1, 1]} : vector<16x64xf32> to vector<1x32xf32>
    %293 = vector.extract_strided_slice %154 {offsets = [480, 0], sizes = [32, 256], strides = [1, 1]} : vector<512x256xf32> to vector<32x256xf32>
    %cst_94 = arith.constant dense<0.000000e+00> : vector<1x256xf32>
    %294 = tpu.matmul %292, %293, %cst_94 {dimension_numbers = #tpu.dot_dimension_numbers<[1], [0], [0], [1], [0, 0, 1, 1], [], []>} : vector<1x32xf32>, vector<32x256xf32>, vector<1x256xf32> -> vector<1x256xf32>
    %295 = arith.addf %291, %294 : vector<1x256xf32>
    %296 = arith.addf %295, %157 : vector<1x256xf32>
    %cst_95 = arith.constant 0.000000e+00 : f32
    %297 = vector.broadcast %cst_95 : f32 to vector<1x256xf32>
    %298 = arith.maximumf %296, %297 : vector<1x256xf32>
    %cst_96 = arith.constant dense<0.000000e+00> : vector<1x128xf32>
    %299 = tpu.matmul %298, %155, %cst_96 {dimension_numbers = #tpu.dot_dimension_numbers<[1], [0], [0], [1], [0, 0, 1, 1], [], []>} : vector<1x256xf32>, vector<256x128xf32>, vector<1x128xf32> -> vector<1x128xf32>
    %300 = arith.addf %299, %158 : vector<1x128xf32>
    %cst_97 = arith.constant 0.000000e+00 : f32
    %301 = vector.broadcast %cst_97 : f32 to vector<1x128xf32>
    %302 = arith.maximumf %300, %301 : vector<1x128xf32>
    %cst_98 = arith.constant dense<0.000000e+00> : vector<1x128xf32>
    %303 = tpu.matmul %302, %156, %cst_98 {dimension_numbers = #tpu.dot_dimension_numbers<[1], [0], [0], [1], [0, 0, 1, 1], [], []>} : vector<1x128xf32>, vector<128x128xf32>, vector<1x128xf32> -> vector<1x128xf32>
    %304 = arith.addf %303, %159 : vector<1x128xf32>
    %c1_99 = arith.constant 1 : index
    %c0_100 = arith.constant 0 : index
    %305 = vector.load %arg12[%c1_99, %c0_100] : memref<2x128xf32, #tpu.memory_space<vmem>>, vector<1x128xf32>
    tpu.vector_store %arg12[%c1_99, %c0_100], %304 {strides = array<i32>} : memref<2x128xf32, #tpu.memory_space<vmem>>, vector<1x128xf32>,
    return
  }
  func.func @transform_0(%arg0: i32) -> (i32, i32, i32) {
    %c0_i32 = arith.constant 0 : i32
    %c0_i32_0 = arith.constant 0 : i32
    %c0_i32_1 = arith.constant 0 : i32
    %c0_i32_2 = arith.constant 0 : i32
    return %c0_i32, %c0_i32_0, %c0_i32_1 : i32, i32, i32
  }
  func.func @transform_1(%arg0: i32) -> (i32, i32) {
    %c0_i32 = arith.constant 0 : i32
    %c0_i32_0 = arith.constant 0 : i32
    %c0_i32_1 = arith.constant 0 : i32
    return %c0_i32, %c0_i32_0 : i32, i32
  }
  func.func @transform_2(%arg0: i32) -> (i32, i32) {
    %c0_i32 = arith.constant 0 : i32
    %c0_i32_0 = arith.constant 0 : i32
    %c0_i32_1 = arith.constant 0 : i32
    return %c0_i32, %c0_i32_0 : i32, i32
  }
  func.func @transform_3(%arg0: i32) -> (i32, i32) {
    %c0_i32 = arith.constant 0 : i32
    %c0_i32_0 = arith.constant 0 : i32
    %c0_i32_1 = arith.constant 0 : i32
    return %c0_i32, %c0_i32_0 : i32, i32
  }
  func.func @transform_4(%arg0: i32) -> (i32, i32) {
    %c0_i32 = arith.constant 0 : i32
    %c0_i32_0 = arith.constant 0 : i32
    %c0_i32_1 = arith.constant 0 : i32
    return %c0_i32, %c0_i32_0 : i32, i32
  }
  func.func @transform_5(%arg0: i32) -> (i32, i32) {
    %c0_i32 = arith.constant 0 : i32
    %c0_i32_0 = arith.constant 0 : i32
    %c0_i32_1 = arith.constant 0 : i32
    return %c0_i32, %c0_i32_0 : i32, i32
  }
  func.func @transform_6(%arg0: i32) -> (i32, i32) {
    %c0_i32 = arith.constant 0 : i32
    %c0_i32_0 = arith.constant 0 : i32
    %c0_i32_1 = arith.constant 0 : i32
    return %c0_i32, %c0_i32_0 : i32, i32
  }
  func.func @transform_7(%arg0: i32) -> (i32, i32) {
    %c0_i32 = arith.constant 0 : i32
    %c0_i32_0 = arith.constant 0 : i32
    %c0_i32_1 = arith.constant 0 : i32
    return %c0_i32, %c0_i32_0 : i32, i32
  }
  func.func @transform_8(%arg0: i32) -> (i32, i32) {
    %c0_i32 = arith.constant 0 : i32
    %c0_i32_0 = arith.constant 0 : i32
    %c0_i32_1 = arith.constant 0 : i32
    return %c0_i32, %c0_i32_0 : i32, i32
  }
  func.func @transform_9(%arg0: i32) -> (i32, i32) {
    %c0_i32 = arith.constant 0 : i32
    %c0_i32_0 = arith.constant 0 : i32
    %c0_i32_1 = arith.constant 0 : i32
    return %c0_i32, %c0_i32_0 : i32, i32
  }
  func.func @transform_10(%arg0: i32) -> (i32, i32) {
    %c0_i32 = arith.constant 0 : i32
    %c0_i32_0 = arith.constant 0 : i32
    %c0_i32_1 = arith.constant 0 : i32
    return %c0_i32, %c0_i32_0 : i32, i32
  }
  func.func @transform_11(%arg0: i32) -> (i32, i32) {
    %c0_i32 = arith.constant 0 : i32
    %c0_i32_0 = arith.constant 0 : i32
    %c0_i32_1 = arith.constant 0 : i32
    return %c0_i32, %c0_i32_0 : i32, i32
  }
}

</mosaic_0001>

<llo_original>
// kernel: nn2d_forward.1
$region0: #{nn2d_forward.1}
  #allocation0 [shape = 'u32[]', space=smem, size = 0x4, offset = 0x4, fixed_abs, tag = 'smem constant byte address 0x4 - core index']
  #allocation1 [shape = 'u32[144,128]{1,0:T(1,128)}', space=vmem, size = 0x12000, scoped, tag = 'internal scratch']
  %s0 = inlined_call_operand.vmem [shape: f32[9,9,1600], index: 0, kind: input, shape index: {}]
  %s1 = inlined_call_operand.vmem [shape: f32[8,9], index: 1, kind: input, shape index: {}]
  %s2 = inlined_call_operand.vmem [shape: f32[8,1], index: 2, kind: input, shape index: {}]
  %s3 = inlined_call_operand.vmem [shape: f32[16,72], index: 3, kind: input, shape index: {}]
  %s4 = inlined_call_operand.vmem [shape: f32[16,1], index: 4, kind: input, shape index: {}]
  %s5 = inlined_call_operand.vmem [shape: f32[512,256], index: 5, kind: input, shape index: {}]
  %s6 = inlined_call_operand.vmem [shape: f32[1,256], index: 6, kind: input, shape index: {}]
  %s7 = inlined_call_operand.vmem [shape: f32[256,128], index: 7, kind: input, shape index: {}]
  %s8 = inlined_call_operand.vmem [shape: f32[1,128], index: 8, kind: input, shape index: {}]
  %s9 = inlined_call_operand.vmem [shape: f32[128,128], index: 9, kind: input, shape index: {}]
  %s10 = inlined_call_operand.vmem [shape: f32[1,128], index: 10, kind: input, shape index: {}]
  %s11 = inlined_call_operand.hbm [shape: f32[2,128], index: 11, kind: output, shape index: {}]
  %s12 = sld [smem:[#allocation0]]
  $region54: #{nn2d_forward.1} parent=0
    _
  %s14 = ssub.s32 1, %s12
  %s15 = scalar_select 0, %s14, %s12
  $region1: #{nn2d_forward.1} parent=0
    #allocation2 [shape = 'u8[1024]{0}', space=vmem, size = 0x400, scoped, tag = 'output window, operand 0, single buffered']
    #allocation3 [shape = 's32[1]{0}', space=sflag, size = 0x4, scoped, tag = 'scoped memory for nn2d_forward.1']
    %16 = vsyncpa [#allocation3], 0
    // Predicated region
    $region2: #{nn2d_forward.1} parent=1 // pred_check
      _
    $region3: #{nn2d_forward.1} parent=1 // pred_check_branch
      %18 = sbr.rel (0) target = $region5
    $region4: #{nn2d_forward.1} parent=1 // pred_region
      _
    $region5: #{nn2d_forward.1} parent=1 // pred_fallthru
      _
    // Predicated region
    $region6: #{nn2d_forward.1} parent=1 // pred_check
      _
    $region7: #{nn2d_forward.1} parent=1 // pred_check_branch
      %20 = sbr.rel (0) target = $region9
    $region8: #{nn2d_forward.1} parent=1 // pred_region
      _
    $region9: #{nn2d_forward.1} parent=1 // pred_fallthru
      _
    // Predicated region
    $region10: #{nn2d_forward.1} parent=1 // pred_check
      _
    $region11: #{nn2d_forward.1} parent=1 // pred_check_branch
      %22 = sbr.rel (0) target = $region13
    $region12: #{nn2d_forward.1} parent=1 // pred_region
      _
    $region13: #{nn2d_forward.1} parent=1 // pred_fallthru
      _
    // Predicated region
    $region14: #{nn2d_forward.1} parent=1 // pred_check
      _
    $region15: #{nn2d_forward.1} parent=1 // pred_check_branch
      %24 = sbr.rel (0) target = $region17
    $region16: #{nn2d_forward.1} parent=1 // pred_region
      _
    $region17: #{nn2d_forward.1} parent=1 // pred_fallthru
      _
    // Predicated region
    $region18: #{nn2d_forward.1} parent=1 // pred_check
      _
    $region19: #{nn2d_forward.1} parent=1 // pred_check_branch
      %26 = sbr.rel (0) target = $region21
    $region20: #{nn2d_forward.1} parent=1 // pred_region
      _
    $region21: #{nn2d_forward.1} parent=1 // pred_fallthru
      _
    // Predicated region
    $region22: #{nn2d_forward.1} parent=1 // pred_check
      _
    $region23: #{nn2d_forward.1} parent=1 // pred_check_branch
      %28 = sbr.rel (0) target = $region25
    $region24: #{nn2d_forward.1} parent=1 // pred_region
      _
    $region25: #{nn2d_forward.1} parent=1 // pred_fallthru
      _
    // Predicated region
    $region26: #{nn2d_forward.1} parent=1 // pred_check
      _
    $region27: #{nn2d_forward.1} parent=1 // pred_check_branch
      %30 = sbr.rel (0) target = $region29
    $region28: #{nn2d_forward.1} parent=1 // pred_region
      _
    $region29: #{nn2d_forward.1} parent=1 // pred_fallthru
      _
    // Predicated region
    $region30: #{nn2d_forward.1} parent=1 // pred_check
      _
    $region31: #{nn2d_forward.1} parent=1 // pred_check_branch
      %32 = sbr.rel (0) target = $region33
    $region32: #{nn2d_forward.1} parent=1 // pred_region
      _
    $region33: #{nn2d_forward.1} parent=1 // pred_fallthru
      _
    // Predicated region
    $region34: #{nn2d_forward.1} parent=1 // pred_check
      _
    $region35: #{nn2d_forward.1} parent=1 // pred_check_branch
      %34 = sbr.rel (0) target = $region37
    $region36: #{nn2d_forward.1} parent=1 // pred_region
      _
    $region37: #{nn2d_forward.1} parent=1 // pred_fallthru
      _
    // Predicated region
    $region38: #{nn2d_forward.1} parent=1 // pred_check
      _
    $region39: #{nn2d_forward.1} parent=1 // pred_check_branch
      %36 = sbr.rel (0) target = $region41
    $region40: #{nn2d_forward.1} parent=1 // pred_region
      _
    $region41: #{nn2d_forward.1} parent=1 // pred_fallthru
      _
    // Predicated region
    $region42: #{nn2d_forward.1} parent=1 // pred_check
      _
    $region43: #{nn2d_forward.1} parent=1 // pred_check_branch
      %38 = sbr.rel (0) target = $region45
    $region44: #{nn2d_forward.1} parent=1 // pred_region
      _
    $region45: #{nn2d_forward.1} parent=1 // pred_fallthru
      _
    %v39 = vld [vmem:[%s1] sm:$0xff]
    %v40 = vld [vmem:[%s0] sm:$0xff]
    %v41 = vld [vmem:[%s0 + $0x8] sm:$0xff]
    %v42 = vld [vmem:[%s0 + $0x10] sm:$0xff]
    %v43 = vld [vmem:[%s0 + $0x18] sm:$0xff]
    %v44 = vld [vmem:[%s0 + $0x20] sm:$0xff]
    %v45 = vld [vmem:[%s0 + $0x28] sm:$0xff]
    %v46 = vld [vmem:[%s0 + $0x30] sm:$0xff]
    %v47 = vld [vmem:[%s0 + $0x38] sm:$0xff]
    %v48 = vld [vmem:[%s0 + $0x40] sm:$0xff]
    %v49 = vld [vmem:[%s0 + $0x48] sm:$0xff]
    %v50 = vld [vmem:[%s0 + $0x50] sm:$0xff]
    %v51 = vld [vmem:[%s0 + $0x58] sm:$0xff]
    %v52 = vld [vmem:[%s0 + $0x60] sm:$0xff]
    %v53 = vld [vmem:[%s0 + $0x68] sm:$0x1]
    %v54 = vld [vmem:[%s0 + $0x70] sm:$0x1]
    %v55 = vld [vmem:[%s0 + $0x78] sm:$0x1]
    %v56 = vld [vmem:[%s0 + $0x80] sm:$0x1]
    %v57 = vld [vmem:[%s0 + $0x88] sm:$0x1]
    %v58 = vld [vmem:[%s0 + $0x90] sm:$0x1]
    %v59 = vld [vmem:[%s0 + $0x98] sm:$0x1]
    %v60 = vld [vmem:[%s0 + $0xa0] sm:$0x1]
    %v61 = vld [vmem:[%s0 + $0xa8] sm:$0x1]
    %v62 = vld [vmem:[%s0 + $0xb0] sm:$0x1]
    %v63 = vld [vmem:[%s0 + $0xb8] sm:$0x1]
    %v64 = vld [vmem:[%s0 + $0xc0] sm:$0x1]
    %v65 = vld [vmem:[%s0 + $0xc8] sm:$0x1]
    %vm66 = vcmask 72704
    %v68 = vsel %vm66, %v39, 0
    %vm70 = vcmask 1040384
    %v72 = vsel %vm70, %v53, 0
    %v75 = vsel %vm70, %v54, 0
    %v78 = vsel %vm70, %v55, 0
    %v81 = vsel %vm70, %v56, 0
    %v84 = vsel %vm70, %v57, 0
    %v87 = vsel %vm70, %v58, 0
    %v90 = vsel %vm70, %v59, 0
    %v93 = vsel %vm70, %v60, 0
    %v96 = vsel %vm70, %v61, 0
    %v99 = vsel %vm70, %v62, 0
    %v102 = vsel %vm70, %v63, 0
    %v105 = vsel %vm70, %v64, 0
    %v108 = vsel %vm70, %v65, 0
    %110 = vmatprep.subr.mxu0 0.0
    %111 = vmatpush1.msra.mxu0 0.0
    %112 = vmatprep.subr.mxu0 0.0
    %113 = vmatpush1.msra.mxu0 0.0
    %114 = vmatprep.subr.mxu0 0.0
    %115 = vmatpush1.msra.mxu0 0.0
    %116 = vmatprep.subr.mxu0 0.0
    %117 = vmatpush1.msra.mxu0 0.0
    %118 = vmatprep.subr.mxu0 0.0
    %119 = vmatpush1.msra.mxu0 0.0
    %120 = vmatprep.subr.mxu0 0.0
    %121 = vmatpush1.msra.mxu0 0.0
    %122 = vmatprep.subr.mxu0 0.0
    %123 = vmatpush1.msra.mxu0 0.0
    %124 = vmatprep.subr.mxu0 0.0
    %125 = vmatpush1.msra.mxu0 0.0
    %126 = vmatprep.subr.mxu0 0.0
    %127 = vmatpush1.msra.mxu0 0.0
    %128 = vmatprep.subr.mxu0 0.0
    %129 = vmatpush1.msra.mxu0 0.0
    %130 = vmatprep.subr.mxu0 0.0
    %131 = vmatpush1.msra.mxu0 0.0
    %132 = vmatprep.subr.mxu0 0.0
    %133 = vmatpush1.msra.mxu0 0.0
    %134 = vmatprep.subr.mxu0 0.0
    %135 = vmatpush1.msra.mxu0 0.0
    %136 = vmatprep.subr.mxu0 0.0
    %137 = vmatpush1.msra.mxu0 0.0
    %138 = vmatprep.subr.mxu0 %v75
    %139 = vmatpush1.msra.mxu0 %v72
    %140 = vmatprep.subr.mxu0 %v41
    %141 = vmatpush1.msra.mxu0 %v40
    %142 = vmatprep.subr.mxu0 0.0
    %143 = vmatpush2.msra.mxu0 0.0
    %144 = vmatprep.subr.mxu0 0.0
    %145 = vmatpush2.msra.mxu0 0.0
    %146 = vmatprep.subr.mxu0 0.0
    %147 = vmatpush2.msra.mxu0 0.0
    %148 = vmatprep.subr.mxu0 0.0
    %149 = vmatpush2.msra.mxu0 0.0
    %150 = vmatprep.subr.mxu0 0.0
    %151 = vmatpush2.msra.mxu0 0.0
    %152 = vmatprep.subr.mxu0 0.0
    %153 = vmatpush2.msra.mxu0 0.0
    %154 = vmatprep.subr.mxu0 0.0
    %155 = vmatpush2.msra.mxu0 0.0
    %156 = vmatprep.subr.mxu0 0.0
    %157 = vmatpush2.msra.mxu0 0.0
    %158 = vmatprep.subr.mxu0 0.0
    %159 = vmatpush2.msra.mxu0 0.0
    %160 = vmatprep.subr.mxu0 0.0
    %161 = vmatpush2.msra.mxu0 0.0
    %162 = vmatprep.subr.mxu0 0.0
    %163 = vmatpush2.msra.mxu0 0.0
    %164 = vmatprep.subr.mxu0 0.0
    %165 = vmatpush2.msra.mxu0 0.0
    %166 = vmatprep.subr.mxu0 0.0
    %167 = vmatpush2.msra.mxu0 0.0
    %168 = vmatprep.subr.mxu0 0.0
    %169 = vmatpush2.msra.mxu0 0.0
    %170 = vmatprep.subr.mxu0 0.0
    %171 = vmatpush2.msra.mxu0 0.0
    %172 = vmatprep.subr.mxu0 0.0
    %173 = vmatpush2.msra.mxu0 0.0
    %174 = vmatprep.mubr.f32.mxu0 0.0
    %175 = vmatmul.mubr.f32.gmra.mxu0 %v68
    %v176 = vpop.f32.mrf.mxu0
    %v177 = vadd.f32 0.0, %v176
    %v178 = vpop.f32.mrf.mxu0
    %v179 = vadd.f32 0.0, %v178
    %180 = vdwg.mxu0
    %181 = vmatprep.subr.mxu0 0.0
    %182 = vmatpush1.msra.mxu0 0.0
    %183 = vmatprep.subr.mxu0 0.0
    %184 = vmatpush1.msra.mxu0 0.0
    %185 = vmatprep.subr.mxu0 0.0
    %186 = vmatpush1.msra.mxu0 0.0
    %187 = vmatprep.subr.mxu0 0.0
    %188 = vmatpush1.msra.mxu0 0.0
    %189 = vmatprep.subr.mxu0 0.0
    %190 = vmatpush1.msra.mxu0 0.0
    %191 = vmatprep.subr.mxu0 0.0
    %192 = vmatpush1.msra.mxu0 0.0
    %193 = vmatprep.subr.mxu0 0.0
    %194 = vmatpush1.msra.mxu0 0.0
    %195 = vmatprep.subr.mxu0 0.0
    %196 = vmatpush1.msra.mxu0 0.0
    %197 = vmatprep.subr.mxu0 0.0
    %198 = vmatpush1.msra.mxu0 0.0
    %199 = vmatprep.subr.mxu0 0.0
    %200 = vmatpush1.msra.mxu0 0.0
    %201 = vmatprep.subr.mxu0 0.0
    %202 = vmatpush1.msra.mxu0 0.0
    %203 = vmatprep.subr.mxu0 0.0
    %204 = vmatpush1.msra.mxu0 0.0
    %205 = vmatprep.subr.mxu0 0.0
    %206 = vmatpush1.msra.mxu0 0.0
    %207 = vmatprep.subr.mxu0 0.0
    %208 = vmatpush1.msra.mxu0 0.0
    %209 = vmatprep.subr.mxu0 %v81
    %210 = vmatpush1.msra.mxu0 %v78
    %211 = vmatprep.subr.mxu0 %v43
    %212 = vmatpush1.msra.mxu0 %v42
    %213 = vmatprep.subr.mxu0 0.0
    %214 = vmatpush2.msra.mxu0 0.0
    %215 = vmatprep.subr.mxu0 0.0
    %216 = vmatpush2.msra.mxu0 0.0
    %217 = vmatprep.subr.mxu0 0.0
    %218 = vmatpush2.msra.mxu0 0.0
    %219 = vmatprep.subr.mxu0 0.0
    %220 = vmatpush2.msra.mxu0 0.0
    %221 = vmatprep.subr.mxu0 0.0
    %222 = vmatpush2.msra.mxu0 0.0
    %223 = vmatprep.subr.mxu0 0.0
    %224 = vmatpush2.msra.mxu0 0.0
    %225 = vmatprep.subr.mxu0 0.0
    %226 = vmatpush2.msra.mxu0 0.0
    %227 = vmatprep.subr.mxu0 0.0
    %228 = vmatpush2.msra.mxu0 0.0
    %229 = vmatprep.subr.mxu0 0.0
    %230 = vmatpush2.msra.mxu0 0.0
    %231 = vmatprep.subr.mxu0 0.0
    %232 = vmatpush2.msra.mxu0 0.0
    %233 = vmatprep.subr.mxu0 0.0
    %234 = vmatpush2.msra.mxu0 0.0
    %235 = vmatprep.subr.mxu0 0.0
    %236 = vmatpush2.msra.mxu0 0.0
    %237 = vmatprep.subr.mxu0 0.0
    %238 = vmatpush2.msra.mxu0 0.0
    %239 = vmatprep.subr.mxu0 0.0
    %240 = vmatpush2.msra.mxu0 0.0
    %241 = vmatprep.subr.mxu0 0.0
    %242 = vmatpush2.msra.mxu0 0.0
    %243 = vmatprep.subr.mxu0 0.0
    %244 = vmatpush2.msra.mxu0 0.0
    %245 = vmatprep.mubr.f32.mxu0 0.0
    %246 = vmatmul.mubr.f32.gmra.mxu0 %v68
    %v247 = vpop.f32.mrf.mxu0
    %v248 = vadd.f32 0.0, %v247
    %v249 = vpop.f32.mrf.mxu0
    %v250 = vadd.f32 0.0, %v249
    %251 = vdwg.mxu0
    %252 = vmatprep.subr.mxu0 0.0
    %253 = vmatpush1.msra.mxu0 0.0
    %254 = vmatprep.subr.mxu0 0.0
    %255 = vmatpush1.msra.mxu0 0.0
    %256 = vmatprep.subr.mxu0 0.0
    %257 = vmatpush1.msra.mxu0 0.0
    %258 = vmatprep.subr.mxu0 0.0
    %259 = vmatpush1.msra.mxu0 0.0
    %260 = vmatprep.subr.mxu0 0.0
    %261 = vmatpush1.msra.mxu0 0.0
    %262 = vmatprep.subr.mxu0 0.0
    %263 = vmatpush1.msra.mxu0 0.0
    %264 = vmatprep.subr.mxu0 0.0
    %265 = vmatpush1.msra.mxu0 0.0
    %266 = vmatprep.subr.mxu0 0.0
    %267 = vmatpush1.msra.mxu0 0.0
    %268 = vmatprep.subr.mxu0 0.0
    %269 = vmatpush1.msra.mxu0 0.0
    %270 = vmatprep.subr.mxu0 0.0
    %271 = vmatpush1.msra.mxu0 0.0
    %272 = vmatprep.subr.mxu0 0.0
    %273 = vmatpush1.msra.mxu0 0.0
    %274 = vmatprep.subr.mxu0 0.0
    %275 = vmatpush1.msra.mxu0 0.0
    %276 = vmatprep.subr.mxu0 0.0
    %277 = vmatpush1.msra.mxu0 0.0
    %278 = vmatprep.subr.mxu0 0.0
    %279 = vmatpush1.msra.mxu0 0.0
    %280 = vmatprep.subr.mxu0 %v87
    %281 = vmatpush1.msra.mxu0 %v84
    %282 = vmatprep.subr.mxu0 %v45
    %283 = vmatpush1.msra.mxu0 %v44
    %284 = vmatprep.subr.mxu0 0.0
    %285 = vmatpush2.msra.mxu0 0.0
    %286 = vmatprep.subr.mxu0 0.0
    %287 = vmatpush2.msra.mxu0 0.0
    %288 = vmatprep.subr.mxu0 0.0
    %289 = vmatpush2.msra.mxu0 0.0
    %290 = vmatprep.subr.mxu0 0.0
    %291 = vmatpush2.msra.mxu0 0.0
    %292 = vmatprep.subr.mxu0 0.0
    %293 = vmatpush2.msra.mxu0 0.0
    %294 = vmatprep.subr.mxu0 0.0
    %295 = vmatpush2.msra.mxu0 0.0
    %296 = vmatprep.subr.mxu0 0.0
    %297 = vmatpush2.msra.mxu0 0.0
    %298 = vmatprep.subr.mxu0 0.0
    %299 = vmatpush2.msra.mxu0 0.0
    %300 = vmatprep.subr.mxu0 0.0
    %301 = vmatpush2.msra.mxu0 0.0
    %302 = vmatprep.subr.mxu0 0.0
    %303 = vmatpush2.msra.mxu0 0.0
    %304 = vmatprep.subr.mxu0 0.0
    %305 = vmatpush2.msra.mxu0 0.0
    %306 = vmatprep.subr.mxu0 0.0
    %307 = vmatpush2.msra.mxu0 0.0
    %308 = vmatprep.subr.mxu0 0.0
    %309 = vmatpush2.msra.mxu0 0.0
    %310 = vmatprep.subr.mxu0 0.0
    %311 = vmatpush2.msra.mxu0 0.0
    %312 = vmatprep.subr.mxu0 0.0
    %313 = vmatpush2.msra.mxu0 0.0
    %314 = vmatprep.subr.mxu0 0.0
    %315 = vmatpush2.msra.mxu0 0.0
    %316 = vmatprep.mubr.f32.mxu0 0.0
    %317 = vmatmul.mubr.f32.gmra.mxu0 %v68
    %v318 = vpop.f32.mrf.mxu0
    %v319 = vadd.f32 0.0, %v318
    %v320 = vpop.f32.mrf.mxu0
    %v321 = vadd.f32 0.0, %v320
    %322 = vdwg.mxu0
    %323 = vmatprep.subr.mxu0 0.0
    %324 = vmatpush1.msra.mxu0 0.0
    %325 = vmatprep.subr.mxu0 0.0
    %326 = vmatpush1.msra.mxu0 0.0
    %327 = vmatprep.subr.mxu0 0.0
    %328 = vmatpush1.msra.mxu0 0.0
    %329 = vmatprep.subr.mxu0 0.0
    %330 = vmatpush1.msra.mxu0 0.0
    %331 = vmatprep.subr.mxu0 0.0
    %332 = vmatpush1.msra.mxu0 0.0
    %333 = vmatprep.subr.mxu0 0.0
    %334 = vmatpush1.msra.mxu0 0.0
    %335 = vmatprep.subr.mxu0 0.0
    %336 = vmatpush1.msra.mxu0 0.0
    %337 = vmatprep.subr.mxu0 0.0
    %338 = vmatpush1.msra.mxu0 0.0
    %339 = vmatprep.subr.mxu0 0.0
    %340 = vmatpush1.msra.mxu0 0.0
    %341 = vmatprep.subr.mxu0 0.0
    %342 = vmatpush1.msra.mxu0 0.0
    %343 = vmatprep.subr.mxu0 0.0
    %344 = vmatpush1.msra.mxu0 0.0
    %345 = vmatprep.subr.mxu0 0.0
    %346 = vmatpush1.msra.mxu0 0.0
    %347 = vmatprep.subr.mxu0 0.0
    %348 = vmatpush1.msra.mxu0 0.0
    %349 = vmatprep.subr.mxu0 0.0
    %350 = vmatpush1.msra.mxu0 0.0
    %351 = vmatprep.subr.mxu0 %v93
    %352 = vmatpush1.msra.mxu0 %v90
    %353 = vmatprep.subr.mxu0 %v47
    %354 = vmatpush1.msra.mxu0 %v46
    %355 = vmatprep.subr.mxu0 0.0
    %356 = vmatpush2.msra.mxu0 0.0
    %357 = vmatprep.subr.mxu0 0.0
    %358 = vmatpush2.msra.mxu0 0.0
    %359 = vmatprep.subr.mxu0 0.0
    %360 = vmatpush2.msra.mxu0 0.0
    %361 = vmatprep.subr.mxu0 0.0
    %362 = vmatpush2.msra.mxu0 0.0
    %363 = vmatprep.subr.mxu0 0.0
    %364 = vmatpush2.msra.mxu0 0.0
    %365 = vmatprep.subr.mxu0 0.0
    %366 = vmatpush2.msra.mxu0 0.0
    %367 = vmatprep.subr.mxu0 0.0
    %368 = vmatpush2.msra.mxu0 0.0
    %369 = vmatprep.subr.mxu0 0.0
    %370 = vmatpush2.msra.mxu0 0.0
    %371 = vmatprep.subr.mxu0 0.0
    %372 = vmatpush2.msra.mxu0 0.0
    %373 = vmatprep.subr.mxu0 0.0
    %374 = vmatpush2.msra.mxu0 0.0
    %375 = vmatprep.subr.mxu0 0.0
    %376 = vmatpush2.msra.mxu0 0.0
    %377 = vmatprep.subr.mxu0 0.0
    %378 = vmatpush2.msra.mxu0 0.0
    %379 = vmatprep.subr.mxu0 0.0
    %380 = vmatpush2.msra.mxu0 0.0
    %381 = vmatprep.subr.mxu0 0.0
    %382 = vmatpush2.msra.mxu0 0.0
    %383 = vmatprep.subr.mxu0 0.0
    %384 = vmatpush2.msra.mxu0 0.0
    %385 = vmatprep.subr.mxu0 0.0
    %386 = vmatpush2.msra.mxu0 0.0
    %387 = vmatprep.mubr.f32.mxu0 0.0
    %388 = vmatmul.mubr.f32.gmra.mxu0 %v68
    %v389 = vpop.f32.mrf.mxu0
    %v390 = vadd.f32 0.0, %v389
    %v391 = vpop.f32.mrf.mxu0
    %v392 = vadd.f32 0.0, %v391
    %393 = vdwg.mxu0
    %394 = vmatprep.subr.mxu0 0.0
    %395 = vmatpush1.msra.mxu0 0.0
    %396 = vmatprep.subr.mxu0 0.0
    %397 = vmatpush1.msra.mxu0 0.0
    %398 = vmatprep.subr.mxu0 0.0
    %399 = vmatpush1.msra.mxu0 0.0
    %400 = vmatprep.subr.mxu0 0.0
    %401 = vmatpush1.msra.mxu0 0.0
    %402 = vmatprep.subr.mxu0 0.0
    %403 = vmatpush1.msra.mxu0 0.0
    %404 = vmatprep.subr.mxu0 0.0
    %405 = vmatpush1.msra.mxu0 0.0
    %406 = vmatprep.subr.mxu0 0.0
    %407 = vmatpush1.msra.mxu0 0.0
    %408 = vmatprep.subr.mxu0 0.0
    %409 = vmatpush1.msra.mxu0 0.0
    %410 = vmatprep.subr.mxu0 0.0
    %411 = vmatpush1.msra.mxu0 0.0
    %412 = vmatprep.subr.mxu0 0.0
    %413 = vmatpush1.msra.mxu0 0.0
    %414 = vmatprep.subr.mxu0 0.0
    %415 = vmatpush1.msra.mxu0 0.0
    %416 = vmatprep.subr.mxu0 0.0
    %417 = vmatpush1.msra.mxu0 0.0
    %418 = vmatprep.subr.mxu0 0.0
    %419 = vmatpush1.msra.mxu0 0.0
    %420 = vmatprep.subr.mxu0 0.0
    %421 = vmatpush1.msra.mxu0 0.0
    %422 = vmatprep.subr.mxu0 %v99
    %423 = vmatpush1.msra.mxu0 %v96
    %424 = vmatprep.subr.mxu0 %v49
    %425 = vmatpush1.msra.mxu0 %v48
    %426 = vmatprep.subr.mxu0 0.0
    %427 = vmatpush2.msra.mxu0 0.0
    %428 = vmatprep.subr.mxu0 0.0
    %429 = vmatpush2.msra.mxu0 0.0
    %430 = vmatprep.subr.mxu0 0.0
    %431 = vmatpush2.msra.mxu0 0.0
    %432 = vmatprep.subr.mxu0 0.0
    %433 = vmatpush2.msra.mxu0 0.0
    %434 = vmatprep.subr.mxu0 0.0
    %435 = vmatpush2.msra.mxu0 0.0
    %436 = vmatprep.subr.mxu0 0.0
    %437 = vmatpush2.msra.mxu0 0.0
    %438 = vmatprep.subr.mxu0 0.0
    %439 = vmatpush2.msra.mxu0 0.0
    %440 = vmatprep.subr.mxu0 0.0
    %441 = vmatpush2.msra.mxu0 0.0
    %442 = vmatprep.subr.mxu0 0.0
    %443 = vmatpush2.msra.mxu0 0.0
    %444 = vmatprep.subr.mxu0 0.0
    %445 = vmatpush2.msra.mxu0 0.0
    %446 = vmatprep.subr.mxu0 0.0
    %447 = vmatpush2.msra.mxu0 0.0
    %448 = vmatprep.subr.mxu0 0.0
    %449 = vmatpush2.msra.mxu0 0.0
    %450 = vmatprep.subr.mxu0 0.0
    %451 = vmatpush2.msra.mxu0 0.0
    %452 = vmatprep.subr.mxu0 0.0
    %453 = vmatpush2.msra.mxu0 0.0
    %454 = vmatprep.subr.mxu0 0.0
    %455 = vmatpush2.msra.mxu0 0.0
    %456 = vmatprep.subr.mxu0 0.0
    %457 = vmatpush2.msra.mxu0 0.0
    %458 = vmatprep.mubr.f32.mxu0 0.0
    %459 = vmatmul.mubr.f32.gmra.mxu0 %v68
    %v460 = vpop.f32.mrf.mxu0
    %v461 = vadd.f32 0.0, %v460
    %v462 = vpop.f32.mrf.mxu0
    %v463 = vadd.f32 0.0, %v462
    %464 = vdwg.mxu0
    %465 = vmatprep.subr.mxu0 0.0
    %466 = vmatpush1.msra.mxu0 0.0
    %467 = vmatprep.subr.mxu0 0.0
    %468 = vmatpush1.msra.mxu0 0.0
    %469 = vmatprep.subr.mxu0 0.0
    %470 = vmatpush1.msra.mxu0 0.0
    %471 = vmatprep.subr.mxu0 0.0
    %472 = vmatpush1.msra.mxu0 0.0
    %473 = vmatprep.subr.mxu0 0.0
    %474 = vmatpush1.msra.mxu0 0.0
    %475 = vmatprep.subr.mxu0 0.0
    %476 = vmatpush1.msra.mxu0 0.0
    %477 = vmatprep.subr.mxu0 0.0
    %478 = vmatpush1.msra.mxu0 0.0
    %479 = vmatprep.subr.mxu0 0.0
    %480 = vmatpush1.msra.mxu0 0.0
    %481 = vmatprep.subr.mxu0 0.0
    %482 = vmatpush1.msra.mxu0 0.0
    %483 = vmatprep.subr.mxu0 0.0
    %484 = vmatpush1.msra.mxu0 0.0
    %485 = vmatprep.subr.mxu0 0.0
    %486 = vmatpush1.msra.mxu0 0.0
    %487 = vmatprep.subr.mxu0 0.0
    %488 = vmatpush1.msra.mxu0 0.0
    %489 = vmatprep.subr.mxu0 0.0
    %490 = vmatpush1.msra.mxu0 0.0
    %491 = vmatprep.subr.mxu0 0.0
    %492 = vmatpush1.msra.mxu0 0.0
    %493 = vmatprep.subr.mxu0 %v105
    %494 = vmatpush1.msra.mxu0 %v102
    %495 = vmatprep.subr.mxu0 %v51
    %496 = vmatpush1.msra.mxu0 %v50
    %497 = vmatprep.subr.mxu0 0.0
    %498 = vmatpush2.msra.mxu0 0.0
    %499 = vmatprep.subr.mxu0 0.0
    %500 = vmatpush2.msra.mxu0 0.0
    %501 = vmatprep.subr.mxu0 0.0
    %502 = vmatpush2.msra.mxu0 0.0
    %503 = vmatprep.subr.mxu0 0.0
    %504 = vmatpush2.msra.mxu0 0.0
    %505 = vmatprep.subr.mxu0 0.0
    %506 = vmatpush2.msra.mxu0 0.0
    %507 = vmatprep.subr.mxu0 0.0
    %508 = vmatpush2.msra.mxu0 0.0
    %509 = vmatprep.subr.mxu0 0.0
    %510 = vmatpush2.msra.mxu0 0.0
    %511 = vmatprep.subr.mxu0 0.0
    %512 = vmatpush2.msra.mxu0 0.0
    %513 = vmatprep.subr.mxu0 0.0
    %514 = vmatpush2.msra.mxu0 0.0
    %515 = vmatprep.subr.mxu0 0.0
    %516 = vmatpush2.msra.mxu0 0.0
    %517 = vmatprep.subr.mxu0 0.0
    %518 = vmatpush2.msra.mxu0 0.0
    %519 = vmatprep.subr.mxu0 0.0
    %520 = vmatpush2.msra.mxu0 0.0
    %521 = vmatprep.subr.mxu0 0.0
    %522 = vmatpush2.msra.mxu0 0.0
    %523 = vmatprep.subr.mxu0 0.0
    %524 = vmatpush2.msra.mxu0 0.0
    %525 = vmatprep.subr.mxu0 0.0
    %526 = vmatpush2.msra.mxu0 0.0
    %527 = vmatprep.subr.mxu0 0.0
    %528 = vmatpush2.msra.mxu0 0.0
    %529 = vmatprep.mubr.f32.mxu0 0.0
    %530 = vmatmul.mubr.f32.gmra.mxu0 %v68
    %v531 = vpop.f32.mrf.mxu0
    %v532 = vadd.f32 0.0, %v531
    %v533 = vpop.f32.mrf.mxu0
    %v534 = vadd.f32 0.0, %v533
    %535 = vdwg.mxu0
    %536 = vmatprep.subr.mxu0 0.0
    %537 = vmatpush1.msra.mxu0 0.0
    %538 = vmatprep.subr.mxu0 0.0
    %539 = vmatpush1.msra.mxu0 0.0
    %540 = vmatprep.subr.mxu0 0.0
    %541 = vmatpush1.msra.mxu0 0.0
    %542 = vmatprep.subr.mxu0 0.0
    %543 = vmatpush1.msra.mxu0 0.0
    %544 = vmatprep.subr.mxu0 0.0
    %545 = vmatpush1.msra.mxu0 0.0
    %546 = vmatprep.subr.mxu0 0.0
    %547 = vmatpush1.msra.mxu0 0.0
    %548 = vmatprep.subr.mxu0 0.0
    %549 = vmatpush1.msra.mxu0 0.0
    %550 = vmatprep.subr.mxu0 0.0
    %551 = vmatpush1.msra.mxu0 0.0
    %552 = vmatprep.subr.mxu0 0.0
    %553 = vmatpush1.msra.mxu0 0.0
    %554 = vmatprep.subr.mxu0 0.0
    %555 = vmatpush1.msra.mxu0 0.0
    %556 = vmatprep.subr.mxu0 0.0
    %557 = vmatpush1.msra.mxu0 0.0
    %558 = vmatprep.subr.mxu0 0.0
    %559 = vmatpush1.msra.mxu0 0.0
    %560 = vmatprep.subr.mxu0 0.0
    %561 = vmatpush1.msra.mxu0 0.0
    %562 = vmatprep.subr.mxu0 0.0
    %563 = vmatpush1.msra.mxu0 0.0
    %564 = vmatprep.subr.mxu0 0.0
    %565 = vmatpush1.msra.mxu0 %v108
    %566 = vmatprep.subr.mxu0 0.0
    %567 = vmatpush1.msra.mxu0 %v52
    %568 = vmatprep.subr.mxu0 0.0
    %569 = vmatpush2.msra.mxu0 0.0
    %570 = vmatprep.subr.mxu0 0.0
    %571 = vmatpush2.msra.mxu0 0.0
    %572 = vmatprep.subr.mxu0 0.0
    %573 = vmatpush2.msra.mxu0 0.0
    %574 = vmatprep.subr.mxu0 0.0
    %575 = vmatpush2.msra.mxu0 0.0
    %576 = vmatprep.subr.mxu0 0.0
    %577 = vmatpush2.msra.mxu0 0.0
    %578 = vmatprep.subr.mxu0 0.0
    %579 = vmatpush2.msra.mxu0 0.0
    %580 = vmatprep.subr.mxu0 0.0
    %581 = vmatpush2.msra.mxu0 0.0
    %582 = vmatprep.subr.mxu0 0.0
    %583 = vmatpush2.msra.mxu0 0.0
    %584 = vmatprep.subr.mxu0 0.0
    %585 = vmatpush2.msra.mxu0 0.0
    %586 = vmatprep.subr.mxu0 0.0
    %587 = vmatpush2.msra.mxu0 0.0
    %588 = vmatprep.subr.mxu0 0.0
    %589 = vmatpush2.msra.mxu0 0.0
    %590 = vmatprep.subr.mxu0 0.0
    %591 = vmatpush2.msra.mxu0 0.0
    %592 = vmatprep.subr.mxu0 0.0
    %593 = vmatpush2.msra.mxu0 0.0
    %594 = vmatprep.subr.mxu0 0.0
    %595 = vmatpush2.msra.mxu0 0.0
    %596 = vmatprep.subr.mxu0 0.0
    %597 = vmatpush2.msra.mxu0 0.0
    %598 = vmatprep.subr.mxu0 0.0
    %599 = vmatpush2.msra.mxu0 0.0
    %600 = vmatprep.mubr.f32.mxu0 0.0
    %601 = vmatmul.mubr.f32.gmra.mxu0 %v68
    %v602 = vpop.f32.mrf.mxu0
    %v603 = vadd.f32 0.0, %v602
    %v604 = vpop.f32.mrf.mxu0
    %605 = vdwg.mxu0
    %s606 = scalar_lea.vmem %s0, 208
    %v607 = vld [vmem:[%s606] sm:$0xff]
    %v608 = vld [vmem:[%s606 + $0x8] sm:$0xff]
    %v609 = vld [vmem:[%s606 + $0x10] sm:$0xff]
    %v610 = vld [vmem:[%s606 + $0x18] sm:$0xff]
    %v611 = vld [vmem:[%s606 + $0x20] sm:$0xff]
    %v612 = vld [vmem:[%s606 + $0x28] sm:$0xff]
    %v613 = vld [vmem:[%s606 + $0x30] sm:$0xff]
    %v614 = vld [vmem:[%s606 + $0x38] sm:$0xff]
    %v615 = vld [vmem:[%s606 + $0x40] sm:$0xff]
    %v616 = vld [vmem:[%s606 + $0x48] sm:$0xff]
    %v617 = vld [vmem:[%s606 + $0x50] sm:$0xff]
    %v618 = vld [vmem:[%s606 + $0x58] sm:$0xff]
    %v619 = vld [vmem:[%s606 + $0x60] sm:$0xff]
    %v620 = vld [vmem:[%s606 + $0x68] sm:$0x1]
    %v621 = vld [vmem:[%s606 + $0x70] sm:$0x1]
    %v622 = vld [vmem:[%s606 + $0x78] sm:$0x1]
    %v623 = vld [vmem:[%s606 + $0x80] sm:$0x1]
    %v624 = vld [vmem:[%s606 + $0x88] sm:$0x1]
    %v625 = vld [vmem:[%s606 + $0x90] sm:$0x1]
    %v626 = vld [vmem:[%s606 + $0x98] sm:$0x1]
    %v627 = vld [vmem:[%s606 + $0xa0] sm:$0x1]
    %v628 = vld [vmem:[%s606 + $0xa8] sm:$0x1]
    %v629 = vld [vmem:[%s606 + $0xb0] sm:$0x1]
    %v630 = vld [vmem:[%s606 + $0xb8] sm:$0x1]
    %v631 = vld [vmem:[%s606 + $0xc0] sm:$0x1]
    %v632 = vld [vmem:[%s606 + $0xc8] sm:$0x1]
    %v634 = vsel %vm70, %v620, 0
    %v637 = vsel %vm70, %v621, 0
    %v640 = vsel %vm70, %v622, 0
    %v643 = vsel %vm70, %v623, 0
    %v646 = vsel %vm70, %v624, 0
    %v649 = vsel %vm70, %v625, 0
    %v652 = vsel %vm70, %v626, 0
    %v655 = vsel %vm70, %v627, 0
    %v658 = vsel %vm70, %v628, 0
    %v661 = vsel %vm70, %v629, 0
    %v664 = vsel %vm70, %v630, 0
    %v667 = vsel %vm70, %v631, 0
    %v670 = vsel %vm70, %v632, 0
    %672 = vmatprep.subr.mxu0 0.0
    %673 = vmatpush1.msra.mxu0 0.0
    %674 = vmatprep.subr.mxu0 0.0
    %675 = vmatpush1.msra.mxu0 0.0
    %676 = vmatprep.subr.mxu0 0.0
    %677 = vmatpush1.msra.mxu0 0.0
    %678 = vmatprep.subr.mxu0 0.0
    %679 = vmatpush1.msra.mxu0 0.0
    %680 = vmatprep.subr.mxu0 0.0
    %681 = vmatpush1.msra.mxu0 0.0
    %682 = vmatprep.subr.mxu0 0.0
    %683 = vmatpush1.msra.mxu0 0.0
    %684 = vmatprep.subr.mxu0 0.0
    %685 = vmatpush1.msra.mxu0 0.0
    %686 = vmatprep.subr.mxu0 0.0
    %687 = vmatpush1.msra.mxu0 0.0
    %688 = vmatprep.subr.mxu0 0.0
    %689 = vmatpush1.msra.mxu0 0.0
    %690 = vmatprep.subr.mxu0 0.0
    %691 = vmatpush1.msra.mxu0 0.0
    %692 = vmatprep.subr.mxu0 0.0
    %693 = vmatpush1.msra.mxu0 0.0
    %694 = vmatprep.subr.mxu0 0.0
    %695 = vmatpush1.msra.mxu0 0.0
    %696 = vmatprep.subr.mxu0 0.0
    %697 = vmatpush1.msra.mxu0 0.0
    %698 = vmatprep.subr.mxu0 0.0
    %699 = vmatpush1.msra.mxu0 0.0
    %700 = vmatprep.subr.mxu0 %v637
    %701 = vmatpush1.msra.mxu0 %v634
    %702 = vmatprep.subr.mxu0 %v608
    %703 = vmatpush1.msra.mxu0 %v607
    %704 = vmatprep.subr.mxu0 0.0
    %705 = vmatpush2.msra.mxu0 0.0
    %706 = vmatprep.subr.mxu0 0.0
    %707 = vmatpush2.msra.mxu0 0.0
    %708 = vmatprep.subr.mxu0 0.0
    %709 = vmatpush2.msra.mxu0 0.0
    %710 = vmatprep.subr.mxu0 0.0
    %711 = vmatpush2.msra.mxu0 0.0
    %712 = vmatprep.subr.mxu0 0.0
    %713 = vmatpush2.msra.mxu0 0.0
    %714 = vmatprep.subr.mxu0 0.0
    %715 = vmatpush2.msra.mxu0 0.0
    %716 = vmatprep.subr.mxu0 0.0
    %717 = vmatpush2.msra.mxu0 0.0
    %718 = vmatprep.subr.mxu0 0.0
    %719 = vmatpush2.msra.mxu0 0.0
    %720 = vmatprep.subr.mxu0 0.0
    %721 = vmatpush2.msra.mxu0 0.0
    %722 = vmatprep.subr.mxu0 0.0
    %723 = vmatpush2.msra.mxu0 0.0
    %724 = vmatprep.subr.mxu0 0.0
    %725 = vmatpush2.msra.mxu0 0.0
    %726 = vmatprep.subr.mxu0 0.0
    %727 = vmatpush2.msra.mxu0 0.0
    %728 = vmatprep.subr.mxu0 0.0
    %729 = vmatpush2.msra.mxu0 0.0
    %730 = vmatprep.subr.mxu0 0.0
    %731 = vmatpush2.msra.mxu0 0.0
    %732 = vmatprep.subr.mxu0 0.0
    %733 = vmatpush2.msra.mxu0 0.0
    %734 = vmatprep.subr.mxu0 0.0
    %735 = vmatpush2.msra.mxu0 0.0
    %736 = vmatprep.mubr.f32.mxu0 0.0
    %737 = vmatmul.mubr.f32.gmra.mxu0 %v68
    %v738 = vpop.f32.mrf.mxu0
    %v739 = vadd.f32 0.0, %v738
    %v740 = vpop.f32.mrf.mxu0
    %v741 = vadd.f32 0.0, %v740
    %742 = vdwg.mxu0
    %743 = vmatprep.subr.mxu0 0.0
    %744 = vmatpush1.msra.mxu0 0.0
    %745 = vmatprep.subr.mxu0 0.0
    %746 = vmatpush1.msra.mxu0 0.0
    %747 = vmatprep.subr.mxu0 0.0
    %748 = vmatpush1.msra.mxu0 0.0
    %749 = vmatprep.subr.mxu0 0.0
    %750 = vmatpush1.msra.mxu0 0.0
    %751 = vmatprep.subr.mxu0 0.0
    %752 = vmatpush1.msra.mxu0 0.0
    %753 = vmatprep.subr.mxu0 0.0
    %754 = vmatpush1.msra.mxu0 0.0
    %755 = vmatprep.subr.mxu0 0.0
    %756 = vmatpush1.msra.mxu0 0.0
    %757 = vmatprep.subr.mxu0 0.0
    %758 = vmatpush1.msra.mxu0 0.0
    %759 = vmatprep.subr.mxu0 0.0
    %760 = vmatpush1.msra.mxu0 0.0
    %761 = vmatprep.subr.mxu0 0.0
    %762 = vmatpush1.msra.mxu0 0.0
    %763 = vmatprep.subr.mxu0 0.0
    %764 = vmatpush1.msra.mxu0 0.0
    %765 = vmatprep.subr.mxu0 0.0
    %766 = vmatpush1.msra.mxu0 0.0
    %767 = vmatprep.subr.mxu0 0.0
    %768 = vmatpush1.msra.mxu0 0.0
    %769 = vmatprep.subr.mxu0 0.0
    %770 = vmatpush1.msra.mxu0 0.0
    %771 = vmatprep.subr.mxu0 %v643
    %772 = vmatpush1.msra.mxu0 %v640
    %773 = vmatprep.subr.mxu0 %v610
    %774 = vmatpush1.msra.mxu0 %v609
    %775 = vmatprep.subr.mxu0 0.0
    %776 = vmatpush2.msra.mxu0 0.0
    %777 = vmatprep.subr.mxu0 0.0
    %778 = vmatpush2.msra.mxu0 0.0
    %779 = vmatprep.subr.mxu0 0.0
    %780 = vmatpush2.msra.mxu0 0.0
    %781 = vmatprep.subr.mxu0 0.0
    %782 = vmatpush2.msra.mxu0 0.0
    %783 = vmatprep.subr.mxu0 0.0
    %784 = vmatpush2.msra.mxu0 0.0
    %785 = vmatprep.subr.mxu0 0.0
    %786 = vmatpush2.msra.mxu0 0.0
    %787 = vmatprep.subr.mxu0 0.0
    %788 = vmatpush2.msra.mxu0 0.0
    %789 = vmatprep.subr.mxu0 0.0
    %790 = vmatpush2.msra.mxu0 0.0
    %791 = vmatprep.subr.mxu0 0.0
    %792 = vmatpush2.msra.mxu0 0.0
    %793 = vmatprep.subr.mxu0 0.0
    %794 = vmatpush2.msra.mxu0 0.0
    %795 = vmatprep.subr.mxu0 0.0
    %796 = vmatpush2.msra.mxu0 0.0
    %797 = vmatprep.subr.mxu0 0.0
    %798 = vmatpush2.msra.mxu0 0.0
    %799 = vmatprep.subr.mxu0 0.0
    %800 = vmatpush2.msra.mxu0 0.0
    %801 = vmatprep.subr.mxu0 0.0
    %802 = vmatpush2.msra.mxu0 0.0
    %803 = vmatprep.subr.mxu0 0.0
    %804 = vmatpush2.msra.mxu0 0.0
    %805 = vmatprep.subr.mxu0 0.0
    %806 = vmatpush2.msra.mxu0 0.0
    %807 = vmatprep.mubr.f32.mxu0 0.0
    %808 = vmatmul.mubr.f32.gmra.mxu0 %v68
    %v809 = vpop.f32.mrf.mxu0
    %v810 = vadd.f32 0.0, %v809
    %v811 = vpop.f32.mrf.mxu0
    %v812 = vadd.f32 0.0, %v811
    %813 = vdwg.mxu0
    %814 = vmatprep.subr.mxu0 0.0
    %815 = vmatpush1.msra.mxu0 0.0
    %816 = vmatprep.subr.mxu0 0.0
    %817 = vmatpush1.msra.mxu0 0.0
    %818 = vmatprep.subr.mxu0 0.0
    %819 = vmatpush1.msra.mxu0 0.0
    %820 = vmatprep.subr.mxu0 0.0
    %821 = vmatpush1.msra.mxu0 0.0
    %822 = vmatprep.subr.mxu0 0.0
    %823 = vmatpush1.msra.mxu0 0.0
    %824 = vmatprep.subr.mxu0 0.0
    %825 = vmatpush1.msra.mxu0 0.0
    %826 = vmatprep.subr.mxu0 0.0
    %827 = vmatpush1.msra.mxu0 0.0
    %828 = vmatprep.subr.mxu0 0.0
    %829 = vmatpush1.msra.mxu0 0.0
    %830 = vmatprep.subr.mxu0 0.0
    %831 = vmatpush1.msra.mxu0 0.0
    %832 = vmatprep.subr.mxu0 0.0
    %833 = vmatpush1.msra.mxu0 0.0
    %834 = vmatprep.subr.mxu0 0.0
    %835 = vmatpush1.msra.mxu0 0.0
    %836 = vmatprep.subr.mxu0 0.0
    %837 = vmatpush1.msra.mxu0 0.0
    %838 = vmatprep.subr.mxu0 0.0
    %839 = vmatpush1.msra.mxu0 0.0
    %840 = vmatprep.subr.mxu0 0.0
    %841 = vmatpush1.msra.mxu0 0.0
    %842 = vmatprep.subr.mxu0 %v649
    %843 = vmatpush1.msra.mxu0 %v646
    %844 = vmatprep.subr.mxu0 %v612
    %845 = vmatpush1.msra.mxu0 %v611
    %846 = vmatprep.subr.mxu0 0.0
    %847 = vmatpush2.msra.mxu0 0.0
    %848 = vmatprep.subr.mxu0 0.0
    %849 = vmatpush2.msra.mxu0 0.0
    %850 = vmatprep.subr.mxu0 0.0
    %851 = vmatpush2.msra.mxu0 0.0
    %852 = vmatprep.subr.mxu0 0.0
    %853 = vmatpush2.msra.mxu0 0.0
    %854 = vmatprep.subr.mxu0 0.0
    %855 = vmatpush2.msra.mxu0 0.0
    %856 = vmatprep.subr.mxu0 0.0
    %857 = vmatpush2.msra.mxu0 0.0
    %858 = vmatprep.subr.mxu0 0.0
    %859 = vmatpush2.msra.mxu0 0.0
    %860 = vmatprep.subr.mxu0 0.0
    %861 = vmatpush2.msra.mxu0 0.0
    %862 = vmatprep.subr.mxu0 0.0
    %863 = vmatpush2.msra.mxu0 0.0
    %864 = vmatprep.subr.mxu0 0.0
    %865 = vmatpush2.msra.mxu0 0.0
    %866 = vmatprep.subr.mxu0 0.0
    %867 = vmatpush2.msra.mxu0 0.0
    %868 = vmatprep.subr.mxu0 0.0
    %869 = vmatpush2.msra.mxu0 0.0
    %870 = vmatprep.subr.mxu0 0.0
    %871 = vmatpush2.msra.mxu0 0.0
    %872 = vmatprep.subr.mxu0 0.0
    %873 = vmatpush2.msra.mxu0 0.0
    %874 = vmatprep.subr.mxu0 0.0
    %875 = vmatpush2.msra.mxu0 0.0
    %876 = vmatprep.subr.mxu0 0.0
    %877 = vmatpush2.msra.mxu0 0.0
    %878 = vmatprep.mubr.f32.mxu0 0.0
    %879 = vmatmul.mubr.f32.gmra.mxu0 %v68
    %v880 = vpop.f32.mrf.mxu0
    %v881 = vadd.f32 0.0, %v880
    %v882 = vpop.f32.mrf.mxu0
    %v883 = vadd.f32 0.0, %v882
    %884 = vdwg.mxu0
    %885 = vmatprep.subr.mxu0 0.0
    %886 = vmatpush1.msra.mxu0 0.0
    %887 = vmatprep.subr.mxu0 0.0
    %888 = vmatpush1.msra.mxu0 0.0
    %889 = vmatprep.subr.mxu0 0.0
    %890 = vmatpush1.msra.mxu0 0.0
    %891 = vmatprep.subr.mxu0 0.0
    %892 = vmatpush1.msra.mxu0 0.0
    %893 = vmatprep.subr.mxu0 0.0
    %894 = vmatpush1.msra.mxu0 0.0
    %895 = vmatprep.subr.mxu0 0.0
    %896 = vmatpush1.msra.mxu0 0.0
    %897 = vmatprep.subr.mxu0 0.0
    %898 = vmatpush1.msra.mxu0 0.0
    %899 = vmatprep.subr.mxu0 0.0
    %900 = vmatpush1.msra.mxu0 0.0
    %901 = vmatprep.subr.mxu0 0.0
    %902 = vmatpush1.msra.mxu0 0.0
    %903 = vmatprep.subr.mxu0 0.0
    %904 = vmatpush1.msra.mxu0 0.0
    %905 = vmatprep.subr.mxu0 0.0
    %906 = vmatpush1.msra.mxu0 0.0
    %907 = vmatprep.subr.mxu0 0.0
    %908 = vmatpush1.msra.mxu0 0.0
    %909 = vmatprep.subr.mxu0 0.0
    %910 = vmatpush1.msra.mxu0 0.0
    %911 = vmatprep.subr.mxu0 0.0
    %912 = vmatpush1.msra.mxu0 0.0
    %913 = vmatprep.subr.mxu0 %v655
    %914 = vmatpush1.msra.mxu0 %v652
    %915 = vmatprep.subr.mxu0 %v614
    %916 = vmatpush1.msra.mxu0 %v613
    %917 = vmatprep.subr.mxu0 0.0
    %918 = vmatpush2.msra.mxu0 0.0
    %919 = vmatprep.subr.mxu0 0.0
    %920 = vmatpush2.msra.mxu0 0.0
    %921 = vmatprep.subr.mxu0 0.0
    %922 = vmatpush2.msra.mxu0 0.0
    %923 = vmatprep.subr.mxu0 0.0
    %924 = vmatpush2.msra.mxu0 0.0
    %925 = vmatprep.subr.mxu0 0.0
    %926 = vmatpush2.msra.mxu0 0.0
    %927 = vmatprep.subr.mxu0 0.0
    %928 = vmatpush2.msra.mxu0 0.0
    %929 = vmatprep.subr.mxu0 0.0
    %930 = vmatpush2.msra.mxu0 0.0
    %931 = vmatprep.subr.mxu0 0.0
    %932 = vmatpush2.msra.mxu0 0.0
    %933 = vmatprep.subr.mxu0 0.0
    %934 = vmatpush2.msra.mxu0 0.0
    %935 = vmatprep.subr.mxu0 0.0
    %936 = vmatpush2.msra.mxu0 0.0
    %937 = vmatprep.subr.mxu0 0.0
    %938 = vmatpush2.msra.mxu0 0.0
    %939 = vmatprep.subr.mxu0 0.0
    %940 = vmatpush2.msra.mxu0 0.0
    %941 = vmatprep.subr.mxu0 0.0
    %942 = vmatpush2.msra.mxu0 0.0
    %943 = vmatprep.subr.mxu0 0.0
    %944 = vmatpush2.msra.mxu0 0.0
    %945 = vmatprep.subr.mxu0 0.0
    %946 = vmatpush2.msra.mxu0 0.0
    %947 = vmatprep.subr.mxu0 0.0
    %948 = vmatpush2.msra.mxu0 0.0
    %949 = vmatprep.mubr.f32.mxu0 0.0
    %950 = vmatmul.mubr.f32.gmra.mxu0 %v68
    %v951 = vpop.f32.mrf.mxu0
    %v952 = vadd.f32 0.0, %v951
    %v953 = vpop.f32.mrf.mxu0
    %v954 = vadd.f32 0.0, %v953
    %955 = vdwg.mxu0
    %956 = vmatprep.subr.mxu0 0.0
    %957 = vmatpush1.msra.mxu0 0.0
    %958 = vmatprep.subr.mxu0 0.0
    %959 = vmatpush1.msra.mxu0 0.0
    %960 = vmatprep.subr.mxu0 0.0
    %961 = vmatpush1.msra.mxu0 0.0
    %962 = vmatprep.subr.mxu0 0.0
    %963 = vmatpush1.msra.mxu0 0.0
    %964 = vmatprep.subr.mxu0 0.0
    %965 = vmatpush1.msra.mxu0 0.0
    %966 = vmatprep.subr.mxu0 0.0
    %967 = vmatpush1.msra.mxu0 0.0
    %968 = vmatprep.subr.mxu0 0.0
    %969 = vmatpush1.msra.mxu0 0.0
    %970 = vmatprep.subr.mxu0 0.0
    %971 = vmatpush1.msra.mxu0 0.0
    %972 = vmatprep.subr.mxu0 0.0
    %973 = vmatpush1.msra.mxu0 0.0
    %974 = vmatprep.subr.mxu0 0.0
    %975 = vmatpush1.msra.mxu0 0.0
    %976 = vmatprep.subr.mxu0 0.0
    %977 = vmatpush1.msra.mxu0 0.0
    %978 = vmatprep.subr.mxu0 0.0
    %979 = vmatpush1.msra.mxu0 0.0
    %980 = vmatprep.subr.mxu0 0.0
    %981 = vmatpush1.msra.mxu0 0.0
    %982 = vmatprep.subr.mxu0 0.0
    %983 = vmatpush1.msra.mxu0 0.0
    %984 = vmatprep.subr.mxu0 %v661
    %985 = vmatpush1.msra.mxu0 %v658
    %986 = vmatprep.subr.mxu0 %v616
    %987 = vmatpush1.msra.mxu0 %v615
    %988 = vmatprep.subr.mxu0 0.0
    %989 = vmatpush2.msra.mxu0 0.0
    %990 = vmatprep.subr.mxu0 0.0
    %991 = vmatpush2.msra.mxu0 0.0
    %992 = vmatprep.subr.mxu0 0.0
    %993 = vmatpush2.msra.mxu0 0.0
    %994 = vmatprep.subr.mxu0 0.0
    %995 = vmatpush2.msra.mxu0 0.0
    %996 = vmatprep.subr.mxu0 0.0
    %997 = vmatpush2.msra.mxu0 0.0
    %998 = vmatprep.subr.mxu0 0.0
    %999 = vmatpush2.msra.mxu0 0.0
    %1000 = vmatprep.subr.mxu0 0.0
    %1001 = vmatpush2.msra.mxu0 0.0
    %1002 = vmatprep.subr.mxu0 0.0
    %1003 = vmatpush2.msra.mxu0 0.0
    %1004 = vmatprep.subr.mxu0 0.0
    %1005 = vmatpush2.msra.mxu0 0.0
    %1006 = vmatprep.subr.mxu0 0.0
    %1007 = vmatpush2.msra.mxu0 0.0
    %1008 = vmatprep.subr.mxu0 0.0
    %1009 = vmatpush2.msra.mxu0 0.0
    %1010 = vmatprep.subr.mxu0 0.0
    %1011 = vmatpush2.msra.mxu0 0.0
    %1012 = vmatprep.subr.mxu0 0.0
    %1013 = vmatpush2.msra.mxu0 0.0
    %1014 = vmatprep.subr.mxu0 0.0
    %1015 = vmatpush2.msra.mxu0 0.0
    %1016 = vmatprep.subr.mxu0 0.0
    %1017 = vmatpush2.msra.mxu0 0.0
    %1018 = vmatprep.subr.mxu0 0.0
    %1019 = vmatpush2.msra.mxu0 0.0
    %1020 = vmatprep.mubr.f32.mxu0 0.0
    %1021 = vmatmul.mubr.f32.gmra.mxu0 %v68
    %v1022 = vpop.f32.mrf.mxu0
    %v1023 = vadd.f32 0.0, %v1022
    %v1024 = vpop.f32.mrf.mxu0
    %v1025 = vadd.f32 0.0, %v1024
    %1026 = vdwg.mxu0
    %1027 = vmatprep.subr.mxu0 0.0
    %1028 = vmatpush1.msra.mxu0 0.0
    %1029 = vmatprep.subr.mxu0 0.0
    %1030 = vmatpush1.msra.mxu0 0.0
    %1031 = vmatprep.subr.mxu0 0.0
    %1032 = vmatpush1.msra.mxu0 0.0
    %1033 = vmatprep.subr.mxu0 0.0
    %1034 = vmatpush1.msra.mxu0 0.0
    %1035 = vmatprep.subr.mxu0 0.0
    %1036 = vmatpush1.msra.mxu0 0.0
    %1037 = vmatprep.subr.mxu0 0.0
    %1038 = vmatpush1.msra.mxu0 0.0
    %1039 = vmatprep.subr.mxu0 0.0
    %1040 = vmatpush1.msra.mxu0 0.0
    %1041 = vmatprep.subr.mxu0 0.0
    %1042 = vmatpush1.msra.mxu0 0.0
    %1043 = vmatprep.subr.mxu0 0.0
    %1044 = vmatpush1.msra.mxu0 0.0
    %1045 = vmatprep.subr.mxu0 0.0
    %1046 = vmatpush1.msra.mxu0 0.0
    %1047 = vmatprep.subr.mxu0 0.0
    %1048 = vmatpush1.msra.mxu0 0.0
    %1049 = vmatprep.subr.mxu0 0.0
    %1050 = vmatpush1.msra.mxu0 0.0
    %1051 = vmatprep.subr.mxu0 0.0
    %1052 = vmatpush1.msra.mxu0 0.0
    %1053 = vmatprep.subr.mxu0 0.0
    %1054 = vmatpush1.msra.mxu0 0.0
    %1055 = vmatprep.subr.mxu0 %v667
    %1056 = vmatpush1.msra.mxu0 %v664
    %1057 = vmatprep.subr.mxu0 %v618
    %1058 = vmatpush1.msra.mxu0 %v617
    %1059 = vmatprep.subr.mxu0 0.0
    %1060 = vmatpush2.msra.mxu0 0.0
    %1061 = vmatprep.subr.mxu0 0.0
    %1062 = vmatpush2.msra.mxu0 0.0
    %1063 = vmatprep.subr.mxu0 0.0
    %1064 = vmatpush2.msra.mxu0 0.0
    %1065 = vmatprep.subr.mxu0 0.0
    %1066 = vmatpush2.msra.mxu0 0.0
    %1067 = vmatprep.subr.mxu0 0.0
    %1068 = vmatpush2.msra.mxu0 0.0
    %1069 = vmatprep.subr.mxu0 0.0
    %1070 = vmatpush2.msra.mxu0 0.0
    %1071 = vmatprep.subr.mxu0 0.0
    %1072 = vmatpush2.msra.mxu0 0.0
    %1073 = vmatprep.subr.mxu0 0.0
    %1074 = vmatpush2.msra.mxu0 0.0
    %1075 = vmatprep.subr.mxu0 0.0
    %1076 = vmatpush2.msra.mxu0 0.0
    %1077 = vmatprep.subr.mxu0 0.0
    %1078 = vmatpush2.msra.mxu0 0.0
    %1079 = vmatprep.subr.mxu0 0.0
    %1080 = vmatpush2.msra.mxu0 0.0
    %1081 = vmatprep.subr.mxu0 0.0
    %1082 = vmatpush2.msra.mxu0 0.0
    %1083 = vmatprep.subr.mxu0 0.0
    %1084 = vmatpush2.msra.mxu0 0.0
    %1085 = vmatprep.subr.mxu0 0.0
    %1086 = vmatpush2.msra.mxu0 0.0
    %1087 = vmatprep.subr.mxu0 0.0
    %1088 = vmatpush2.msra.mxu0 0.0
    %1089 = vmatprep.subr.mxu0 0.0
    %1090 = vmatpush2.msra.mxu0 0.0
    %1091 = vmatprep.mubr.f32.mxu0 0.0
    %1092 = vmatmul.mubr.f32.gmra.mxu0 %v68
    %v1093 = vpop.f32.mrf.mxu0
    %v1094 = vadd.f32 0.0, %v1093
    %v1095 = vpop.f32.mrf.mxu0
    %v1096 = vadd.f32 0.0, %v1095
    %1097 = vdwg.mxu0
    %1098 = vmatprep.subr.mxu0 0.0
    %1099 = vmatpush1.msra.mxu0 0.0
    %1100 = vmatprep.subr.mxu0 0.0
    %1101 = vmatpush1.msra.mxu0 0.0
    %1102 = vmatprep.subr.mxu0 0.0
    %1103 = vmatpush1.msra.mxu0 0.0
    %1104 = vmatprep.subr.mxu0 0.0
    %1105 = vmatpush1.msra.mxu0 0.0
    %1106 = vmatprep.subr.mxu0 0.0
    %1107 = vmatpush1.msra.mxu0 0.0
    %1108 = vmatprep.subr.mxu0 0.0
    %1109 = vmatpush1.msra.mxu0 0.0
    %1110 = vmatprep.subr.mxu0 0.0
    %1111 = vmatpush1.msra.mxu0 0.0
    %1112 = vmatprep.subr.mxu0 0.0
    %1113 = vmatpush1.msra.mxu0 0.0
    %1114 = vmatprep.subr.mxu0 0.0
    %1115 = vmatpush1.msra.mxu0 0.0
    %1116 = vmatprep.subr.mxu0 0.0
    %1117 = vmatpush1.msra.mxu0 0.0
    %1118 = vmatprep.subr.mxu0 0.0
    %1119 = vmatpush1.msra.mxu0 0.0
    %1120 = vmatprep.subr.mxu0 0.0
    %1121 = vmatpush1.msra.mxu0 0.0
    %1122 = vmatprep.subr.mxu0 0.0
    %1123 = vmatpush1.msra.mxu0 0.0
    %1124 = vmatprep.subr.mxu0 0.0
    %1125 = vmatpush1.msra.mxu0 0.0
    %1126 = vmatprep.subr.mxu0 0.0
    %1127 = vmatpush1.msra.mxu0 %v670
    %1128 = vmatprep.subr.mxu0 0.0
    %1129 = vmatpush1.msra.mxu0 %v619
    %1130 = vmatprep.subr.mxu0 0.0
    %1131 = vmatpush2.msra.mxu0 0.0
    %1132 = vmatprep.subr.mxu0 0.0
    %1133 = vmatpush2.msra.mxu0 0.0
    %1134 = vmatprep.subr.mxu0 0.0
    %1135 = vmatpush2.msra.mxu0 0.0
    %1136 = vmatprep.subr.mxu0 0.0
    %1137 = vmatpush2.msra.mxu0 0.0
    %1138 = vmatprep.subr.mxu0 0.0
    %1139 = vmatpush2.msra.mxu0 0.0
    %1140 = vmatprep.subr.mxu0 0.0
    %1141 = vmatpush2.msra.mxu0 0.0
    %1142 = vmatprep.subr.mxu0 0.0
    %1143 = vmatpush2.msra.mxu0 0.0
    %1144 = vmatprep.subr.mxu0 0.0
    %1145 = vmatpush2.msra.mxu0 0.0
    %1146 = vmatprep.subr.mxu0 0.0
    %1147 = vmatpush2.msra.mxu0 0.0
    %1148 = vmatprep.subr.mxu0 0.0
    %1149 = vmatpush2.msra.mxu0 0.0
    %1150 = vmatprep.subr.mxu0 0.0
    %1151 = vmatpush2.msra.mxu0 0.0
    %1152 = vmatprep.subr.mxu0 0.0
    %1153 = vmatpush2.msra.mxu0 0.0
    %1154 = vmatprep.subr.mxu0 0.0
    %1155 = vmatpush2.msra.mxu0 0.0
    %1156 = vmatprep.subr.mxu0 0.0
    %1157 = vmatpush2.msra.mxu0 0.0
    %1158 = vmatprep.subr.mxu0 0.0
    %1159 = vmatpush2.msra.mxu0 0.0
    %1160 = vmatprep.subr.mxu0 0.0
    %1161 = vmatpush2.msra.mxu0 0.0
    %1162 = vmatprep.mubr.f32.mxu0 0.0
    %1163 = vmatmul.mubr.f32.gmra.mxu0 %v68
    %v1164 = vpop.f32.mrf.mxu0
    %v1165 = vadd.f32 0.0, %v1164
    %v1166 = vpop.f32.mrf.mxu0
    %1167 = vdwg.mxu0
    %v1168 = vmax.f32 %v177, %v739
    %v1169 = vmax.f32 %v179, %v741
    %v1170 = vmax.f32 %v248, %v810
    %v1171 = vmax.f32 %v250, %v812
    %v1172 = vmax.f32 %v319, %v881
    %v1173 = vmax.f32 %v321, %v883
    %v1174 = vmax.f32 %v390, %v952
    %v1175 = vmax.f32 %v392, %v954
    %v1176 = vmax.f32 %v461, %v1023
    %v1177 = vmax.f32 %v463, %v1025
    %v1178 = vmax.f32 %v532, %v1094
    %v1179 = vmax.f32 %v534, %v1096
    %v1180 = vmax.f32 %v603, %v1165
    %s1181 = scalar_lea.vmem %s0, 416
    %v1182 = vld [vmem:[%s1181] sm:$0xff]
    %v1183 = vld [vmem:[%s1181 + $0x8] sm:$0xff]
    %v1184 = vld [vmem:[%s1181 + $0x10] sm:$0xff]
    %v1185 = vld [vmem:[%s1181 + $0x18] sm:$0xff]
    %v1186 = vld [vmem:[%s1181 + $0x20] sm:$0xff]
    %v1187 = vld [vmem:[%s1181 + $0x28] sm:$0xff]
    %v1188 = vld [vmem:[%s1181 + $0x30] sm:$0xff]
    %v1189 = vld [vmem:[%s1181 + $0x38] sm:$0xff]
    %v1190 = vld [vmem:[%s1181 + $0x40] sm:$0xff]
    %v1191 = vld [vmem:[%s1181 + $0x48] sm:$0xff]
    %v1192 = vld [vmem:[%s1181 + $0x50] sm:$0xff]
    %v1193 = vld [vmem:[%s1181 + $0x58] sm:$0xff]
    %v1194 = vld [vmem:[%s1181 + $0x60] sm:$0xff]
    %v1195 = vld [vmem:[%s1181 + $0x68] sm:$0x1]
    %v1196 = vld [vmem:[%s1181 + $0x70] sm:$0x1]
    %v1197 = vld [vmem:[%s1181 + $0x78] sm:$0x1]
    %v1198 = vld [vmem:[%s1181 + $0x80] sm:$0x1]
    %v1199 = vld [vmem:[%s1181 + $0x88] sm:$0x1]
    %v1200 = vld [vmem:[%s1181 + $0x90] sm:$0x1]
    %v1201 = vld [vmem:[%s1181 + $0x98] sm:$0x1]
    %v1202 = vld [vmem:[%s1181 + $0xa0] sm:$0x1]
    %v1203 = vld [vmem:[%s1181 + $0xa8] sm:$0x1]
    %v1204 = vld [vmem:[%s1181 + $0xb0] sm:$0x1]
    %v1205 = vld [vmem:[%s1181 + $0xb8] sm:$0x1]
    %v1206 = vld [vmem:[%s1181 + $0xc0] sm:$0x1]
    %v1207 = vld [vmem:[%s1181 + $0xc8] sm:$0x1]
    %v1209 = vsel %vm70, %v1195, 0
    %v1212 = vsel %vm70, %v1196, 0
    %v1215 = vsel %vm70, %v1197, 0
    %v1218 = vsel %vm70, %v1198, 0
    %v1221 = vsel %vm70, %v1199, 0
    %v1224 = vsel %vm70, %v1200, 0
    %v1227 = vsel %vm70, %v1201, 0
    %v1230 = vsel %vm70, %v1202, 0
    %v1233 = vsel %vm70, %v1203, 0
    %v1236 = vsel %vm70, %v1204, 0
    %v1239 = vsel %vm70, %v1205, 0
    %v1242 = vsel %vm70, %v1206, 0
    %v1245 = vsel %vm70, %v1207, 0
    %1247 = vmatprep.subr.mxu0 0.0
    %1248 = vmatpush1.msra.mxu0 0.0
    %1249 = vmatprep.subr.mxu0 0.0
    %1250 = vmatpush1.msra.mxu0 0.0
    %1251 = vmatprep.subr.mxu0 0.0
    %1252 = vmatpush1.msra.mxu0 0.0
    %1253 = vmatprep.subr.mxu0 0.0
    %1254 = vmatpush1.msra.mxu0 0.0
    %1255 = vmatprep.subr.mxu0 0.0
    %1256 = vmatpush1.msra.mxu0 0.0
    %1257 = vmatprep.subr.mxu0 0.0
    %1258 = vmatpush1.msra.mxu0 0.0
    %1259 = vmatprep.subr.mxu0 0.0
    %1260 = vmatpush1.msra.mxu0 0.0
    %1261 = vmatprep.subr.mxu0 0.0
    %1262 = vmatpush1.msra.mxu0 0.0
    %1263 = vmatprep.subr.mxu0 0.0
    %1264 = vmatpush1.msra.mxu0 0.0
    %1265 = vmatprep.subr.mxu0 0.0
    %1266 = vmatpush1.msra.mxu0 0.0
    %1267 = vmatprep.subr.mxu0 0.0
    %1268 = vmatpush1.msra.mxu0 0.0
    %1269 = vmatprep.subr.mxu0 0.0
    %1270 = vmatpush1.msra.mxu0 0.0
    %1271 = vmatprep.subr.mxu0 0.0
    %1272 = vmatpush1.msra.mxu0 0.0
    %1273 = vmatprep.subr.mxu0 0.0
    %1274 = vmatpush1.msra.mxu0 0.0
    %1275 = vmatprep.subr.mxu0 %v1212
    %1276 = vmatpush1.msra.mxu0 %v1209
    %1277 = vmatprep.subr.mxu0 %v1183
    %1278 = vmatpush1.msra.mxu0 %v1182
    %1279 = vmatprep.subr.mxu0 0.0
    %1280 = vmatpush2.msra.mxu0 0.0
    %1281 = vmatprep.subr.mxu0 0.0
    %1282 = vmatpush2.msra.mxu0 0.0
    %1283 = vmatprep.subr.mxu0 0.0
    %1284 = vmatpush2.msra.mxu0 0.0
    %1285 = vmatprep.subr.mxu0 0.0
    %1286 = vmatpush2.msra.mxu0 0.0
    %1287 = vmatprep.subr.mxu0 0.0
    %1288 = vmatpush2.msra.mxu0 0.0
    %1289 = vmatprep.subr.mxu0 0.0
    %1290 = vmatpush2.msra.mxu0 0.0
    %1291 = vmatprep.subr.mxu0 0.0
    %1292 = vmatpush2.msra.mxu0 0.0
    %1293 = vmatprep.subr.mxu0 0.0
    %1294 = vmatpush2.msra.mxu0 0.0
    %1295 = vmatprep.subr.mxu0 0.0
    %1296 = vmatpush2.msra.mxu0 0.0
    %1297 = vmatprep.subr.mxu0 0.0
    %1298 = vmatpush2.msra.mxu0 0.0
    %1299 = vmatprep.subr.mxu0 0.0
    %1300 = vmatpush2.msra.mxu0 0.0
    %1301 = vmatprep.subr.mxu0 0.0
    %1302 = vmatpush2.msra.mxu0 0.0
    %1303 = vmatprep.subr.mxu0 0.0
    %1304 = vmatpush2.msra.mxu0 0.0
    %1305 = vmatprep.subr.mxu0 0.0
    %1306 = vmatpush2.msra.mxu0 0.0
    %1307 = vmatprep.subr.mxu0 0.0
    %1308 = vmatpush2.msra.mxu0 0.0
    %1309 = vmatprep.subr.mxu0 0.0
    %1310 = vmatpush2.msra.mxu0 0.0
    %1311 = vmatprep.mubr.f32.mxu0 0.0
    %1312 = vmatmul.mubr.f32.gmra.mxu0 %v68
    %v1313 = vpop.f32.mrf.mxu0
    %v1314 = vadd.f32 0.0, %v1313
    %v1315 = vpop.f32.mrf.mxu0
    %v1316 = vadd.f32 0.0, %v1315
    %1317 = vdwg.mxu0
    %1318 = vmatprep.subr.mxu0 0.0
    %1319 = vmatpush1.msra.mxu0 0.0
    %1320 = vmatprep.subr.mxu0 0.0
    %1321 = vmatpush1.msra.mxu0 0.0
    %1322 = vmatprep.subr.mxu0 0.0
    %1323 = vmatpush1.msra.mxu0 0.0
    %1324 = vmatprep.subr.mxu0 0.0
    %1325 = vmatpush1.msra.mxu0 0.0
    %1326 = vmatprep.subr.mxu0 0.0
    %1327 = vmatpush1.msra.mxu0 0.0
    %1328 = vmatprep.subr.mxu0 0.0
    %1329 = vmatpush1.msra.mxu0 0.0
    %1330 = vmatprep.subr.mxu0 0.0
    %1331 = vmatpush1.msra.mxu0 0.0
    %1332 = vmatprep.subr.mxu0 0.0
    %1333 = vmatpush1.msra.mxu0 0.0
    %1334 = vmatprep.subr.mxu0 0.0
    %1335 = vmatpush1.msra.mxu0 0.0
    %1336 = vmatprep.subr.mxu0 0.0
    %1337 = vmatpush1.msra.mxu0 0.0
    %1338 = vmatprep.subr.mxu0 0.0
    %1339 = vmatpush1.msra.mxu0 0.0
    %1340 = vmatprep.subr.mxu0 0.0
    %1341 = vmatpush1.msra.mxu0 0.0
    %1342 = vmatprep.subr.mxu0 0.0
    %1343 = vmatpush1.msra.mxu0 0.0
    %1344 = vmatprep.subr.mxu0 0.0
    %1345 = vmatpush1.msra.mxu0 0.0
    %1346 = vmatprep.subr.mxu0 %v1218
    %1347 = vmatpush1.msra.mxu0 %v1215
    %1348 = vmatprep.subr.mxu0 %v1185
    %1349 = vmatpush1.msra.mxu0 %v1184
    %1350 = vmatprep.subr.mxu0 0.0
    %1351 = vmatpush2.msra.mxu0 0.0
    %1352 = vmatprep.subr.mxu0 0.0
    %1353 = vmatpush2.msra.mxu0 0.0
    %1354 = vmatprep.subr.mxu0 0.0
    %1355 = vmatpush2.msra.mxu0 0.0
    %1356 = vmatprep.subr.mxu0 0.0
    %1357 = vmatpush2.msra.mxu0 0.0
    %1358 = vmatprep.subr.mxu0 0.0
    %1359 = vmatpush2.msra.mxu0 0.0
    %1360 = vmatprep.subr.mxu0 0.0
    %1361 = vmatpush2.msra.mxu0 0.0
    %1362 = vmatprep.subr.mxu0 0.0
    %1363 = vmatpush2.msra.mxu0 0.0
    %1364 = vmatprep.subr.mxu0 0.0
    %1365 = vmatpush2.msra.mxu0 0.0
    %1366 = vmatprep.subr.mxu0 0.0
    %1367 = vmatpush2.msra.mxu0 0.0
    %1368 = vmatprep.subr.mxu0 0.0
    %1369 = vmatpush2.msra.mxu0 0.0
    %1370 = vmatprep.subr.mxu0 0.0
    %1371 = vmatpush2.msra.mxu0 0.0
    %1372 = vmatprep.subr.mxu0 0.0
    %1373 = vmatpush2.msra.mxu0 0.0
    %1374 = vmatprep.subr.mxu0 0.0
    %1375 = vmatpush2.msra.mxu0 0.0
    %1376 = vmatprep.subr.mxu0 0.0
    %1377 = vmatpush2.msra.mxu0 0.0
    %1378 = vmatprep.subr.mxu0 0.0
    %1379 = vmatpush2.msra.mxu0 0.0
    %1380 = vmatprep.subr.mxu0 0.0
    %1381 = vmatpush2.msra.mxu0 0.0
    %1382 = vmatprep.mubr.f32.mxu0 0.0
    %1383 = vmatmul.mubr.f32.gmra.mxu0 %v68
    %v1384 = vpop.f32.mrf.mxu0
    %v1385 = vadd.f32 0.0, %v1384
    %v1386 = vpop.f32.mrf.mxu0
    %v1387 = vadd.f32 0.0, %v1386
    %1388 = vdwg.mxu0
    %1389 = vmatprep.subr.mxu0 0.0
    %1390 = vmatpush1.msra.mxu0 0.0
    %1391 = vmatprep.subr.mxu0 0.0
    %1392 = vmatpush1.msra.mxu0 0.0
    %1393 = vmatprep.subr.mxu0 0.0
    %1394 = vmatpush1.msra.mxu0 0.0
    %1395 = vmatprep.subr.mxu0 0.0
    %1396 = vmatpush1.msra.mxu0 0.0
    %1397 = vmatprep.subr.mxu0 0.0
    %1398 = vmatpush1.msra.mxu0 0.0
    %1399 = vmatprep.subr.mxu0 0.0
    %1400 = vmatpush1.msra.mxu0 0.0
    %1401 = vmatprep.subr.mxu0 0.0
    %1402 = vmatpush1.msra.mxu0 0.0
    %1403 = vmatprep.subr.mxu0 0.0
    %1404 = vmatpush1.msra.mxu0 0.0
    %1405 = vmatprep.subr.mxu0 0.0
    %1406 = vmatpush1.msra.mxu0 0.0
    %1407 = vmatprep.subr.mxu0 0.0
    %1408 = vmatpush1.msra.mxu0 0.0
    %1409 = vmatprep.subr.mxu0 0.0
    %1410 = vmatpush1.msra.mxu0 0.0
    %1411 = vmatprep.subr.mxu0 0.0
    %1412 = vmatpush1.msra.mxu0 0.0
    %1413 = vmatprep.subr.mxu0 0.0
    %1414 = vmatpush1.msra.mxu0 0.0
    %1415 = vmatprep.subr.mxu0 0.0
    %1416 = vmatpush1.msra.mxu0 0.0
    %1417 = vmatprep.subr.mxu0 %v1224
    %1418 = vmatpush1.msra.mxu0 %v1221
    %1419 = vmatprep.subr.mxu0 %v1187
    %1420 = vmatpush1.msra.mxu0 %v1186
    %1421 = vmatprep.subr.mxu0 0.0
    %1422 = vmatpush2.msra.mxu0 0.0
    %1423 = vmatprep.subr.mxu0 0.0
    %1424 = vmatpush2.msra.mxu0 0.0
    %1425 = vmatprep.subr.mxu0 0.0
    %1426 = vmatpush2.msra.mxu0 0.0
    %1427 = vmatprep.subr.mxu0 0.0
    %1428 = vmatpush2.msra.mxu0 0.0
    %1429 = vmatprep.subr.mxu0 0.0
    %1430 = vmatpush2.msra.mxu0 0.0
    %1431 = vmatprep.subr.mxu0 0.0
    %1432 = vmatpush2.msra.mxu0 0.0
    %1433 = vmatprep.subr.mxu0 0.0
    %1434 = vmatpush2.msra.mxu0 0.0
    %1435 = vmatprep.subr.mxu0 0.0
    %1436 = vmatpush2.msra.mxu0 0.0
    %1437 = vmatprep.subr.mxu0 0.0
    %1438 = vmatpush2.msra.mxu0 0.0
    %1439 = vmatprep.subr.mxu0 0.0
    %1440 = vmatpush2.msra.mxu0 0.0
    %1441 = vmatprep.subr.mxu0 0.0
    %1442 = vmatpush2.msra.mxu0 0.0
    %1443 = vmatprep.subr.mxu0 0.0
    %1444 = vmatpush2.msra.mxu0 0.0
    %1445 = vmatprep.subr.mxu0 0.0
    %1446 = vmatpush2.msra.mxu0 0.0
    %1447 = vmatprep.subr.mxu0 0.0
    %1448 = vmatpush2.msra.mxu0 0.0
    %1449 = vmatprep.subr.mxu0 0.0
    %1450 = vmatpush2.msra.mxu0 0.0
    %1451 = vmatprep.subr.mxu0 0.0
    %1452 = vmatpush2.msra.mxu0 0.0
    %1453 = vmatprep.mubr.f32.mxu0 0.0
    %1454 = vmatmul.mubr.f32.gmra.mxu0 %v68
    %v1455 = vpop.f32.mrf.mxu0
    %v1456 = vadd.f32 0.0, %v1455
    %v1457 = vpop.f32.mrf.mxu0
    %v1458 = vadd.f32 0.0, %v1457
    %1459 = vdwg.mxu0
    %1460 = vmatprep.subr.mxu0 0.0
    %1461 = vmatpush1.msra.mxu0 0.0
    %1462 = vmatprep.subr.mxu0 0.0
    %1463 = vmatpush1.msra.mxu0 0.0
    %1464 = vmatprep.subr.mxu0 0.0
    %1465 = vmatpush1.msra.mxu0 0.0
    %1466 = vmatprep.subr.mxu0 0.0
    %1467 = vmatpush1.msra.mxu0 0.0
    %1468 = vmatprep.subr.mxu0 0.0
    %1469 = vmatpush1.msra.mxu0 0.0
    %1470 = vmatprep.subr.mxu0 0.0
    %1471 = vmatpush1.msra.mxu0 0.0
    %1472 = vmatprep.subr.mxu0 0.0
    %1473 = vmatpush1.msra.mxu0 0.0
    %1474 = vmatprep.subr.mxu0 0.0
    %1475 = vmatpush1.msra.mxu0 0.0
    %1476 = vmatprep.subr.mxu0 0.0
    %1477 = vmatpush1.msra.mxu0 0.0
    %1478 = vmatprep.subr.mxu0 0.0
    %1479 = vmatpush1.msra.mxu0 0.0
    %1480 = vmatprep.subr.mxu0 0.0
    %1481 = vmatpush1.msra.mxu0 0.0
    %1482 = vmatprep.subr.mxu0 0.0
    %1483 = vmatpush1.msra.mxu0 0.0
    %1484 = vmatprep.subr.mxu0 0.0
    %1485 = vmatpush1.msra.mxu0 0.0
    %1486 = vmatprep.subr.mxu0 0.0
    %1487 = vmatpush1.msra.mxu0 0.0
    %1488 = vmatprep.subr.mxu0 %v1230
    %1489 = vmatpush1.msra.mxu0 %v1227
    %1490 = vmatprep.subr.mxu0 %v1189
    %1491 = vmatpush1.msra.mxu0 %v1188
    %1492 = vmatprep.subr.mxu0 0.0
    %1493 = vmatpush2.msra.mxu0 0.0
    %1494 = vmatprep.subr.mxu0 0.0
    %1495 = vmatpush2.msra.mxu0 0.0
    %1496 = vmatprep.subr.mxu0 0.0
    %1497 = vmatpush2.msra.mxu0 0.0
    %1498 = vmatprep.subr.mxu0 0.0
    %1499 = vmatpush2.msra.mxu0 0.0
    %1500 = vmatprep.subr.mxu0 0.0
    %1501 = vmatpush2.msra.mxu0 0.0
    %1502 = vmatprep.subr.mxu0 0.0
    %1503 = vmatpush2.msra.mxu0 0.0
    %1504 = vmatprep.subr.mxu0 0.0
    %1505 = vmatpush2.msra.mxu0 0.0
    %1506 = vmatprep.subr.mxu0 0.0
    %1507 = vmatpush2.msra.mxu0 0.0
    %1508 = vmatprep.subr.mxu0 0.0
    %1509 = vmatpush2.msra.mxu0 0.0
    %1510 = vmatprep.subr.mxu0 0.0
    %1511 = vmatpush2.msra.mxu0 0.0
    %1512 = vmatprep.subr.mxu0 0.0
    %1513 = vmatpush2.msra.mxu0 0.0
    %1514 = vmatprep.subr.mxu0 0.0
    %1515 = vmatpush2.msra.mxu0 0.0
    %1516 = vmatprep.subr.mxu0 0.0
    %1517 = vmatpush2.msra.mxu0 0.0
    %1518 = vmatprep.subr.mxu0 0.0
    %1519 = vmatpush2.msra.mxu0 0.0
    %1520 = vmatprep.subr.mxu0 0.0
    %1521 = vmatpush2.msra.mxu0 0.0
    %1522 = vmatprep.subr.mxu0 0.0
    %1523 = vmatpush2.msra.mxu0 0.0
    %1524 = vmatprep.mubr.f32.mxu0 0.0
    %1525 = vmatmul.mubr.f32.gmra.mxu0 %v68
    %v1526 = vpop.f32.mrf.mxu0
    %v1527 = vadd.f32 0.0, %v1526
    %v1528 = vpop.f32.mrf.mxu0
    %v1529 = vadd.f32 0.0, %v1528
    %1530 = vdwg.mxu0
    %1531 = vmatprep.subr.mxu0 0.0
    %1532 = vmatpush1.msra.mxu0 0.0
    %1533 = vmatprep.subr.mxu0 0.0
    %1534 = vmatpush1.msra.mxu0 0.0
    %1535 = vmatprep.subr.mxu0 0.0
    %1536 = vmatpush1.msra.mxu0 0.0
    %1537 = vmatprep.subr.mxu0 0.0
    %1538 = vmatpush1.msra.mxu0 0.0
    %1539 = vmatprep.subr.mxu0 0.0
    %1540 = vmatpush1.msra.mxu0 0.0
    %1541 = vmatprep.subr.mxu0 0.0
    %1542 = vmatpush1.msra.mxu0 0.0
    %1543 = vmatprep.subr.mxu0 0.0
    %1544 = vmatpush1.msra.mxu0 0.0
    %1545 = vmatprep.subr.mxu0 0.0
    %1546 = vmatpush1.msra.mxu0 0.0
    %1547 = vmatprep.subr.mxu0 0.0
    %1548 = vmatpush1.msra.mxu0 0.0
    %1549 = vmatprep.subr.mxu0 0.0
    %1550 = vmatpush1.msra.mxu0 0.0
    %1551 = vmatprep.subr.mxu0 0.0
    %1552 = vmatpush1.msra.mxu0 0.0
    %1553 = vmatprep.subr.mxu0 0.0
    %1554 = vmatpush1.msra.mxu0 0.0
    %1555 = vmatprep.subr.mxu0 0.0
    %1556 = vmatpush1.msra.mxu0 0.0
    %1557 = vmatprep.subr.mxu0 0.0
    %1558 = vmatpush1.msra.mxu0 0.0
    %1559 = vmatprep.subr.mxu0 %v1236
    %1560 = vmatpush1.msra.mxu0 %v1233
    %1561 = vmatprep.subr.mxu0 %v1191
    %1562 = vmatpush1.msra.mxu0 %v1190
    %1563 = vmatprep.subr.mxu0 0.0
    %1564 = vmatpush2.msra.mxu0 0.0
    %1565 = vmatprep.subr.mxu0 0.0
    %1566 = vmatpush2.msra.mxu0 0.0
    %1567 = vmatprep.subr.mxu0 0.0
    %1568 = vmatpush2.msra.mxu0 0.0
    %1569 = vmatprep.subr.mxu0 0.0
    %1570 = vmatpush2.msra.mxu0 0.0
    %1571 = vmatprep.subr.mxu0 0.0
    %1572 = vmatpush2.msra.mxu0 0.0
    %1573 = vmatprep.subr.mxu0 0.0
    %1574 = vmatpush2.msra.mxu0 0.0
    %1575 = vmatprep.subr.mxu0 0.0
    %1576 = vmatpush2.msra.mxu0 0.0
    %1577 = vmatprep.subr.mxu0 0.0
    %1578 = vmatpush2.msra.mxu0 0.0
    %1579 = vmatprep.subr.mxu0 0.0
    %1580 = vmatpush2.msra.mxu0 0.0
    %1581 = vmatprep.subr.mxu0 0.0
    %1582 = vmatpush2.msra.mxu0 0.0
    %1583 = vmatprep.subr.mxu0 0.0
    %1584 = vmatpush2.msra.mxu0 0.0
    %1585 = vmatprep.subr.mxu0 0.0
    %1586 = vmatpush2.msra.mxu0 0.0
    %1587 = vmatprep.subr.mxu0 0.0
    %1588 = vmatpush2.msra.mxu0 0.0
    %1589 = vmatprep.subr.mxu0 0.0
    %1590 = vmatpush2.msra.mxu0 0.0
    %1591 = vmatprep.subr.mxu0 0.0
    %1592 = vmatpush2.msra.mxu0 0.0
    %1593 = vmatprep.subr.mxu0 0.0
    %1594 = vmatpush2.msra.mxu0 0.0
    %1595 = vmatprep.mubr.f32.mxu0 0.0
    %1596 = vmatmul.mubr.f32.gmra.mxu0 %v68
    %v1597 = vpop.f32.mrf.mxu0
    %v1598 = vadd.f32 0.0, %v1597
    %v1599 = vpop.f32.mrf.mxu0
    %v1600 = vadd.f32 0.0, %v1599
    %1601 = vdwg.mxu0
    %1602 = vmatprep.subr.mxu0 0.0
    %1603 = vmatpush1.msra.mxu0 0.0
    %1604 = vmatprep.subr.mxu0 0.0
    %1605 = vmatpush1.msra.mxu0 0.0
    %1606 = vmatprep.subr.mxu0 0.0
    %1607 = vmatpush1.msra.mxu0 0.0
    %1608 = vmatprep.subr.mxu0 0.0
    %1609 = vmatpush1.msra.mxu0 0.0
    %1610 = vmatprep.subr.mxu0 0.0
    %1611 = vmatpush1.msra.mxu0 0.0
    %1612 = vmatprep.subr.mxu0 0.0
    %1613 = vmatpush1.msra.mxu0 0.0
    %1614 = vmatprep.subr.mxu0 0.0
    %1615 = vmatpush1.msra.mxu0 0.0
    %1616 = vmatprep.subr.mxu0 0.0
    %1617 = vmatpush1.msra.mxu0 0.0
    %1618 = vmatprep.subr.mxu0 0.0
    %1619 = vmatpush1.msra.mxu0 0.0
    %1620 = vmatprep.subr.mxu0 0.0
    %1621 = vmatpush1.msra.mxu0 0.0
    %1622 = vmatprep.subr.mxu0 0.0
    %1623 = vmatpush1.msra.mxu0 0.0
    %1624 = vmatprep.subr.mxu0 0.0
    %1625 = vmatpush1.msra.mxu0 0.0
    %1626 = vmatprep.subr.mxu0 0.0
    %1627 = vmatpush1.msra.mxu0 0.0
    %1628 = vmatprep.subr.mxu0 0.0
    %1629 = vmatpush1.msra.mxu0 0.0
    %1630 = vmatprep.subr.mxu0 %v1242
    %1631 = vmatpush1.msra.mxu0 %v1239
    %1632 = vmatprep.subr.mxu0 %v1193
    %1633 = vmatpush1.msra.mxu0 %v1192
    %1634 = vmatprep.subr.mxu0 0.0
    %1635 = vmatpush2.msra.mxu0 0.0
    %1636 = vmatprep.subr.mxu0 0.0
    %1637 = vmatpush2.msra.mxu0 0.0
    %1638 = vmatprep.subr.mxu0 0.0
    %1639 = vmatpush2.msra.mxu0 0.0
    %1640 = vmatprep.subr.mxu0 0.0
    %1641 = vmatpush2.msra.mxu0 0.0
    %1642 = vmatprep.subr.mxu0 0.0
    %1643 = vmatpush2.msra.mxu0 0.0
    %1644 = vmatprep.subr.mxu0 0.0
    %1645 = vmatpush2.msra.mxu0 0.0
    %1646 = vmatprep.subr.mxu0 0.0
    %1647 = vmatpush2.msra.mxu0 0.0
    %1648 = vmatprep.subr.mxu0 0.0
    %1649 = vmatpush2.msra.mxu0 0.0
    %1650 = vmatprep.subr.mxu0 0.0
    %1651 = vmatpush2.msra.mxu0 0.0
    %1652 = vmatprep.subr.mxu0 0.0
    %1653 = vmatpush2.msra.mxu0 0.0
    %1654 = vmatprep.subr.mxu0 0.0
    %1655 = vmatpush2.msra.mxu0 0.0
    %1656 = vmatprep.subr.mxu0 0.0
    %1657 = vmatpush2.msra.mxu0 0.0
    %1658 = vmatprep.subr.mxu0 0.0
    %1659 = vmatpush2.msra.mxu0 0.0
    %1660 = vmatprep.subr.mxu0 0.0
    %1661 = vmatpush2.msra.mxu0 0.0
    %1662 = vmatprep.subr.mxu0 0.0
    %1663 = vmatpush2.msra.mxu0 0.0
    %1664 = vmatprep.subr.mxu0 0.0
    %1665 = vmatpush2.msra.mxu0 0.0
    %1666 = vmatprep.mubr.f32.mxu0 0.0
    %1667 = vmatmul.mubr.f32.gmra.mxu0 %v68
    %v1668 = vpop.f32.mrf.mxu0
    %v1669 = vadd.f32 0.0, %v1668
    %v1670 = vpop.f32.mrf.mxu0
    %v1671 = vadd.f32 0.0, %v1670
    %1672 = vdwg.mxu0
    %1673 = vmatprep.subr.mxu0 0.0
    %1674 = vmatpush1.msra.mxu0 0.0
    %1675 = vmatprep.subr.mxu0 0.0
    %1676 = vmatpush1.msra.mxu0 0.0
    %1677 = vmatprep.subr.mxu0 0.0
    %1678 = vmatpush1.msra.mxu0 0.0
    %1679 = vmatprep.subr.mxu0 0.0
    %1680 = vmatpush1.msra.mxu0 0.0
    %1681 = vmatprep.subr.mxu0 0.0
    %1682 = vmatpush1.msra.mxu0 0.0
    %1683 = vmatprep.subr.mxu0 0.0
    %1684 = vmatpush1.msra.mxu0 0.0
    %1685 = vmatprep.subr.mxu0 0.0
    %1686 = vmatpush1.msra.mxu0 0.0
    %1687 = vmatprep.subr.mxu0 0.0
    %1688 = vmatpush1.msra.mxu0 0.0
    %1689 = vmatprep.subr.mxu0 0.0
    %1690 = vmatpush1.msra.mxu0 0.0
    %1691 = vmatprep.subr.mxu0 0.0
    %1692 = vmatpush1.msra.mxu0 0.0
    %1693 = vmatprep.subr.mxu0 0.0
    %1694 = vmatpush1.msra.mxu0 0.0
    %1695 = vmatprep.subr.mxu0 0.0
    %1696 = vmatpush1.msra.mxu0 0.0
    %1697 = vmatprep.subr.mxu0 0.0
    %1698 = vmatpush1.msra.mxu0 0.0
    %1699 = vmatprep.subr.mxu0 0.0
    %1700 = vmatpush1.msra.mxu0 0.0
    %1701 = vmatprep.subr.mxu0 0.0
    %1702 = vmatpush1.msra.mxu0 %v1245
    %1703 = vmatprep.subr.mxu0 0.0
    %1704 = vmatpush1.msra.mxu0 %v1194
    %1705 = vmatprep.subr.mxu0 0.0
    %1706 = vmatpush2.msra.mxu0 0.0
    %1707 = vmatprep.subr.mxu0 0.0
    %1708 = vmatpush2.msra.mxu0 0.0
    %1709 = vmatprep.subr.mxu0 0.0
    %1710 = vmatpush2.msra.mxu0 0.0
    %1711 = vmatprep.subr.mxu0 0.0
    %1712 = vmatpush2.msra.mxu0 0.0
    %1713 = vmatprep.subr.mxu0 0.0
    %1714 = vmatpush2.msra.mxu0 0.0
    %1715 = vmatprep.subr.mxu0 0.0
    %1716 = vmatpush2.msra.mxu0 0.0
    %1717 = vmatprep.subr.mxu0 0.0
    %1718 = vmatpush2.msra.mxu0 0.0
    %1719 = vmatprep.subr.mxu0 0.0
    %1720 = vmatpush2.msra.mxu0 0.0
    %1721 = vmatprep.subr.mxu0 0.0
    %1722 = vmatpush2.msra.mxu0 0.0
    %1723 = vmatprep.subr.mxu0 0.0
    %1724 = vmatpush2.msra.mxu0 0.0
    %1725 = vmatprep.subr.mxu0 0.0
    %1726 = vmatpush2.msra.mxu0 0.0
    %1727 = vmatprep.subr.mxu0 0.0
    %1728 = vmatpush2.msra.mxu0 0.0
    %1729 = vmatprep.subr.mxu0 0.0
    %1730 = vmatpush2.msra.mxu0 0.0
    %1731 = vmatprep.subr.mxu0 0.0
    %1732 = vmatpush2.msra.mxu0 0.0
    %1733 = vmatprep.subr.mxu0 0.0
    %1734 = vmatpush2.msra.mxu0 0.0
    %1735 = vmatprep.subr.mxu0 0.0
    %1736 = vmatpush2.msra.mxu0 0.0
    %1737 = vmatprep.mubr.f32.mxu0 0.0
    %1738 = vmatmul.mubr.f32.gmra.mxu0 %v68
    %v1739 = vpop.f32.mrf.mxu0
    %v1740 = vadd.f32 0.0, %v1739
    %v1741 = vpop.f32.mrf.mxu0
    %1742 = vdwg.mxu0
    %v1743 = vmax.f32 %v1168, %v1314
    %v1744 = vmax.f32 %v1169, %v1316
    %v1745 = vmax.f32 %v1170, %v1385
    %v1746 = vmax.f32 %v1171, %v1387
    %v1747 = vmax.f32 %v1172, %v1456
    %v1748 = vmax.f32 %v1173, %v1458
    %v1749 = vmax.f32 %v1174, %v1527
    %v1750 = vmax.f32 %v1175, %v1529
    %v1751 = vmax.f32 %v1176, %v1598
    %v1752 = vmax.f32 %v1177, %v1600
    %v1753 = vmax.f32 %v1178, %v1669
    %v1754 = vmax.f32 %v1179, %v1671
    %v1755 = vmax.f32 %v1180, %v1740
    %s1756 = scalar_lea.vmem %s0, 624
    %v1757 = vld [vmem:[%s1756] sm:$0xff]
    %v1758 = vld [vmem:[%s1756 + $0x8] sm:$0xff]
    %v1759 = vld [vmem:[%s1756 + $0x10] sm:$0xff]
    %v1760 = vld [vmem:[%s1756 + $0x18] sm:$0xff]
    %v1761 = vld [vmem:[%s1756 + $0x20] sm:$0xff]
    %v1762 = vld [vmem:[%s1756 + $0x28] sm:$0xff]
    %v1763 = vld [vmem:[%s1756 + $0x30] sm:$0xff]
    %v1764 = vld [vmem:[%s1756 + $0x38] sm:$0xff]
    %v1765 = vld [vmem:[%s1756 + $0x40] sm:$0xff]
    %v1766 = vld [vmem:[%s1756 + $0x48] sm:$0xff]
    %v1767 = vld [vmem:[%s1756 + $0x50] sm:$0xff]
    %v1768 = vld [vmem:[%s1756 + $0x58] sm:$0xff]
    %v1769 = vld [vmem:[%s1756 + $0x60] sm:$0xff]
    %v1770 = vld [vmem:[%s1756 + $0x68] sm:$0x1]
    %v1771 = vld [vmem:[%s1756 + $0x70] sm:$0x1]
    %v1772 = vld [vmem:[%s1756 + $0x78] sm:$0x1]
    %v1773 = vld [vmem:[%s1756 + $0x80] sm:$0x1]
    %v1774 = vld [vmem:[%s1756 + $0x88] sm:$0x1]
    %v1775 = vld [vmem:[%s1756 + $0x90] sm:$0x1]
    %v1776 = vld [vmem:[%s1756 + $0x98] sm:$0x1]
    %v1777 = vld [vmem:[%s1756 + $0xa0] sm:$0x1]
    %v1778 = vld [vmem:[%s1756 + $0xa8] sm:$0x1]
    %v1779 = vld [vmem:[%s1756 + $0xb0] sm:$0x1]
    %v1780 = vld [vmem:[%s1756 + $0xb8] sm:$0x1]
    %v1781 = vld [vmem:[%s1756 + $0xc0] sm:$0x1]
    %v1782 = vld [vmem:[%s1756 + $0xc8] sm:$0x1]
    %v1784 = vsel %vm70, %v1770, 0
    %v1787 = vsel %vm70, %v1771, 0
    %v1790 = vsel %vm70, %v1772, 0
    %v1793 = vsel %vm70, %v1773, 0
    %v1796 = vsel %vm70, %v1774, 0
    %v1799 = vsel %vm70, %v1775, 0
    %v1802 = vsel %vm70, %v1776, 0
    %v1805 = vsel %vm70, %v1777, 0
    %v1808 = vsel %vm70, %v1778, 0
    %v1811 = vsel %vm70, %v1779, 0
    %v1814 = vsel %vm70, %v1780, 0
    %v1817 = vsel %vm70, %v1781, 0
    %v1820 = vsel %vm70, %v1782, 0
    %1822 = vmatprep.subr.mxu0 0.0
    %1823 = vmatpush1.msra.mxu0 0.0
    %1824 = vmatprep.subr.mxu0 0.0
    %1825 = vmatpush1.msra.mxu0 0.0
    %1826 = vmatprep.subr.mxu0 0.0
    %1827 = vmatpush1.msra.mxu0 0.0
    %1828 = vmatprep.subr.mxu0 0.0
    %1829 = vmatpush1.msra.mxu0 0.0
    %1830 = vmatprep.subr.mxu0 0.0
    %1831 = vmatpush1.msra.mxu0 0.0
    %1832 = vmatprep.subr.mxu0 0.0
    %1833 = vmatpush1.msra.mxu0 0.0
    %1834 = vmatprep.subr.mxu0 0.0
    %1835 = vmatpush1.msra.mxu0 0.0
    %1836 = vmatprep.subr.mxu0 0.0
    %1837 = vmatpush1.msra.mxu0 0.0
    %1838 = vmatprep.subr.mxu0 0.0
    %1839 = vmatpush1.msra.mxu0 0.0
    %1840 = vmatprep.subr.mxu0 0.0
    %1841 = vmatpush1.msra.mxu0 0.0
    %1842 = vmatprep.subr.mxu0 0.0
    %1843 = vmatpush1.msra.mxu0 0.0
    %1844 = vmatprep.subr.mxu0 0.0
    %1845 = vmatpush1.msra.mxu0 0.0
    %1846 = vmatprep.subr.mxu0 0.0
    %1847 = vmatpush1.msra.mxu0 0.0
    %1848 = vmatprep.subr.mxu0 0.0
    %1849 = vmatpush1.msra.mxu0 0.0
    %1850 = vmatprep.subr.mxu0 %v1787
    %1851 = vmatpush1.msra.mxu0 %v1784
    %1852 = vmatprep.subr.mxu0 %v1758
    %1853 = vmatpush1.msra.mxu0 %v1757
    %1854 = vmatprep.subr.mxu0 0.0
    %1855 = vmatpush2.msra.mxu0 0.0
    %1856 = vmatprep.subr.mxu0 0.0
    %1857 = vmatpush2.msra.mxu0 0.0
    %1858 = vmatprep.subr.mxu0 0.0
    %1859 = vmatpush2.msra.mxu0 0.0
    %1860 = vmatprep.subr.mxu0 0.0
    %1861 = vmatpush2.msra.mxu0 0.0
    %1862 = vmatprep.subr.mxu0 0.0
    %1863 = vmatpush2.msra.mxu0 0.0
    %1864 = vmatprep.subr.mxu0 0.0
    %1865 = vmatpush2.msra.mxu0 0.0
    %1866 = vmatprep.subr.mxu0 0.0
    %1867 = vmatpush2.msra.mxu0 0.0
    %1868 = vmatprep.subr.mxu0 0.0
    %1869 = vmatpush2.msra.mxu0 0.0
    %1870 = vmatprep.subr.mxu0 0.0
    %1871 = vmatpush2.msra.mxu0 0.0
    %1872 = vmatprep.subr.mxu0 0.0
    %1873 = vmatpush2.msra.mxu0 0.0
    %1874 = vmatprep.subr.mxu0 0.0
    %1875 = vmatpush2.msra.mxu0 0.0
    %1876 = vmatprep.subr.mxu0 0.0
    %1877 = vmatpush2.msra.mxu0 0.0
    %1878 = vmatprep.subr.mxu0 0.0
    %1879 = vmatpush2.msra.mxu0 0.0
    %1880 = vmatprep.subr.mxu0 0.0
    %1881 = vmatpush2.msra.mxu0 0.0
    %1882 = vmatprep.subr.mxu0 0.0
    %1883 = vmatpush2.msra.mxu0 0.0
    %1884 = vmatprep.subr.mxu0 0.0
    %1885 = vmatpush2.msra.mxu0 0.0
    %1886 = vmatprep.mubr.f32.mxu0 0.0
    %1887 = vmatmul.mubr.f32.gmra.mxu0 %v68
    %v1888 = vpop.f32.mrf.mxu0
    %v1889 = vadd.f32 0.0, %v1888
    %v1890 = vpop.f32.mrf.mxu0
    %v1891 = vadd.f32 0.0, %v1890
    %1892 = vdwg.mxu0
    %1893 = vmatprep.subr.mxu0 0.0
    %1894 = vmatpush1.msra.mxu0 0.0
    %1895 = vmatprep.subr.mxu0 0.0
    %1896 = vmatpush1.msra.mxu0 0.0
    %1897 = vmatprep.subr.mxu0 0.0
    %1898 = vmatpush1.msra.mxu0 0.0
    %1899 = vmatprep.subr.mxu0 0.0
    %1900 = vmatpush1.msra.mxu0 0.0
    %1901 = vmatprep.subr.mxu0 0.0
    %1902 = vmatpush1.msra.mxu0 0.0
    %1903 = vmatprep.subr.mxu0 0.0
    %1904 = vmatpush1.msra.mxu0 0.0
    %1905 = vmatprep.subr.mxu0 0.0
    %1906 = vmatpush1.msra.mxu0 0.0
    %1907 = vmatprep.subr.mxu0 0.0
    %1908 = vmatpush1.msra.mxu0 0.0
    %1909 = vmatprep.subr.mxu0 0.0
    %1910 = vmatpush1.msra.mxu0 0.0
    %1911 = vmatprep.subr.mxu0 0.0
    %1912 = vmatpush1.msra.mxu0 0.0
    %1913 = vmatprep.subr.mxu0 0.0
    %1914 = vmatpush1.msra.mxu0 0.0
    %1915 = vmatprep.subr.mxu0 0.0
    %1916 = vmatpush1.msra.mxu0 0.0
    %1917 = vmatprep.subr.mxu0 0.0
    %1918 = vmatpush1.msra.mxu0 0.0
    %1919 = vmatprep.subr.mxu0 0.0
    %1920 = vmatpush1.msra.mxu0 0.0
    %1921 = vmatprep.subr.mxu0 %v1793
    %1922 = vmatpush1.msra.mxu0 %v1790
    %1923 = vmatprep.subr.mxu0 %v1760
    %1924 = vmatpush1.msra.mxu0 %v1759
    %1925 = vmatprep.subr.mxu0 0.0
    %1926 = vmatpush2.msra.mxu0 0.0
    %1927 = vmatprep.subr.mxu0 0.0
    %1928 = vmatpush2.msra.mxu0 0.0
    %1929 = vmatprep.subr.mxu0 0.0
    %1930 = vmatpush2.msra.mxu0 0.0
    %1931 = vmatprep.subr.mxu0 0.0
    %1932 = vmatpush2.msra.mxu0 0.0
    %1933 = vmatprep.subr.mxu0 0.0
    %1934 = vmatpush2.msra.mxu0 0.0
    %1935 = vmatprep.subr.mxu0 0.0
    %1936 = vmatpush2.msra.mxu0 0.0
    %1937 = vmatprep.subr.mxu0 0.0
    %1938 = vmatpush2.msra.mxu0 0.0
    %1939 = vmatprep.subr.mxu0 0.0
    %1940 = vmatpush2.msra.mxu0 0.0
    %1941 = vmatprep.subr.mxu0 0.0
    %1942 = vmatpush2.msra.mxu0 0.0
    %1943 = vmatprep.subr.mxu0 0.0
    %1944 = vmatpush2.msra.mxu0 0.0
    %1945 = vmatprep.subr.mxu0 0.0
    %1946 = vmatpush2.msra.mxu0 0.0
    %1947 = vmatprep.subr.mxu0 0.0
    %1948 = vmatpush2.msra.mxu0 0.0
    %1949 = vmatprep.subr.mxu0 0.0
    %1950 = vmatpush2.msra.mxu0 0.0
    %1951 = vmatprep.subr.mxu0 0.0
    %1952 = vmatpush2.msra.mxu0 0.0
    %1953 = vmatprep.subr.mxu0 0.0
    %1954 = vmatpush2.msra.mxu0 0.0
    %1955 = vmatprep.subr.mxu0 0.0
    %1956 = vmatpush2.msra.mxu0 0.0
    %1957 = vmatprep.mubr.f32.mxu0 0.0
    %1958 = vmatmul.mubr.f32.gmra.mxu0 %v68
    %v1959 = vpop.f32.mrf.mxu0
    %v1960 = vadd.f32 0.0, %v1959
    %v1961 = vpop.f32.mrf.mxu0
    %v1962 = vadd.f32 0.0, %v1961
    %1963 = vdwg.mxu0
    %1964 = vmatprep.subr.mxu0 0.0
    %1965 = vmatpush1.msra.mxu0 0.0
    %1966 = vmatprep.subr.mxu0 0.0
    %1967 = vmatpush1.msra.mxu0 0.0
    %1968 = vmatprep.subr.mxu0 0.0
    %1969 = vmatpush1.msra.mxu0 0.0
    %1970 = vmatprep.subr.mxu0 0.0
    %1971 = vmatpush1.msra.mxu0 0.0
    %1972 = vmatprep.subr.mxu0 0.0
    %1973 = vmatpush1.msra.mxu0 0.0
    %1974 = vmatprep.subr.mxu0 0.0
    %1975 = vmatpush1.msra.mxu0 0.0
    %1976 = vmatprep.subr.mxu0 0.0
    %1977 = vmatpush1.msra.mxu0 0.0
    %1978 = vmatprep.subr.mxu0 0.0
    %1979 = vmatpush1.msra.mxu0 0.0
    %1980 = vmatprep.subr.mxu0 0.0
    %1981 = vmatpush1.msra.mxu0 0.0
    %1982 = vmatprep.subr.mxu0 0.0
    %1983 = vmatpush1.msra.mxu0 0.0
    %1984 = vmatprep.subr.mxu0 0.0
    %1985 = vmatpush1.msra.mxu0 0.0
    %1986 = vmatprep.subr.mxu0 0.0
    %1987 = vmatpush1.msra.mxu0 0.0
    %1988 = vmatprep.subr.mxu0 0.0
    %1989 = vmatpush1.msra.mxu0 0.0
    %1990 = vmatprep.subr.mxu0 0.0
    %1991 = vmatpush1.msra.mxu0 0.0
    %1992 = vmatprep.subr.mxu0 %v1799
    %1993 = vmatpush1.msra.mxu0 %v1796
    %1994 = vmatprep.subr.mxu0 %v1762
    %1995 = vmatpush1.msra.mxu0 %v1761
    %1996 = vmatprep.subr.mxu0 0.0
    %1997 = vmatpush2.msra.mxu0 0.0
    %1998 = vmatprep.subr.mxu0 0.0
    %1999 = vmatpush2.msra.mxu0 0.0
    %2000 = vmatprep.subr.mxu0 0.0
    %2001 = vmatpush2.msra.mxu0 0.0
    %2002 = vmatprep.subr.mxu0 0.0
    %2003 = vmatpush2.msra.mxu0 0.0
    %2004 = vmatprep.subr.mxu0 0.0
    %2005 = vmatpush2.msra.mxu0 0.0
    %2006 = vmatprep.subr.mxu0 0.0
    %2007 = vmatpush2.msra.mxu0 0.0
    %2008 = vmatprep.subr.mxu0 0.0
    %2009 = vmatpush2.msra.mxu0 0.0
    %2010 = vmatprep.subr.mxu0 0.0
    %2011 = vmatpush2.msra.mxu0 0.0
    %2012 = vmatprep.subr.mxu0 0.0
    %2013 = vmatpush2.msra.mxu0 0.0
    %2014 = vmatprep.subr.mxu0 0.0
    %2015 = vmatpush2.msra.mxu0 0.0
    %2016 = vmatprep.subr.mxu0 0.0
    %2017 = vmatpush2.msra.mxu0 0.0
    %2018 = vmatprep.subr.mxu0 0.0
    %2019 = vmatpush2.msra.mxu0 0.0
    %2020 = vmatprep.subr.mxu0 0.0
    %2021 = vmatpush2.msra.mxu0 0.0
    %2022 = vmatprep.subr.mxu0 0.0
    %2023 = vmatpush2.msra.mxu0 0.0
    %2024 = vmatprep.subr.mxu0 0.0
    %2025 = vmatpush2.msra.mxu0 0.0
    %2026 = vmatprep.subr.mxu0 0.0
    %2027 = vmatpush2.msra.mxu0 0.0
    %2028 = vmatprep.mubr.f32.mxu0 0.0
    %2029 = vmatmul.mubr.f32.gmra.mxu0 %v68
    %v2030 = vpop.f32.mrf.mxu0
    %v2031 = vadd.f32 0.0, %v2030
    %v2032 = vpop.f32.mrf.mxu0
    %v2033 = vadd.f32 0.0, %v2032
    %2034 = vdwg.mxu0
    %2035 = vmatprep.subr.mxu0 0.0
    %2036 = vmatpush1.msra.mxu0 0.0
    %2037 = vmatprep.subr.mxu0 0.0
    %2038 = vmatpush1.msra.mxu0 0.0
    %2039 = vmatprep.subr.mxu0 0.0
    %2040 = vmatpush1.msra.mxu0 0.0
    %2041 = vmatprep.subr.mxu0 0.0
    %2042 = vmatpush1.msra.mxu0 0.0
    %2043 = vmatprep.subr.mxu0 0.0
    %2044 = vmatpush1.msra.mxu0 0.0
    %2045 = vmatprep.subr.mxu0 0.0
    %2046 = vmatpush1.msra.mxu0 0.0
    %2047 = vmatprep.subr.mxu0 0.0
    %2048 = vmatpush1.msra.mxu0 0.0
    %2049 = vmatprep.subr.mxu0 0.0
    %2050 = vmatpush1.msra.mxu0 0.0
    %2051 = vmatprep.subr.mxu0 0.0
    %2052 = vmatpush1.msra.mxu0 0.0
    %2053 = vmatprep.subr.mxu0 0.0
    %2054 = vmatpush1.msra.mxu0 0.0
    %2055 = vmatprep.subr.mxu0 0.0
    %2056 = vmatpush1.msra.mxu0 0.0
    %2057 = vmatprep.subr.mxu0 0.0
    %2058 = vmatpush1.msra.mxu0 0.0
    %2059 = vmatprep.subr.mxu0 0.0
    %2060 = vmatpush1.msra.mxu0 0.0
    %2061 = vmatprep.subr.mxu0 0.0
    %2062 = vmatpush1.msra.mxu0 0.0
    %2063 = vmatprep.subr.mxu0 %v1805
    %2064 = vmatpush1.msra.mxu0 %v1802
    %2065 = vmatprep.subr.mxu0 %v1764
    %2066 = vmatpush1.msra.mxu0 %v1763
    %2067 = vmatprep.subr.mxu0 0.0
    %2068 = vmatpush2.msra.mxu0 0.0
    %2069 = vmatprep.subr.mxu0 0.0
    %2070 = vmatpush2.msra.mxu0 0.0
    %2071 = vmatprep.subr.mxu0 0.0
    %2072 = vmatpush2.msra.mxu0 0.0
    %2073 = vmatprep.subr.mxu0 0.0
    %2074 = vmatpush2.msra.mxu0 0.0
    %2075 = vmatprep.subr.mxu0 0.0
    %2076 = vmatpush2.msra.mxu0 0.0
    %2077 = vmatprep.subr.mxu0 0.0
    %2078 = vmatpush2.msra.mxu0 0.0
    %2079 = vmatprep.subr.mxu0 0.0
    %2080 = vmatpush2.msra.mxu0 0.0
    %2081 = vmatprep.subr.mxu0 0.0
    %2082 = vmatpush2.msra.mxu0 0.0
    %2083 = vmatprep.subr.mxu0 0.0
    %2084 = vmatpush2.msra.mxu0 0.0
    %2085 = vmatprep.subr.mxu0 0.0
    %2086 = vmatpush2.msra.mxu0 0.0
    %2087 = vmatprep.subr.mxu0 0.0
    %2088 = vmatpush2.msra.mxu0 0.0
    %2089 = vmatprep.subr.mxu0 0.0
    %2090 = vmatpush2.msra.mxu0 0.0
    %2091 = vmatprep.subr.mxu0 0.0
    %2092 = vmatpush2.msra.mxu0 0.0
    %2093 = vmatprep.subr.mxu0 0.0
    %2094 = vmatpush2.msra.mxu0 0.0
    %2095 = vmatprep.subr.mxu0 0.0
    %2096 = vmatpush2.msra.mxu0 0.0
    %2097 = vmatprep.subr.mxu0 0.0
    %2098 = vmatpush2.msra.mxu0 0.0
    %2099 = vmatprep.mubr.f32.mxu0 0.0
    %2100 = vmatmul.mubr.f32.gmra.mxu0 %v68
    %v2101 = vpop.f32.mrf.mxu0
    %v2102 = vadd.f32 0.0, %v2101
    %v2103 = vpop.f32.mrf.mxu0
    %v2104 = vadd.f32 0.0, %v2103
    %2105 = vdwg.mxu0
    %2106 = vmatprep.subr.mxu0 0.0
    %2107 = vmatpush1.msra.mxu0 0.0
    %2108 = vmatprep.subr.mxu0 0.0
    %2109 = vmatpush1.msra.mxu0 0.0
    %2110 = vmatprep.subr.mxu0 0.0
    %2111 = vmatpush1.msra.mxu0 0.0
    %2112 = vmatprep.subr.mxu0 0.0
    %2113 = vmatpush1.msra.mxu0 0.0
    %2114 = vmatprep.subr.mxu0 0.0
    %2115 = vmatpush1.msra.mxu0 0.0
    %2116 = vmatprep.subr.mxu0 0.0
    %2117 = vmatpush1.msra.mxu0 0.0
    %2118 = vmatprep.subr.mxu0 0.0
    %2119 = vmatpush1.msra.mxu0 0.0
    %2120 = vmatprep.subr.mxu0 0.0
    %2121 = vmatpush1.msra.mxu0 0.0
    %2122 = vmatprep.subr.mxu0 0.0
    %2123 = vmatpush1.msra.mxu0 0.0
    %2124 = vmatprep.subr.mxu0 0.0
    %2125 = vmatpush1.msra.mxu0 0.0
    %2126 = vmatprep.subr.mxu0 0.0
    %2127 = vmatpush1.msra.mxu0 0.0
    %2128 = vmatprep.subr.mxu0 0.0
    %2129 = vmatpush1.msra.mxu0 0.0
    %2130 = vmatprep.subr.mxu0 0.0
    %2131 = vmatpush1.msra.mxu0 0.0
    %2132 = vmatprep.subr.mxu0 0.0
    %2133 = vmatpush1.msra.mxu0 0.0
    %2134 = vmatprep.subr.mxu0 %v1811
    %2135 = vmatpush1.msra.mxu0 %v1808
    %2136 = vmatprep.subr.mxu0 %v1766
    %2137 = vmatpush1.msra.mxu0 %v1765
    %2138 = vmatprep.subr.mxu0 0.0
    %2139 = vmatpush2.msra.mxu0 0.0
    %2140 = vmatprep.subr.mxu0 0.0
    %2141 = vmatpush2.msra.mxu0 0.0
    %2142 = vmatprep.subr.mxu0 0.0
    %2143 = vmatpush2.msra.mxu0 0.0
    %2144 = vmatprep.subr.mxu0 0.0
    %2145 = vmatpush2.msra.mxu0 0.0
    %2146 = vmatprep.subr.mxu0 0.0
    %2147 = vmatpush2.msra.mxu0 0.0
    %2148 = vmatprep.subr.mxu0 0.0
    %2149 = vmatpush2.msra.mxu0 0.0
    %2150 = vmatprep.subr.mxu0 0.0
    %2151 = vmatpush2.msra.mxu0 0.0
    %2152 = vmatprep.subr.mxu0 0.0
    %2153 = vmatpush2.msra.mxu0 0.0
    %2154 = vmatprep.subr.mxu0 0.0
    %2155 = vmatpush2.msra.mxu0 0.0
    %2156 = vmatprep.subr.mxu0 0.0
    %2157 = vmatpush2.msra.mxu0 0.0
    %2158 = vmatprep.subr.mxu0 0.0
    %2159 = vmatpush2.msra.mxu0 0.0
    %2160 = vmatprep.subr.mxu0 0.0
    %2161 = vmatpush2.msra.mxu0 0.0
    %2162 = vmatprep.subr.mxu0 0.0
    %2163 = vmatpush2.msra.mxu0 0.0
    %2164 = vmatprep.subr.mxu0 0.0
    %2165 = vmatpush2.msra.mxu0 0.0
    %2166 = vmatprep.subr.mxu0 0.0
    %2167 = vmatpush2.msra.mxu0 0.0
    %2168 = vmatprep.subr.mxu0 0.0
    %2169 = vmatpush2.msra.mxu0 0.0
    %2170 = vmatprep.mubr.f32.mxu0 0.0
    %2171 = vmatmul.mubr.f32.gmra.mxu0 %v68
    %v2172 = vpop.f32.mrf.mxu0
    %v2173 = vadd.f32 0.0, %v2172
    %v2174 = vpop.f32.mrf.mxu0
    %v2175 = vadd.f32 0.0, %v2174
    %2176 = vdwg.mxu0
    %2177 = vmatprep.subr.mxu0 0.0
    %2178 = vmatpush1.msra.mxu0 0.0
    %2179 = vmatprep.subr.mxu0 0.0
    %2180 = vmatpush1.msra.mxu0 0.0
    %2181 = vmatprep.subr.mxu0 0.0
    %2182 = vmatpush1.msra.mxu0 0.0
    %2183 = vmatprep.subr.mxu0 0.0
    %2184 = vmatpush1.msra.mxu0 0.0
    %2185 = vmatprep.subr.mxu0 0.0
    %2186 = vmatpush1.msra.mxu0 0.0
    %2187 = vmatprep.subr.mxu0 0.0
    %2188 = vmatpush1.msra.mxu0 0.0
    %2189 = vmatprep.subr.mxu0 0.0
    %2190 = vmatpush1.msra.mxu0 0.0
    %2191 = vmatprep.subr.mxu0 0.0
    %2192 = vmatpush1.msra.mxu0 0.0
    %2193 = vmatprep.subr.mxu0 0.0
    %2194 = vmatpush1.msra.mxu0 0.0
    %2195 = vmatprep.subr.mxu0 0.0
    %2196 = vmatpush1.msra.mxu0 0.0
    %2197 = vmatprep.subr.mxu0 0.0
    %2198 = vmatpush1.msra.mxu0 0.0
    %2199 = vmatprep.subr.mxu0 0.0
    %2200 = vmatpush1.msra.mxu0 0.0
    %2201 = vmatprep.subr.mxu0 0.0
    %2202 = vmatpush1.msra.mxu0 0.0
    %2203 = vmatprep.subr.mxu0 0.0
    %2204 = vmatpush1.msra.mxu0 0.0
    %2205 = vmatprep.subr.mxu0 %v1817
    %2206 = vmatpush1.msra.mxu0 %v1814
    %2207 = vmatprep.subr.mxu0 %v1768
    %2208 = vmatpush1.msra.mxu0 %v1767
    %2209 = vmatprep.subr.mxu0 0.0
    %2210 = vmatpush2.msra.mxu0 0.0
    %2211 = vmatprep.subr.mxu0 0.0
    %2212 = vmatpush2.msra.mxu0 0.0
    %2213 = vmatprep.subr.mxu0 0.0
    %2214 = vmatpush2.msra.mxu0 0.0
    %2215 = vmatprep.subr.mxu0 0.0
    %2216 = vmatpush2.msra.mxu0 0.0
    %2217 = vmatprep.subr.mxu0 0.0
    %2218 = vmatpush2.msra.mxu0 0.0
    %2219 = vmatprep.subr.mxu0 0.0
    %2220 = vmatpush2.msra.mxu0 0.0
    %2221 = vmatprep.subr.mxu0 0.0
    %2222 = vmatpush2.msra.mxu0 0.0
    %2223 = vmatprep.subr.mxu0 0.0
    %2224 = vmatpush2.msra.mxu0 0.0
    %2225 = vmatprep.subr.mxu0 0.0
    %2226 = vmatpush2.msra.mxu0 0.0
    %2227 = vmatprep.subr.mxu0 0.0
    %2228 = vmatpush2.msra.mxu0 0.0
    %2229 = vmatprep.subr.mxu0 0.0
    %2230 = vmatpush2.msra.mxu0 0.0
    %2231 = vmatprep.subr.mxu0 0.0
    %2232 = vmatpush2.msra.mxu0 0.0
    %2233 = vmatprep.subr.mxu0 0.0
    %2234 = vmatpush2.msra.mxu0 0.0
    %2235 = vmatprep.subr.mxu0 0.0
    %2236 = vmatpush2.msra.mxu0 0.0
    %2237 = vmatprep.subr.mxu0 0.0
    %2238 = vmatpush2.msra.mxu0 0.0
    %2239 = vmatprep.subr.mxu0 0.0
    %2240 = vmatpush2.msra.mxu0 0.0
    %2241 = vmatprep.mubr.f32.mxu0 0.0
    %2242 = vmatmul.mubr.f32.gmra.mxu0 %v68
    %v2243 = vpop.f32.mrf.mxu0
    %v2244 = vadd.f32 0.0, %v2243
    %v2245 = vpop.f32.mrf.mxu0
    %v2246 = vadd.f32 0.0, %v2245
    %2247 = vdwg.mxu0
    %2248 = vmatprep.subr.mxu0 0.0
    %2249 = vmatpush1.msra.mxu0 0.0
    %2250 = vmatprep.subr.mxu0 0.0
    %2251 = vmatpush1.msra.mxu0 0.0
    %2252 = vmatprep.subr.mxu0 0.0
    %2253 = vmatpush1.msra.mxu0 0.0
    %2254 = vmatprep.subr.mxu0 0.0
    %2255 = vmatpush1.msra.mxu0 0.0
    %2256 = vmatprep.subr.mxu0 0.0
    %2257 = vmatpush1.msra.mxu0 0.0
    %2258 = vmatprep.subr.mxu0 0.0
    %2259 = vmatpush1.msra.mxu0 0.0
    %2260 = vmatprep.subr.mxu0 0.0
    %2261 = vmatpush1.msra.mxu0 0.0
    %2262 = vmatprep.subr.mxu0 0.0
    %2263 = vmatpush1.msra.mxu0 0.0
    %2264 = vmatprep.subr.mxu0 0.0
    %2265 = vmatpush1.msra.mxu0 0.0
    %2266 = vmatprep.subr.mxu0 0.0
    %2267 = vmatpush1.msra.mxu0 0.0
    %2268 = vmatprep.subr.mxu0 0.0
    %2269 = vmatpush1.msra.mxu0 0.0
    %2270 = vmatprep.subr.mxu0 0.0
    %2271 = vmatpush1.msra.mxu0 0.0
    %2272 = vmatprep.subr.mxu0 0.0
    %2273 = vmatpush1.msra.mxu0 0.0
    %2274 = vmatprep.subr.mxu0 0.0
    %2275 = vmatpush1.msra.mxu0 0.0
    %2276 = vmatprep.subr.mxu0 0.0
    %2277 = vmatpush1.msra.mxu0 %v1820
    %2278 = vmatprep.subr.mxu0 0.0
    %2279 = vmatpush1.msra.mxu0 %v1769
    %2280 = vmatprep.subr.mxu0 0.0
    %2281 = vmatpush2.msra.mxu0 0.0
    %2282 = vmatprep.subr.mxu0 0.0
    %2283 = vmatpush2.msra.mxu0 0.0
    %2284 = vmatprep.subr.mxu0 0.0
    %2285 = vmatpush2.msra.mxu0 0.0
    %2286 = vmatprep.subr.mxu0 0.0
    %2287 = vmatpush2.msra.mxu0 0.0
    %2288 = vmatprep.subr.mxu0 0.0
    %2289 = vmatpush2.msra.mxu0 0.0
    %2290 = vmatprep.subr.mxu0 0.0
    %2291 = vmatpush2.msra.mxu0 0.0
    %2292 = vmatprep.subr.mxu0 0.0
    %2293 = vmatpush2.msra.mxu0 0.0
    %2294 = vmatprep.subr.mxu0 0.0
    %2295 = vmatpush2.msra.mxu0 0.0
    %2296 = vmatprep.subr.mxu0 0.0
    %2297 = vmatpush2.msra.mxu0 0.0
    %2298 = vmatprep.subr.mxu0 0.0
    %2299 = vmatpush2.msra.mxu0 0.0
    %2300 = vmatprep.subr.mxu0 0.0
    %2301 = vmatpush2.msra.mxu0 0.0
    %2302 = vmatprep.subr.mxu0 0.0
    %2303 = vmatpush2.msra.mxu0 0.0
    %2304 = vmatprep.subr.mxu0 0.0
    %2305 = vmatpush2.msra.mxu0 0.0
    %2306 = vmatprep.subr.mxu0 0.0
    %2307 = vmatpush2.msra.mxu0 0.0
    %2308 = vmatprep.subr.mxu0 0.0
    %2309 = vmatpush2.msra.mxu0 0.0
    %2310 = vmatprep.subr.mxu0 0.0
    %2311 = vmatpush2.msra.mxu0 0.0
    %2312 = vmatprep.mubr.f32.mxu0 0.0
    %2313 = vmatmul.mubr.f32.gmra.mxu0 %v68
    %v2314 = vpop.f32.mrf.mxu0
    %v2315 = vadd.f32 0.0, %v2314
    %v2316 = vpop.f32.mrf.mxu0
    %2317 = vdwg.mxu0
    %v2318 = vmax.f32 %v1743, %v1889
    %v2319 = vmax.f32 %v1744, %v1891
    %v2320 = vmax.f32 %v1745, %v1960
    %v2321 = vmax.f32 %v1746, %v1962
    %v2322 = vmax.f32 %v1747, %v2031
    %v2323 = vmax.f32 %v1748, %v2033
    %v2324 = vmax.f32 %v1749, %v2102
    %v2325 = vmax.f32 %v1750, %v2104
    %v2326 = vmax.f32 %v1751, %v2173
    %v2327 = vmax.f32 %v1752, %v2175
    %v2328 = vmax.f32 %v1753, %v2244
    %v2329 = vmax.f32 %v1754, %v2246
    %v2330 = vmax.f32 %v1755, %v2315
    %s2331 = scalar_lea.vmem %s0, 832
    %v2332 = vld [vmem:[%s2331] sm:$0xff]
    %v2333 = vld [vmem:[%s2331 + $0x8] sm:$0xff]
    %v2334 = vld [vmem:[%s2331 + $0x10] sm:$0xff]
    %v2335 = vld [vmem:[%s2331 + $0x18] sm:$0xff]
    %v2336 = vld [vmem:[%s2331 + $0x20] sm:$0xff]
    %v2337 = vld [vmem:[%s2331 + $0x28] sm:$0xff]
    %v2338 = vld [vmem:[%s2331 + $0x30] sm:$0xff]
    %v2339 = vld [vmem:[%s2331 + $0x38] sm:$0xff]
    %v2340 = vld [vmem:[%s2331 + $0x40] sm:$0xff]
    %v2341 = vld [vmem:[%s2331 + $0x48] sm:$0xff]
    %v2342 = vld [vmem:[%s2331 + $0x50] sm:$0xff]
    %v2343 = vld [vmem:[%s2331 + $0x58] sm:$0xff]
    %v2344 = vld [vmem:[%s2331 + $0x60] sm:$0xff]
    %v2345 = vld [vmem:[%s2331 + $0x68] sm:$0x1]
    %v2346 = vld [vmem:[%s2331 + $0x70] sm:$0x1]
    %v2347 = vld [vmem:[%s2331 + $0x78] sm:$0x1]
    %v2348 = vld [vmem:[%s2331 + $0x80] sm:$0x1]
    %v2349 = vld [vmem:[%s2331 + $0x88] sm:$0x1]
    %v2350 = vld [vmem:[%s2331 + $0x90] sm:$0x1]
    %v2351 = vld [vmem:[%s2331 + $0x98] sm:$0x1]
    %v2352 = vld [vmem:[%s2331 + $0xa0] sm:$0x1]
    %v2353 = vld [vmem:[%s2331 + $0xa8] sm:$0x1]
    %v2354 = vld [vmem:[%s2331 + $0xb0] sm:$0x1]
    %v2355 = vld [vmem:[%s2331 + $0xb8] sm:$0x1]
    %v2356 = vld [vmem:[%s2331 + $0xc0] sm:$0x1]
    %v2357 = vld [vmem:[%s2331 + $0xc8] sm:$0x1]
    %v2359 = vsel %vm70, %v2345, 0
    %v2362 = vsel %vm70, %v2346, 0
    %v2365 = vsel %vm70, %v2347, 0
    %v2368 = vsel %vm70, %v2348, 0
    %v2371 = vsel %vm70, %v2349, 0
    %v2374 = vsel %vm70, %v2350, 0
    %v2377 = vsel %vm70, %v2351, 0
    %v2380 = vsel %vm70, %v2352, 0
    %v2383 = vsel %vm70, %v2353, 0
    %v2386 = vsel %vm70, %v2354, 0
    %v2389 = vsel %vm70, %v2355, 0
    %v2392 = vsel %vm70, %v2356, 0
    %v2395 = vsel %vm70, %v2357, 0
    %2397 = vmatprep.subr.mxu0 0.0
    %2398 = vmatpush1.msra.mxu0 0.0
    %2399 = vmatprep.subr.mxu0 0.0
    %2400 = vmatpush1.msra.mxu0 0.0
    %2401 = vmatprep.subr.mxu0 0.0
    %2402 = vmatpush1.msra.mxu0 0.0
    %2403 = vmatprep.subr.mxu0 0.0
    %2404 = vmatpush1.msra.mxu0 0.0
    %2405 = vmatprep.subr.mxu0 0.0
    %2406 = vmatpush1.msra.mxu0 0.0
    %2407 = vmatprep.subr.mxu0 0.0
    %2408 = vmatpush1.msra.mxu0 0.0
    %2409 = vmatprep.subr.mxu0 0.0
    %2410 = vmatpush1.msra.mxu0 0.0
    %2411 = vmatprep.subr.mxu0 0.0
    %2412 = vmatpush1.msra.mxu0 0.0
    %2413 = vmatprep.subr.mxu0 0.0
    %2414 = vmatpush1.msra.mxu0 0.0
    %2415 = vmatprep.subr.mxu0 0.0
    %2416 = vmatpush1.msra.mxu0 0.0
    %2417 = vmatprep.subr.mxu0 0.0
    %2418 = vmatpush1.msra.mxu0 0.0
    %2419 = vmatprep.subr.mxu0 0.0
    %2420 = vmatpush1.msra.mxu0 0.0
    %2421 = vmatprep.subr.mxu0 0.0
    %2422 = vmatpush1.msra.mxu0 0.0
    %2423 = vmatprep.subr.mxu0 0.0
    %2424 = vmatpush1.msra.mxu0 0.0
    %2425 = vmatprep.subr.mxu0 %v2362
    %2426 = vmatpush1.msra.mxu0 %v2359
    %2427 = vmatprep.subr.mxu0 %v2333
    %2428 = vmatpush1.msra.mxu0 %v2332
    %2429 = vmatprep.subr.mxu0 0.0
    %2430 = vmatpush2.msra.mxu0 0.0
    %2431 = vmatprep.subr.mxu0 0.0
    %2432 = vmatpush2.msra.mxu0 0.0
    %2433 = vmatprep.subr.mxu0 0.0
    %2434 = vmatpush2.msra.mxu0 0.0
    %2435 = vmatprep.subr.mxu0 0.0
    %2436 = vmatpush2.msra.mxu0 0.0
    %2437 = vmatprep.subr.mxu0 0.0
    %2438 = vmatpush2.msra.mxu0 0.0
    %2439 = vmatprep.subr.mxu0 0.0
    %2440 = vmatpush2.msra.mxu0 0.0
    %2441 = vmatprep.subr.mxu0 0.0
    %2442 = vmatpush2.msra.mxu0 0.0
    %2443 = vmatprep.subr.mxu0 0.0
    %2444 = vmatpush2.msra.mxu0 0.0
    %2445 = vmatprep.subr.mxu0 0.0
    %2446 = vmatpush2.msra.mxu0 0.0
    %2447 = vmatprep.subr.mxu0 0.0
    %2448 = vmatpush2.msra.mxu0 0.0
    %2449 = vmatprep.subr.mxu0 0.0
    %2450 = vmatpush2.msra.mxu0 0.0
    %2451 = vmatprep.subr.mxu0 0.0
    %2452 = vmatpush2.msra.mxu0 0.0
    %2453 = vmatprep.subr.mxu0 0.0
    %2454 = vmatpush2.msra.mxu0 0.0
    %2455 = vmatprep.subr.mxu0 0.0
    %2456 = vmatpush2.msra.mxu0 0.0
    %2457 = vmatprep.subr.mxu0 0.0
    %2458 = vmatpush2.msra.mxu0 0.0
    %2459 = vmatprep.subr.mxu0 0.0
    %2460 = vmatpush2.msra.mxu0 0.0
    %2461 = vmatprep.mubr.f32.mxu0 0.0
    %2462 = vmatmul.mubr.f32.gmra.mxu0 %v68
    %v2463 = vpop.f32.mrf.mxu0
    %v2464 = vadd.f32 0.0, %v2463
    %v2465 = vpop.f32.mrf.mxu0
    %v2466 = vadd.f32 0.0, %v2465
    %2467 = vdwg.mxu0
    %2468 = vmatprep.subr.mxu0 0.0
    %2469 = vmatpush1.msra.mxu0 0.0
    %2470 = vmatprep.subr.mxu0 0.0
    %2471 = vmatpush1.msra.mxu0 0.0
    %2472 = vmatprep.subr.mxu0 0.0
    %2473 = vmatpush1.msra.mxu0 0.0
    %2474 = vmatprep.subr.mxu0 0.0
    %2475 = vmatpush1.msra.mxu0 0.0
    %2476 = vmatprep.subr.mxu0 0.0
    %2477 = vmatpush1.msra.mxu0 0.0
    %2478 = vmatprep.subr.mxu0 0.0
    %2479 = vmatpush1.msra.mxu0 0.0
    %2480 = vmatprep.subr.mxu0 0.0
    %2481 = vmatpush1.msra.mxu0 0.0
    %2482 = vmatprep.subr.mxu0 0.0
    %2483 = vmatpush1.msra.mxu0 0.0
    %2484 = vmatprep.subr.mxu0 0.0
    %2485 = vmatpush1.msra.mxu0 0.0
    %2486 = vmatprep.subr.mxu0 0.0
    %2487 = vmatpush1.msra.mxu0 0.0
    %2488 = vmatprep.subr.mxu0 0.0
    %2489 = vmatpush1.msra.mxu0 0.0
    %2490 = vmatprep.subr.mxu0 0.0
    %2491 = vmatpush1.msra.mxu0 0.0
    %2492 = vmatprep.subr.mxu0 0.0
    %2493 = vmatpush1.msra.mxu0 0.0
    %2494 = vmatprep.subr.mxu0 0.0
    %2495 = vmatpush1.msra.mxu0 0.0
    %2496 = vmatprep.subr.mxu0 %v2368
    %2497 = vmatpush1.msra.mxu0 %v2365
    %2498 = vmatprep.subr.mxu0 %v2335
    %2499 = vmatpush1.msra.mxu0 %v2334
    %2500 = vmatprep.subr.mxu0 0.0
    %2501 = vmatpush2.msra.mxu0 0.0
    %2502 = vmatprep.subr.mxu0 0.0
    %2503 = vmatpush2.msra.mxu0 0.0
    %2504 = vmatprep.subr.mxu0 0.0
    %2505 = vmatpush2.msra.mxu0 0.0
    %2506 = vmatprep.subr.mxu0 0.0
    %2507 = vmatpush2.msra.mxu0 0.0
    %2508 = vmatprep.subr.mxu0 0.0
    %2509 = vmatpush2.msra.mxu0 0.0
    %2510 = vmatprep.subr.mxu0 0.0
    %2511 = vmatpush2.msra.mxu0 0.0
    %2512 = vmatprep.subr.mxu0 0.0
    %2513 = vmatpush2.msra.mxu0 0.0
    %2514 = vmatprep.subr.mxu0 0.0
    %2515 = vmatpush2.msra.mxu0 0.0
    %2516 = vmatprep.subr.mxu0 0.0
    %2517 = vmatpush2.msra.mxu0 0.0
    %2518 = vmatprep.subr.mxu0 0.0
    %2519 = vmatpush2.msra.mxu0 0.0
    %2520 = vmatprep.subr.mxu0 0.0
    %2521 = vmatpush2.msra.mxu0 0.0
    %2522 = vmatprep.subr.mxu0 0.0
    %2523 = vmatpush2.msra.mxu0 0.0
    %2524 = vmatprep.subr.mxu0 0.0
    %2525 = vmatpush2.msra.mxu0 0.0
    %2526 = vmatprep.subr.mxu0 0.0
    %2527 = vmatpush2.msra.mxu0 0.0
    %2528 = vmatprep.subr.mxu0 0.0
    %2529 = vmatpush2.msra.mxu0 0.0
    %2530 = vmatprep.subr.mxu0 0.0
    %2531 = vmatpush2.msra.mxu0 0.0
    %2532 = vmatprep.mubr.f32.mxu0 0.0
    %2533 = vmatmul.mubr.f32.gmra.mxu0 %v68
    %v2534 = vpop.f32.mrf.mxu0
    %v2535 = vadd.f32 0.0, %v2534
    %v2536 = vpop.f32.mrf.mxu0
    %v2537 = vadd.f32 0.0, %v2536
    %2538 = vdwg.mxu0
    %2539 = vmatprep.subr.mxu0 0.0
    %2540 = vmatpush1.msra.mxu0 0.0
    %2541 = vmatprep.subr.mxu0 0.0
    %2542 = vmatpush1.msra.mxu0 0.0
    %2543 = vmatprep.subr.mxu0 0.0
    %2544 = vmatpush1.msra.mxu0 0.0
    %2545 = vmatprep.subr.mxu0 0.0
    %2546 = vmatpush1.msra.mxu0 0.0
    %2547 = vmatprep.subr.mxu0 0.0
    %2548 = vmatpush1.msra.mxu0 0.0
    %2549 = vmatprep.subr.mxu0 0.0
    %2550 = vmatpush1.msra.mxu0 0.0
    %2551 = vmatprep.subr.mxu0 0.0
    %2552 = vmatpush1.msra.mxu0 0.0
    %2553 = vmatprep.subr.mxu0 0.0
    %2554 = vmatpush1.msra.mxu0 0.0
    %2555 = vmatprep.subr.mxu0 0.0
    %2556 = vmatpush1.msra.mxu0 0.0
    %2557 = vmatprep.subr.mxu0 0.0
    %2558 = vmatpush1.msra.mxu0 0.0
    %2559 = vmatprep.subr.mxu0 0.0
    %2560 = vmatpush1.msra.mxu0 0.0
    %2561 = vmatprep.subr.mxu0 0.0
    %2562 = vmatpush1.msra.mxu0 0.0
    %2563 = vmatprep.subr.mxu0 0.0
    %2564 = vmatpush1.msra.mxu0 0.0
    %2565 = vmatprep.subr.mxu0 0.0
    %2566 = vmatpush1.msra.mxu0 0.0
    %2567 = vmatprep.subr.mxu0 %v2374
    %2568 = vmatpush1.msra.mxu0 %v2371
    %2569 = vmatprep.subr.mxu0 %v2337
    %2570 = vmatpush1.msra.mxu0 %v2336
    %2571 = vmatprep.subr.mxu0 0.0
    %2572 = vmatpush2.msra.mxu0 0.0
    %2573 = vmatprep.subr.mxu0 0.0
    %2574 = vmatpush2.msra.mxu0 0.0
    %2575 = vmatprep.subr.mxu0 0.0
    %2576 = vmatpush2.msra.mxu0 0.0
    %2577 = vmatprep.subr.mxu0 0.0
    %2578 = vmatpush2.msra.mxu0 0.0
    %2579 = vmatprep.subr.mxu0 0.0
    %2580 = vmatpush2.msra.mxu0 0.0
    %2581 = vmatprep.subr.mxu0 0.0
    %2582 = vmatpush2.msra.mxu0 0.0
    %2583 = vmatprep.subr.mxu0 0.0
    %2584 = vmatpush2.msra.mxu0 0.0
    %2585 = vmatprep.subr.mxu0 0.0
    %2586 = vmatpush2.msra.mxu0 0.0
    %2587 = vmatprep.subr.mxu0 0.0
    %2588 = vmatpush2.msra.mxu0 0.0
    %2589 = vmatprep.subr.mxu0 0.0
    %2590 = vmatpush2.msra.mxu0 0.0
    %2591 = vmatprep.subr.mxu0 0.0
    %2592 = vmatpush2.msra.mxu0 0.0
    %2593 = vmatprep.subr.mxu0 0.0
    %2594 = vmatpush2.msra.mxu0 0.0
    %2595 = vmatprep.subr.mxu0 0.0
    %2596 = vmatpush2.msra.mxu0 0.0
    %2597 = vmatprep.subr.mxu0 0.0
    %2598 = vmatpush2.msra.mxu0 0.0
    %2599 = vmatprep.subr.mxu0 0.0
    %2600 = vmatpush2.msra.mxu0 0.0
    %2601 = vmatprep.subr.mxu0 0.0
    %2602 = vmatpush2.msra.mxu0 0.0
    %2603 = vmatprep.mubr.f32.mxu0 0.0
    %2604 = vmatmul.mubr.f32.gmra.mxu0 %v68
    %v2605 = vpop.f32.mrf.mxu0
    %v2606 = vadd.f32 0.0, %v2605
    %v2607 = vpop.f32.mrf.mxu0
    %v2608 = vadd.f32 0.0, %v2607
    %2609 = vdwg.mxu0
    %2610 = vmatprep.subr.mxu0 0.0
    %2611 = vmatpush1.msra.mxu0 0.0
    %2612 = vmatprep.subr.mxu0 0.0
    %2613 = vmatpush1.msra.mxu0 0.0
    %2614 = vmatprep.subr.mxu0 0.0
    %2615 = vmatpush1.msra.mxu0 0.0
    %2616 = vmatprep.subr.mxu0 0.0
    %2617 = vmatpush1.msra.mxu0 0.0
    %2618 = vmatprep.subr.mxu0 0.0
    %2619 = vmatpush1.msra.mxu0 0.0
    %2620 = vmatprep.subr.mxu0 0.0
    %2621 = vmatpush1.msra.mxu0 0.0
    %2622 = vmatprep.subr.mxu0 0.0
    %2623 = vmatpush1.msra.mxu0 0.0
    %2624 = vmatprep.subr.mxu0 0.0
    %2625 = vmatpush1.msra.mxu0 0.0
    %2626 = vmatprep.subr.mxu0 0.0
    %2627 = vmatpush1.msra.mxu0 0.0
    %2628 = vmatprep.subr.mxu0 0.0
    %2629 = vmatpush1.msra.mxu0 0.0
    %2630 = vmatprep.subr.mxu0 0.0
    %2631 = vmatpush1.msra.mxu0 0.0
    %2632 = vmatprep.subr.mxu0 0.0
    %2633 = vmatpush1.msra.mxu0 0.0
    %2634 = vmatprep.subr.mxu0 0.0
    %2635 = vmatpush1.msra.mxu0 0.0
    %2636 = vmatprep.subr.mxu0 0.0
    %2637 = vmatpush1.msra.mxu0 0.0
    %2638 = vmatprep.subr.mxu0 %v2380
    %2639 = vmatpush1.msra.mxu0 %v2377
    %2640 = vmatprep.subr.mxu0 %v2339
    %2641 = vmatpush1.msra.mxu0 %v2338
    %2642 = vmatprep.subr.mxu0 0.0
    %2643 = vmatpush2.msra.mxu0 0.0
    %2644 = vmatprep.subr.mxu0 0.0
    %2645 = vmatpush2.msra.mxu0 0.0
    %2646 = vmatprep.subr.mxu0 0.0
    %2647 = vmatpush2.msra.mxu0 0.0
    %2648 = vmatprep.subr.mxu0 0.0
    %2649 = vmatpush2.msra.mxu0 0.0
    %2650 = vmatprep.subr.mxu0 0.0
    %2651 = vmatpush2.msra.mxu0 0.0
    %2652 = vmatprep.subr.mxu0 0.0
    %2653 = vmatpush2.msra.mxu0 0.0
    %2654 = vmatprep.subr.mxu0 0.0
    %2655 = vmatpush2.msra.mxu0 0.0
    %2656 = vmatprep.subr.mxu0 0.0
    %2657 = vmatpush2.msra.mxu0 0.0
    %2658 = vmatprep.subr.mxu0 0.0
    %2659 = vmatpush2.msra.mxu0 0.0
    %2660 = vmatprep.subr.mxu0 0.0
    %2661 = vmatpush2.msra.mxu0 0.0
    %2662 = vmatprep.subr.mxu0 0.0
    %2663 = vmatpush2.msra.mxu0 0.0
    %2664 = vmatprep.subr.mxu0 0.0
    %2665 = vmatpush2.msra.mxu0 0.0
    %2666 = vmatprep.subr.mxu0 0.0
    %2667 = vmatpush2.msra.mxu0 0.0
    %2668 = vmatprep.subr.mxu0 0.0
    %2669 = vmatpush2.msra.mxu0 0.0
    %2670 = vmatprep.subr.mxu0 0.0
    %2671 = vmatpush2.msra.mxu0 0.0
    %2672 = vmatprep.subr.mxu0 0.0
    %2673 = vmatpush2.msra.mxu0 0.0
    %2674 = vmatprep.mubr.f32.mxu0 0.0
    %2675 = vmatmul.mubr.f32.gmra.mxu0 %v68
    %v2676 = vpop.f32.mrf.mxu0
    %v2677 = vadd.f32 0.0, %v2676
    %v2678 = vpop.f32.mrf.mxu0
    %v2679 = vadd.f32 0.0, %v2678
    %2680 = vdwg.mxu0
    %2681 = vmatprep.subr.mxu0 0.0
    %2682 = vmatpush1.msra.mxu0 0.0
    %2683 = vmatprep.subr.mxu0 0.0
    %2684 = vmatpush1.msra.mxu0 0.0
    %2685 = vmatprep.subr.mxu0 0.0
    %2686 = vmatpush1.msra.mxu0 0.0
    %2687 = vmatprep.subr.mxu0 0.0
    %2688 = vmatpush1.msra.mxu0 0.0
    %2689 = vmatprep.subr.mxu0 0.0
    %2690 = vmatpush1.msra.mxu0 0.0
    %2691 = vmatprep.subr.mxu0 0.0
    %2692 = vmatpush1.msra.mxu0 0.0
    %2693 = vmatprep.subr.mxu0 0.0
    %2694 = vmatpush1.msra.mxu0 0.0
    %2695 = vmatprep.subr.mxu0 0.0
    %2696 = vmatpush1.msra.mxu0 0.0
    %2697 = vmatprep.subr.mxu0 0.0
    %2698 = vmatpush1.msra.mxu0 0.0
    %2699 = vmatprep.subr.mxu0 0.0
    %2700 = vmatpush1.msra.mxu0 0.0
    %2701 = vmatprep.subr.mxu0 0.0
    %2702 = vmatpush1.msra.mxu0 0.0
    %2703 = vmatprep.subr.mxu0 0.0
    %2704 = vmatpush1.msra.mxu0 0.0
    %2705 = vmatprep.subr.mxu0 0.0
    %2706 = vmatpush1.msra.mxu0 0.0
    %2707 = vmatprep.subr.mxu0 0.0
    %2708 = vmatpush1.msra.mxu0 0.0
    %2709 = vmatprep.subr.mxu0 %v2386
    %2710 = vmatpush1.msra.mxu0 %v2383
    %2711 = vmatprep.subr.mxu0 %v2341
    %2712 = vmatpush1.msra.mxu0 %v2340
    %2713 = vmatprep.subr.mxu0 0.0
    %2714 = vmatpush2.msra.mxu0 0.0
    %2715 = vmatprep.subr.mxu0 0.0
    %2716 = vmatpush2.msra.mxu0 0.0
    %2717 = vmatprep.subr.mxu0 0.0
    %2718 = vmatpush2.msra.mxu0 0.0
    %2719 = vmatprep.subr.mxu0 0.0
    %2720 = vmatpush2.msra.mxu0 0.0
    %2721 = vmatprep.subr.mxu0 0.0
    %2722 = vmatpush2.msra.mxu0 0.0
    %2723 = vmatprep.subr.mxu0 0.0
    %2724 = vmatpush2.msra.mxu0 0.0
    %2725 = vmatprep.subr.mxu0 0.0
    %2726 = vmatpush2.msra.mxu0 0.0
    %2727 = vmatprep.subr.mxu0 0.0
    %2728 = vmatpush2.msra.mxu0 0.0
    %2729 = vmatprep.subr.mxu0 0.0
    %2730 = vmatpush2.msra.mxu0 0.0
    %2731 = vmatprep.subr.mxu0 0.0
    %2732 = vmatpush2.msra.mxu0 0.0
    %2733 = vmatprep.subr.mxu0 0.0
    %2734 = vmatpush2.msra.mxu0 0.0
    %2735 = vmatprep.subr.mxu0 0.0
    %2736 = vmatpush2.msra.mxu0 0.0
    %2737 = vmatprep.subr.mxu0 0.0
    %2738 = vmatpush2.msra.mxu0 0.0
    %2739 = vmatprep.subr.mxu0 0.0
    %2740 = vmatpush2.msra.mxu0 0.0
    %2741 = vmatprep.subr.mxu0 0.0
    %2742 = vmatpush2.msra.mxu0 0.0
    %2743 = vmatprep.subr.mxu0 0.0
    %2744 = vmatpush2.msra.mxu0 0.0
    %2745 = vmatprep.mubr.f32.mxu0 0.0
    %2746 = vmatmul.mubr.f32.gmra.mxu0 %v68
    %v2747 = vpop.f32.mrf.mxu0
    %v2748 = vadd.f32 0.0, %v2747
    %v2749 = vpop.f32.mrf.mxu0
    %v2750 = vadd.f32 0.0, %v2749
    %2751 = vdwg.mxu0
    %2752 = vmatprep.subr.mxu0 0.0
    %2753 = vmatpush1.msra.mxu0 0.0
    %2754 = vmatprep.subr.mxu0 0.0
    %2755 = vmatpush1.msra.mxu0 0.0
    %2756 = vmatprep.subr.mxu0 0.0
    %2757 = vmatpush1.msra.mxu0 0.0
    %2758 = vmatprep.subr.mxu0 0.0
    %2759 = vmatpush1.msra.mxu0 0.0
    %2760 = vmatprep.subr.mxu0 0.0
    %2761 = vmatpush1.msra.mxu0 0.0
    %2762 = vmatprep.subr.mxu0 0.0
    %2763 = vmatpush1.msra.mxu0 0.0
    %2764 = vmatprep.subr.mxu0 0.0
    %2765 = vmatpush1.msra.mxu0 0.0
    %2766 = vmatprep.subr.mxu0 0.0
    %2767 = vmatpush1.msra.mxu0 0.0
    %2768 = vmatprep.subr.mxu0 0.0
    %2769 = vmatpush1.msra.mxu0 0.0
    %2770 = vmatprep.subr.mxu0 0.0
    %2771 = vmatpush1.msra.mxu0 0.0
    %2772 = vmatprep.subr.mxu0 0.0
    %2773 = vmatpush1.msra.mxu0 0.0
    %2774 = vmatprep.subr.mxu0 0.0
    %2775 = vmatpush1.msra.mxu0 0.0
    %2776 = vmatprep.subr.mxu0 0.0
    %2777 = vmatpush1.msra.mxu0 0.0
    %2778 = vmatprep.subr.mxu0 0.0
    %2779 = vmatpush1.msra.mxu0 0.0
    %2780 = vmatprep.subr.mxu0 %v2392
    %2781 = vmatpush1.msra.mxu0 %v2389
    %2782 = vmatprep.subr.mxu0 %v2343
    %2783 = vmatpush1.msra.mxu0 %v2342
    %2784 = vmatprep.subr.mxu0 0.0
    %2785 = vmatpush2.msra.mxu0 0.0
    %2786 = vmatprep.subr.mxu0 0.0
    %2787 = vmatpush2.msra.mxu0 0.0
    %2788 = vmatprep.subr.mxu0 0.0
    %2789 = vmatpush2.msra.mxu0 0.0
    %2790 = vmatprep.subr.mxu0 0.0
    %2791 = vmatpush2.msra.mxu0 0.0
    %2792 = vmatprep.subr.mxu0 0.0
    %2793 = vmatpush2.msra.mxu0 0.0
    %2794 = vmatprep.subr.mxu0 0.0
    %2795 = vmatpush2.msra.mxu0 0.0
    %2796 = vmatprep.subr.mxu0 0.0
    %2797 = vmatpush2.msra.mxu0 0.0
    %2798 = vmatprep.subr.mxu0 0.0
    %2799 = vmatpush2.msra.mxu0 0.0
    %2800 = vmatprep.subr.mxu0 0.0
    %2801 = vmatpush2.msra.mxu0 0.0
    %2802 = vmatprep.subr.mxu0 0.0
    %2803 = vmatpush2.msra.mxu0 0.0
    %2804 = vmatprep.subr.mxu0 0.0
    %2805 = vmatpush2.msra.mxu0 0.0
    %2806 = vmatprep.subr.mxu0 0.0
    %2807 = vmatpush2.msra.mxu0 0.0
    %2808 = vmatprep.subr.mxu0 0.0
    %2809 = vmatpush2.msra.mxu0 0.0
    %2810 = vmatprep.subr.mxu0 0.0
    %2811 = vmatpush2.msra.mxu0 0.0
    %2812 = vmatprep.subr.mxu0 0.0
    %2813 = vmatpush2.msra.mxu0 0.0
    %2814 = vmatprep.subr.mxu0 0.0
    %2815 = vmatpush2.msra.mxu0 0.0
    %2816 = vmatprep.mubr.f32.mxu0 0.0
    %2817 = vmatmul.mubr.f32.gmra.mxu0 %v68
    %v2818 = vpop.f32.mrf.mxu0
    %v2819 = vadd.f32 0.0, %v2818
    %v2820 = vpop.f32.mrf.mxu0
    %v2821 = vadd.f32 0.0, %v2820
    %2822 = vdwg.mxu0
    %2823 = vmatprep.subr.mxu0 0.0
    %2824 = vmatpush1.msra.mxu0 0.0
    %2825 = vmatprep.subr.mxu0 0.0
    %2826 = vmatpush1.msra.mxu0 0.0
    %2827 = vmatprep.subr.mxu0 0.0
    %2828 = vmatpush1.msra.mxu0 0.0
    %2829 = vmatprep.subr.mxu0 0.0
    %2830 = vmatpush1.msra.mxu0 0.0
    %2831 = vmatprep.subr.mxu0 0.0
    %2832 = vmatpush1.msra.mxu0 0.0
    %2833 = vmatprep.subr.mxu0 0.0
    %2834 = vmatpush1.msra.mxu0 0.0
    %2835 = vmatprep.subr.mxu0 0.0
    %2836 = vmatpush1.msra.mxu0 0.0
    %2837 = vmatprep.subr.mxu0 0.0
    %2838 = vmatpush1.msra.mxu0 0.0
    %2839 = vmatprep.subr.mxu0 0.0
    %2840 = vmatpush1.msra.mxu0 0.0
    %2841 = vmatprep.subr.mxu0 0.0
    %2842 = vmatpush1.msra.mxu0 0.0
    %2843 = vmatprep.subr.mxu0 0.0
    %2844 = vmatpush1.msra.mxu0 0.0
    %2845 = vmatprep.subr.mxu0 0.0
    %2846 = vmatpush1.msra.mxu0 0.0
    %2847 = vmatprep.subr.mxu0 0.0
    %2848 = vmatpush1.msra.mxu0 0.0
    %2849 = vmatprep.subr.mxu0 0.0
    %2850 = vmatpush1.msra.mxu0 0.0
    %2851 = vmatprep.subr.mxu0 0.0
    %2852 = vmatpush1.msra.mxu0 %v2395
    %2853 = vmatprep.subr.mxu0 0.0
    %2854 = vmatpush1.msra.mxu0 %v2344
    %2855 = vmatprep.subr.mxu0 0.0
    %2856 = vmatpush2.msra.mxu0 0.0
    %2857 = vmatprep.subr.mxu0 0.0
    %2858 = vmatpush2.msra.mxu0 0.0
    %2859 = vmatprep.subr.mxu0 0.0
    %2860 = vmatpush2.msra.mxu0 0.0
    %2861 = vmatprep.subr.mxu0 0.0
    %2862 = vmatpush2.msra.mxu0 0.0
    %2863 = vmatprep.subr.mxu0 0.0
    %2864 = vmatpush2.msra.mxu0 0.0
    %2865 = vmatprep.subr.mxu0 0.0
    %2866 = vmatpush2.msra.mxu0 0.0
    %2867 = vmatprep.subr.mxu0 0.0
    %2868 = vmatpush2.msra.mxu0 0.0
    %2869 = vmatprep.subr.mxu0 0.0
    %2870 = vmatpush2.msra.mxu0 0.0
    %2871 = vmatprep.subr.mxu0 0.0
    %2872 = vmatpush2.msra.mxu0 0.0
    %2873 = vmatprep.subr.mxu0 0.0
    %2874 = vmatpush2.msra.mxu0 0.0
    %2875 = vmatprep.subr.mxu0 0.0
    %2876 = vmatpush2.msra.mxu0 0.0
    %2877 = vmatprep.subr.mxu0 0.0
    %2878 = vmatpush2.msra.mxu0 0.0
    %2879 = vmatprep.subr.mxu0 0.0
    %2880 = vmatpush2.msra.mxu0 0.0
    %2881 = vmatprep.subr.mxu0 0.0
    %2882 = vmatpush2.msra.mxu0 0.0
    %2883 = vmatprep.subr.mxu0 0.0
    %2884 = vmatpush2.msra.mxu0 0.0
    %2885 = vmatprep.subr.mxu0 0.0
    %2886 = vmatpush2.msra.mxu0 0.0
    %2887 = vmatprep.mubr.f32.mxu0 0.0
    %2888 = vmatmul.mubr.f32.gmra.mxu0 %v68
    %v2889 = vpop.f32.mrf.mxu0
    %v2890 = vadd.f32 0.0, %v2889
    %v2891 = vpop.f32.mrf.mxu0
    %2892 = vdwg.mxu0
    %v2893 = vmax.f32 %v2318, %v2464
    %v2894 = vmax.f32 %v2319, %v2466
    %v2895 = vmax.f32 %v2320, %v2535
    %v2896 = vmax.f32 %v2321, %v2537
    %v2897 = vmax.f32 %v2322, %v2606
    %v2898 = vmax.f32 %v2323, %v2608
    %v2899 = vmax.f32 %v2324, %v2677
    %v2900 = vmax.f32 %v2325, %v2679
    %v2901 = vmax.f32 %v2326, %v2748
    %v2902 = vmax.f32 %v2327, %v2750
    %v2903 = vmax.f32 %v2328, %v2819
    %v2904 = vmax.f32 %v2329, %v2821
    %v2905 = vmax.f32 %v2330, %v2890
    %s2906 = scalar_lea.vmem %s0, 1040
    %v2907 = vld [vmem:[%s2906] sm:$0xff]
    %v2908 = vld [vmem:[%s2906 + $0x8] sm:$0xff]
    %v2909 = vld [vmem:[%s2906 + $0x10] sm:$0xff]
    %v2910 = vld [vmem:[%s2906 + $0x18] sm:$0xff]
    %v2911 = vld [vmem:[%s2906 + $0x20] sm:$0xff]
    %v2912 = vld [vmem:[%s2906 + $0x28] sm:$0xff]
    %v2913 = vld [vmem:[%s2906 + $0x30] sm:$0xff]
    %v2914 = vld [vmem:[%s2906 + $0x38] sm:$0xff]
    %v2915 = vld [vmem:[%s2906 + $0x40] sm:$0xff]
    %v2916 = vld [vmem:[%s2906 + $0x48] sm:$0xff]
    %v2917 = vld [vmem:[%s2906 + $0x50] sm:$0xff]
    %v2918 = vld [vmem:[%s2906 + $0x58] sm:$0xff]
    %v2919 = vld [vmem:[%s2906 + $0x60] sm:$0xff]
    %v2920 = vld [vmem:[%s2906 + $0x68] sm:$0x1]
    %v2921 = vld [vmem:[%s2906 + $0x70] sm:$0x1]
    %v2922 = vld [vmem:[%s2906 + $0x78] sm:$0x1]
    %v2923 = vld [vmem:[%s2906 + $0x80] sm:$0x1]
    %v2924 = vld [vmem:[%s2906 + $0x88] sm:$0x1]
    %v2925 = vld [vmem:[%s2906 + $0x90] sm:$0x1]
    %v2926 = vld [vmem:[%s2906 + $0x98] sm:$0x1]
    %v2927 = vld [vmem:[%s2906 + $0xa0] sm:$0x1]
    %v2928 = vld [vmem:[%s2906 + $0xa8] sm:$0x1]
    %v2929 = vld [vmem:[%s2906 + $0xb0] sm:$0x1]
    %v2930 = vld [vmem:[%s2906 + $0xb8] sm:$0x1]
    %v2931 = vld [vmem:[%s2906 + $0xc0] sm:$0x1]
    %v2932 = vld [vmem:[%s2906 + $0xc8] sm:$0x1]
    %v2934 = vsel %vm70, %v2920, 0
    %v2937 = vsel %vm70, %v2921, 0
    %v2940 = vsel %vm70, %v2922, 0
    %v2943 = vsel %vm70, %v2923, 0
    %v2946 = vsel %vm70, %v2924, 0
    %v2949 = vsel %vm70, %v2925, 0
    %v2952 = vsel %vm70, %v2926, 0
    %v2955 = vsel %vm70, %v2927, 0
    %v2958 = vsel %vm70, %v2928, 0
    %v2961 = vsel %vm70, %v2929, 0
    %v2964 = vsel %vm70, %v2930, 0
    %v2967 = vsel %vm70, %v2931, 0
    %v2970 = vsel %vm70, %v2932, 0
    %2972 = vmatprep.subr.mxu0 0.0
    %2973 = vmatpush1.msra.mxu0 0.0
    %2974 = vmatprep.subr.mxu0 0.0
    %2975 = vmatpush1.msra.mxu0 0.0
    %2976 = vmatprep.subr.mxu0 0.0
    %2977 = vmatpush1.msra.mxu0 0.0
    %2978 = vmatprep.subr.mxu0 0.0
    %2979 = vmatpush1.msra.mxu0 0.0
    %2980 = vmatprep.subr.mxu0 0.0
    %2981 = vmatpush1.msra.mxu0 0.0
    %2982 = vmatprep.subr.mxu0 0.0
    %2983 = vmatpush1.msra.mxu0 0.0
    %2984 = vmatprep.subr.mxu0 0.0
    %2985 = vmatpush1.msra.mxu0 0.0
    %2986 = vmatprep.subr.mxu0 0.0
    %2987 = vmatpush1.msra.mxu0 0.0
    %2988 = vmatprep.subr.mxu0 0.0
    %2989 = vmatpush1.msra.mxu0 0.0
    %2990 = vmatprep.subr.mxu0 0.0
    %2991 = vmatpush1.msra.mxu0 0.0
    %2992 = vmatprep.subr.mxu0 0.0
    %2993 = vmatpush1.msra.mxu0 0.0
    %2994 = vmatprep.subr.mxu0 0.0
    %2995 = vmatpush1.msra.mxu0 0.0
    %2996 = vmatprep.subr.mxu0 0.0
    %2997 = vmatpush1.msra.mxu0 0.0
    %2998 = vmatprep.subr.mxu0 0.0
    %2999 = vmatpush1.msra.mxu0 0.0
    %3000 = vmatprep.subr.mxu0 %v2937
    %3001 = vmatpush1.msra.mxu0 %v2934
    %3002 = vmatprep.subr.mxu0 %v2908
    %3003 = vmatpush1.msra.mxu0 %v2907
    %3004 = vmatprep.subr.mxu0 0.0
    %3005 = vmatpush2.msra.mxu0 0.0
    %3006 = vmatprep.subr.mxu0 0.0
    %3007 = vmatpush2.msra.mxu0 0.0
    %3008 = vmatprep.subr.mxu0 0.0
    %3009 = vmatpush2.msra.mxu0 0.0
    %3010 = vmatprep.subr.mxu0 0.0
    %3011 = vmatpush2.msra.mxu0 0.0
    %3012 = vmatprep.subr.mxu0 0.0
    %3013 = vmatpush2.msra.mxu0 0.0
    %3014 = vmatprep.subr.mxu0 0.0
    %3015 = vmatpush2.msra.mxu0 0.0
    %3016 = vmatprep.subr.mxu0 0.0
    %3017 = vmatpush2.msra.mxu0 0.0
    %3018 = vmatprep.subr.mxu0 0.0
    %3019 = vmatpush2.msra.mxu0 0.0
    %3020 = vmatprep.subr.mxu0 0.0
    %3021 = vmatpush2.msra.mxu0 0.0
    %3022 = vmatprep.subr.mxu0 0.0
    %3023 = vmatpush2.msra.mxu0 0.0
    %3024 = vmatprep.subr.mxu0 0.0
    %3025 = vmatpush2.msra.mxu0 0.0
    %3026 = vmatprep.subr.mxu0 0.0
    %3027 = vmatpush2.msra.mxu0 0.0
    %3028 = vmatprep.subr.mxu0 0.0
    %3029 = vmatpush2.msra.mxu0 0.0
    %3030 = vmatprep.subr.mxu0 0.0
    %3031 = vmatpush2.msra.mxu0 0.0
    %3032 = vmatprep.subr.mxu0 0.0
    %3033 = vmatpush2.msra.mxu0 0.0
    %3034 = vmatprep.subr.mxu0 0.0
    %3035 = vmatpush2.msra.mxu0 0.0
    %3036 = vmatprep.mubr.f32.mxu0 0.0
    %3037 = vmatmul.mubr.f32.gmra.mxu0 %v68
    %v3038 = vpop.f32.mrf.mxu0
    %v3039 = vadd.f32 0.0, %v3038
    %v3040 = vpop.f32.mrf.mxu0
    %v3041 = vadd.f32 0.0, %v3040
    %3042 = vdwg.mxu0
    %3043 = vmatprep.subr.mxu0 0.0
    %3044 = vmatpush1.msra.mxu0 0.0
    %3045 = vmatprep.subr.mxu0 0.0
    %3046 = vmatpush1.msra.mxu0 0.0
    %3047 = vmatprep.subr.mxu0 0.0
    %3048 = vmatpush1.msra.mxu0 0.0
    %3049 = vmatprep.subr.mxu0 0.0
    %3050 = vmatpush1.msra.mxu0 0.0
    %3051 = vmatprep.subr.mxu0 0.0
    %3052 = vmatpush1.msra.mxu0 0.0
    %3053 = vmatprep.subr.mxu0 0.0
    %3054 = vmatpush1.msra.mxu0 0.0
    %3055 = vmatprep.subr.mxu0 0.0
    %3056 = vmatpush1.msra.mxu0 0.0
    %3057 = vmatprep.subr.mxu0 0.0
    %3058 = vmatpush1.msra.mxu0 0.0
    %3059 = vmatprep.subr.mxu0 0.0
    %3060 = vmatpush1.msra.mxu0 0.0
    %3061 = vmatprep.subr.mxu0 0.0
    %3062 = vmatpush1.msra.mxu0 0.0
    %3063 = vmatprep.subr.mxu0 0.0
    %3064 = vmatpush1.msra.mxu0 0.0
    %3065 = vmatprep.subr.mxu0 0.0
    %3066 = vmatpush1.msra.mxu0 0.0
    %3067 = vmatprep.subr.mxu0 0.0
    %3068 = vmatpush1.msra.mxu0 0.0
    %3069 = vmatprep.subr.mxu0 0.0
    %3070 = vmatpush1.msra.mxu0 0.0
    %3071 = vmatprep.subr.mxu0 %v2943
    %3072 = vmatpush1.msra.mxu0 %v2940
    %3073 = vmatprep.subr.mxu0 %v2910
    %3074 = vmatpush1.msra.mxu0 %v2909
    %3075 = vmatprep.subr.mxu0 0.0
    %3076 = vmatpush2.msra.mxu0 0.0
    %3077 = vmatprep.subr.mxu0 0.0
    %3078 = vmatpush2.msra.mxu0 0.0
    %3079 = vmatprep.subr.mxu0 0.0
    %3080 = vmatpush2.msra.mxu0 0.0
    %3081 = vmatprep.subr.mxu0 0.0
    %3082 = vmatpush2.msra.mxu0 0.0
    %3083 = vmatprep.subr.mxu0 0.0
    %3084 = vmatpush2.msra.mxu0 0.0
    %3085 = vmatprep.subr.mxu0 0.0
    %3086 = vmatpush2.msra.mxu0 0.0
    %3087 = vmatprep.subr.mxu0 0.0
    %3088 = vmatpush2.msra.mxu0 0.0
    %3089 = vmatprep.subr.mxu0 0.0
    %3090 = vmatpush2.msra.mxu0 0.0
    %3091 = vmatprep.subr.mxu0 0.0
    %3092 = vmatpush2.msra.mxu0 0.0
    %3093 = vmatprep.subr.mxu0 0.0
    %3094 = vmatpush2.msra.mxu0 0.0
    %3095 = vmatprep.subr.mxu0 0.0
    %3096 = vmatpush2.msra.mxu0 0.0
    %3097 = vmatprep.subr.mxu0 0.0
    %3098 = vmatpush2.msra.mxu0 0.0
    %3099 = vmatprep.subr.mxu0 0.0
    %3100 = vmatpush2.msra.mxu0 0.0
    %3101 = vmatprep.subr.mxu0 0.0
    %3102 = vmatpush2.msra.mxu0 0.0
    %3103 = vmatprep.subr.mxu0 0.0
    %3104 = vmatpush2.msra.mxu0 0.0
    %3105 = vmatprep.subr.mxu0 0.0
    %3106 = vmatpush2.msra.mxu0 0.0
    %3107 = vmatprep.mubr.f32.mxu0 0.0
    %3108 = vmatmul.mubr.f32.gmra.mxu0 %v68
    %v3109 = vpop.f32.mrf.mxu0
    %v3110 = vadd.f32 0.0, %v3109
    %v3111 = vpop.f32.mrf.mxu0
    %v3112 = vadd.f32 0.0, %v3111
    %3113 = vdwg.mxu0
    %3114 = vmatprep.subr.mxu0 0.0
    %3115 = vmatpush1.msra.mxu0 0.0
    %3116 = vmatprep.subr.mxu0 0.0
    %3117 = vmatpush1.msra.mxu0 0.0
    %3118 = vmatprep.subr.mxu0 0.0
    %3119 = vmatpush1.msra.mxu0 0.0
    %3120 = vmatprep.subr.mxu0 0.0
    %3121 = vmatpush1.msra.mxu0 0.0
    %3122 = vmatprep.subr.mxu0 0.0
    %3123 = vmatpush1.msra.mxu0 0.0
    %3124 = vmatprep.subr.mxu0 0.0
    %3125 = vmatpush1.msra.mxu0 0.0
    %3126 = vmatprep.subr.mxu0 0.0
    %3127 = vmatpush1.msra.mxu0 0.0
    %3128 = vmatprep.subr.mxu0 0.0
    %3129 = vmatpush1.msra.mxu0 0.0
    %3130 = vmatprep.subr.mxu0 0.0
    %3131 = vmatpush1.msra.mxu0 0.0
    %3132 = vmatprep.subr.mxu0 0.0
    %3133 = vmatpush1.msra.mxu0 0.0
    %3134 = vmatprep.subr.mxu0 0.0
    %3135 = vmatpush1.msra.mxu0 0.0
    %3136 = vmatprep.subr.mxu0 0.0
    %3137 = vmatpush1.msra.mxu0 0.0
    %3138 = vmatprep.subr.mxu0 0.0
    %3139 = vmatpush1.msra.mxu0 0.0
    %3140 = vmatprep.subr.mxu0 0.0
    %3141 = vmatpush1.msra.mxu0 0.0
    %3142 = vmatprep.subr.mxu0 %v2949
    %3143 = vmatpush1.msra.mxu0 %v2946
    %3144 = vmatprep.subr.mxu0 %v2912
    %3145 = vmatpush1.msra.mxu0 %v2911
    %3146 = vmatprep.subr.mxu0 0.0
    %3147 = vmatpush2.msra.mxu0 0.0
    %3148 = vmatprep.subr.mxu0 0.0
    %3149 = vmatpush2.msra.mxu0 0.0
    %3150 = vmatprep.subr.mxu0 0.0
    %3151 = vmatpush2.msra.mxu0 0.0
    %3152 = vmatprep.subr.mxu0 0.0
    %3153 = vmatpush2.msra.mxu0 0.0
    %3154 = vmatprep.subr.mxu0 0.0
    %3155 = vmatpush2.msra.mxu0 0.0
    %3156 = vmatprep.subr.mxu0 0.0
    %3157 = vmatpush2.msra.mxu0 0.0
    %3158 = vmatprep.subr.mxu0 0.0
    %3159 = vmatpush2.msra.mxu0 0.0
    %3160 = vmatprep.subr.mxu0 0.0
    %3161 = vmatpush2.msra.mxu0 0.0
    %3162 = vmatprep.subr.mxu0 0.0
    %3163 = vmatpush2.msra.mxu0 0.0
    %3164 = vmatprep.subr.mxu0 0.0
    %3165 = vmatpush2.msra.mxu0 0.0
    %3166 = vmatprep.subr.mxu0 0.0
    %3167 = vmatpush2.msra.mxu0 0.0
    %3168 = vmatprep.subr.mxu0 0.0
    %3169 = vmatpush2.msra.mxu0 0.0
    %3170 = vmatprep.subr.mxu0 0.0
    %3171 = vmatpush2.msra.mxu0 0.0
    %3172 = vmatprep.subr.mxu0 0.0
    %3173 = vmatpush2.msra.mxu0 0.0
    %3174 = vmatprep.subr.mxu0 0.0
    %3175 = vmatpush2.msra.mxu0 0.0
    %3176 = vmatprep.subr.mxu0 0.0
    %3177 = vmatpush2.msra.mxu0 0.0
    %3178 = vmatprep.mubr.f32.mxu0 0.0
    %3179 = vmatmul.mubr.f32.gmra.mxu0 %v68
    %v3180 = vpop.f32.mrf.mxu0
    %v3181 = vadd.f32 0.0, %v3180
    %v3182 = vpop.f32.mrf.mxu0
    %v3183 = vadd.f32 0.0, %v3182
    %3184 = vdwg.mxu0
    %3185 = vmatprep.subr.mxu0 0.0
    %3186 = vmatpush1.msra.mxu0 0.0
    %3187 = vmatprep.subr.mxu0 0.0
    %3188 = vmatpush1.msra.mxu0 0.0
    %3189 = vmatprep.subr.mxu0 0.0
    %3190 = vmatpush1.msra.mxu0 0.0
    %3191 = vmatprep.subr.mxu0 0.0
    %3192 = vmatpush1.msra.mxu0 0.0
    %3193 = vmatprep.subr.mxu0 0.0
    %3194 = vmatpush1.msra.mxu0 0.0
    %3195 = vmatprep.subr.mxu0 0.0
    %3196 = vmatpush1.msra.mxu0 0.0
    %3197 = vmatprep.subr.mxu0 0.0
    %3198 = vmatpush1.msra.mxu0 0.0
    %3199 = vmatprep.subr.mxu0 0.0
    %3200 = vmatpush1.msra.mxu0 0.0
    %3201 = vmatprep.subr.mxu0 0.0
    %3202 = vmatpush1.msra.mxu0 0.0
    %3203 = vmatprep.subr.mxu0 0.0
    %3204 = vmatpush1.msra.mxu0 0.0
    %3205 = vmatprep.subr.mxu0 0.0
    %3206 = vmatpush1.msra.mxu0 0.0
    %3207 = vmatprep.subr.mxu0 0.0
    %3208 = vmatpush1.msra.mxu0 0.0
    %3209 = vmatprep.subr.mxu0 0.0
    %3210 = vmatpush1.msra.mxu0 0.0
    %3211 = vmatprep.subr.mxu0 0.0
    %3212 = vmatpush1.msra.mxu0 0.0
    %3213 = vmatprep.subr.mxu0 %v2955
    %3214 = vmatpush1.msra.mxu0 %v2952
    %3215 = vmatprep.subr.mxu0 %v2914
    %3216 = vmatpush1.msra.mxu0 %v2913
    %3217 = vmatprep.subr.mxu0 0.0
    %3218 = vmatpush2.msra.mxu0 0.0
    %3219 = vmatprep.subr.mxu0 0.0
    %3220 = vmatpush2.msra.mxu0 0.0
    %3221 = vmatprep.subr.mxu0 0.0
    %3222 = vmatpush2.msra.mxu0 0.0
    %3223 = vmatprep.subr.mxu0 0.0
    %3224 = vmatpush2.msra.mxu0 0.0
    %3225 = vmatprep.subr.mxu0 0.0
    %3226 = vmatpush2.msra.mxu0 0.0
    %3227 = vmatprep.subr.mxu0 0.0
    %3228 = vmatpush2.msra.mxu0 0.0
    %3229 = vmatprep.subr.mxu0 0.0
    %3230 = vmatpush2.msra.mxu0 0.0
    %3231 = vmatprep.subr.mxu0 0.0
    %3232 = vmatpush2.msra.mxu0 0.0
    %3233 = vmatprep.subr.mxu0 0.0
    %3234 = vmatpush2.msra.mxu0 0.0
    %3235 = vmatprep.subr.mxu0 0.0
    %3236 = vmatpush2.msra.mxu0 0.0
    %3237 = vmatprep.subr.mxu0 0.0
    %3238 = vmatpush2.msra.mxu0 0.0
    %3239 = vmatprep.subr.mxu0 0.0
    %3240 = vmatpush2.msra.mxu0 0.0
    %3241 = vmatprep.subr.mxu0 0.0
    %3242 = vmatpush2.msra.mxu0 0.0
    %3243 = vmatprep.subr.mxu0 0.0
    %3244 = vmatpush2.msra.mxu0 0.0
    %3245 = vmatprep.subr.mxu0 0.0
    %3246 = vmatpush2.msra.mxu0 0.0
    %3247 = vmatprep.subr.mxu0 0.0
    %3248 = vmatpush2.msra.mxu0 0.0
    %3249 = vmatprep.mubr.f32.mxu0 0.0
    %3250 = vmatmul.mubr.f32.gmra.mxu0 %v68
    %v3251 = vpop.f32.mrf.mxu0
    %v3252 = vadd.f32 0.0, %v3251
    %v3253 = vpop.f32.mrf.mxu0
    %v3254 = vadd.f32 0.0, %v3253
    %3255 = vdwg.mxu0
    %3256 = vmatprep.subr.mxu0 0.0
    %3257 = vmatpush1.msra.mxu0 0.0
    %3258 = vmatprep.subr.mxu0 0.0
    %3259 = vmatpush1.msra.mxu0 0.0
    %3260 = vmatprep.subr.mxu0 0.0
    %3261 = vmatpush1.msra.mxu0 0.0
    %3262 = vmatprep.subr.mxu0 0.0
    %3263 = vmatpush1.msra.mxu0 0.0
    %3264 = vmatprep.subr.mxu0 0.0
    %3265 = vmatpush1.msra.mxu0 0.0
    %3266 = vmatprep.subr.mxu0 0.0
    %3267 = vmatpush1.msra.mxu0 0.0
    %3268 = vmatprep.subr.mxu0 0.0
    %3269 = vmatpush1.msra.mxu0 0.0
    %3270 = vmatprep.subr.mxu0 0.0
    %3271 = vmatpush1.msra.mxu0 0.0
    %3272 = vmatprep.subr.mxu0 0.0
    %3273 = vmatpush1.msra.mxu0 0.0
    %3274 = vmatprep.subr.mxu0 0.0
    %3275 = vmatpush1.msra.mxu0 0.0
    %3276 = vmatprep.subr.mxu0 0.0
    %3277 = vmatpush1.msra.mxu0 0.0
    %3278 = vmatprep.subr.mxu0 0.0
    %3279 = vmatpush1.msra.mxu0 0.0
    %3280 = vmatprep.subr.mxu0 0.0
    %3281 = vmatpush1.msra.mxu0 0.0
    %3282 = vmatprep.subr.mxu0 0.0
    %3283 = vmatpush1.msra.mxu0 0.0
    %3284 = vmatprep.subr.mxu0 %v2961
    %3285 = vmatpush1.msra.mxu0 %v2958
    %3286 = vmatprep.subr.mxu0 %v2916
    %3287 = vmatpush1.msra.mxu0 %v2915
    %3288 = vmatprep.subr.mxu0 0.0
    %3289 = vmatpush2.msra.mxu0 0.0
    %3290 = vmatprep.subr.mxu0 0.0
    %3291 = vmatpush2.msra.mxu0 0.0
    %3292 = vmatprep.subr.mxu0 0.0
    %3293 = vmatpush2.msra.mxu0 0.0
    %3294 = vmatprep.subr.mxu0 0.0
    %3295 = vmatpush2.msra.mxu0 0.0
    %3296 = vmatprep.subr.mxu0 0.0
    %3297 = vmatpush2.msra.mxu0 0.0
    %3298 = vmatprep.subr.mxu0 0.0
    %3299 = vmatpush2.msra.mxu0 0.0
    %3300 = vmatprep.subr.mxu0 0.0
    %3301 = vmatpush2.msra.mxu0 0.0
    %3302 = vmatprep.subr.mxu0 0.0
    %3303 = vmatpush2.msra.mxu0 0.0
    %3304 = vmatprep.subr.mxu0 0.0
    %3305 = vmatpush2.msra.mxu0 0.0
    %3306 = vmatprep.subr.mxu0 0.0
    %3307 = vmatpush2.msra.mxu0 0.0
    %3308 = vmatprep.subr.mxu0 0.0
    %3309 = vmatpush2.msra.mxu0 0.0
    %3310 = vmatprep.subr.mxu0 0.0
    %3311 = vmatpush2.msra.mxu0 0.0
    %3312 = vmatprep.subr.mxu0 0.0
    %3313 = vmatpush2.msra.mxu0 0.0
    %3314 = vmatprep.subr.mxu0 0.0
    %3315 = vmatpush2.msra.mxu0 0.0
    %3316 = vmatprep.subr.mxu0 0.0
    %3317 = vmatpush2.msra.mxu0 0.0
    %3318 = vmatprep.subr.mxu0 0.0
    %3319 = vmatpush2.msra.mxu0 0.0
    %3320 = vmatprep.mubr.f32.mxu0 0.0
    %3321 = vmatmul.mubr.f32.gmra.mxu0 %v68
    %v3322 = vpop.f32.mrf.mxu0
    %v3323 = vadd.f32 0.0, %v3322
    %v3324 = vpop.f32.mrf.mxu0
    %v3325 = vadd.f32 0.0, %v3324
    %3326 = vdwg.mxu0
    %3327 = vmatprep.subr.mxu0 0.0
    %3328 = vmatpush1.msra.mxu0 0.0
    %3329 = vmatprep.subr.mxu0 0.0
    %3330 = vmatpush1.msra.mxu0 0.0
    %3331 = vmatprep.subr.mxu0 0.0
    %3332 = vmatpush1.msra.mxu0 0.0
    %3333 = vmatprep.subr.mxu0 0.0
    %3334 = vmatpush1.msra.mxu0 0.0
    %3335 = vmatprep.subr.mxu0 0.0
    %3336 = vmatpush1.msra.mxu0 0.0
    %3337 = vmatprep.subr.mxu0 0.0
    %3338 = vmatpush1.msra.mxu0 0.0
    %3339 = vmatprep.subr.mxu0 0.0
    %3340 = vmatpush1.msra.mxu0 0.0
    %3341 = vmatprep.subr.mxu0 0.0
    %3342 = vmatpush1.msra.mxu0 0.0
    %3343 = vmatprep.subr.mxu0 0.0
    %3344 = vmatpush1.msra.mxu0 0.0
    %3345 = vmatprep.subr.mxu0 0.0
    %3346 = vmatpush1.msra.mxu0 0.0
    %3347 = vmatprep.subr.mxu0 0.0
    %3348 = vmatpush1.msra.mxu0 0.0
    %3349 = vmatprep.subr.mxu0 0.0
    %3350 = vmatpush1.msra.mxu0 0.0
    %3351 = vmatprep.subr.mxu0 0.0
    %3352 = vmatpush1.msra.mxu0 0.0
    %3353 = vmatprep.subr.mxu0 0.0
    %3354 = vmatpush1.msra.mxu0 0.0
    %3355 = vmatprep.subr.mxu0 %v2967
    %3356 = vmatpush1.msra.mxu0 %v2964
    %3357 = vmatprep.subr.mxu0 %v2918
    %3358 = vmatpush1.msra.mxu0 %v2917
    %3359 = vmatprep.subr.mxu0 0.0
    %3360 = vmatpush2.msra.mxu0 0.0
    %3361 = vmatprep.subr.mxu0 0.0
    %3362 = vmatpush2.msra.mxu0 0.0
    %3363 = vmatprep.subr.mxu0 0.0
    %3364 = vmatpush2.msra.mxu0 0.0
    %3365 = vmatprep.subr.mxu0 0.0
    %3366 = vmatpush2.msra.mxu0 0.0
    %3367 = vmatprep.subr.mxu0 0.0
    %3368 = vmatpush2.msra.mxu0 0.0
    %3369 = vmatprep.subr.mxu0 0.0
    %3370 = vmatpush2.msra.mxu0 0.0
    %3371 = vmatprep.subr.mxu0 0.0
    %3372 = vmatpush2.msra.mxu0 0.0
    %3373 = vmatprep.subr.mxu0 0.0
    %3374 = vmatpush2.msra.mxu0 0.0
    %3375 = vmatprep.subr.mxu0 0.0
    %3376 = vmatpush2.msra.mxu0 0.0
    %3377 = vmatprep.subr.mxu0 0.0
    %3378 = vmatpush2.msra.mxu0 0.0
    %3379 = vmatprep.subr.mxu0 0.0
    %3380 = vmatpush2.msra.mxu0 0.0
    %3381 = vmatprep.subr.mxu0 0.0
    %3382 = vmatpush2.msra.mxu0 0.0
    %3383 = vmatprep.subr.mxu0 0.0
    %3384 = vmatpush2.msra.mxu0 0.0
    %3385 = vmatprep.subr.mxu0 0.0
    %3386 = vmatpush2.msra.mxu0 0.0
    %3387 = vmatprep.subr.mxu0 0.0
    %3388 = vmatpush2.msra.mxu0 0.0
    %3389 = vmatprep.subr.mxu0 0.0
    %3390 = vmatpush2.msra.mxu0 0.0
    %3391 = vmatprep.mubr.f32.mxu0 0.0
    %3392 = vmatmul.mubr.f32.gmra.mxu0 %v68
    %v3393 = vpop.f32.mrf.mxu0
    %v3394 = vadd.f32 0.0, %v3393
    %v3395 = vpop.f32.mrf.mxu0
    %v3396 = vadd.f32 0.0, %v3395
    %3397 = vdwg.mxu0
    %3398 = vmatprep.subr.mxu0 0.0
    %3399 = vmatpush1.msra.mxu0 0.0
    %3400 = vmatprep.subr.mxu0 0.0
    %3401 = vmatpush1.msra.mxu0 0.0
    %3402 = vmatprep.subr.mxu0 0.0
    %3403 = vmatpush1.msra.mxu0 0.0
    %3404 = vmatprep.subr.mxu0 0.0
    %3405 = vmatpush1.msra.mxu0 0.0
    %3406 = vmatprep.subr.mxu0 0.0
    %3407 = vmatpush1.msra.mxu0 0.0
    %3408 = vmatprep.subr.mxu0 0.0
    %3409 = vmatpush1.msra.mxu0 0.0
    %3410 = vmatprep.subr.mxu0 0.0
    %3411 = vmatpush1.msra.mxu0 0.0
    %3412 = vmatprep.subr.mxu0 0.0
    %3413 = vmatpush1.msra.mxu0 0.0
    %3414 = vmatprep.subr.mxu0 0.0
    %3415 = vmatpush1.msra.mxu0 0.0
    %3416 = vmatprep.subr.mxu0 0.0
    %3417 = vmatpush1.msra.mxu0 0.0
    %3418 = vmatprep.subr.mxu0 0.0
    %3419 = vmatpush1.msra.mxu0 0.0
    %3420 = vmatprep.subr.mxu0 0.0
    %3421 = vmatpush1.msra.mxu0 0.0
    %3422 = vmatprep.subr.mxu0 0.0
    %3423 = vmatpush1.msra.mxu0 0.0
    %3424 = vmatprep.subr.mxu0 0.0
    %3425 = vmatpush1.msra.mxu0 0.0
    %3426 = vmatprep.subr.mxu0 0.0
    %3427 = vmatpush1.msra.mxu0 %v2970
    %3428 = vmatprep.subr.mxu0 0.0
    %3429 = vmatpush1.msra.mxu0 %v2919
    %3430 = vmatprep.subr.mxu0 0.0
    %3431 = vmatpush2.msra.mxu0 0.0
    %3432 = vmatprep.subr.mxu0 0.0
    %3433 = vmatpush2.msra.mxu0 0.0
    %3434 = vmatprep.subr.mxu0 0.0
    %3435 = vmatpush2.msra.mxu0 0.0
    %3436 = vmatprep.subr.mxu0 0.0
    %3437 = vmatpush2.msra.mxu0 0.0
    %3438 = vmatprep.subr.mxu0 0.0
    %3439 = vmatpush2.msra.mxu0 0.0
    %3440 = vmatprep.subr.mxu0 0.0
    %3441 = vmatpush2.msra.mxu0 0.0
    %3442 = vmatprep.subr.mxu0 0.0
    %3443 = vmatpush2.msra.mxu0 0.0
    %3444 = vmatprep.subr.mxu0 0.0
    %3445 = vmatpush2.msra.mxu0 0.0
    %3446 = vmatprep.subr.mxu0 0.0
    %3447 = vmatpush2.msra.mxu0 0.0
    %3448 = vmatprep.subr.mxu0 0.0
    %3449 = vmatpush2.msra.mxu0 0.0
    %3450 = vmatprep.subr.mxu0 0.0
    %3451 = vmatpush2.msra.mxu0 0.0
    %3452 = vmatprep.subr.mxu0 0.0
    %3453 = vmatpush2.msra.mxu0 0.0
    %3454 = vmatprep.subr.mxu0 0.0
    %3455 = vmatpush2.msra.mxu0 0.0
    %3456 = vmatprep.subr.mxu0 0.0
    %3457 = vmatpush2.msra.mxu0 0.0
    %3458 = vmatprep.subr.mxu0 0.0
    %3459 = vmatpush2.msra.mxu0 0.0
    %3460 = vmatprep.subr.mxu0 0.0
    %3461 = vmatpush2.msra.mxu0 0.0
    %3462 = vmatprep.mubr.f32.mxu0 0.0
    %3463 = vmatmul.mubr.f32.gmra.mxu0 %v68
    %v3464 = vpop.f32.mrf.mxu0
    %v3465 = vadd.f32 0.0, %v3464
    %v3466 = vpop.f32.mrf.mxu0
    %3467 = vdwg.mxu0
    %v3468 = vmax.f32 %v2893, %v3039
    %v3469 = vmax.f32 %v2894, %v3041
    %v3470 = vmax.f32 %v2895, %v3110
    %v3471 = vmax.f32 %v2896, %v3112
    %v3472 = vmax.f32 %v2897, %v3181
    %v3473 = vmax.f32 %v2898, %v3183
    %v3474 = vmax.f32 %v2899, %v3252
    %v3475 = vmax.f32 %v2900, %v3254
    %v3476 = vmax.f32 %v2901, %v3323
    %v3477 = vmax.f32 %v2902, %v3325
    %v3478 = vmax.f32 %v2903, %v3394
    %v3479 = vmax.f32 %v2904, %v3396
    %v3480 = vmax.f32 %v2905, %v3465
    %s3481 = scalar_lea.vmem %s0, 1248
    %v3482 = vld [vmem:[%s3481] sm:$0xff]
    %v3483 = vld [vmem:[%s3481 + $0x8] sm:$0xff]
    %v3484 = vld [vmem:[%s3481 + $0x10] sm:$0xff]
    %v3485 = vld [vmem:[%s3481 + $0x18] sm:$0xff]
    %v3486 = vld [vmem:[%s3481 + $0x20] sm:$0xff]
    %v3487 = vld [vmem:[%s3481 + $0x28] sm:$0xff]
    %v3488 = vld [vmem:[%s3481 + $0x30] sm:$0xff]
    %v3489 = vld [vmem:[%s3481 + $0x38] sm:$0xff]
    %v3490 = vld [vmem:[%s3481 + $0x40] sm:$0xff]
    %v3491 = vld [vmem:[%s3481 + $0x48] sm:$0xff]
    %v3492 = vld [vmem:[%s3481 + $0x50] sm:$0xff]
    %v3493 = vld [vmem:[%s3481 + $0x58] sm:$0xff]
    %v3494 = vld [vmem:[%s3481 + $0x60] sm:$0xff]
    %v3495 = vld [vmem:[%s3481 + $0x68] sm:$0x1]
    %v3496 = vld [vmem:[%s3481 + $0x70] sm:$0x1]
    %v3497 = vld [vmem:[%s3481 + $0x78] sm:$0x1]
    %v3498 = vld [vmem:[%s3481 + $0x80] sm:$0x1]
    %v3499 = vld [vmem:[%s3481 + $0x88] sm:$0x1]
    %v3500 = vld [vmem:[%s3481 + $0x90] sm:$0x1]
    %v3501 = vld [vmem:[%s3481 + $0x98] sm:$0x1]
    %v3502 = vld [vmem:[%s3481 + $0xa0] sm:$0x1]
    %v3503 = vld [vmem:[%s3481 + $0xa8] sm:$0x1]
    %v3504 = vld [vmem:[%s3481 + $0xb0] sm:$0x1]
    %v3505 = vld [vmem:[%s3481 + $0xb8] sm:$0x1]
    %v3506 = vld [vmem:[%s3481 + $0xc0] sm:$0x1]
    %v3507 = vld [vmem:[%s3481 + $0xc8] sm:$0x1]
    %v3509 = vsel %vm70, %v3495, 0
    %v3512 = vsel %vm70, %v3496, 0
    %v3515 = vsel %vm70, %v3497, 0
    %v3518 = vsel %vm70, %v3498, 0
    %v3521 = vsel %vm70, %v3499, 0
    %v3524 = vsel %vm70, %v3500, 0
    %v3527 = vsel %vm70, %v3501, 0
    %v3530 = vsel %vm70, %v3502, 0
    %v3533 = vsel %vm70, %v3503, 0
    %v3536 = vsel %vm70, %v3504, 0
    %v3539 = vsel %vm70, %v3505, 0
    %v3542 = vsel %vm70, %v3506, 0
    %v3545 = vsel %vm70, %v3507, 0
    %3547 = vmatprep.subr.mxu0 0.0
    %3548 = vmatpush1.msra.mxu0 0.0
    %3549 = vmatprep.subr.mxu0 0.0
    %3550 = vmatpush1.msra.mxu0 0.0
    %3551 = vmatprep.subr.mxu0 0.0
    %3552 = vmatpush1.msra.mxu0 0.0
    %3553 = vmatprep.subr.mxu0 0.0
    %3554 = vmatpush1.msra.mxu0 0.0
    %3555 = vmatprep.subr.mxu0 0.0
    %3556 = vmatpush1.msra.mxu0 0.0
    %3557 = vmatprep.subr.mxu0 0.0
    %3558 = vmatpush1.msra.mxu0 0.0
    %3559 = vmatprep.subr.mxu0 0.0
    %3560 = vmatpush1.msra.mxu0 0.0
    %3561 = vmatprep.subr.mxu0 0.0
    %3562 = vmatpush1.msra.mxu0 0.0
    %3563 = vmatprep.subr.mxu0 0.0
    %3564 = vmatpush1.msra.mxu0 0.0
    %3565 = vmatprep.subr.mxu0 0.0
    %3566 = vmatpush1.msra.mxu0 0.0
    %3567 = vmatprep.subr.mxu0 0.0
    %3568 = vmatpush1.msra.mxu0 0.0
    %3569 = vmatprep.subr.mxu0 0.0
    %3570 = vmatpush1.msra.mxu0 0.0
    %3571 = vmatprep.subr.mxu0 0.0
    %3572 = vmatpush1.msra.mxu0 0.0
    %3573 = vmatprep.subr.mxu0 0.0
    %3574 = vmatpush1.msra.mxu0 0.0
    %3575 = vmatprep.subr.mxu0 %v3512
    %3576 = vmatpush1.msra.mxu0 %v3509
    %3577 = vmatprep.subr.mxu0 %v3483
    %3578 = vmatpush1.msra.mxu0 %v3482
    %3579 = vmatprep.subr.mxu0 0.0
    %3580 = vmatpush2.msra.mxu0 0.0
    %3581 = vmatprep.subr.mxu0 0.0
    %3582 = vmatpush2.msra.mxu0 0.0
    %3583 = vmatprep.subr.mxu0 0.0
    %3584 = vmatpush2.msra.mxu0 0.0
    %3585 = vmatprep.subr.mxu0 0.0
    %3586 = vmatpush2.msra.mxu0 0.0
    %3587 = vmatprep.subr.mxu0 0.0
    %3588 = vmatpush2.msra.mxu0 0.0
    %3589 = vmatprep.subr.mxu0 0.0
    %3590 = vmatpush2.msra.mxu0 0.0
    %3591 = vmatprep.subr.mxu0 0.0
    %3592 = vmatpush2.msra.mxu0 0.0
    %3593 = vmatprep.subr.mxu0 0.0
    %3594 = vmatpush2.msra.mxu0 0.0
    %3595 = vmatprep.subr.mxu0 0.0
    %3596 = vmatpush2.msra.mxu0 0.0
    %3597 = vmatprep.subr.mxu0 0.0
    %3598 = vmatpush2.msra.mxu0 0.0
    %3599 = vmatprep.subr.mxu0 0.0
    %3600 = vmatpush2.msra.mxu0 0.0
    %3601 = vmatprep.subr.mxu0 0.0
    %3602 = vmatpush2.msra.mxu0 0.0
    %3603 = vmatprep.subr.mxu0 0.0
    %3604 = vmatpush2.msra.mxu0 0.0
    %3605 = vmatprep.subr.mxu0 0.0
    %3606 = vmatpush2.msra.mxu0 0.0
    %3607 = vmatprep.subr.mxu0 0.0
    %3608 = vmatpush2.msra.mxu0 0.0
    %3609 = vmatprep.subr.mxu0 0.0
    %3610 = vmatpush2.msra.mxu0 0.0
    %3611 = vmatprep.mubr.f32.mxu0 0.0
    %3612 = vmatmul.mubr.f32.gmra.mxu0 %v68
    %v3613 = vpop.f32.mrf.mxu0
    %v3614 = vadd.f32 0.0, %v3613
    %v3615 = vpop.f32.mrf.mxu0
    %v3616 = vadd.f32 0.0, %v3615
    %3617 = vdwg.mxu0
    %3618 = vmatprep.subr.mxu0 0.0
    %3619 = vmatpush1.msra.mxu0 0.0
    %3620 = vmatprep.subr.mxu0 0.0
    %3621 = vmatpush1.msra.mxu0 0.0
    %3622 = vmatprep.subr.mxu0 0.0
    %3623 = vmatpush1.msra.mxu0 0.0
    %3624 = vmatprep.subr.mxu0 0.0
    %3625 = vmatpush1.msra.mxu0 0.0
    %3626 = vmatprep.subr.mxu0 0.0
    %3627 = vmatpush1.msra.mxu0 0.0
    %3628 = vmatprep.subr.mxu0 0.0
    %3629 = vmatpush1.msra.mxu0 0.0
    %3630 = vmatprep.subr.mxu0 0.0
    %3631 = vmatpush1.msra.mxu0 0.0
    %3632 = vmatprep.subr.mxu0 0.0
    %3633 = vmatpush1.msra.mxu0 0.0
    %3634 = vmatprep.subr.mxu0 0.0
    %3635 = vmatpush1.msra.mxu0 0.0
    %3636 = vmatprep.subr.mxu0 0.0
    %3637 = vmatpush1.msra.mxu0 0.0
    %3638 = vmatprep.subr.mxu0 0.0
    %3639 = vmatpush1.msra.mxu0 0.0
    %3640 = vmatprep.subr.mxu0 0.0
    %3641 = vmatpush1.msra.mxu0 0.0
    %3642 = vmatprep.subr.mxu0 0.0
    %3643 = vmatpush1.msra.mxu0 0.0
    %3644 = vmatprep.subr.mxu0 0.0
    %3645 = vmatpush1.msra.mxu0 0.0
    %3646 = vmatprep.subr.mxu0 %v3518
    %3647 = vmatpush1.msra.mxu0 %v3515
    %3648 = vmatprep.subr.mxu0 %v3485
    %3649 = vmatpush1.msra.mxu0 %v3484
    %3650 = vmatprep.subr.mxu0 0.0
    %3651 = vmatpush2.msra.mxu0 0.0
    %3652 = vmatprep.subr.mxu0 0.0
    %3653 = vmatpush2.msra.mxu0 0.0
    %3654 = vmatprep.subr.mxu0 0.0
    %3655 = vmatpush2.msra.mxu0 0.0
    %3656 = vmatprep.subr.mxu0 0.0
    %3657 = vmatpush2.msra.mxu0 0.0
    %3658 = vmatprep.subr.mxu0 0.0
    %3659 = vmatpush2.msra.mxu0 0.0
    %3660 = vmatprep.subr.mxu0 0.0
    %3661 = vmatpush2.msra.mxu0 0.0
    %3662 = vmatprep.subr.mxu0 0.0
    %3663 = vmatpush2.msra.mxu0 0.0
    %3664 = vmatprep.subr.mxu0 0.0
    %3665 = vmatpush2.msra.mxu0 0.0
    %3666 = vmatprep.subr.mxu0 0.0
    %3667 = vmatpush2.msra.mxu0 0.0
    %3668 = vmatprep.subr.mxu0 0.0
    %3669 = vmatpush2.msra.mxu0 0.0
    %3670 = vmatprep.subr.mxu0 0.0
    %3671 = vmatpush2.msra.mxu0 0.0
    %3672 = vmatprep.subr.mxu0 0.0
    %3673 = vmatpush2.msra.mxu0 0.0
    %3674 = vmatprep.subr.mxu0 0.0
    %3675 = vmatpush2.msra.mxu0 0.0
    %3676 = vmatprep.subr.mxu0 0.0
    %3677 = vmatpush2.msra.mxu0 0.0
    %3678 = vmatprep.subr.mxu0 0.0
    %3679 = vmatpush2.msra.mxu0 0.0
    %3680 = vmatprep.subr.mxu0 0.0
    %3681 = vmatpush2.msra.mxu0 0.0
    %3682 = vmatprep.mubr.f32.mxu0 0.0
    %3683 = vmatmul.mubr.f32.gmra.mxu0 %v68
    %v3684 = vpop.f32.mrf.mxu0
    %v3685 = vadd.f32 0.0, %v3684
    %v3686 = vpop.f32.mrf.mxu0
    %v3687 = vadd.f32 0.0, %v3686
    %3688 = vdwg.mxu0
    %3689 = vmatprep.subr.mxu0 0.0
    %3690 = vmatpush1.msra.mxu0 0.0
    %3691 = vmatprep.subr.mxu0 0.0
    %3692 = vmatpush1.msra.mxu0 0.0
    %3693 = vmatprep.subr.mxu0 0.0
    %3694 = vmatpush1.msra.mxu0 0.0
    %3695 = vmatprep.subr.mxu0 0.0
    %3696 = vmatpush1.msra.mxu0 0.0
    %3697 = vmatprep.subr.mxu0 0.0
    %3698 = vmatpush1.msra.mxu0 0.0
    %3699 = vmatprep.subr.mxu0 0.0
    %3700 = vmatpush1.msra.mxu0 0.0
    %3701 = vmatprep.subr.mxu0 0.0
    %3702 = vmatpush1.msra.mxu0 0.0
    %3703 = vmatprep.subr.mxu0 0.0
    %3704 = vmatpush1.msra.mxu0 0.0
    %3705 = vmatprep.subr.mxu0 0.0
    %3706 = vmatpush1.msra.mxu0 0.0
    %3707 = vmatprep.subr.mxu0 0.0
    %3708 = vmatpush1.msra.mxu0 0.0
    %3709 = vmatprep.subr.mxu0 0.0
    %3710 = vmatpush1.msra.mxu0 0.0
    %3711 = vmatprep.subr.mxu0 0.0
    %3712 = vmatpush1.msra.mxu0 0.0
    %3713 = vmatprep.subr.mxu0 0.0
    %3714 = vmatpush1.msra.mxu0 0.0
    %3715 = vmatprep.subr.mxu0 0.0
    %3716 = vmatpush1.msra.mxu0 0.0
    %3717 = vmatprep.subr.mxu0 %v3524
    %3718 = vmatpush1.msra.mxu0 %v3521
    %3719 = vmatprep.subr.mxu0 %v3487
    %3720 = vmatpush1.msra.mxu0 %v3486
    %3721 = vmatprep.subr.mxu0 0.0
    %3722 = vmatpush2.msra.mxu0 0.0
    %3723 = vmatprep.subr.mxu0 0.0
    %3724 = vmatpush2.msra.mxu0 0.0
    %3725 = vmatprep.subr.mxu0 0.0
    %3726 = vmatpush2.msra.mxu0 0.0
    %3727 = vmatprep.subr.mxu0 0.0
    %3728 = vmatpush2.msra.mxu0 0.0
    %3729 = vmatprep.subr.mxu0 0.0
    %3730 = vmatpush2.msra.mxu0 0.0
    %3731 = vmatprep.subr.mxu0 0.0
    %3732 = vmatpush2.msra.mxu0 0.0
    %3733 = vmatprep.subr.mxu0 0.0
    %3734 = vmatpush2.msra.mxu0 0.0
    %3735 = vmatprep.subr.mxu0 0.0
    %3736 = vmatpush2.msra.mxu0 0.0
    %3737 = vmatprep.subr.mxu0 0.0
    %3738 = vmatpush2.msra.mxu0 0.0
    %3739 = vmatprep.subr.mxu0 0.0
    %3740 = vmatpush2.msra.mxu0 0.0
    %3741 = vmatprep.subr.mxu0 0.0
    %3742 = vmatpush2.msra.mxu0 0.0
    %3743 = vmatprep.subr.mxu0 0.0
    %3744 = vmatpush2.msra.mxu0 0.0
    %3745 = vmatprep.subr.mxu0 0.0
    %3746 = vmatpush2.msra.mxu0 0.0
    %3747 = vmatprep.subr.mxu0 0.0
    %3748 = vmatpush2.msra.mxu0 0.0
    %3749 = vmatprep.subr.mxu0 0.0
    %3750 = vmatpush2.msra.mxu0 0.0
    %3751 = vmatprep.subr.mxu0 0.0
    %3752 = vmatpush2.msra.mxu0 0.0
    %3753 = vmatprep.mubr.f32.mxu0 0.0
    %3754 = vmatmul.mubr.f32.gmra.mxu0 %v68
    %v3755 = vpop.f32.mrf.mxu0
    %v3756 = vadd.f32 0.0, %v3755
    %v3757 = vpop.f32.mrf.mxu0
    %v3758 = vadd.f32 0.0, %v3757
    %3759 = vdwg.mxu0
    %3760 = vmatprep.subr.mxu0 0.0
    %3761 = vmatpush1.msra.mxu0 0.0
    %3762 = vmatprep.subr.mxu0 0.0
    %3763 = vmatpush1.msra.mxu0 0.0
    %3764 = vmatprep.subr.mxu0 0.0
    %3765 = vmatpush1.msra.mxu0 0.0
    %3766 = vmatprep.subr.mxu0 0.0
    %3767 = vmatpush1.msra.mxu0 0.0
    %3768 = vmatprep.subr.mxu0 0.0
    %3769 = vmatpush1.msra.mxu0 0.0
    %3770 = vmatprep.subr.mxu0 0.0
    %3771 = vmatpush1.msra.mxu0 0.0
    %3772 = vmatprep.subr.mxu0 0.0
    %3773 = vmatpush1.msra.mxu0 0.0
    %3774 = vmatprep.subr.mxu0 0.0
    %3775 = vmatpush1.msra.mxu0 0.0
    %3776 = vmatprep.subr.mxu0 0.0
    %3777 = vmatpush1.msra.mxu0 0.0
    %3778 = vmatprep.subr.mxu0 0.0
    %3779 = vmatpush1.msra.mxu0 0.0
    %3780 = vmatprep.subr.mxu0 0.0
    %3781 = vmatpush1.msra.mxu0 0.0
    %3782 = vmatprep.subr.mxu0 0.0
    %3783 = vmatpush1.msra.mxu0 0.0
    %3784 = vmatprep.subr.mxu0 0.0
    %3785 = vmatpush1.msra.mxu0 0.0
    %3786 = vmatprep.subr.mxu0 0.0
    %3787 = vmatpush1.msra.mxu0 0.0
    %3788 = vmatprep.subr.mxu0 %v3530
    %3789 = vmatpush1.msra.mxu0 %v3527
    %3790 = vmatprep.subr.mxu0 %v3489
    %3791 = vmatpush1.msra.mxu0 %v3488
    %3792 = vmatprep.subr.mxu0 0.0
    %3793 = vmatpush2.msra.mxu0 0.0
    %3794 = vmatprep.subr.mxu0 0.0
    %3795 = vmatpush2.msra.mxu0 0.0
    %3796 = vmatprep.subr.mxu0 0.0
    %3797 = vmatpush2.msra.mxu0 0.0
    %3798 = vmatprep.subr.mxu0 0.0
    %3799 = vmatpush2.msra.mxu0 0.0
    %3800 = vmatprep.subr.mxu0 0.0
    %3801 = vmatpush2.msra.mxu0 0.0
    %3802 = vmatprep.subr.mxu0 0.0
    %3803 = vmatpush2.msra.mxu0 0.0
    %3804 = vmatprep.subr.mxu0 0.0
    %3805 = vmatpush2.msra.mxu0 0.0
    %3806 = vmatprep.subr.mxu0 0.0
    %3807 = vmatpush2.msra.mxu0 0.0
    %3808 = vmatprep.subr.mxu0 0.0
    %3809 = vmatpush2.msra.mxu0 0.0
    %3810 = vmatprep.subr.mxu0 0.0
    %3811 = vmatpush2.msra.mxu0 0.0
    %3812 = vmatprep.subr.mxu0 0.0
    %3813 = vmatpush2.msra.mxu0 0.0
    %3814 = vmatprep.subr.mxu0 0.0
    %3815 = vmatpush2.msra.mxu0 0.0
    %3816 = vmatprep.subr.mxu0 0.0
    %3817 = vmatpush2.msra.mxu0 0.0
    %3818 = vmatprep.subr.mxu0 0.0
    %3819 = vmatpush2.msra.mxu0 0.0
    %3820 = vmatprep.subr.mxu0 0.0
    %3821 = vmatpush2.msra.mxu0 0.0
    %3822 = vmatprep.subr.mxu0 0.0
    %3823 = vmatpush2.msra.mxu0 0.0
    %3824 = vmatprep.mubr.f32.mxu0 0.0
    %3825 = vmatmul.mubr.f32.gmra.mxu0 %v68
    %v3826 = vpop.f32.mrf.mxu0
    %v3827 = vadd.f32 0.0, %v3826
    %v3828 = vpop.f32.mrf.mxu0
    %v3829 = vadd.f32 0.0, %v3828
    %3830 = vdwg.mxu0
    %3831 = vmatprep.subr.mxu0 0.0
    %3832 = vmatpush1.msra.mxu0 0.0
    %3833 = vmatprep.subr.mxu0 0.0
    %3834 = vmatpush1.msra.mxu0 0.0
    %3835 = vmatprep.subr.mxu0 0.0
    %3836 = vmatpush1.msra.mxu0 0.0
    %3837 = vmatprep.subr.mxu0 0.0
    %3838 = vmatpush1.msra.mxu0 0.0
    %3839 = vmatprep.subr.mxu0 0.0
    %3840 = vmatpush1.msra.mxu0 0.0
    %3841 = vmatprep.subr.mxu0 0.0
    %3842 = vmatpush1.msra.mxu0 0.0
    %3843 = vmatprep.subr.mxu0 0.0
    %3844 = vmatpush1.msra.mxu0 0.0
    %3845 = vmatprep.subr.mxu0 0.0
    %3846 = vmatpush1.msra.mxu0 0.0
    %3847 = vmatprep.subr.mxu0 0.0
    %3848 = vmatpush1.msra.mxu0 0.0
    %3849 = vmatprep.subr.mxu0 0.0
    %3850 = vmatpush1.msra.mxu0 0.0
    %3851 = vmatprep.subr.mxu0 0.0
    %3852 = vmatpush1.msra.mxu0 0.0
    %3853 = vmatprep.subr.mxu0 0.0
    %3854 = vmatpush1.msra.mxu0 0.0
    %3855 = vmatprep.subr.mxu0 0.0
    %3856 = vmatpush1.msra.mxu0 0.0
    %3857 = vmatprep.subr.mxu0 0.0
    %3858 = vmatpush1.msra.mxu0 0.0
    %3859 = vmatprep.subr.mxu0 %v3536
    %3860 = vmatpush1.msra.mxu0 %v3533
    %3861 = vmatprep.subr.mxu0 %v3491
    %3862 = vmatpush1.msra.mxu0 %v3490
    %3863 = vmatprep.subr.mxu0 0.0
    %3864 = vmatpush2.msra.mxu0 0.0
    %3865 = vmatprep.subr.mxu0 0.0
    %3866 = vmatpush2.msra.mxu0 0.0
    %3867 = vmatprep.subr.mxu0 0.0
    %3868 = vmatpush2.msra.mxu0 0.0
    %3869 = vmatprep.subr.mxu0 0.0
    %3870 = vmatpush2.msra.mxu0 0.0
    %3871 = vmatprep.subr.mxu0 0.0
    %3872 = vmatpush2.msra.mxu0 0.0
    %3873 = vmatprep.subr.mxu0 0.0
    %3874 = vmatpush2.msra.mxu0 0.0
    %3875 = vmatprep.subr.mxu0 0.0
    %3876 = vmatpush2.msra.mxu0 0.0
    %3877 = vmatprep.subr.mxu0 0.0
    %3878 = vmatpush2.msra.mxu0 0.0
    %3879 = vmatprep.subr.mxu0 0.0
    %3880 = vmatpush2.msra.mxu0 0.0
    %3881 = vmatprep.subr.mxu0 0.0
    %3882 = vmatpush2.msra.mxu0 0.0
    %3883 = vmatprep.subr.mxu0 0.0
    %3884 = vmatpush2.msra.mxu0 0.0
    %3885 = vmatprep.subr.mxu0 0.0
    %3886 = vmatpush2.msra.mxu0 0.0
    %3887 = vmatprep.subr.mxu0 0.0
    %3888 = vmatpush2.msra.mxu0 0.0
    %3889 = vmatprep.subr.mxu0 0.0
    %3890 = vmatpush2.msra.mxu0 0.0
    %3891 = vmatprep.subr.mxu0 0.0
    %3892 = vmatpush2.msra.mxu0 0.0
    %3893 = vmatprep.subr.mxu0 0.0
    %3894 = vmatpush2.msra.mxu0 0.0
    %3895 = vmatprep.mubr.f32.mxu0 0.0
    %3896 = vmatmul.mubr.f32.gmra.mxu0 %v68
    %v3897 = vpop.f32.mrf.mxu0
    %v3898 = vadd.f32 0.0, %v3897
    %v3899 = vpop.f32.mrf.mxu0
    %v3900 = vadd.f32 0.0, %v3899
    %3901 = vdwg.mxu0
    %3902 = vmatprep.subr.mxu0 0.0
    %3903 = vmatpush1.msra.mxu0 0.0
    %3904 = vmatprep.subr.mxu0 0.0
    %3905 = vmatpush1.msra.mxu0 0.0
    %3906 = vmatprep.subr.mxu0 0.0
    %3907 = vmatpush1.msra.mxu0 0.0
    %3908 = vmatprep.subr.mxu0 0.0
    %3909 = vmatpush1.msra.mxu0 0.0
    %3910 = vmatprep.subr.mxu0 0.0
    %3911 = vmatpush1.msra.mxu0 0.0
    %3912 = vmatprep.subr.mxu0 0.0
    %3913 = vmatpush1.msra.mxu0 0.0
    %3914 = vmatprep.subr.mxu0 0.0
    %3915 = vmatpush1.msra.mxu0 0.0
    %3916 = vmatprep.subr.mxu0 0.0
    %3917 = vmatpush1.msra.mxu0 0.0
    %3918 = vmatprep.subr.mxu0 0.0
    %3919 = vmatpush1.msra.mxu0 0.0
    %3920 = vmatprep.subr.mxu0 0.0
    %3921 = vmatpush1.msra.mxu0 0.0
    %3922 = vmatprep.subr.mxu0 0.0
    %3923 = vmatpush1.msra.mxu0 0.0
    %3924 = vmatprep.subr.mxu0 0.0
    %3925 = vmatpush1.msra.mxu0 0.0
    %3926 = vmatprep.subr.mxu0 0.0
    %3927 = vmatpush1.msra.mxu0 0.0
    %3928 = vmatprep.subr.mxu0 0.0
    %3929 = vmatpush1.msra.mxu0 0.0
    %3930 = vmatprep.subr.mxu0 %v3542
    %3931 = vmatpush1.msra.mxu0 %v3539
    %3932 = vmatprep.subr.mxu0 %v3493
    %3933 = vmatpush1.msra.mxu0 %v3492
    %3934 = vmatprep.subr.mxu0 0.0
    %3935 = vmatpush2.msra.mxu0 0.0
    %3936 = vmatprep.subr.mxu0 0.0
    %3937 = vmatpush2.msra.mxu0 0.0
    %3938 = vmatprep.subr.mxu0 0.0
    %3939 = vmatpush2.msra.mxu0 0.0
    %3940 = vmatprep.subr.mxu0 0.0
    %3941 = vmatpush2.msra.mxu0 0.0
    %3942 = vmatprep.subr.mxu0 0.0
    %3943 = vmatpush2.msra.mxu0 0.0
    %3944 = vmatprep.subr.mxu0 0.0
    %3945 = vmatpush2.msra.mxu0 0.0
    %3946 = vmatprep.subr.mxu0 0.0
    %3947 = vmatpush2.msra.mxu0 0.0
    %3948 = vmatprep.subr.mxu0 0.0
    %3949 = vmatpush2.msra.mxu0 0.0
    %3950 = vmatprep.subr.mxu0 0.0
    %3951 = vmatpush2.msra.mxu0 0.0
    %3952 = vmatprep.subr.mxu0 0.0
    %3953 = vmatpush2.msra.mxu0 0.0
    %3954 = vmatprep.subr.mxu0 0.0
    %3955 = vmatpush2.msra.mxu0 0.0
    %3956 = vmatprep.subr.mxu0 0.0
    %3957 = vmatpush2.msra.mxu0 0.0
    %3958 = vmatprep.subr.mxu0 0.0
    %3959 = vmatpush2.msra.mxu0 0.0
    %3960 = vmatprep.subr.mxu0 0.0
    %3961 = vmatpush2.msra.mxu0 0.0
    %3962 = vmatprep.subr.mxu0 0.0
    %3963 = vmatpush2.msra.mxu0 0.0
    %3964 = vmatprep.subr.mxu0 0.0
    %3965 = vmatpush2.msra.mxu0 0.0
    %3966 = vmatprep.mubr.f32.mxu0 0.0
    %3967 = vmatmul.mubr.f32.gmra.mxu0 %v68
    %v3968 = vpop.f32.mrf.mxu0
    %v3969 = vadd.f32 0.0, %v3968
    %v3970 = vpop.f32.mrf.mxu0
    %v3971 = vadd.f32 0.0, %v3970
    %3972 = vdwg.mxu0
    %3973 = vmatprep.subr.mxu0 0.0
    %3974 = vmatpush1.msra.mxu0 0.0
    %3975 = vmatprep.subr.mxu0 0.0
    %3976 = vmatpush1.msra.mxu0 0.0
    %3977 = vmatprep.subr.mxu0 0.0
    %3978 = vmatpush1.msra.mxu0 0.0
    %3979 = vmatprep.subr.mxu0 0.0
    %3980 = vmatpush1.msra.mxu0 0.0
    %3981 = vmatprep.subr.mxu0 0.0
    %3982 = vmatpush1.msra.mxu0 0.0
    %3983 = vmatprep.subr.mxu0 0.0
    %3984 = vmatpush1.msra.mxu0 0.0
    %3985 = vmatprep.subr.mxu0 0.0
    %3986 = vmatpush1.msra.mxu0 0.0
    %3987 = vmatprep.subr.mxu0 0.0
    %3988 = vmatpush1.msra.mxu0 0.0
    %3989 = vmatprep.subr.mxu0 0.0
    %3990 = vmatpush1.msra.mxu0 0.0
    %3991 = vmatprep.subr.mxu0 0.0
    %3992 = vmatpush1.msra.mxu0 0.0
    %3993 = vmatprep.subr.mxu0 0.0
    %3994 = vmatpush1.msra.mxu0 0.0
    %3995 = vmatprep.subr.mxu0 0.0
    %3996 = vmatpush1.msra.mxu0 0.0
    %3997 = vmatprep.subr.mxu0 0.0
    %3998 = vmatpush1.msra.mxu0 0.0
    %3999 = vmatprep.subr.mxu0 0.0
    %4000 = vmatpush1.msra.mxu0 0.0
    %4001 = vmatprep.subr.mxu0 0.0
    %4002 = vmatpush1.msra.mxu0 %v3545
    %4003 = vmatprep.subr.mxu0 0.0
    %4004 = vmatpush1.msra.mxu0 %v3494
    %4005 = vmatprep.subr.mxu0 0.0
    %4006 = vmatpush2.msra.mxu0 0.0
    %4007 = vmatprep.subr.mxu0 0.0
    %4008 = vmatpush2.msra.mxu0 0.0
    %4009 = vmatprep.subr.mxu0 0.0
    %4010 = vmatpush2.msra.mxu0 0.0
    %4011 = vmatprep.subr.mxu0 0.0
    %4012 = vmatpush2.msra.mxu0 0.0
    %4013 = vmatprep.subr.mxu0 0.0
    %4014 = vmatpush2.msra.mxu0 0.0
    %4015 = vmatprep.subr.mxu0 0.0
    %4016 = vmatpush2.msra.mxu0 0.0
    %4017 = vmatprep.subr.mxu0 0.0
    %4018 = vmatpush2.msra.mxu0 0.0
    %4019 = vmatprep.subr.mxu0 0.0
    %4020 = vmatpush2.msra.mxu0 0.0
    %4021 = vmatprep.subr.mxu0 0.0
    %4022 = vmatpush2.msra.mxu0 0.0
    %4023 = vmatprep.subr.mxu0 0.0
    %4024 = vmatpush2.msra.mxu0 0.0
    %4025 = vmatprep.subr.mxu0 0.0
    %4026 = vmatpush2.msra.mxu0 0.0
    %4027 = vmatprep.subr.mxu0 0.0
    %4028 = vmatpush2.msra.mxu0 0.0
    %4029 = vmatprep.subr.mxu0 0.0
    %4030 = vmatpush2.msra.mxu0 0.0
    %4031 = vmatprep.subr.mxu0 0.0
    %4032 = vmatpush2.msra.mxu0 0.0
    %4033 = vmatprep.subr.mxu0 0.0
    %4034 = vmatpush2.msra.mxu0 0.0
    %4035 = vmatprep.subr.mxu0 0.0
    %4036 = vmatpush2.msra.mxu0 0.0
    %4037 = vmatprep.mubr.f32.mxu0 0.0
    %4038 = vmatmul.mubr.f32.gmra.mxu0 %v68
    %v4039 = vpop.f32.mrf.mxu0
    %v4040 = vadd.f32 0.0, %v4039
    %v4041 = vpop.f32.mrf.mxu0
    %4042 = vdwg.mxu0
    %v4043 = vmax.f32 %v3468, %v3614
    %v4044 = vmax.f32 %v3469, %v3616
    %v4045 = vmax.f32 %v3470, %v3685
    %v4046 = vmax.f32 %v3471, %v3687
    %v4047 = vmax.f32 %v3472, %v3756
    %v4048 = vmax.f32 %v3473, %v3758
    %v4049 = vmax.f32 %v3474, %v3827
    %v4050 = vmax.f32 %v3475, %v3829
    %v4051 = vmax.f32 %v3476, %v3898
    %v4052 = vmax.f32 %v3477, %v3900
    %v4053 = vmax.f32 %v3478, %v3969
    %v4054 = vmax.f32 %v3479, %v3971
    %v4055 = vmax.f32 %v3480, %v4040
    %s4056 = scalar_lea.vmem %s0, 1456
    %v4057 = vld [vmem:[%s4056] sm:$0xff]
    %v4058 = vld [vmem:[%s4056 + $0x8] sm:$0xff]
    %v4059 = vld [vmem:[%s4056 + $0x10] sm:$0xff]
    %v4060 = vld [vmem:[%s4056 + $0x18] sm:$0xff]
    %v4061 = vld [vmem:[%s4056 + $0x20] sm:$0xff]
    %v4062 = vld [vmem:[%s4056 + $0x28] sm:$0xff]
    %v4063 = vld [vmem:[%s4056 + $0x30] sm:$0xff]
    %v4064 = vld [vmem:[%s4056 + $0x38] sm:$0xff]
    %v4065 = vld [vmem:[%s4056 + $0x40] sm:$0xff]
    %v4066 = vld [vmem:[%s4056 + $0x48] sm:$0xff]
    %v4067 = vld [vmem:[%s4056 + $0x50] sm:$0xff]
    %v4068 = vld [vmem:[%s4056 + $0x58] sm:$0xff]
    %v4069 = vld [vmem:[%s4056 + $0x60] sm:$0xff]
    %v4070 = vld [vmem:[%s4056 + $0x68] sm:$0x1]
    %v4071 = vld [vmem:[%s4056 + $0x70] sm:$0x1]
    %v4072 = vld [vmem:[%s4056 + $0x78] sm:$0x1]
    %v4073 = vld [vmem:[%s4056 + $0x80] sm:$0x1]
    %v4074 = vld [vmem:[%s4056 + $0x88] sm:$0x1]
    %v4075 = vld [vmem:[%s4056 + $0x90] sm:$0x1]
    %v4076 = vld [vmem:[%s4056 + $0x98] sm:$0x1]
    %v4077 = vld [vmem:[%s4056 + $0xa0] sm:$0x1]
    %v4078 = vld [vmem:[%s4056 + $0xa8] sm:$0x1]
    %v4079 = vld [vmem:[%s4056 + $0xb0] sm:$0x1]
    %v4080 = vld [vmem:[%s4056 + $0xb8] sm:$0x1]
    %v4081 = vld [vmem:[%s4056 + $0xc0] sm:$0x1]
    %v4082 = vld [vmem:[%s4056 + $0xc8] sm:$0x1]
    %v4084 = vsel %vm70, %v4070, 0
    %v4087 = vsel %vm70, %v4071, 0
    %v4090 = vsel %vm70, %v4072, 0
    %v4093 = vsel %vm70, %v4073, 0
    %v4096 = vsel %vm70, %v4074, 0
    %v4099 = vsel %vm70, %v4075, 0
    %v4102 = vsel %vm70, %v4076, 0
    %v4105 = vsel %vm70, %v4077, 0
    %v4108 = vsel %vm70, %v4078, 0
    %v4111 = vsel %vm70, %v4079, 0
    %v4114 = vsel %vm70, %v4080, 0
    %v4117 = vsel %vm70, %v4081, 0
    %v4120 = vsel %vm70, %v4082, 0
    %4122 = vmatprep.subr.mxu0 0.0
    %4123 = vmatpush1.msra.mxu0 0.0
    %4124 = vmatprep.subr.mxu0 0.0
    %4125 = vmatpush1.msra.mxu0 0.0
    %4126 = vmatprep.subr.mxu0 0.0
    %4127 = vmatpush1.msra.mxu0 0.0
    %4128 = vmatprep.subr.mxu0 0.0
    %4129 = vmatpush1.msra.mxu0 0.0
    %4130 = vmatprep.subr.mxu0 0.0
    %4131 = vmatpush1.msra.mxu0 0.0
    %4132 = vmatprep.subr.mxu0 0.0
    %4133 = vmatpush1.msra.mxu0 0.0
    %4134 = vmatprep.subr.mxu0 0.0
    %4135 = vmatpush1.msra.mxu0 0.0
    %4136 = vmatprep.subr.mxu0 0.0
    %4137 = vmatpush1.msra.mxu0 0.0
    %4138 = vmatprep.subr.mxu0 0.0
    %4139 = vmatpush1.msra.mxu0 0.0
    %4140 = vmatprep.subr.mxu0 0.0
    %4141 = vmatpush1.msra.mxu0 0.0
    %4142 = vmatprep.subr.mxu0 0.0
    %4143 = vmatpush1.msra.mxu0 0.0
    %4144 = vmatprep.subr.mxu0 0.0
    %4145 = vmatpush1.msra.mxu0 0.0
    %4146 = vmatprep.subr.mxu0 0.0
    %4147 = vmatpush1.msra.mxu0 0.0
    %4148 = vmatprep.subr.mxu0 0.0
    %4149 = vmatpush1.msra.mxu0 0.0
    %4150 = vmatprep.subr.mxu0 %v4087
    %4151 = vmatpush1.msra.mxu0 %v4084
    %4152 = vmatprep.subr.mxu0 %v4058
    %4153 = vmatpush1.msra.mxu0 %v4057
    %4154 = vmatprep.subr.mxu0 0.0
    %4155 = vmatpush2.msra.mxu0 0.0
    %4156 = vmatprep.subr.mxu0 0.0
    %4157 = vmatpush2.msra.mxu0 0.0
    %4158 = vmatprep.subr.mxu0 0.0
    %4159 = vmatpush2.msra.mxu0 0.0
    %4160 = vmatprep.subr.mxu0 0.0
    %4161 = vmatpush2.msra.mxu0 0.0
    %4162 = vmatprep.subr.mxu0 0.0
    %4163 = vmatpush2.msra.mxu0 0.0
    %4164 = vmatprep.subr.mxu0 0.0
    %4165 = vmatpush2.msra.mxu0 0.0
    %4166 = vmatprep.subr.mxu0 0.0
    %4167 = vmatpush2.msra.mxu0 0.0
    %4168 = vmatprep.subr.mxu0 0.0
    %4169 = vmatpush2.msra.mxu0 0.0
    %4170 = vmatprep.subr.mxu0 0.0
    %4171 = vmatpush2.msra.mxu0 0.0
    %4172 = vmatprep.subr.mxu0 0.0
    %4173 = vmatpush2.msra.mxu0 0.0
    %4174 = vmatprep.subr.mxu0 0.0
    %4175 = vmatpush2.msra.mxu0 0.0
    %4176 = vmatprep.subr.mxu0 0.0
    %4177 = vmatpush2.msra.mxu0 0.0
    %4178 = vmatprep.subr.mxu0 0.0
    %4179 = vmatpush2.msra.mxu0 0.0
    %4180 = vmatprep.subr.mxu0 0.0
    %4181 = vmatpush2.msra.mxu0 0.0
    %4182 = vmatprep.subr.mxu0 0.0
    %4183 = vmatpush2.msra.mxu0 0.0
    %4184 = vmatprep.subr.mxu0 0.0
    %4185 = vmatpush2.msra.mxu0 0.0
    %4186 = vmatprep.mubr.f32.mxu0 0.0
    %4187 = vmatmul.mubr.f32.gmra.mxu0 %v68
    %v4188 = vpop.f32.mrf.mxu0
    %v4189 = vadd.f32 0.0, %v4188
    %v4190 = vpop.f32.mrf.mxu0
    %v4191 = vadd.f32 0.0, %v4190
    %4192 = vdwg.mxu0
    %4193 = vmatprep.subr.mxu0 0.0
    %4194 = vmatpush1.msra.mxu0 0.0
    %4195 = vmatprep.subr.mxu0 0.0
    %4196 = vmatpush1.msra.mxu0 0.0
    %4197 = vmatprep.subr.mxu0 0.0
    %4198 = vmatpush1.msra.mxu0 0.0
    %4199 = vmatprep.subr.mxu0 0.0
    %4200 = vmatpush1.msra.mxu0 0.0
    %4201 = vmatprep.subr.mxu0 0.0
    %4202 = vmatpush1.msra.mxu0 0.0
    %4203 = vmatprep.subr.mxu0 0.0
    %4204 = vmatpush1.msra.mxu0 0.0
    %4205 = vmatprep.subr.mxu0 0.0
    %4206 = vmatpush1.msra.mxu0 0.0
    %4207 = vmatprep.subr.mxu0 0.0
    %4208 = vmatpush1.msra.mxu0 0.0
    %4209 = vmatprep.subr.mxu0 0.0
    %4210 = vmatpush1.msra.mxu0 0.0
    %4211 = vmatprep.subr.mxu0 0.0
    %4212 = vmatpush1.msra.mxu0 0.0
    %4213 = vmatprep.subr.mxu0 0.0
    %4214 = vmatpush1.msra.mxu0 0.0
    %4215 = vmatprep.subr.mxu0 0.0
    %4216 = vmatpush1.msra.mxu0 0.0
    %4217 = vmatprep.subr.mxu0 0.0
    %4218 = vmatpush1.msra.mxu0 0.0
    %4219 = vmatprep.subr.mxu0 0.0
    %4220 = vmatpush1.msra.mxu0 0.0
    %4221 = vmatprep.subr.mxu0 %v4093
    %4222 = vmatpush1.msra.mxu0 %v4090
    %4223 = vmatprep.subr.mxu0 %v4060
    %4224 = vmatpush1.msra.mxu0 %v4059
    %4225 = vmatprep.subr.mxu0 0.0
    %4226 = vmatpush2.msra.mxu0 0.0
    %4227 = vmatprep.subr.mxu0 0.0
    %4228 = vmatpush2.msra.mxu0 0.0
    %4229 = vmatprep.subr.mxu0 0.0
    %4230 = vmatpush2.msra.mxu0 0.0
    %4231 = vmatprep.subr.mxu0 0.0
    %4232 = vmatpush2.msra.mxu0 0.0
    %4233 = vmatprep.subr.mxu0 0.0
    %4234 = vmatpush2.msra.mxu0 0.0
    %4235 = vmatprep.subr.mxu0 0.0
    %4236 = vmatpush2.msra.mxu0 0.0
    %4237 = vmatprep.subr.mxu0 0.0
    %4238 = vmatpush2.msra.mxu0 0.0
    %4239 = vmatprep.subr.mxu0 0.0
    %4240 = vmatpush2.msra.mxu0 0.0
    %4241 = vmatprep.subr.mxu0 0.0
    %4242 = vmatpush2.msra.mxu0 0.0
    %4243 = vmatprep.subr.mxu0 0.0
    %4244 = vmatpush2.msra.mxu0 0.0
    %4245 = vmatprep.subr.mxu0 0.0
    %4246 = vmatpush2.msra.mxu0 0.0
    %4247 = vmatprep.subr.mxu0 0.0
    %4248 = vmatpush2.msra.mxu0 0.0
    %4249 = vmatprep.subr.mxu0 0.0
    %4250 = vmatpush2.msra.mxu0 0.0
    %4251 = vmatprep.subr.mxu0 0.0
    %4252 = vmatpush2.msra.mxu0 0.0
    %4253 = vmatprep.subr.mxu0 0.0
    %4254 = vmatpush2.msra.mxu0 0.0
    %4255 = vmatprep.subr.mxu0 0.0
    %4256 = vmatpush2.msra.mxu0 0.0
    %4257 = vmatprep.mubr.f32.mxu0 0.0
    %4258 = vmatmul.mubr.f32.gmra.mxu0 %v68
    %v4259 = vpop.f32.mrf.mxu0
    %v4260 = vadd.f32 0.0, %v4259
    %v4261 = vpop.f32.mrf.mxu0
    %v4262 = vadd.f32 0.0, %v4261
    %4263 = vdwg.mxu0
    %4264 = vmatprep.subr.mxu0 0.0
    %4265 = vmatpush1.msra.mxu0 0.0
    %4266 = vmatprep.subr.mxu0 0.0
    %4267 = vmatpush1.msra.mxu0 0.0
    %4268 = vmatprep.subr.mxu0 0.0
    %4269 = vmatpush1.msra.mxu0 0.0
    %4270 = vmatprep.subr.mxu0 0.0
    %4271 = vmatpush1.msra.mxu0 0.0
    %4272 = vmatprep.subr.mxu0 0.0
    %4273 = vmatpush1.msra.mxu0 0.0
    %4274 = vmatprep.subr.mxu0 0.0
    %4275 = vmatpush1.msra.mxu0 0.0
    %4276 = vmatprep.subr.mxu0 0.0
    %4277 = vmatpush1.msra.mxu0 0.0
    %4278 = vmatprep.subr.mxu0 0.0
    %4279 = vmatpush1.msra.mxu0 0.0
    %4280 = vmatprep.subr.mxu0 0.0
    %4281 = vmatpush1.msra.mxu0 0.0
    %4282 = vmatprep.subr.mxu0 0.0
    %4283 = vmatpush1.msra.mxu0 0.0
    %4284 = vmatprep.subr.mxu0 0.0
    %4285 = vmatpush1.msra.mxu0 0.0
    %4286 = vmatprep.subr.mxu0 0.0
    %4287 = vmatpush1.msra.mxu0 0.0
    %4288 = vmatprep.subr.mxu0 0.0
    %4289 = vmatpush1.msra.mxu0 0.0
    %4290 = vmatprep.subr.mxu0 0.0
    %4291 = vmatpush1.msra.mxu0 0.0
    %4292 = vmatprep.subr.mxu0 %v4099
    %4293 = vmatpush1.msra.mxu0 %v4096
    %4294 = vmatprep.subr.mxu0 %v4062
    %4295 = vmatpush1.msra.mxu0 %v4061
    %4296 = vmatprep.subr.mxu0 0.0
    %4297 = vmatpush2.msra.mxu0 0.0
    %4298 = vmatprep.subr.mxu0 0.0
    %4299 = vmatpush2.msra.mxu0 0.0
    %4300 = vmatprep.subr.mxu0 0.0
    %4301 = vmatpush2.msra.mxu0 0.0
    %4302 = vmatprep.subr.mxu0 0.0
    %4303 = vmatpush2.msra.mxu0 0.0
    %4304 = vmatprep.subr.mxu0 0.0
    %4305 = vmatpush2.msra.mxu0 0.0
    %4306 = vmatprep.subr.mxu0 0.0
    %4307 = vmatpush2.msra.mxu0 0.0
    %4308 = vmatprep.subr.mxu0 0.0
    %4309 = vmatpush2.msra.mxu0 0.0
    %4310 = vmatprep.subr.mxu0 0.0
    %4311 = vmatpush2.msra.mxu0 0.0
    %4312 = vmatprep.subr.mxu0 0.0
    %4313 = vmatpush2.msra.mxu0 0.0
    %4314 = vmatprep.subr.mxu0 0.0
    %4315 = vmatpush2.msra.mxu0 0.0
    %4316 = vmatprep.subr.mxu0 0.0
    %4317 = vmatpush2.msra.mxu0 0.0
    %4318 = vmatprep.subr.mxu0 0.0
    %4319 = vmatpush2.msra.mxu0 0.0
    %4320 = vmatprep.subr.mxu0 0.0
    %4321 = vmatpush2.msra.mxu0 0.0
    %4322 = vmatprep.subr.mxu0 0.0
    %4323 = vmatpush2.msra.mxu0 0.0
    %4324 = vmatprep.subr.mxu0 0.0
    %4325 = vmatpush2.msra.mxu0 0.0
    %4326 = vmatprep.subr.mxu0 0.0
    %4327 = vmatpush2.msra.mxu0 0.0
    %4328 = vmatprep.mubr.f32.mxu0 0.0
    %4329 = vmatmul.mubr.f32.gmra.mxu0 %v68
    %v4330 = vpop.f32.mrf.mxu0
    %v4331 = vadd.f32 0.0, %v4330
    %v4332 = vpop.f32.mrf.mxu0
    %v4333 = vadd.f32 0.0, %v4332
    %4334 = vdwg.mxu0
    %4335 = vmatprep.subr.mxu0 0.0
    %4336 = vmatpush1.msra.mxu0 0.0
    %4337 = vmatprep.subr.mxu0 0.0
    %4338 = vmatpush1.msra.mxu0 0.0
    %4339 = vmatprep.subr.mxu0 0.0
    %4340 = vmatpush1.msra.mxu0 0.0
    %4341 = vmatprep.subr.mxu0 0.0
    %4342 = vmatpush1.msra.mxu0 0.0
    %4343 = vmatprep.subr.mxu0 0.0
    %4344 = vmatpush1.msra.mxu0 0.0
    %4345 = vmatprep.subr.mxu0 0.0
    %4346 = vmatpush1.msra.mxu0 0.0
    %4347 = vmatprep.subr.mxu0 0.0
    %4348 = vmatpush1.msra.mxu0 0.0
    %4349 = vmatprep.subr.mxu0 0.0
    %4350 = vmatpush1.msra.mxu0 0.0
    %4351 = vmatprep.subr.mxu0 0.0
    %4352 = vmatpush1.msra.mxu0 0.0
    %4353 = vmatprep.subr.mxu0 0.0
    %4354 = vmatpush1.msra.mxu0 0.0
    %4355 = vmatprep.subr.mxu0 0.0
    %4356 = vmatpush1.msra.mxu0 0.0
    %4357 = vmatprep.subr.mxu0 0.0
    %4358 = vmatpush1.msra.mxu0 0.0
    %4359 = vmatprep.subr.mxu0 0.0
    %4360 = vmatpush1.msra.mxu0 0.0
    %4361 = vmatprep.subr.mxu0 0.0
    %4362 = vmatpush1.msra.mxu0 0.0
    %4363 = vmatprep.subr.mxu0 %v4105
    %4364 = vmatpush1.msra.mxu0 %v4102
    %4365 = vmatprep.subr.mxu0 %v4064
    %4366 = vmatpush1.msra.mxu0 %v4063
    %4367 = vmatprep.subr.mxu0 0.0
    %4368 = vmatpush2.msra.mxu0 0.0
    %4369 = vmatprep.subr.mxu0 0.0
    %4370 = vmatpush2.msra.mxu0 0.0
    %4371 = vmatprep.subr.mxu0 0.0
    %4372 = vmatpush2.msra.mxu0 0.0
    %4373 = vmatprep.subr.mxu0 0.0
    %4374 = vmatpush2.msra.mxu0 0.0
    %4375 = vmatprep.subr.mxu0 0.0
    %4376 = vmatpush2.msra.mxu0 0.0
    %4377 = vmatprep.subr.mxu0 0.0
    %4378 = vmatpush2.msra.mxu0 0.0
    %4379 = vmatprep.subr.mxu0 0.0
    %4380 = vmatpush2.msra.mxu0 0.0
    %4381 = vmatprep.subr.mxu0 0.0
    %4382 = vmatpush2.msra.mxu0 0.0
    %4383 = vmatprep.subr.mxu0 0.0
    %4384 = vmatpush2.msra.mxu0 0.0
    %4385 = vmatprep.subr.mxu0 0.0
    %4386 = vmatpush2.msra.mxu0 0.0
    %4387 = vmatprep.subr.mxu0 0.0
    %4388 = vmatpush2.msra.mxu0 0.0
    %4389 = vmatprep.subr.mxu0 0.0
    %4390 = vmatpush2.msra.mxu0 0.0
    %4391 = vmatprep.subr.mxu0 0.0
    %4392 = vmatpush2.msra.mxu0 0.0
    %4393 = vmatprep.subr.mxu0 0.0
    %4394 = vmatpush2.msra.mxu0 0.0
    %4395 = vmatprep.subr.mxu0 0.0
    %4396 = vmatpush2.msra.mxu0 0.0
    %4397 = vmatprep.subr.mxu0 0.0
    %4398 = vmatpush2.msra.mxu0 0.0
    %4399 = vmatprep.mubr.f32.mxu0 0.0
    %4400 = vmatmul.mubr.f32.gmra.mxu0 %v68
    %v4401 = vpop.f32.mrf.mxu0
    %v4402 = vadd.f32 0.0, %v4401
    %v4403 = vpop.f32.mrf.mxu0
    %v4404 = vadd.f32 0.0, %v4403
    %4405 = vdwg.mxu0
    %4406 = vmatprep.subr.mxu0 0.0
    %4407 = vmatpush1.msra.mxu0 0.0
    %4408 = vmatprep.subr.mxu0 0.0
    %4409 = vmatpush1.msra.mxu0 0.0
    %4410 = vmatprep.subr.mxu0 0.0
    %4411 = vmatpush1.msra.mxu0 0.0
    %4412 = vmatprep.subr.mxu0 0.0
    %4413 = vmatpush1.msra.mxu0 0.0
    %4414 = vmatprep.subr.mxu0 0.0
    %4415 = vmatpush1.msra.mxu0 0.0
    %4416 = vmatprep.subr.mxu0 0.0
    %4417 = vmatpush1.msra.mxu0 0.0
    %4418 = vmatprep.subr.mxu0 0.0
    %4419 = vmatpush1.msra.mxu0 0.0
    %4420 = vmatprep.subr.mxu0 0.0
    %4421 = vmatpush1.msra.mxu0 0.0
    %4422 = vmatprep.subr.mxu0 0.0
    %4423 = vmatpush1.msra.mxu0 0.0
    %4424 = vmatprep.subr.mxu0 0.0
    %4425 = vmatpush1.msra.mxu0 0.0
    %4426 = vmatprep.subr.mxu0 0.0
    %4427 = vmatpush1.msra.mxu0 0.0
    %4428 = vmatprep.subr.mxu0 0.0
    %4429 = vmatpush1.msra.mxu0 0.0
    %4430 = vmatprep.subr.mxu0 0.0
    %4431 = vmatpush1.msra.mxu0 0.0
    %4432 = vmatprep.subr.mxu0 0.0
    %4433 = vmatpush1.msra.mxu0 0.0
    %4434 = vmatprep.subr.mxu0 %v4111
    %4435 = vmatpush1.msra.mxu0 %v4108
    %4436 = vmatprep.subr.mxu0 %v4066
    %4437 = vmatpush1.msra.mxu0 %v4065
    %4438 = vmatprep.subr.mxu0 0.0
    %4439 = vmatpush2.msra.mxu0 0.0
    %4440 = vmatprep.subr.mxu0 0.0
    %4441 = vmatpush2.msra.mxu0 0.0
    %4442 = vmatprep.subr.mxu0 0.0
    %4443 = vmatpush2.msra.mxu0 0.0
    %4444 = vmatprep.subr.mxu0 0.0
    %4445 = vmatpush2.msra.mxu0 0.0
    %4446 = vmatprep.subr.mxu0 0.0
    %4447 = vmatpush2.msra.mxu0 0.0
    %4448 = vmatprep.subr.mxu0 0.0
    %4449 = vmatpush2.msra.mxu0 0.0
    %4450 = vmatprep.subr.mxu0 0.0
    %4451 = vmatpush2.msra.mxu0 0.0
    %4452 = vmatprep.subr.mxu0 0.0
    %4453 = vmatpush2.msra.mxu0 0.0
    %4454 = vmatprep.subr.mxu0 0.0
    %4455 = vmatpush2.msra.mxu0 0.0
    %4456 = vmatprep.subr.mxu0 0.0
    %4457 = vmatpush2.msra.mxu0 0.0
    %4458 = vmatprep.subr.mxu0 0.0
    %4459 = vmatpush2.msra.mxu0 0.0
    %4460 = vmatprep.subr.mxu0 0.0
    %4461 = vmatpush2.msra.mxu0 0.0
    %4462 = vmatprep.subr.mxu0 0.0
    %4463 = vmatpush2.msra.mxu0 0.0
    %4464 = vmatprep.subr.mxu0 0.0
    %4465 = vmatpush2.msra.mxu0 0.0
    %4466 = vmatprep.subr.mxu0 0.0
    %4467 = vmatpush2.msra.mxu0 0.0
    %4468 = vmatprep.subr.mxu0 0.0
    %4469 = vmatpush2.msra.mxu0 0.0
    %4470 = vmatprep.mubr.f32.mxu0 0.0
    %4471 = vmatmul.mubr.f32.gmra.mxu0 %v68
    %v4472 = vpop.f32.mrf.mxu0
    %v4473 = vadd.f32 0.0, %v4472
    %v4474 = vpop.f32.mrf.mxu0
    %v4475 = vadd.f32 0.0, %v4474
    %4476 = vdwg.mxu0
    %4477 = vmatprep.subr.mxu0 0.0
    %4478 = vmatpush1.msra.mxu0 0.0
    %4479 = vmatprep.subr.mxu0 0.0
    %4480 = vmatpush1.msra.mxu0 0.0
    %4481 = vmatprep.subr.mxu0 0.0
    %4482 = vmatpush1.msra.mxu0 0.0
    %4483 = vmatprep.subr.mxu0 0.0
    %4484 = vmatpush1.msra.mxu0 0.0
    %4485 = vmatprep.subr.mxu0 0.0
    %4486 = vmatpush1.msra.mxu0 0.0
    %4487 = vmatprep.subr.mxu0 0.0
    %4488 = vmatpush1.msra.mxu0 0.0
    %4489 = vmatprep.subr.mxu0 0.0
    %4490 = vmatpush1.msra.mxu0 0.0
    %4491 = vmatprep.subr.mxu0 0.0
    %4492 = vmatpush1.msra.mxu0 0.0
    %4493 = vmatprep.subr.mxu0 0.0
    %4494 = vmatpush1.msra.mxu0 0.0
    %4495 = vmatprep.subr.mxu0 0.0
    %4496 = vmatpush1.msra.mxu0 0.0
    %4497 = vmatprep.subr.mxu0 0.0
    %4498 = vmatpush1.msra.mxu0 0.0
    %4499 = vmatprep.subr.mxu0 0.0
    %4500 = vmatpush1.msra.mxu0 0.0
    %4501 = vmatprep.subr.mxu0 0.0
    %4502 = vmatpush1.msra.mxu0 0.0
    %4503 = vmatprep.subr.mxu0 0.0
    %4504 = vmatpush1.msra.mxu0 0.0
    %4505 = vmatprep.subr.mxu0 %v4117
    %4506 = vmatpush1.msra.mxu0 %v4114
    %4507 = vmatprep.subr.mxu0 %v4068
    %4508 = vmatpush1.msra.mxu0 %v4067
    %4509 = vmatprep.subr.mxu0 0.0
    %4510 = vmatpush2.msra.mxu0 0.0
    %4511 = vmatprep.subr.mxu0 0.0
    %4512 = vmatpush2.msra.mxu0 0.0
    %4513 = vmatprep.subr.mxu0 0.0
    %4514 = vmatpush2.msra.mxu0 0.0
    %4515 = vmatprep.subr.mxu0 0.0
    %4516 = vmatpush2.msra.mxu0 0.0
    %4517 = vmatprep.subr.mxu0 0.0
    %4518 = vmatpush2.msra.mxu0 0.0
    %4519 = vmatprep.subr.mxu0 0.0
    %4520 = vmatpush2.msra.mxu0 0.0
    %4521 = vmatprep.subr.mxu0 0.0
    %4522 = vmatpush2.msra.mxu0 0.0
    %4523 = vmatprep.subr.mxu0 0.0
    %4524 = vmatpush2.msra.mxu0 0.0
    %4525 = vmatprep.subr.mxu0 0.0
    %4526 = vmatpush2.msra.mxu0 0.0
    %4527 = vmatprep.subr.mxu0 0.0
    %4528 = vmatpush2.msra.mxu0 0.0
    %4529 = vmatprep.subr.mxu0 0.0
    %4530 = vmatpush2.msra.mxu0 0.0
    %4531 = vmatprep.subr.mxu0 0.0
    %4532 = vmatpush2.msra.mxu0 0.0
    %4533 = vmatprep.subr.mxu0 0.0
    %4534 = vmatpush2.msra.mxu0 0.0
    %4535 = vmatprep.subr.mxu0 0.0
    %4536 = vmatpush2.msra.mxu0 0.0
    %4537 = vmatprep.subr.mxu0 0.0
    %4538 = vmatpush2.msra.mxu0 0.0
    %4539 = vmatprep.subr.mxu0 0.0
    %4540 = vmatpush2.msra.mxu0 0.0
    %4541 = vmatprep.mubr.f32.mxu0 0.0
    %4542 = vmatmul.mubr.f32.gmra.mxu0 %v68
    %v4543 = vpop.f32.mrf.mxu0
    %v4544 = vadd.f32 0.0, %v4543
    %v4545 = vpop.f32.mrf.mxu0
    %v4546 = vadd.f32 0.0, %v4545
    %4547 = vdwg.mxu0
    %4548 = vmatprep.subr.mxu0 0.0
    %4549 = vmatpush1.msra.mxu0 0.0
    %4550 = vmatprep.subr.mxu0 0.0
    %4551 = vmatpush1.msra.mxu0 0.0
    %4552 = vmatprep.subr.mxu0 0.0
    %4553 = vmatpush1.msra.mxu0 0.0
    %4554 = vmatprep.subr.mxu0 0.0
    %4555 = vmatpush1.msra.mxu0 0.0
    %4556 = vmatprep.subr.mxu0 0.0
    %4557 = vmatpush1.msra.mxu0 0.0
    %4558 = vmatprep.subr.mxu0 0.0
    %4559 = vmatpush1.msra.mxu0 0.0
    %4560 = vmatprep.subr.mxu0 0.0
    %4561 = vmatpush1.msra.mxu0 0.0
    %4562 = vmatprep.subr.mxu0 0.0
    %4563 = vmatpush1.msra.mxu0 0.0
    %4564 = vmatprep.subr.mxu0 0.0
    %4565 = vmatpush1.msra.mxu0 0.0
    %4566 = vmatprep.subr.mxu0 0.0
    %4567 = vmatpush1.msra.mxu0 0.0
    %4568 = vmatprep.subr.mxu0 0.0
    %4569 = vmatpush1.msra.mxu0 0.0
    %4570 = vmatprep.subr.mxu0 0.0
    %4571 = vmatpush1.msra.mxu0 0.0
    %4572 = vmatprep.subr.mxu0 0.0
    %4573 = vmatpush1.msra.mxu0 0.0
    %4574 = vmatprep.subr.mxu0 0.0
    %4575 = vmatpush1.msra.mxu0 0.0
    %4576 = vmatprep.subr.mxu0 0.0
    %4577 = vmatpush1.msra.mxu0 %v4120
    %4578 = vmatprep.subr.mxu0 0.0
    %4579 = vmatpush1.msra.mxu0 %v4069
    %4580 = vmatprep.subr.mxu0 0.0
    %4581 = vmatpush2.msra.mxu0 0.0
    %4582 = vmatprep.subr.mxu0 0.0
    %4583 = vmatpush2.msra.mxu0 0.0
    %4584 = vmatprep.subr.mxu0 0.0
    %4585 = vmatpush2.msra.mxu0 0.0
    %4586 = vmatprep.subr.mxu0 0.0
    %4587 = vmatpush2.msra.mxu0 0.0
    %4588 = vmatprep.subr.mxu0 0.0
    %4589 = vmatpush2.msra.mxu0 0.0
    %4590 = vmatprep.subr.mxu0 0.0
    %4591 = vmatpush2.msra.mxu0 0.0
    %4592 = vmatprep.subr.mxu0 0.0
    %4593 = vmatpush2.msra.mxu0 0.0
    %4594 = vmatprep.subr.mxu0 0.0
    %4595 = vmatpush2.msra.mxu0 0.0
    %4596 = vmatprep.subr.mxu0 0.0
    %4597 = vmatpush2.msra.mxu0 0.0
    %4598 = vmatprep.subr.mxu0 0.0
    %4599 = vmatpush2.msra.mxu0 0.0
    %4600 = vmatprep.subr.mxu0 0.0
    %4601 = vmatpush2.msra.mxu0 0.0
    %4602 = vmatprep.subr.mxu0 0.0
    %4603 = vmatpush2.msra.mxu0 0.0
    %4604 = vmatprep.subr.mxu0 0.0
    %4605 = vmatpush2.msra.mxu0 0.0
    %4606 = vmatprep.subr.mxu0 0.0
    %4607 = vmatpush2.msra.mxu0 0.0
    %4608 = vmatprep.subr.mxu0 0.0
    %4609 = vmatpush2.msra.mxu0 0.0
    %4610 = vmatprep.subr.mxu0 0.0
    %4611 = vmatpush2.msra.mxu0 0.0
    %4612 = vmatprep.mubr.f32.mxu0 0.0
    %4613 = vmatmul.mubr.f32.gmra.mxu0 %v68
    %v4614 = vpop.f32.mrf.mxu0
    %v4615 = vadd.f32 0.0, %v4614
    %v4616 = vpop.f32.mrf.mxu0
    %4617 = vdwg.mxu0
    %v4618 = vmax.f32 %v4043, %v4189
    %v4619 = vmax.f32 %v4044, %v4191
    %v4620 = vmax.f32 %v4045, %v4260
    %v4621 = vmax.f32 %v4046, %v4262
    %v4622 = vmax.f32 %v4047, %v4331
    %v4623 = vmax.f32 %v4048, %v4333
    %v4624 = vmax.f32 %v4049, %v4402
    %v4625 = vmax.f32 %v4050, %v4404
    %v4626 = vmax.f32 %v4051, %v4473
    %v4627 = vmax.f32 %v4052, %v4475
    %v4628 = vmax.f32 %v4053, %v4544
    %v4629 = vmax.f32 %v4054, %v4546
    %v4630 = vmax.f32 %v4055, %v4615
    %s4631 = scalar_lea.vmem %s0, 1664
    %v4632 = vld [vmem:[%s4631] sm:$0xff]
    %v4633 = vld [vmem:[%s4631 + $0x8] sm:$0xff]
    %v4634 = vld [vmem:[%s4631 + $0x10] sm:$0xff]
    %v4635 = vld [vmem:[%s4631 + $0x18] sm:$0xff]
    %v4636 = vld [vmem:[%s4631 + $0x20] sm:$0xff]
    %v4637 = vld [vmem:[%s4631 + $0x28] sm:$0xff]
    %v4638 = vld [vmem:[%s4631 + $0x30] sm:$0xff]
    %v4639 = vld [vmem:[%s4631 + $0x38] sm:$0xff]
    %v4640 = vld [vmem:[%s4631 + $0x40] sm:$0xff]
    %v4641 = vld [vmem:[%s4631 + $0x48] sm:$0xff]
    %v4642 = vld [vmem:[%s4631 + $0x50] sm:$0xff]
    %v4643 = vld [vmem:[%s4631 + $0x58] sm:$0xff]
    %v4644 = vld [vmem:[%s4631 + $0x60] sm:$0xff]
    %v4645 = vld [vmem:[%s4631 + $0x68] sm:$0x1]
    %v4646 = vld [vmem:[%s4631 + $0x70] sm:$0x1]
    %v4647 = vld [vmem:[%s4631 + $0x78] sm:$0x1]
    %v4648 = vld [vmem:[%s4631 + $0x80] sm:$0x1]
    %v4649 = vld [vmem:[%s4631 + $0x88] sm:$0x1]
    %v4650 = vld [vmem:[%s4631 + $0x90] sm:$0x1]
    %v4651 = vld [vmem:[%s4631 + $0x98] sm:$0x1]
    %v4652 = vld [vmem:[%s4631 + $0xa0] sm:$0x1]
    %v4653 = vld [vmem:[%s4631 + $0xa8] sm:$0x1]
    %v4654 = vld [vmem:[%s4631 + $0xb0] sm:$0x1]
    %v4655 = vld [vmem:[%s4631 + $0xb8] sm:$0x1]
    %v4656 = vld [vmem:[%s4631 + $0xc0] sm:$0x1]
    %v4657 = vld [vmem:[%s4631 + $0xc8] sm:$0x1]
    %v4659 = vsel %vm70, %v4645, 0
    %v4662 = vsel %vm70, %v4646, 0
    %v4665 = vsel %vm70, %v4647, 0
    %v4668 = vsel %vm70, %v4648, 0
    %v4671 = vsel %vm70, %v4649, 0
    %v4674 = vsel %vm70, %v4650, 0
    %v4677 = vsel %vm70, %v4651, 0
    %v4680 = vsel %vm70, %v4652, 0
    %v4683 = vsel %vm70, %v4653, 0
    %v4686 = vsel %vm70, %v4654, 0
    %v4689 = vsel %vm70, %v4655, 0
    %v4692 = vsel %vm70, %v4656, 0
    %v4695 = vsel %vm70, %v4657, 0
    %4697 = vmatprep.subr.mxu0 0.0
    %4698 = vmatpush1.msra.mxu0 0.0
    %4699 = vmatprep.subr.mxu0 0.0
    %4700 = vmatpush1.msra.mxu0 0.0
    %4701 = vmatprep.subr.mxu0 0.0
    %4702 = vmatpush1.msra.mxu0 0.0
    %4703 = vmatprep.subr.mxu0 0.0
    %4704 = vmatpush1.msra.mxu0 0.0
    %4705 = vmatprep.subr.mxu0 0.0
    %4706 = vmatpush1.msra.mxu0 0.0
    %4707 = vmatprep.subr.mxu0 0.0
    %4708 = vmatpush1.msra.mxu0 0.0
    %4709 = vmatprep.subr.mxu0 0.0
    %4710 = vmatpush1.msra.mxu0 0.0
    %4711 = vmatprep.subr.mxu0 0.0
    %4712 = vmatpush1.msra.mxu0 0.0
    %4713 = vmatprep.subr.mxu0 0.0
    %4714 = vmatpush1.msra.mxu0 0.0
    %4715 = vmatprep.subr.mxu0 0.0
    %4716 = vmatpush1.msra.mxu0 0.0
    %4717 = vmatprep.subr.mxu0 0.0
    %4718 = vmatpush1.msra.mxu0 0.0
    %4719 = vmatprep.subr.mxu0 0.0
    %4720 = vmatpush1.msra.mxu0 0.0
    %4721 = vmatprep.subr.mxu0 0.0
    %4722 = vmatpush1.msra.mxu0 0.0
    %4723 = vmatprep.subr.mxu0 0.0
    %4724 = vmatpush1.msra.mxu0 0.0
    %4725 = vmatprep.subr.mxu0 %v4662
    %4726 = vmatpush1.msra.mxu0 %v4659
    %4727 = vmatprep.subr.mxu0 %v4633
    %4728 = vmatpush1.msra.mxu0 %v4632
    %4729 = vmatprep.subr.mxu0 0.0
    %4730 = vmatpush2.msra.mxu0 0.0
    %4731 = vmatprep.subr.mxu0 0.0
    %4732 = vmatpush2.msra.mxu0 0.0
    %4733 = vmatprep.subr.mxu0 0.0
    %4734 = vmatpush2.msra.mxu0 0.0
    %4735 = vmatprep.subr.mxu0 0.0
    %4736 = vmatpush2.msra.mxu0 0.0
    %4737 = vmatprep.subr.mxu0 0.0
    %4738 = vmatpush2.msra.mxu0 0.0
    %4739 = vmatprep.subr.mxu0 0.0
    %4740 = vmatpush2.msra.mxu0 0.0
    %4741 = vmatprep.subr.mxu0 0.0
    %4742 = vmatpush2.msra.mxu0 0.0
    %4743 = vmatprep.subr.mxu0 0.0
    %4744 = vmatpush2.msra.mxu0 0.0
    %4745 = vmatprep.subr.mxu0 0.0
    %4746 = vmatpush2.msra.mxu0 0.0
    %4747 = vmatprep.subr.mxu0 0.0
    %4748 = vmatpush2.msra.mxu0 0.0
    %4749 = vmatprep.subr.mxu0 0.0
    %4750 = vmatpush2.msra.mxu0 0.0
    %4751 = vmatprep.subr.mxu0 0.0
    %4752 = vmatpush2.msra.mxu0 0.0
    %4753 = vmatprep.subr.mxu0 0.0
    %4754 = vmatpush2.msra.mxu0 0.0
    %4755 = vmatprep.subr.mxu0 0.0
    %4756 = vmatpush2.msra.mxu0 0.0
    %4757 = vmatprep.subr.mxu0 0.0
    %4758 = vmatpush2.msra.mxu0 0.0
    %4759 = vmatprep.subr.mxu0 0.0
    %4760 = vmatpush2.msra.mxu0 0.0
    %4761 = vmatprep.mubr.f32.mxu0 0.0
    %4762 = vmatmul.mubr.f32.gmra.mxu0 %v68
    %v4763 = vpop.f32.mrf.mxu0
    %v4764 = vadd.f32 0.0, %v4763
    %v4765 = vpop.f32.mrf.mxu0
    %v4766 = vadd.f32 0.0, %v4765
    %4767 = vdwg.mxu0
    %4768 = vmatprep.subr.mxu0 0.0
    %4769 = vmatpush1.msra.mxu0 0.0
    %4770 = vmatprep.subr.mxu0 0.0
    %4771 = vmatpush1.msra.mxu0 0.0
    %4772 = vmatprep.subr.mxu0 0.0
    %4773 = vmatpush1.msra.mxu0 0.0
    %4774 = vmatprep.subr.mxu0 0.0
    %4775 = vmatpush1.msra.mxu0 0.0
    %4776 = vmatprep.subr.mxu0 0.0
    %4777 = vmatpush1.msra.mxu0 0.0
    %4778 = vmatprep.subr.mxu0 0.0
    %4779 = vmatpush1.msra.mxu0 0.0
    %4780 = vmatprep.subr.mxu0 0.0
    %4781 = vmatpush1.msra.mxu0 0.0
    %4782 = vmatprep.subr.mxu0 0.0
    %4783 = vmatpush1.msra.mxu0 0.0
    %4784 = vmatprep.subr.mxu0 0.0
    %4785 = vmatpush1.msra.mxu0 0.0
    %4786 = vmatprep.subr.mxu0 0.0
    %4787 = vmatpush1.msra.mxu0 0.0
    %4788 = vmatprep.subr.mxu0 0.0
    %4789 = vmatpush1.msra.mxu0 0.0
    %4790 = vmatprep.subr.mxu0 0.0
    %4791 = vmatpush1.msra.mxu0 0.0
    %4792 = vmatprep.subr.mxu0 0.0
    %4793 = vmatpush1.msra.mxu0 0.0
    %4794 = vmatprep.subr.mxu0 0.0
    %4795 = vmatpush1.msra.mxu0 0.0
    %4796 = vmatprep.subr.mxu0 %v4668
    %4797 = vmatpush1.msra.mxu0 %v4665
    %4798 = vmatprep.subr.mxu0 %v4635
    %4799 = vmatpush1.msra.mxu0 %v4634
    %4800 = vmatprep.subr.mxu0 0.0
    %4801 = vmatpush2.msra.mxu0 0.0
    %4802 = vmatprep.subr.mxu0 0.0
    %4803 = vmatpush2.msra.mxu0 0.0
    %4804 = vmatprep.subr.mxu0 0.0
    %4805 = vmatpush2.msra.mxu0 0.0
    %4806 = vmatprep.subr.mxu0 0.0
    %4807 = vmatpush2.msra.mxu0 0.0
    %4808 = vmatprep.subr.mxu0 0.0
    %4809 = vmatpush2.msra.mxu0 0.0
    %4810 = vmatprep.subr.mxu0 0.0
    %4811 = vmatpush2.msra.mxu0 0.0
    %4812 = vmatprep.subr.mxu0 0.0
    %4813 = vmatpush2.msra.mxu0 0.0
    %4814 = vmatprep.subr.mxu0 0.0
    %4815 = vmatpush2.msra.mxu0 0.0
    %4816 = vmatprep.subr.mxu0 0.0
    %4817 = vmatpush2.msra.mxu0 0.0
    %4818 = vmatprep.subr.mxu0 0.0
    %4819 = vmatpush2.msra.mxu0 0.0
    %4820 = vmatprep.subr.mxu0 0.0
    %4821 = vmatpush2.msra.mxu0 0.0
    %4822 = vmatprep.subr.mxu0 0.0
    %4823 = vmatpush2.msra.mxu0 0.0
    %4824 = vmatprep.subr.mxu0 0.0
    %4825 = vmatpush2.msra.mxu0 0.0
    %4826 = vmatprep.subr.mxu0 0.0
    %4827 = vmatpush2.msra.mxu0 0.0
    %4828 = vmatprep.subr.mxu0 0.0
    %4829 = vmatpush2.msra.mxu0 0.0
    %4830 = vmatprep.subr.mxu0 0.0
    %4831 = vmatpush2.msra.mxu0 0.0
    %4832 = vmatprep.mubr.f32.mxu0 0.0
    %4833 = vmatmul.mubr.f32.gmra.mxu0 %v68
    %v4834 = vpop.f32.mrf.mxu0
    %v4835 = vadd.f32 0.0, %v4834
    %v4836 = vpop.f32.mrf.mxu0
    %v4837 = vadd.f32 0.0, %v4836
    %4838 = vdwg.mxu0
    %4839 = vmatprep.subr.mxu0 0.0
    %4840 = vmatpush1.msra.mxu0 0.0
    %4841 = vmatprep.subr.mxu0 0.0
    %4842 = vmatpush1.msra.mxu0 0.0
    %4843 = vmatprep.subr.mxu0 0.0
    %4844 = vmatpush1.msra.mxu0 0.0
    %4845 = vmatprep.subr.mxu0 0.0
    %4846 = vmatpush1.msra.mxu0 0.0
    %4847 = vmatprep.subr.mxu0 0.0
    %4848 = vmatpush1.msra.mxu0 0.0
    %4849 = vmatprep.subr.mxu0 0.0
    %4850 = vmatpush1.msra.mxu0 0.0
    %4851 = vmatprep.subr.mxu0 0.0
    %4852 = vmatpush1.msra.mxu0 0.0
    %4853 = vmatprep.subr.mxu0 0.0
    %4854 = vmatpush1.msra.mxu0 0.0
    %4855 = vmatprep.subr.mxu0 0.0
    %4856 = vmatpush1.msra.mxu0 0.0
    %4857 = vmatprep.subr.mxu0 0.0
    %4858 = vmatpush1.msra.mxu0 0.0
    %4859 = vmatprep.subr.mxu0 0.0
    %4860 = vmatpush1.msra.mxu0 0.0
    %4861 = vmatprep.subr.mxu0 0.0
    %4862 = vmatpush1.msra.mxu0 0.0
    %4863 = vmatprep.subr.mxu0 0.0
    %4864 = vmatpush1.msra.mxu0 0.0
    %4865 = vmatprep.subr.mxu0 0.0
    %4866 = vmatpush1.msra.mxu0 0.0
    %4867 = vmatprep.subr.mxu0 %v4674
    %4868 = vmatpush1.msra.mxu0 %v4671
    %4869 = vmatprep.subr.mxu0 %v4637
    %4870 = vmatpush1.msra.mxu0 %v4636
    %4871 = vmatprep.subr.mxu0 0.0
    %4872 = vmatpush2.msra.mxu0 0.0
    %4873 = vmatprep.subr.mxu0 0.0
    %4874 = vmatpush2.msra.mxu0 0.0
    %4875 = vmatprep.subr.mxu0 0.0
    %4876 = vmatpush2.msra.mxu0 0.0
    %4877 = vmatprep.subr.mxu0 0.0
    %4878 = vmatpush2.msra.mxu0 0.0
    %4879 = vmatprep.subr.mxu0 0.0
    %4880 = vmatpush2.msra.mxu0 0.0
    %4881 = vmatprep.subr.mxu0 0.0
    %4882 = vmatpush2.msra.mxu0 0.0
    %4883 = vmatprep.subr.mxu0 0.0
    %4884 = vmatpush2.msra.mxu0 0.0
    %4885 = vmatprep.subr.mxu0 0.0
    %4886 = vmatpush2.msra.mxu0 0.0
    %4887 = vmatprep.subr.mxu0 0.0
    %4888 = vmatpush2.msra.mxu0 0.0
    %4889 = vmatprep.subr.mxu0 0.0
    %4890 = vmatpush2.msra.mxu0 0.0
    %4891 = vmatprep.subr.mxu0 0.0
    %4892 = vmatpush2.msra.mxu0 0.0
    %4893 = vmatprep.subr.mxu0 0.0
    %4894 = vmatpush2.msra.mxu0 0.0
    %4895 = vmatprep.subr.mxu0 0.0
    %4896 = vmatpush2.msra.mxu0 0.0
    %4897 = vmatprep.subr.mxu0 0.0
    %4898 = vmatpush2.msra.mxu0 0.0
    %4899 = vmatprep.subr.mxu0 0.0
    %4900 = vmatpush2.msra.mxu0 0.0
    %4901 = vmatprep.subr.mxu0 0.0
    %4902 = vmatpush2.msra.mxu0 0.0
    %4903 = vmatprep.mubr.f32.mxu0 0.0
    %4904 = vmatmul.mubr.f32.gmra.mxu0 %v68
    %v4905 = vpop.f32.mrf.mxu0
    %v4906 = vadd.f32 0.0, %v4905
    %v4907 = vpop.f32.mrf.mxu0
    %v4908 = vadd.f32 0.0, %v4907
    %4909 = vdwg.mxu0
    %4910 = vmatprep.subr.mxu0 0.0
    %4911 = vmatpush1.msra.mxu0 0.0
    %4912 = vmatprep.subr.mxu0 0.0
    %4913 = vmatpush1.msra.mxu0 0.0
    %4914 = vmatprep.subr.mxu0 0.0
    %4915 = vmatpush1.msra.mxu0 0.0
    %4916 = vmatprep.subr.mxu0 0.0
    %4917 = vmatpush1.msra.mxu0 0.0
    %4918 = vmatprep.subr.mxu0 0.0
    %4919 = vmatpush1.msra.mxu0 0.0
    %4920 = vmatprep.subr.mxu0 0.0
    %4921 = vmatpush1.msra.mxu0 0.0
    %4922 = vmatprep.subr.mxu0 0.0
    %4923 = vmatpush1.msra.mxu0 0.0
    %4924 = vmatprep.subr.mxu0 0.0
    %4925 = vmatpush1.msra.mxu0 0.0
    %4926 = vmatprep.subr.mxu0 0.0
    %4927 = vmatpush1.msra.mxu0 0.0
    %4928 = vmatprep.subr.mxu0 0.0
    %4929 = vmatpush1.msra.mxu0 0.0
    %4930 = vmatprep.subr.mxu0 0.0
    %4931 = vmatpush1.msra.mxu0 0.0
    %4932 = vmatprep.subr.mxu0 0.0
    %4933 = vmatpush1.msra.mxu0 0.0
    %4934 = vmatprep.subr.mxu0 0.0
    %4935 = vmatpush1.msra.mxu0 0.0
    %4936 = vmatprep.subr.mxu0 0.0
    %4937 = vmatpush1.msra.mxu0 0.0
    %4938 = vmatprep.subr.mxu0 %v4680
    %4939 = vmatpush1.msra.mxu0 %v4677
    %4940 = vmatprep.subr.mxu0 %v4639
    %4941 = vmatpush1.msra.mxu0 %v4638
    %4942 = vmatprep.subr.mxu0 0.0
    %4943 = vmatpush2.msra.mxu0 0.0
    %4944 = vmatprep.subr.mxu0 0.0
    %4945 = vmatpush2.msra.mxu0 0.0
    %4946 = vmatprep.subr.mxu0 0.0
    %4947 = vmatpush2.msra.mxu0 0.0
    %4948 = vmatprep.subr.mxu0 0.0
    %4949 = vmatpush2.msra.mxu0 0.0
    %4950 = vmatprep.subr.mxu0 0.0
    %4951 = vmatpush2.msra.mxu0 0.0
    %4952 = vmatprep.subr.mxu0 0.0
    %4953 = vmatpush2.msra.mxu0 0.0
    %4954 = vmatprep.subr.mxu0 0.0
    %4955 = vmatpush2.msra.mxu0 0.0
    %4956 = vmatprep.subr.mxu0 0.0
    %4957 = vmatpush2.msra.mxu0 0.0
    %4958 = vmatprep.subr.mxu0 0.0
    %4959 = vmatpush2.msra.mxu0 0.0
    %4960 = vmatprep.subr.mxu0 0.0
    %4961 = vmatpush2.msra.mxu0 0.0
    %4962 = vmatprep.subr.mxu0 0.0
    %4963 = vmatpush2.msra.mxu0 0.0
    %4964 = vmatprep.subr.mxu0 0.0
    %4965 = vmatpush2.msra.mxu0 0.0
    %4966 = vmatprep.subr.mxu0 0.0
    %4967 = vmatpush2.msra.mxu0 0.0
    %4968 = vmatprep.subr.mxu0 0.0
    %4969 = vmatpush2.msra.mxu0 0.0
    %4970 = vmatprep.subr.mxu0 0.0
    %4971 = vmatpush2.msra.mxu0 0.0
    %4972 = vmatprep.subr.mxu0 0.0
    %4973 = vmatpush2.msra.mxu0 0.0
    %4974 = vmatprep.mubr.f32.mxu0 0.0
    %4975 = vmatmul.mubr.f32.gmra.mxu0 %v68
    %v4976 = vpop.f32.mrf.mxu0
    %v4977 = vadd.f32 0.0, %v4976
    %v4978 = vpop.f32.mrf.mxu0
    %v4979 = vadd.f32 0.0, %v4978
    %4980 = vdwg.mxu0
    %4981 = vmatprep.subr.mxu0 0.0
    %4982 = vmatpush1.msra.mxu0 0.0
    %4983 = vmatprep.subr.mxu0 0.0
    %4984 = vmatpush1.msra.mxu0 0.0
    %4985 = vmatprep.subr.mxu0 0.0
    %4986 = vmatpush1.msra.mxu0 0.0
    %4987 = vmatprep.subr.mxu0 0.0
    %4988 = vmatpush1.msra.mxu0 0.0
    %4989 = vmatprep.subr.mxu0 0.0
    %4990 = vmatpush1.msra.mxu0 0.0
    %4991 = vmatprep.subr.mxu0 0.0
    %4992 = vmatpush1.msra.mxu0 0.0
    %4993 = vmatprep.subr.mxu0 0.0
    %4994 = vmatpush1.msra.mxu0 0.0
    %4995 = vmatprep.subr.mxu0 0.0
    %4996 = vmatpush1.msra.mxu0 0.0
    %4997 = vmatprep.subr.mxu0 0.0
    %4998 = vmatpush1.msra.mxu0 0.0
    %4999 = vmatprep.subr.mxu0 0.0
    %5000 = vmatpush1.msra.mxu0 0.0
    %5001 = vmatprep.subr.mxu0 0.0
    %5002 = vmatpush1.msra.mxu0 0.0
    %5003 = vmatprep.subr.mxu0 0.0
    %5004 = vmatpush1.msra.mxu0 0.0
    %5005 = vmatprep.subr.mxu0 0.0
    %5006 = vmatpush1.msra.mxu0 0.0
    %5007 = vmatprep.subr.mxu0 0.0
    %5008 = vmatpush1.msra.mxu0 0.0
    %5009 = vmatprep.subr.mxu0 %v4686
    %5010 = vmatpush1.msra.mxu0 %v4683
    %5011 = vmatprep.subr.mxu0 %v4641
    %5012 = vmatpush1.msra.mxu0 %v4640
    %5013 = vmatprep.subr.mxu0 0.0
    %5014 = vmatpush2.msra.mxu0 0.0
    %5015 = vmatprep.subr.mxu0 0.0
    %5016 = vmatpush2.msra.mxu0 0.0
    %5017 = vmatprep.subr.mxu0 0.0
    %5018 = vmatpush2.msra.mxu0 0.0
    %5019 = vmatprep.subr.mxu0 0.0
    %5020 = vmatpush2.msra.mxu0 0.0
    %5021 = vmatprep.subr.mxu0 0.0
    %5022 = vmatpush2.msra.mxu0 0.0
    %5023 = vmatprep.subr.mxu0 0.0
    %5024 = vmatpush2.msra.mxu0 0.0
    %5025 = vmatprep.subr.mxu0 0.0
    %5026 = vmatpush2.msra.mxu0 0.0
    %5027 = vmatprep.subr.mxu0 0.0
    %5028 = vmatpush2.msra.mxu0 0.0
    %5029 = vmatprep.subr.mxu0 0.0
    %5030 = vmatpush2.msra.mxu0 0.0
    %5031 = vmatprep.subr.mxu0 0.0
    %5032 = vmatpush2.msra.mxu0 0.0
    %5033 = vmatprep.subr.mxu0 0.0
    %5034 = vmatpush2.msra.mxu0 0.0
    %5035 = vmatprep.subr.mxu0 0.0
    %5036 = vmatpush2.msra.mxu0 0.0
    %5037 = vmatprep.subr.mxu0 0.0
    %5038 = vmatpush2.msra.mxu0 0.0
    %5039 = vmatprep.subr.mxu0 0.0
    %5040 = vmatpush2.msra.mxu0 0.0
    %5041 = vmatprep.subr.mxu0 0.0
    %5042 = vmatpush2.msra.mxu0 0.0
    %5043 = vmatprep.subr.mxu0 0.0
    %5044 = vmatpush2.msra.mxu0 0.0
    %5045 = vmatprep.mubr.f32.mxu0 0.0
    %5046 = vmatmul.mubr.f32.gmra.mxu0 %v68
    %v5047 = vpop.f32.mrf.mxu0
    %v5048 = vadd.f32 0.0, %v5047
    %v5049 = vpop.f32.mrf.mxu0
    %v5050 = vadd.f32 0.0, %v5049
    %5051 = vdwg.mxu0
    %5052 = vmatprep.subr.mxu0 0.0
    %5053 = vmatpush1.msra.mxu0 0.0
    %5054 = vmatprep.subr.mxu0 0.0
    %5055 = vmatpush1.msra.mxu0 0.0
    %5056 = vmatprep.subr.mxu0 0.0
    %5057 = vmatpush1.msra.mxu0 0.0
    %5058 = vmatprep.subr.mxu0 0.0
    %5059 = vmatpush1.msra.mxu0 0.0
    %5060 = vmatprep.subr.mxu0 0.0
    %5061 = vmatpush1.msra.mxu0 0.0
    %5062 = vmatprep.subr.mxu0 0.0
    %5063 = vmatpush1.msra.mxu0 0.0
    %5064 = vmatprep.subr.mxu0 0.0
    %5065 = vmatpush1.msra.mxu0 0.0
    %5066 = vmatprep.subr.mxu0 0.0
    %5067 = vmatpush1.msra.mxu0 0.0
    %5068 = vmatprep.subr.mxu0 0.0
    %5069 = vmatpush1.msra.mxu0 0.0
    %5070 = vmatprep.subr.mxu0 0.0
    %5071 = vmatpush1.msra.mxu0 0.0
    %5072 = vmatprep.subr.mxu0 0.0
    %5073 = vmatpush1.msra.mxu0 0.0
    %5074 = vmatprep.subr.mxu0 0.0
    %5075 = vmatpush1.msra.mxu0 0.0
    %5076 = vmatprep.subr.mxu0 0.0
    %5077 = vmatpush1.msra.mxu0 0.0
    %5078 = vmatprep.subr.mxu0 0.0
    %5079 = vmatpush1.msra.mxu0 0.0
    %5080 = vmatprep.subr.mxu0 %v4692
    %5081 = vmatpush1.msra.mxu0 %v4689
    %5082 = vmatprep.subr.mxu0 %v4643
    %5083 = vmatpush1.msra.mxu0 %v4642
    %5084 = vmatprep.subr.mxu0 0.0
    %5085 = vmatpush2.msra.mxu0 0.0
    %5086 = vmatprep.subr.mxu0 0.0
    %5087 = vmatpush2.msra.mxu0 0.0
    %5088 = vmatprep.subr.mxu0 0.0
    %5089 = vmatpush2.msra.mxu0 0.0
    %5090 = vmatprep.subr.mxu0 0.0
    %5091 = vmatpush2.msra.mxu0 0.0
    %5092 = vmatprep.subr.mxu0 0.0
    %5093 = vmatpush2.msra.mxu0 0.0
    %5094 = vmatprep.subr.mxu0 0.0
    %5095 = vmatpush2.msra.mxu0 0.0
    %5096 = vmatprep.subr.mxu0 0.0
    %5097 = vmatpush2.msra.mxu0 0.0
    %5098 = vmatprep.subr.mxu0 0.0
    %5099 = vmatpush2.msra.mxu0 0.0
    %5100 = vmatprep.subr.mxu0 0.0
    %5101 = vmatpush2.msra.mxu0 0.0
    %5102 = vmatprep.subr.mxu0 0.0
    %5103 = vmatpush2.msra.mxu0 0.0
    %5104 = vmatprep.subr.mxu0 0.0
    %5105 = vmatpush2.msra.mxu0 0.0
    %5106 = vmatprep.subr.mxu0 0.0
    %5107 = vmatpush2.msra.mxu0 0.0
    %5108 = vmatprep.subr.mxu0 0.0
    %5109 = vmatpush2.msra.mxu0 0.0
    %5110 = vmatprep.subr.mxu0 0.0
    %5111 = vmatpush2.msra.mxu0 0.0
    %5112 = vmatprep.subr.mxu0 0.0
    %5113 = vmatpush2.msra.mxu0 0.0
    %5114 = vmatprep.subr.mxu0 0.0
    %5115 = vmatpush2.msra.mxu0 0.0
    %5116 = vmatprep.mubr.f32.mxu0 0.0
    %5117 = vmatmul.mubr.f32.gmra.mxu0 %v68
    %v5118 = vpop.f32.mrf.mxu0
    %v5119 = vadd.f32 0.0, %v5118
    %v5120 = vpop.f32.mrf.mxu0
    %v5121 = vadd.f32 0.0, %v5120
    %5122 = vdwg.mxu0
    %5123 = vmatprep.subr.mxu0 0.0
    %5124 = vmatpush1.msra.mxu0 0.0
    %5125 = vmatprep.subr.mxu0 0.0
    %5126 = vmatpush1.msra.mxu0 0.0
    %5127 = vmatprep.subr.mxu0 0.0
    %5128 = vmatpush1.msra.mxu0 0.0
    %5129 = vmatprep.subr.mxu0 0.0
    %5130 = vmatpush1.msra.mxu0 0.0
    %5131 = vmatprep.subr.mxu0 0.0
    %5132 = vmatpush1.msra.mxu0 0.0
    %5133 = vmatprep.subr.mxu0 0.0
    %5134 = vmatpush1.msra.mxu0 0.0
    %5135 = vmatprep.subr.mxu0 0.0
    %5136 = vmatpush1.msra.mxu0 0.0
    %5137 = vmatprep.subr.mxu0 0.0
    %5138 = vmatpush1.msra.mxu0 0.0
    %5139 = vmatprep.subr.mxu0 0.0
    %5140 = vmatpush1.msra.mxu0 0.0
    %5141 = vmatprep.subr.mxu0 0.0
    %5142 = vmatpush1.msra.mxu0 0.0
    %5143 = vmatprep.subr.mxu0 0.0
    %5144 = vmatpush1.msra.mxu0 0.0
    %5145 = vmatprep.subr.mxu0 0.0
    %5146 = vmatpush1.msra.mxu0 0.0
    %5147 = vmatprep.subr.mxu0 0.0
    %5148 = vmatpush1.msra.mxu0 0.0
    %5149 = vmatprep.subr.mxu0 0.0
    %5150 = vmatpush1.msra.mxu0 0.0
    %5151 = vmatprep.subr.mxu0 0.0
    %5152 = vmatpush1.msra.mxu0 %v4695
    %5153 = vmatprep.subr.mxu0 0.0
    %5154 = vmatpush1.msra.mxu0 %v4644
    %5155 = vmatprep.subr.mxu0 0.0
    %5156 = vmatpush2.msra.mxu0 0.0
    %5157 = vmatprep.subr.mxu0 0.0
    %5158 = vmatpush2.msra.mxu0 0.0
    %5159 = vmatprep.subr.mxu0 0.0
    %5160 = vmatpush2.msra.mxu0 0.0
    %5161 = vmatprep.subr.mxu0 0.0
    %5162 = vmatpush2.msra.mxu0 0.0
    %5163 = vmatprep.subr.mxu0 0.0
    %5164 = vmatpush2.msra.mxu0 0.0
    %5165 = vmatprep.subr.mxu0 0.0
    %5166 = vmatpush2.msra.mxu0 0.0
    %5167 = vmatprep.subr.mxu0 0.0
    %5168 = vmatpush2.msra.mxu0 0.0
    %5169 = vmatprep.subr.mxu0 0.0
    %5170 = vmatpush2.msra.mxu0 0.0
    %5171 = vmatprep.subr.mxu0 0.0
    %5172 = vmatpush2.msra.mxu0 0.0
    %5173 = vmatprep.subr.mxu0 0.0
    %5174 = vmatpush2.msra.mxu0 0.0
    %5175 = vmatprep.subr.mxu0 0.0
    %5176 = vmatpush2.msra.mxu0 0.0
    %5177 = vmatprep.subr.mxu0 0.0
    %5178 = vmatpush2.msra.mxu0 0.0
    %5179 = vmatprep.subr.mxu0 0.0
    %5180 = vmatpush2.msra.mxu0 0.0
    %5181 = vmatprep.subr.mxu0 0.0
    %5182 = vmatpush2.msra.mxu0 0.0
    %5183 = vmatprep.subr.mxu0 0.0
    %5184 = vmatpush2.msra.mxu0 0.0
    %5185 = vmatprep.subr.mxu0 0.0
    %5186 = vmatpush2.msra.mxu0 0.0
    %5187 = vmatprep.mubr.f32.mxu0 0.0
    %5188 = vmatmul.mubr.f32.gmra.mxu0 %v68
    %v5189 = vpop.f32.mrf.mxu0
    %v5190 = vadd.f32 0.0, %v5189
    %v5191 = vpop.f32.mrf.mxu0
    %5192 = vdwg.mxu0
    %v5193 = vmax.f32 %v4618, %v4764
    %v5194 = vmax.f32 %v4619, %v4766
    %v5195 = vmax.f32 %v4620, %v4835
    %v5196 = vmax.f32 %v4621, %v4837
    %v5197 = vmax.f32 %v4622, %v4906
    %v5198 = vmax.f32 %v4623, %v4908
    %v5199 = vmax.f32 %v4624, %v4977
    %v5200 = vmax.f32 %v4625, %v4979
    %v5201 = vmax.f32 %v4626, %v5048
    %v5202 = vmax.f32 %v4627, %v5050
    %v5203 = vmax.f32 %v4628, %v5119
    %v5204 = vmax.f32 %v4629, %v5121
    %v5205 = vmax.f32 %v4630, %v5190
    %v5206 = vld [vmem:[%s2] sm:$0xff]
    %5208 = vset.pattern.permute.xlu0 0
    %5209 = vperm.xlu0 %5208, %v5206
    %v5210 = vpop.permute.xlu0 %5209
    %v5212 = vadd.f32 %v5193, %v5210
    %v5213 = vadd.f32 %v5194, %v5210
    %v5214 = vadd.f32 %v5195, %v5210
    %v5215 = vadd.f32 %v5196, %v5210
    %v5216 = vadd.f32 %v5197, %v5210
    %v5217 = vadd.f32 %v5198, %v5210
    %v5218 = vadd.f32 %v5199, %v5210
    %v5219 = vadd.f32 %v5200, %v5210
    %v5220 = vadd.f32 %v5201, %v5210
    %v5221 = vadd.f32 %v5202, %v5210
    %v5222 = vadd.f32 %v5203, %v5210
    %v5223 = vadd.f32 %v5204, %v5210
    %v5224 = vadd.f32 %v5205, %v5210
    %v5225 = vmax.f32 %v5212, 0.0
    %v5226 = vmax.f32 %v5213, 0.0
    %v5227 = vmax.f32 %v5214, 0.0
    %v5228 = vmax.f32 %v5215, 0.0
    %v5229 = vmax.f32 %v5216, 0.0
    %v5230 = vmax.f32 %v5217, 0.0
    %v5231 = vmax.f32 %v5218, 0.0
    %v5232 = vmax.f32 %v5219, 0.0
    %v5233 = vmax.f32 %v5220, 0.0
    %v5234 = vmax.f32 %v5221, 0.0
    %v5235 = vmax.f32 %v5222, 0.0
    %v5236 = vmax.f32 %v5223, 0.0
    %v5237 = vmax.f32 %v5224, 0.0
    %v5238 = vld [vmem:[%s3] sm:$0xff]
    %v5239 = vld [vmem:[%s3 + $0x8] sm:$0xff]
    %5241 = vrot.lane.b32.xlu0 %v5225, 64
    %v5242 = vpop.permute.xlu0 %5241
    %5245 = vrot.lane.b32.xlu0 %v5227, 64
    %v5246 = vpop.permute.xlu0 %5245
    %5249 = vrot.lane.b32.xlu0 %v5228, 64
    %v5250 = vpop.permute.xlu0 %5249
    %5253 = vrot.lane.b32.xlu0 %v5230, 64
    %v5254 = vpop.permute.xlu0 %5253
    %vm5256 = vcmask 588800
    %v5258 = vsel %vm5256, %v5238, 0
    %v5261 = vsel %vm5256, %v5239, 0
    %5263 = vmatprep.subr.mxu0 0.0
    %5264 = vmatpush1.msra.mxu0 0.0
    %5265 = vmatprep.subr.mxu0 0.0
    %5266 = vmatpush1.msra.mxu0 0.0
    %5267 = vmatprep.subr.mxu0 0.0
    %5268 = vmatpush1.msra.mxu0 0.0
    %5269 = vmatprep.subr.mxu0 0.0
    %5270 = vmatpush1.msra.mxu0 0.0
    %5271 = vmatprep.subr.mxu0 0.0
    %5272 = vmatpush1.msra.mxu0 0.0
    %5273 = vmatprep.subr.mxu0 0.0
    %5274 = vmatpush1.msra.mxu0 0.0
    %5275 = vmatprep.subr.mxu0 0.0
    %5276 = vmatpush1.msra.mxu0 0.0
    %5277 = vmatprep.subr.mxu0 0.0
    %5278 = vmatpush1.msra.mxu0 %v5231
    %5279 = vmatprep.subr.mxu0 0.0
    %5280 = vmatpush1.msra.mxu0 %v5254
    %5281 = vmatprep.subr.mxu0 0.0
    %5282 = vmatpush1.msra.mxu0 %v5230
    %5283 = vmatprep.subr.mxu0 0.0
    %5284 = vmatpush1.msra.mxu0 %v5250
    %5285 = vmatprep.subr.mxu0 0.0
    %5286 = vmatpush1.msra.mxu0 %v5228
    %5287 = vmatprep.subr.mxu0 0.0
    %5288 = vmatpush1.msra.mxu0 %v5246
    %5289 = vmatprep.subr.mxu0 0.0
    %5290 = vmatpush1.msra.mxu0 %v5226
    %5291 = vmatprep.subr.mxu0 0.0
    %5292 = vmatpush1.msra.mxu0 %v5242
    %5293 = vmatprep.subr.mxu0 0.0
    %5294 = vmatpush1.msra.mxu0 %v5225
    %5295 = vmatprep.subr.mxu0 0.0
    %5296 = vmatpush2.msra.mxu0 0.0
    %5297 = vmatprep.subr.mxu0 0.0
    %5298 = vmatpush2.msra.mxu0 0.0
    %5299 = vmatprep.subr.mxu0 0.0
    %5300 = vmatpush2.msra.mxu0 0.0
    %5301 = vmatprep.subr.mxu0 0.0
    %5302 = vmatpush2.msra.mxu0 0.0
    %5303 = vmatprep.subr.mxu0 0.0
    %5304 = vmatpush2.msra.mxu0 0.0
    %5305 = vmatprep.subr.mxu0 0.0
    %5306 = vmatpush2.msra.mxu0 0.0
    %5307 = vmatprep.subr.mxu0 0.0
    %5308 = vmatpush2.msra.mxu0 0.0
    %5309 = vmatprep.subr.mxu0 0.0
    %5310 = vmatpush2.msra.mxu0 0.0
    %5311 = vmatprep.subr.mxu0 0.0
    %5312 = vmatpush2.msra.mxu0 0.0
    %5313 = vmatprep.subr.mxu0 0.0
    %5314 = vmatpush2.msra.mxu0 0.0
    %5315 = vmatprep.subr.mxu0 0.0
    %5316 = vmatpush2.msra.mxu0 0.0
    %5317 = vmatprep.subr.mxu0 0.0
    %5318 = vmatpush2.msra.mxu0 0.0
    %5319 = vmatprep.subr.mxu0 0.0
    %5320 = vmatpush2.msra.mxu0 0.0
    %5321 = vmatprep.subr.mxu0 0.0
    %5322 = vmatpush2.msra.mxu0 0.0
    %5323 = vmatprep.subr.mxu0 0.0
    %5324 = vmatpush2.msra.mxu0 0.0
    %5325 = vmatprep.subr.mxu0 0.0
    %5326 = vmatpush2.msra.mxu0 0.0
    %5327 = vmatprep.mubr.f32.mxu0 0.0
    %5328 = vmatmul.mubr.f32.gmra.mxu0 %v5258
    %v5329 = vpop.f32.mrf.mxu0
    %v5330 = vadd.f32 0.0, %v5329
    %v5331 = vpop.f32.mrf.mxu0
    %5332 = vmatprep.mubr.f32.mxu0 0.0
    %5333 = vmatmul.mubr.f32.gmra.mxu0 %v5261
    %v5334 = vpop.f32.mrf.mxu0
    %v5335 = vadd.f32 0.0, %v5334
    %v5336 = vpop.f32.mrf.mxu0
    %5337 = vdwg.mxu0
    %5339 = vrot.lane.b32.xlu0 %v5226, 64
    %v5340 = vpop.permute.xlu0 %5339
    %5342 = vrot.lane.b32.xlu0 %v5229, 64
    %v5343 = vpop.permute.xlu0 %5342
    %5345 = vrot.lane.b32.xlu0 %v5231, 64
    %v5346 = vpop.permute.xlu0 %5345
    %5347 = vrot.lane.b32.xlu0 %v5340, 64
    %v5348 = vpop.permute.xlu0 %5347
    %5349 = vrot.lane.b32.xlu0 %v5250, 64
    %v5350 = vpop.permute.xlu0 %5349
    %5351 = vrot.lane.b32.xlu0 %v5343, 64
    %v5352 = vpop.permute.xlu0 %5351
    %5353 = vrot.lane.b32.xlu0 %v5346, 64
    %v5354 = vpop.permute.xlu0 %5353
    %5361 = vmatprep.subr.mxu0 0.0
    %5362 = vmatpush1.msra.mxu0 0.0
    %5363 = vmatprep.subr.mxu0 0.0
    %5364 = vmatpush1.msra.mxu0 0.0
    %5365 = vmatprep.subr.mxu0 0.0
    %5366 = vmatpush1.msra.mxu0 0.0
    %5367 = vmatprep.subr.mxu0 0.0
    %5368 = vmatpush1.msra.mxu0 0.0
    %5369 = vmatprep.subr.mxu0 0.0
    %5370 = vmatpush1.msra.mxu0 0.0
    %5371 = vmatprep.subr.mxu0 0.0
    %5372 = vmatpush1.msra.mxu0 0.0
    %5373 = vmatprep.subr.mxu0 0.0
    %5374 = vmatpush1.msra.mxu0 0.0
    %5375 = vmatprep.subr.mxu0 0.0
    %5376 = vmatpush1.msra.mxu0 %v5346
    %5377 = vmatprep.subr.mxu0 0.0
    %5378 = vmatpush1.msra.mxu0 %v5354
    %5379 = vmatprep.subr.mxu0 0.0
    %5380 = vmatpush1.msra.mxu0 %v5254
    %5381 = vmatprep.subr.mxu0 0.0
    %5382 = vmatpush1.msra.mxu0 %v5352
    %5383 = vmatprep.subr.mxu0 0.0
    %5384 = vmatpush1.msra.mxu0 %v5250
    %5385 = vmatprep.subr.mxu0 0.0
    %5386 = vmatpush1.msra.mxu0 %v5350
    %5387 = vmatprep.subr.mxu0 0.0
    %5388 = vmatpush1.msra.mxu0 %v5340
    %5389 = vmatprep.subr.mxu0 0.0
    %5390 = vmatpush1.msra.mxu0 %v5348
    %5391 = vmatprep.subr.mxu0 0.0
    %5392 = vmatpush1.msra.mxu0 %v5242
    %5393 = vmatprep.subr.mxu0 0.0
    %5394 = vmatpush2.msra.mxu0 0.0
    %5395 = vmatprep.subr.mxu0 0.0
    %5396 = vmatpush2.msra.mxu0 0.0
    %5397 = vmatprep.subr.mxu0 0.0
    %5398 = vmatpush2.msra.mxu0 0.0
    %5399 = vmatprep.subr.mxu0 0.0
    %5400 = vmatpush2.msra.mxu0 0.0
    %5401 = vmatprep.subr.mxu0 0.0
    %5402 = vmatpush2.msra.mxu0 0.0
    %5403 = vmatprep.subr.mxu0 0.0
    %5404 = vmatpush2.msra.mxu0 0.0
    %5405 = vmatprep.subr.mxu0 0.0
    %5406 = vmatpush2.msra.mxu0 0.0
    %5407 = vmatprep.subr.mxu0 0.0
    %5408 = vmatpush2.msra.mxu0 0.0
    %5409 = vmatprep.subr.mxu0 0.0
    %5410 = vmatpush2.msra.mxu0 0.0
    %5411 = vmatprep.subr.mxu0 0.0
    %5412 = vmatpush2.msra.mxu0 0.0
    %5413 = vmatprep.subr.mxu0 0.0
    %5414 = vmatpush2.msra.mxu0 0.0
    %5415 = vmatprep.subr.mxu0 0.0
    %5416 = vmatpush2.msra.mxu0 0.0
    %5417 = vmatprep.subr.mxu0 0.0
    %5418 = vmatpush2.msra.mxu0 0.0
    %5419 = vmatprep.subr.mxu0 0.0
    %5420 = vmatpush2.msra.mxu0 0.0
    %5421 = vmatprep.subr.mxu0 0.0
    %5422 = vmatpush2.msra.mxu0 0.0
    %5423 = vmatprep.subr.mxu0 0.0
    %5424 = vmatpush2.msra.mxu0 0.0
    %5425 = vmatprep.mubr.f32.mxu0 0.0
    %5426 = vmatmul.mubr.f32.gmra.mxu0 %v5258
    %v5427 = vpop.f32.mrf.mxu0
    %v5428 = vadd.f32 0.0, %v5427
    %v5429 = vpop.f32.mrf.mxu0
    %5430 = vmatprep.mubr.f32.mxu0 0.0
    %5431 = vmatmul.mubr.f32.gmra.mxu0 %v5261
    %v5432 = vpop.f32.mrf.mxu0
    %v5433 = vadd.f32 0.0, %v5432
    %v5434 = vpop.f32.mrf.mxu0
    %5435 = vdwg.mxu0
    %v5436 = vmax.f32 %v5330, %v5428
    %v5437 = vmax.f32 %v5335, %v5433
    %5439 = vmatprep.subr.mxu0 0.0
    %5440 = vmatpush1.msra.mxu0 0.0
    %5441 = vmatprep.subr.mxu0 0.0
    %5442 = vmatpush1.msra.mxu0 0.0
    %5443 = vmatprep.subr.mxu0 0.0
    %5444 = vmatpush1.msra.mxu0 0.0
    %5445 = vmatprep.subr.mxu0 0.0
    %5446 = vmatpush1.msra.mxu0 0.0
    %5447 = vmatprep.subr.mxu0 0.0
    %5448 = vmatpush1.msra.mxu0 0.0
    %5449 = vmatprep.subr.mxu0 0.0
    %5450 = vmatpush1.msra.mxu0 0.0
    %5451 = vmatprep.subr.mxu0 0.0
    %5452 = vmatpush1.msra.mxu0 0.0
    %5453 = vmatprep.subr.mxu0 0.0
    %5454 = vmatpush1.msra.mxu0 %v5232
    %5455 = vmatprep.subr.mxu0 0.0
    %5456 = vmatpush1.msra.mxu0 %v5346
    %5457 = vmatprep.subr.mxu0 0.0
    %5458 = vmatpush1.msra.mxu0 %v5231
    %5459 = vmatprep.subr.mxu0 0.0
    %5460 = vmatpush1.msra.mxu0 %v5343
    %5461 = vmatprep.subr.mxu0 0.0
    %5462 = vmatpush1.msra.mxu0 %v5229
    %5463 = vmatprep.subr.mxu0 0.0
    %5464 = vmatpush1.msra.mxu0 %v5250
    %5465 = vmatprep.subr.mxu0 0.0
    %5466 = vmatpush1.msra.mxu0 %v5227
    %5467 = vmatprep.subr.mxu0 0.0
    %5468 = vmatpush1.msra.mxu0 %v5340
    %5469 = vmatprep.subr.mxu0 0.0
    %5470 = vmatpush1.msra.mxu0 %v5226
    %5471 = vmatprep.subr.mxu0 0.0
    %5472 = vmatpush2.msra.mxu0 0.0
    %5473 = vmatprep.subr.mxu0 0.0
    %5474 = vmatpush2.msra.mxu0 0.0
    %5475 = vmatprep.subr.mxu0 0.0
    %5476 = vmatpush2.msra.mxu0 0.0
    %5477 = vmatprep.subr.mxu0 0.0
    %5478 = vmatpush2.msra.mxu0 0.0
    %5479 = vmatprep.subr.mxu0 0.0
    %5480 = vmatpush2.msra.mxu0 0.0
    %5481 = vmatprep.subr.mxu0 0.0
    %5482 = vmatpush2.msra.mxu0 0.0
    %5483 = vmatprep.subr.mxu0 0.0
    %5484 = vmatpush2.msra.mxu0 0.0
    %5485 = vmatprep.subr.mxu0 0.0
    %5486 = vmatpush2.msra.mxu0 0.0
    %5487 = vmatprep.subr.mxu0 0.0
    %5488 = vmatpush2.msra.mxu0 0.0
    %5489 = vmatprep.subr.mxu0 0.0
    %5490 = vmatpush2.msra.mxu0 0.0
    %5491 = vmatprep.subr.mxu0 0.0
    %5492 = vmatpush2.msra.mxu0 0.0
    %5493 = vmatprep.subr.mxu0 0.0
    %5494 = vmatpush2.msra.mxu0 0.0
    %5495 = vmatprep.subr.mxu0 0.0
    %5496 = vmatpush2.msra.mxu0 0.0
    %5497 = vmatprep.subr.mxu0 0.0
    %5498 = vmatpush2.msra.mxu0 0.0
    %5499 = vmatprep.subr.mxu0 0.0
    %5500 = vmatpush2.msra.mxu0 0.0
    %5501 = vmatprep.subr.mxu0 0.0
    %5502 = vmatpush2.msra.mxu0 0.0
    %5503 = vmatprep.mubr.f32.mxu0 0.0
    %5504 = vmatmul.mubr.f32.gmra.mxu0 %v5258
    %v5505 = vpop.f32.mrf.mxu0
    %v5506 = vadd.f32 0.0, %v5505
    %v5507 = vpop.f32.mrf.mxu0
    %5508 = vmatprep.mubr.f32.mxu0 0.0
    %5509 = vmatmul.mubr.f32.gmra.mxu0 %v5261
    %v5510 = vpop.f32.mrf.mxu0
    %v5511 = vadd.f32 0.0, %v5510
    %v5512 = vpop.f32.mrf.mxu0
    %5513 = vdwg.mxu0
    %v5514 = vmax.f32 %v5436, %v5506
    %v5515 = vmax.f32 %v5437, %v5511
    %5517 = vrot.lane.b32.xlu0 %v5233, 64
    %v5518 = vpop.permute.xlu0 %5517
    %5520 = vrot.lane.b32.xlu0 %v5254, 64
    %v5521 = vpop.permute.xlu0 %5520
    %5522 = vrot.lane.b32.xlu0 %v5232, 64
    %v5523 = vpop.permute.xlu0 %5522
    %5524 = vrot.lane.b32.xlu0 %v5518, 64
    %v5525 = vpop.permute.xlu0 %5524
    %5530 = vmatprep.subr.mxu0 0.0
    %5531 = vmatpush1.msra.mxu0 0.0
    %5532 = vmatprep.subr.mxu0 0.0
    %5533 = vmatpush1.msra.mxu0 0.0
    %5534 = vmatprep.subr.mxu0 0.0
    %5535 = vmatpush1.msra.mxu0 0.0
    %5536 = vmatprep.subr.mxu0 0.0
    %5537 = vmatpush1.msra.mxu0 0.0
    %5538 = vmatprep.subr.mxu0 0.0
    %5539 = vmatpush1.msra.mxu0 0.0
    %5540 = vmatprep.subr.mxu0 0.0
    %5541 = vmatpush1.msra.mxu0 0.0
    %5542 = vmatprep.subr.mxu0 0.0
    %5543 = vmatpush1.msra.mxu0 0.0
    %5544 = vmatprep.subr.mxu0 0.0
    %5545 = vmatpush1.msra.mxu0 %v5518
    %5546 = vmatprep.subr.mxu0 0.0
    %5547 = vmatpush1.msra.mxu0 %v5525
    %5548 = vmatprep.subr.mxu0 0.0
    %5549 = vmatpush1.msra.mxu0 %v5523
    %5550 = vmatprep.subr.mxu0 0.0
    %5551 = vmatpush1.msra.mxu0 %v5354
    %5552 = vmatprep.subr.mxu0 0.0
    %5553 = vmatpush1.msra.mxu0 %v5254
    %5554 = vmatprep.subr.mxu0 0.0
    %5555 = vmatpush1.msra.mxu0 %v5521
    %5556 = vmatprep.subr.mxu0 0.0
    %5557 = vmatpush1.msra.mxu0 %v5250
    %5558 = vmatprep.subr.mxu0 0.0
    %5559 = vmatpush1.msra.mxu0 %v5350
    %5560 = vmatprep.subr.mxu0 0.0
    %5561 = vmatpush1.msra.mxu0 %v5246
    %5562 = vmatprep.subr.mxu0 0.0
    %5563 = vmatpush2.msra.mxu0 0.0
    %5564 = vmatprep.subr.mxu0 0.0
    %5565 = vmatpush2.msra.mxu0 0.0
    %5566 = vmatprep.subr.mxu0 0.0
    %5567 = vmatpush2.msra.mxu0 0.0
    %5568 = vmatprep.subr.mxu0 0.0
    %5569 = vmatpush2.msra.mxu0 0.0
    %5570 = vmatprep.subr.mxu0 0.0
    %5571 = vmatpush2.msra.mxu0 0.0
    %5572 = vmatprep.subr.mxu0 0.0
    %5573 = vmatpush2.msra.mxu0 0.0
    %5574 = vmatprep.subr.mxu0 0.0
    %5575 = vmatpush2.msra.mxu0 0.0
    %5576 = vmatprep.subr.mxu0 0.0
    %5577 = vmatpush2.msra.mxu0 0.0
    %5578 = vmatprep.subr.mxu0 0.0
    %5579 = vmatpush2.msra.mxu0 0.0
    %5580 = vmatprep.subr.mxu0 0.0
    %5581 = vmatpush2.msra.mxu0 0.0
    %5582 = vmatprep.subr.mxu0 0.0
    %5583 = vmatpush2.msra.mxu0 0.0
    %5584 = vmatprep.subr.mxu0 0.0
    %5585 = vmatpush2.msra.mxu0 0.0
    %5586 = vmatprep.subr.mxu0 0.0
    %5587 = vmatpush2.msra.mxu0 0.0
    %5588 = vmatprep.subr.mxu0 0.0
    %5589 = vmatpush2.msra.mxu0 0.0
    %5590 = vmatprep.subr.mxu0 0.0
    %5591 = vmatpush2.msra.mxu0 0.0
    %5592 = vmatprep.subr.mxu0 0.0
    %5593 = vmatpush2.msra.mxu0 0.0
    %5594 = vmatprep.mubr.f32.mxu0 0.0
    %5595 = vmatmul.mubr.f32.gmra.mxu0 %v5258
    %v5596 = vpop.f32.mrf.mxu0
    %v5597 = vadd.f32 0.0, %v5596
    %v5598 = vpop.f32.mrf.mxu0
    %5599 = vmatprep.mubr.f32.mxu0 0.0
    %5600 = vmatmul.mubr.f32.gmra.mxu0 %v5261
    %v5601 = vpop.f32.mrf.mxu0
    %v5602 = vadd.f32 0.0, %v5601
    %v5603 = vpop.f32.mrf.mxu0
    %5604 = vdwg.mxu0
    %v5605 = vmax.f32 %v5514, %v5597
    %v5606 = vmax.f32 %v5515, %v5602
    %5607 = vmatprep.subr.mxu0 0.0
    %5608 = vmatpush1.msra.mxu0 0.0
    %5609 = vmatprep.subr.mxu0 0.0
    %5610 = vmatpush1.msra.mxu0 0.0
    %5611 = vmatprep.subr.mxu0 0.0
    %5612 = vmatpush1.msra.mxu0 0.0
    %5613 = vmatprep.subr.mxu0 0.0
    %5614 = vmatpush1.msra.mxu0 0.0
    %5615 = vmatprep.subr.mxu0 0.0
    %5616 = vmatpush1.msra.mxu0 0.0
    %5617 = vmatprep.subr.mxu0 0.0
    %5618 = vmatpush1.msra.mxu0 0.0
    %5619 = vmatprep.subr.mxu0 0.0
    %5620 = vmatpush1.msra.mxu0 0.0
    %5621 = vmatprep.subr.mxu0 0.0
    %5622 = vmatpush1.msra.mxu0 %v5234
    %5623 = vmatprep.subr.mxu0 0.0
    %5624 = vmatpush1.msra.mxu0 %v5518
    %5625 = vmatprep.subr.mxu0 0.0
    %5626 = vmatpush1.msra.mxu0 %v5233
    %5627 = vmatprep.subr.mxu0 0.0
    %5628 = vmatpush1.msra.mxu0 %v5346
    %5629 = vmatprep.subr.mxu0 0.0
    %5630 = vmatpush1.msra.mxu0 %v5231
    %5631 = vmatprep.subr.mxu0 0.0
    %5632 = vmatpush1.msra.mxu0 %v5254
    %5633 = vmatprep.subr.mxu0 0.0
    %5634 = vmatpush1.msra.mxu0 %v5229
    %5635 = vmatprep.subr.mxu0 0.0
    %5636 = vmatpush1.msra.mxu0 %v5250
    %5637 = vmatprep.subr.mxu0 0.0
    %5638 = vmatpush1.msra.mxu0 %v5228
    %5639 = vmatprep.subr.mxu0 0.0
    %5640 = vmatpush2.msra.mxu0 0.0
    %5641 = vmatprep.subr.mxu0 0.0
    %5642 = vmatpush2.msra.mxu0 0.0
    %5643 = vmatprep.subr.mxu0 0.0
    %5644 = vmatpush2.msra.mxu0 0.0
    %5645 = vmatprep.subr.mxu0 0.0
    %5646 = vmatpush2.msra.mxu0 0.0
    %5647 = vmatprep.subr.mxu0 0.0
    %5648 = vmatpush2.msra.mxu0 0.0
    %5649 = vmatprep.subr.mxu0 0.0
    %5650 = vmatpush2.msra.mxu0 0.0
    %5651 = vmatprep.subr.mxu0 0.0
    %5652 = vmatpush2.msra.mxu0 0.0
    %5653 = vmatprep.subr.mxu0 0.0
    %5654 = vmatpush2.msra.mxu0 0.0
    %5655 = vmatprep.subr.mxu0 0.0
    %5656 = vmatpush2.msra.mxu0 0.0
    %5657 = vmatprep.subr.mxu0 0.0
    %5658 = vmatpush2.msra.mxu0 0.0
    %5659 = vmatprep.subr.mxu0 0.0
    %5660 = vmatpush2.msra.mxu0 0.0
    %5661 = vmatprep.subr.mxu0 0.0
    %5662 = vmatpush2.msra.mxu0 0.0
    %5663 = vmatprep.subr.mxu0 0.0
    %5664 = vmatpush2.msra.mxu0 0.0
    %5665 = vmatprep.subr.mxu0 0.0
    %5666 = vmatpush2.msra.mxu0 0.0
    %5667 = vmatprep.subr.mxu0 0.0
    %5668 = vmatpush2.msra.mxu0 0.0
    %5669 = vmatprep.subr.mxu0 0.0
    %5670 = vmatpush2.msra.mxu0 0.0
    %5671 = vmatprep.mubr.f32.mxu0 0.0
    %5672 = vmatmul.mubr.f32.gmra.mxu0 %v5258
    %v5673 = vpop.f32.mrf.mxu0
    %v5674 = vadd.f32 0.0, %v5673
    %v5675 = vpop.f32.mrf.mxu0
    %5676 = vmatprep.mubr.f32.mxu0 0.0
    %5677 = vmatmul.mubr.f32.gmra.mxu0 %v5261
    %v5678 = vpop.f32.mrf.mxu0
    %v5679 = vadd.f32 0.0, %v5678
    %v5680 = vpop.f32.mrf.mxu0
    %5681 = vdwg.mxu0
    %v5682 = vmax.f32 %v5605, %v5674
    %v5683 = vmax.f32 %v5606, %v5679
    %5685 = vrot.lane.b32.xlu0 %v5234, 64
    %v5686 = vpop.permute.xlu0 %5685
    %5687 = vrot.lane.b32.xlu0 %v5523, 64
    %v5688 = vpop.permute.xlu0 %5687
    %5689 = vrot.lane.b32.xlu0 %v5686, 64
    %v5690 = vpop.permute.xlu0 %5689
    %5694 = vmatprep.subr.mxu0 0.0
    %5695 = vmatpush1.msra.mxu0 0.0
    %5696 = vmatprep.subr.mxu0 0.0
    %5697 = vmatpush1.msra.mxu0 0.0
    %5698 = vmatprep.subr.mxu0 0.0
    %5699 = vmatpush1.msra.mxu0 0.0
    %5700 = vmatprep.subr.mxu0 0.0
    %5701 = vmatpush1.msra.mxu0 0.0
    %5702 = vmatprep.subr.mxu0 0.0
    %5703 = vmatpush1.msra.mxu0 0.0
    %5704 = vmatprep.subr.mxu0 0.0
    %5705 = vmatpush1.msra.mxu0 0.0
    %5706 = vmatprep.subr.mxu0 0.0
    %5707 = vmatpush1.msra.mxu0 0.0
    %5708 = vmatprep.subr.mxu0 0.0
    %5709 = vmatpush1.msra.mxu0 %v5686
    %5710 = vmatprep.subr.mxu0 0.0
    %5711 = vmatpush1.msra.mxu0 %v5690
    %5712 = vmatprep.subr.mxu0 0.0
    %5713 = vmatpush1.msra.mxu0 %v5518
    %5714 = vmatprep.subr.mxu0 0.0
    %5715 = vmatpush1.msra.mxu0 %v5688
    %5716 = vmatprep.subr.mxu0 0.0
    %5717 = vmatpush1.msra.mxu0 %v5346
    %5718 = vmatprep.subr.mxu0 0.0
    %5719 = vmatpush1.msra.mxu0 %v5354
    %5720 = vmatprep.subr.mxu0 0.0
    %5721 = vmatpush1.msra.mxu0 %v5343
    %5722 = vmatprep.subr.mxu0 0.0
    %5723 = vmatpush1.msra.mxu0 %v5352
    %5724 = vmatprep.subr.mxu0 0.0
    %5725 = vmatpush1.msra.mxu0 %v5250
    %5726 = vmatprep.subr.mxu0 0.0
    %5727 = vmatpush2.msra.mxu0 0.0
    %5728 = vmatprep.subr.mxu0 0.0
    %5729 = vmatpush2.msra.mxu0 0.0
    %5730 = vmatprep.subr.mxu0 0.0
    %5731 = vmatpush2.msra.mxu0 0.0
    %5732 = vmatprep.subr.mxu0 0.0
    %5733 = vmatpush2.msra.mxu0 0.0
    %5734 = vmatprep.subr.mxu0 0.0
    %5735 = vmatpush2.msra.mxu0 0.0
    %5736 = vmatprep.subr.mxu0 0.0
    %5737 = vmatpush2.msra.mxu0 0.0
    %5738 = vmatprep.subr.mxu0 0.0
    %5739 = vmatpush2.msra.mxu0 0.0
    %5740 = vmatprep.subr.mxu0 0.0
    %5741 = vmatpush2.msra.mxu0 0.0
    %5742 = vmatprep.subr.mxu0 0.0
    %5743 = vmatpush2.msra.mxu0 0.0
    %5744 = vmatprep.subr.mxu0 0.0
    %5745 = vmatpush2.msra.mxu0 0.0
    %5746 = vmatprep.subr.mxu0 0.0
    %5747 = vmatpush2.msra.mxu0 0.0
    %5748 = vmatprep.subr.mxu0 0.0
    %5749 = vmatpush2.msra.mxu0 0.0
    %5750 = vmatprep.subr.mxu0 0.0
    %5751 = vmatpush2.msra.mxu0 0.0
    %5752 = vmatprep.subr.mxu0 0.0
    %5753 = vmatpush2.msra.mxu0 0.0
    %5754 = vmatprep.subr.mxu0 0.0
    %5755 = vmatpush2.msra.mxu0 0.0
    %5756 = vmatprep.subr.mxu0 0.0
    %5757 = vmatpush2.msra.mxu0 0.0
    %5758 = vmatprep.mubr.f32.mxu0 0.0
    %5759 = vmatmul.mubr.f32.gmra.mxu0 %v5258
    %v5760 = vpop.f32.mrf.mxu0
    %v5761 = vadd.f32 0.0, %v5760
    %v5762 = vpop.f32.mrf.mxu0
    %5763 = vmatprep.mubr.f32.mxu0 0.0
    %5764 = vmatmul.mubr.f32.gmra.mxu0 %v5261
    %v5765 = vpop.f32.mrf.mxu0
    %v5766 = vadd.f32 0.0, %v5765
    %v5767 = vpop.f32.mrf.mxu0
    %5768 = vdwg.mxu0
    %v5769 = vmax.f32 %v5682, %v5761
    %v5770 = vmax.f32 %v5683, %v5766
    %5772 = vrot.lane.b32.xlu0 %v5235, 64
    %v5773 = vpop.permute.xlu0 %5772
    %5775 = vmatprep.subr.mxu0 0.0
    %5776 = vmatpush1.msra.mxu0 0.0
    %5777 = vmatprep.subr.mxu0 0.0
    %5778 = vmatpush1.msra.mxu0 0.0
    %5779 = vmatprep.subr.mxu0 0.0
    %5780 = vmatpush1.msra.mxu0 0.0
    %5781 = vmatprep.subr.mxu0 0.0
    %5782 = vmatpush1.msra.mxu0 0.0
    %5783 = vmatprep.subr.mxu0 0.0
    %5784 = vmatpush1.msra.mxu0 0.0
    %5785 = vmatprep.subr.mxu0 0.0
    %5786 = vmatpush1.msra.mxu0 0.0
    %5787 = vmatprep.subr.mxu0 0.0
    %5788 = vmatpush1.msra.mxu0 0.0
    %5789 = vmatprep.subr.mxu0 0.0
    %5790 = vmatpush1.msra.mxu0 %v5236
    %5791 = vmatprep.subr.mxu0 0.0
    %5792 = vmatpush1.msra.mxu0 %v5773
    %5793 = vmatprep.subr.mxu0 0.0
    %5794 = vmatpush1.msra.mxu0 %v5235
    %5795 = vmatprep.subr.mxu0 0.0
    %5796 = vmatpush1.msra.mxu0 %v5518
    %5797 = vmatprep.subr.mxu0 0.0
    %5798 = vmatpush1.msra.mxu0 %v5233
    %5799 = vmatprep.subr.mxu0 0.0
    %5800 = vmatpush1.msra.mxu0 %v5523
    %5801 = vmatprep.subr.mxu0 0.0
    %5802 = vmatpush1.msra.mxu0 %v5231
    %5803 = vmatprep.subr.mxu0 0.0
    %5804 = vmatpush1.msra.mxu0 %v5254
    %5805 = vmatprep.subr.mxu0 0.0
    %5806 = vmatpush1.msra.mxu0 %v5230
    %5807 = vmatprep.subr.mxu0 0.0
    %5808 = vmatpush2.msra.mxu0 0.0
    %5809 = vmatprep.subr.mxu0 0.0
    %5810 = vmatpush2.msra.mxu0 0.0
    %5811 = vmatprep.subr.mxu0 0.0
    %5812 = vmatpush2.msra.mxu0 0.0
    %5813 = vmatprep.subr.mxu0 0.0
    %5814 = vmatpush2.msra.mxu0 0.0
    %5815 = vmatprep.subr.mxu0 0.0
    %5816 = vmatpush2.msra.mxu0 0.0
    %5817 = vmatprep.subr.mxu0 0.0
    %5818 = vmatpush2.msra.mxu0 0.0
    %5819 = vmatprep.subr.mxu0 0.0
    %5820 = vmatpush2.msra.mxu0 0.0
    %5821 = vmatprep.subr.mxu0 0.0
    %5822 = vmatpush2.msra.mxu0 0.0
    %5823 = vmatprep.subr.mxu0 0.0
    %5824 = vmatpush2.msra.mxu0 0.0
    %5825 = vmatprep.subr.mxu0 0.0
    %5826 = vmatpush2.msra.mxu0 0.0
    %5827 = vmatprep.subr.mxu0 0.0
    %5828 = vmatpush2.msra.mxu0 0.0
    %5829 = vmatprep.subr.mxu0 0.0
    %5830 = vmatpush2.msra.mxu0 0.0
    %5831 = vmatprep.subr.mxu0 0.0
    %5832 = vmatpush2.msra.mxu0 0.0
    %5833 = vmatprep.subr.mxu0 0.0
    %5834 = vmatpush2.msra.mxu0 0.0
    %5835 = vmatprep.subr.mxu0 0.0
    %5836 = vmatpush2.msra.mxu0 0.0
    %5837 = vmatprep.subr.mxu0 0.0
    %5838 = vmatpush2.msra.mxu0 0.0
    %5839 = vmatprep.mubr.f32.mxu0 0.0
    %5840 = vmatmul.mubr.f32.gmra.mxu0 %v5258
    %v5841 = vpop.f32.mrf.mxu0
    %v5842 = vadd.f32 0.0, %v5841
    %v5843 = vpop.f32.mrf.mxu0
    %5844 = vmatprep.mubr.f32.mxu0 0.0
    %5845 = vmatmul.mubr.f32.gmra.mxu0 %v5261
    %v5846 = vpop.f32.mrf.mxu0
    %v5847 = vadd.f32 0.0, %v5846
    %v5848 = vpop.f32.mrf.mxu0
    %5849 = vdwg.mxu0
    %v5850 = vmax.f32 %v5769, %v5842
    %v5851 = vmax.f32 %v5770, %v5847
    %5853 = vrot.lane.b32.xlu0 %v5236, 64
    %v5854 = vpop.permute.xlu0 %5853
    %5855 = vrot.lane.b32.xlu0 %v5854, 64
    %v5856 = vpop.permute.xlu0 %5855
    %5859 = vmatprep.subr.mxu0 0.0
    %5860 = vmatpush1.msra.mxu0 0.0
    %5861 = vmatprep.subr.mxu0 0.0
    %5862 = vmatpush1.msra.mxu0 0.0
    %5863 = vmatprep.subr.mxu0 0.0
    %5864 = vmatpush1.msra.mxu0 0.0
    %5865 = vmatprep.subr.mxu0 0.0
    %5866 = vmatpush1.msra.mxu0 0.0
    %5867 = vmatprep.subr.mxu0 0.0
    %5868 = vmatpush1.msra.mxu0 0.0
    %5869 = vmatprep.subr.mxu0 0.0
    %5870 = vmatpush1.msra.mxu0 0.0
    %5871 = vmatprep.subr.mxu0 0.0
    %5872 = vmatpush1.msra.mxu0 0.0
    %5873 = vmatprep.subr.mxu0 0.0
    %5874 = vmatpush1.msra.mxu0 %v5854
    %5875 = vmatprep.subr.mxu0 0.0
    %5876 = vmatpush1.msra.mxu0 %v5856
    %5877 = vmatprep.subr.mxu0 0.0
    %5878 = vmatpush1.msra.mxu0 %v5773
    %5879 = vmatprep.subr.mxu0 0.0
    %5880 = vmatpush1.msra.mxu0 %v5690
    %5881 = vmatprep.subr.mxu0 0.0
    %5882 = vmatpush1.msra.mxu0 %v5518
    %5883 = vmatprep.subr.mxu0 0.0
    %5884 = vmatpush1.msra.mxu0 %v5525
    %5885 = vmatprep.subr.mxu0 0.0
    %5886 = vmatpush1.msra.mxu0 %v5346
    %5887 = vmatprep.subr.mxu0 0.0
    %5888 = vmatpush1.msra.mxu0 %v5354
    %5889 = vmatprep.subr.mxu0 0.0
    %5890 = vmatpush1.msra.mxu0 %v5254
    %5891 = vmatprep.subr.mxu0 0.0
    %5892 = vmatpush2.msra.mxu0 0.0
    %5893 = vmatprep.subr.mxu0 0.0
    %5894 = vmatpush2.msra.mxu0 0.0
    %5895 = vmatprep.subr.mxu0 0.0
    %5896 = vmatpush2.msra.mxu0 0.0
    %5897 = vmatprep.subr.mxu0 0.0
    %5898 = vmatpush2.msra.mxu0 0.0
    %5899 = vmatprep.subr.mxu0 0.0
    %5900 = vmatpush2.msra.mxu0 0.0
    %5901 = vmatprep.subr.mxu0 0.0
    %5902 = vmatpush2.msra.mxu0 0.0
    %5903 = vmatprep.subr.mxu0 0.0
    %5904 = vmatpush2.msra.mxu0 0.0
    %5905 = vmatprep.subr.mxu0 0.0
    %5906 = vmatpush2.msra.mxu0 0.0
    %5907 = vmatprep.subr.mxu0 0.0
    %5908 = vmatpush2.msra.mxu0 0.0
    %5909 = vmatprep.subr.mxu0 0.0
    %5910 = vmatpush2.msra.mxu0 0.0
    %5911 = vmatprep.subr.mxu0 0.0
    %5912 = vmatpush2.msra.mxu0 0.0
    %5913 = vmatprep.subr.mxu0 0.0
    %5914 = vmatpush2.msra.mxu0 0.0
    %5915 = vmatprep.subr.mxu0 0.0
    %5916 = vmatpush2.msra.mxu0 0.0
    %5917 = vmatprep.subr.mxu0 0.0
    %5918 = vmatpush2.msra.mxu0 0.0
    %5919 = vmatprep.subr.mxu0 0.0
    %5920 = vmatpush2.msra.mxu0 0.0
    %5921 = vmatprep.subr.mxu0 0.0
    %5922 = vmatpush2.msra.mxu0 0.0
    %5923 = vmatprep.mubr.f32.mxu0 0.0
    %5924 = vmatmul.mubr.f32.gmra.mxu0 %v5258
    %v5925 = vpop.f32.mrf.mxu0
    %v5926 = vadd.f32 0.0, %v5925
    %v5927 = vpop.f32.mrf.mxu0
    %5928 = vmatprep.mubr.f32.mxu0 0.0
    %5929 = vmatmul.mubr.f32.gmra.mxu0 %v5261
    %v5930 = vpop.f32.mrf.mxu0
    %v5931 = vadd.f32 0.0, %v5930
    %v5932 = vpop.f32.mrf.mxu0
    %5933 = vdwg.mxu0
    %v5934 = vmax.f32 %v5850, %v5926
    %v5935 = vmax.f32 %v5851, %v5931
    %5936 = vmatprep.subr.mxu0 0.0
    %5937 = vmatpush1.msra.mxu0 0.0
    %5938 = vmatprep.subr.mxu0 0.0
    %5939 = vmatpush1.msra.mxu0 0.0
    %5940 = vmatprep.subr.mxu0 0.0
    %5941 = vmatpush1.msra.mxu0 0.0
    %5942 = vmatprep.subr.mxu0 0.0
    %5943 = vmatpush1.msra.mxu0 0.0
    %5944 = vmatprep.subr.mxu0 0.0
    %5945 = vmatpush1.msra.mxu0 0.0
    %5946 = vmatprep.subr.mxu0 0.0
    %5947 = vmatpush1.msra.mxu0 0.0
    %5948 = vmatprep.subr.mxu0 0.0
    %5949 = vmatpush1.msra.mxu0 0.0
    %5950 = vmatprep.subr.mxu0 0.0
    %5951 = vmatpush1.msra.mxu0 %v5237
    %5952 = vmatprep.subr.mxu0 0.0
    %5953 = vmatpush1.msra.mxu0 %v5854
    %5954 = vmatprep.subr.mxu0 0.0
    %5955 = vmatpush1.msra.mxu0 %v5236
    %5956 = vmatprep.subr.mxu0 0.0
    %5957 = vmatpush1.msra.mxu0 %v5686
    %5958 = vmatprep.subr.mxu0 0.0
    %5959 = vmatpush1.msra.mxu0 %v5234
    %5960 = vmatprep.subr.mxu0 0.0
    %5961 = vmatpush1.msra.mxu0 %v5518
    %5962 = vmatprep.subr.mxu0 0.0
    %5963 = vmatpush1.msra.mxu0 %v5232
    %5964 = vmatprep.subr.mxu0 0.0
    %5965 = vmatpush1.msra.mxu0 %v5346
    %5966 = vmatprep.subr.mxu0 0.0
    %5967 = vmatpush1.msra.mxu0 %v5231
    %5968 = vmatprep.subr.mxu0 0.0
    %5969 = vmatpush2.msra.mxu0 0.0
    %5970 = vmatprep.subr.mxu0 0.0
    %5971 = vmatpush2.msra.mxu0 0.0
    %5972 = vmatprep.subr.mxu0 0.0
    %5973 = vmatpush2.msra.mxu0 0.0
    %5974 = vmatprep.subr.mxu0 0.0
    %5975 = vmatpush2.msra.mxu0 0.0
    %5976 = vmatprep.subr.mxu0 0.0
    %5977 = vmatpush2.msra.mxu0 0.0
    %5978 = vmatprep.subr.mxu0 0.0
    %5979 = vmatpush2.msra.mxu0 0.0
    %5980 = vmatprep.subr.mxu0 0.0
    %5981 = vmatpush2.msra.mxu0 0.0
    %5982 = vmatprep.subr.mxu0 0.0
    %5983 = vmatpush2.msra.mxu0 0.0
    %5984 = vmatprep.subr.mxu0 0.0
    %5985 = vmatpush2.msra.mxu0 0.0
    %5986 = vmatprep.subr.mxu0 0.0
    %5987 = vmatpush2.msra.mxu0 0.0
    %5988 = vmatprep.subr.mxu0 0.0
    %5989 = vmatpush2.msra.mxu0 0.0
    %5990 = vmatprep.subr.mxu0 0.0
    %5991 = vmatpush2.msra.mxu0 0.0
    %5992 = vmatprep.subr.mxu0 0.0
    %5993 = vmatpush2.msra.mxu0 0.0
    %5994 = vmatprep.subr.mxu0 0.0
    %5995 = vmatpush2.msra.mxu0 0.0
    %5996 = vmatprep.subr.mxu0 0.0
    %5997 = vmatpush2.msra.mxu0 0.0
    %5998 = vmatprep.subr.mxu0 0.0
    %5999 = vmatpush2.msra.mxu0 0.0
    %6000 = vmatprep.mubr.f32.mxu0 0.0
    %6001 = vmatmul.mubr.f32.gmra.mxu0 %v5258
    %v6002 = vpop.f32.mrf.mxu0
    %v6003 = vadd.f32 0.0, %v6002
    %v6004 = vpop.f32.mrf.mxu0
    %6005 = vmatprep.mubr.f32.mxu0 0.0
    %6006 = vmatmul.mubr.f32.gmra.mxu0 %v5261
    %v6007 = vpop.f32.mrf.mxu0
    %v6008 = vadd.f32 0.0, %v6007
    %v6009 = vpop.f32.mrf.mxu0
    %6010 = vdwg.mxu0
    %v6011 = vmax.f32 %v5934, %v6003
    %v6012 = vmax.f32 %v5935, %v6008
    %v6013 = vld [vmem:[%s4] sm:$0xff]
    %v6014 = vld [vmem:[%s4 + $0x8] sm:$0xff]
    %6016 = vset.pattern.permute.xlu0 0
    %6017 = vperm.xlu0 %6016, %v6013
    %v6018 = vpop.permute.xlu0 %6017
    %6021 = vset.pattern.permute.xlu0 0
    %6022 = vperm.xlu0 %6021, %v6014
    %v6023 = vpop.permute.xlu0 %6022
    %v6025 = vadd.f32 %v6011, %v6018
    %v6026 = vadd.f32 %v6012, %v6023
    %v6027 = vmax.f32 %v6025, 0.0
    %v6028 = vmax.f32 %v6026, 0.0
    %v6029 = vld [vmem:[%s5] sm:$0xff]
    %v6030 = vld [vmem:[%s5 + $0x8] sm:$0xff]
    %v6031 = vld [vmem:[%s5 + $0x10] sm:$0xff]
    %v6032 = vld [vmem:[%s5 + $0x18] sm:$0xff]
    %v6033 = vld [vmem:[%s5 + $0x20] sm:$0xff]
    %v6034 = vld [vmem:[%s5 + $0x28] sm:$0xff]
    %v6035 = vld [vmem:[%s5 + $0x30] sm:$0xff]
    %v6036 = vld [vmem:[%s5 + $0x38] sm:$0xff]
    %v6037 = vld [vmem:[%s5 + $0x40] sm:$0xff]
    %v6038 = vld [vmem:[%s5 + $0x48] sm:$0xff]
    %v6039 = vld [vmem:[%s5 + $0x50] sm:$0xff]
    %v6040 = vld [vmem:[%s5 + $0x58] sm:$0xff]
    %v6041 = vld [vmem:[%s5 + $0x60] sm:$0xff]
    %v6042 = vld [vmem:[%s5 + $0x68] sm:$0xff]
    %v6043 = vld [vmem:[%s5 + $0x70] sm:$0xff]
    %v6044 = vld [vmem:[%s5 + $0x78] sm:$0xff]
    %v6045 = vld [vmem:[%s5 + $0x80] sm:$0xff]
    %v6046 = vld [vmem:[%s5 + $0x88] sm:$0xff]
    %v6047 = vld [vmem:[%s5 + $0x90] sm:$0xff]
    %v6048 = vld [vmem:[%s5 + $0x98] sm:$0xff]
    %v6049 = vld [vmem:[%s5 + $0xa0] sm:$0xff]
    %v6050 = vld [vmem:[%s5 + $0xa8] sm:$0xff]
    %v6051 = vld [vmem:[%s5 + $0xb0] sm:$0xff]
    %v6052 = vld [vmem:[%s5 + $0xb8] sm:$0xff]
    %v6053 = vld [vmem:[%s5 + $0xc0] sm:$0xff]
    %v6054 = vld [vmem:[%s5 + $0xc8] sm:$0xff]
    %v6055 = vld [vmem:[%s5 + $0xd0] sm:$0xff]
    %v6056 = vld [vmem:[%s5 + $0xd8] sm:$0xff]
    %v6057 = vld [vmem:[%s5 + $0xe0] sm:$0xff]
    %v6058 = vld [vmem:[%s5 + $0xe8] sm:$0xff]
    %v6059 = vld [vmem:[%s5 + $0xf0] sm:$0xff]
    %v6060 = vld [vmem:[%s5 + $0xf8] sm:$0xff]
    %v6061 = vld [vmem:[%s5 + $0x100] sm:$0xff]
    %v6062 = vld [vmem:[%s5 + $0x108] sm:$0xff]
    %v6063 = vld [vmem:[%s5 + $0x110] sm:$0xff]
    %v6064 = vld [vmem:[%s5 + $0x118] sm:$0xff]
    %v6065 = vld [vmem:[%s5 + $0x120] sm:$0xff]
    %v6066 = vld [vmem:[%s5 + $0x128] sm:$0xff]
    %v6067 = vld [vmem:[%s5 + $0x130] sm:$0xff]
    %v6068 = vld [vmem:[%s5 + $0x138] sm:$0xff]
    %v6069 = vld [vmem:[%s5 + $0x140] sm:$0xff]
    %v6070 = vld [vmem:[%s5 + $0x148] sm:$0xff]
    %v6071 = vld [vmem:[%s5 + $0x150] sm:$0xff]
    %v6072 = vld [vmem:[%s5 + $0x158] sm:$0xff]
    %v6073 = vld [vmem:[%s5 + $0x160] sm:$0xff]
    %v6074 = vld [vmem:[%s5 + $0x168] sm:$0xff]
    %v6075 = vld [vmem:[%s5 + $0x170] sm:$0xff]
    %v6076 = vld [vmem:[%s5 + $0x178] sm:$0xff]
    %v6077 = vld [vmem:[%s5 + $0x180] sm:$0xff]
    %v6078 = vld [vmem:[%s5 + $0x188] sm:$0xff]
    %v6079 = vld [vmem:[%s5 + $0x190] sm:$0xff]
    %v6080 = vld [vmem:[%s5 + $0x198] sm:$0xff]
    %v6081 = vld [vmem:[%s5 + $0x1a0] sm:$0xff]
    %v6082 = vld [vmem:[%s5 + $0x1a8] sm:$0xff]
    %v6083 = vld [vmem:[%s5 + $0x1b0] sm:$0xff]
    %v6084 = vld [vmem:[%s5 + $0x1b8] sm:$0xff]
    %v6085 = vld [vmem:[%s5 + $0x1c0] sm:$0xff]
    %v6086 = vld [vmem:[%s5 + $0x1c8] sm:$0xff]
    %v6087 = vld [vmem:[%s5 + $0x1d0] sm:$0xff]
    %v6088 = vld [vmem:[%s5 + $0x1d8] sm:$0xff]
    %v6089 = vld [vmem:[%s5 + $0x1e0] sm:$0xff]
    %v6090 = vld [vmem:[%s5 + $0x1e8] sm:$0xff]
    %v6091 = vld [vmem:[%s5 + $0x1f0] sm:$0xff]
    %v6092 = vld [vmem:[%s5 + $0x1f8] sm:$0xff]
    %v6093 = vld [vmem:[%s5 + $0x200] sm:$0xff]
    %v6094 = vld [vmem:[%s5 + $0x208] sm:$0xff]
    %v6095 = vld [vmem:[%s5 + $0x210] sm:$0xff]
    %v6096 = vld [vmem:[%s5 + $0x218] sm:$0xff]
    %v6097 = vld [vmem:[%s5 + $0x220] sm:$0xff]
    %v6098 = vld [vmem:[%s5 + $0x228] sm:$0xff]
    %v6099 = vld [vmem:[%s5 + $0x230] sm:$0xff]
    %v6100 = vld [vmem:[%s5 + $0x238] sm:$0xff]
    %v6101 = vld [vmem:[%s5 + $0x240] sm:$0xff]
    %v6102 = vld [vmem:[%s5 + $0x248] sm:$0xff]
    %v6103 = vld [vmem:[%s5 + $0x250] sm:$0xff]
    %v6104 = vld [vmem:[%s5 + $0x258] sm:$0xff]
    %v6105 = vld [vmem:[%s5 + $0x260] sm:$0xff]
    %v6106 = vld [vmem:[%s5 + $0x268] sm:$0xff]
    %v6107 = vld [vmem:[%s5 + $0x270] sm:$0xff]
    %v6108 = vld [vmem:[%s5 + $0x278] sm:$0xff]
    %v6109 = vld [vmem:[%s5 + $0x280] sm:$0xff]
    %v6110 = vld [vmem:[%s5 + $0x288] sm:$0xff]
    %v6111 = vld [vmem:[%s5 + $0x290] sm:$0xff]
    %v6112 = vld [vmem:[%s5 + $0x298] sm:$0xff]
    %v6113 = vld [vmem:[%s5 + $0x2a0] sm:$0xff]
    %v6114 = vld [vmem:[%s5 + $0x2a8] sm:$0xff]
    %v6115 = vld [vmem:[%s5 + $0x2b0] sm:$0xff]
    %v6116 = vld [vmem:[%s5 + $0x2b8] sm:$0xff]
    %v6117 = vld [vmem:[%s5 + $0x2c0] sm:$0xff]
    %v6118 = vld [vmem:[%s5 + $0x2c8] sm:$0xff]
    %v6119 = vld [vmem:[%s5 + $0x2d0] sm:$0xff]
    %v6120 = vld [vmem:[%s5 + $0x2d8] sm:$0xff]
    %v6121 = vld [vmem:[%s5 + $0x2e0] sm:$0xff]
    %v6122 = vld [vmem:[%s5 + $0x2e8] sm:$0xff]
    %v6123 = vld [vmem:[%s5 + $0x2f0] sm:$0xff]
    %v6124 = vld [vmem:[%s5 + $0x2f8] sm:$0xff]
    %v6125 = vld [vmem:[%s5 + $0x300] sm:$0xff]
    %v6126 = vld [vmem:[%s5 + $0x308] sm:$0xff]
    %v6127 = vld [vmem:[%s5 + $0x310] sm:$0xff]
    %v6128 = vld [vmem:[%s5 + $0x318] sm:$0xff]
    %v6129 = vld [vmem:[%s5 + $0x320] sm:$0xff]
    %v6130 = vld [vmem:[%s5 + $0x328] sm:$0xff]
    %v6131 = vld [vmem:[%s5 + $0x330] sm:$0xff]
    %v6132 = vld [vmem:[%s5 + $0x338] sm:$0xff]
    %v6133 = vld [vmem:[%s5 + $0x340] sm:$0xff]
    %v6134 = vld [vmem:[%s5 + $0x348] sm:$0xff]
    %v6135 = vld [vmem:[%s5 + $0x350] sm:$0xff]
    %v6136 = vld [vmem:[%s5 + $0x358] sm:$0xff]
    %v6137 = vld [vmem:[%s5 + $0x360] sm:$0xff]
    %v6138 = vld [vmem:[%s5 + $0x368] sm:$0xff]
    %v6139 = vld [vmem:[%s5 + $0x370] sm:$0xff]
    %v6140 = vld [vmem:[%s5 + $0x378] sm:$0xff]
    %v6141 = vld [vmem:[%s5 + $0x380] sm:$0xff]
    %v6142 = vld [vmem:[%s5 + $0x388] sm:$0xff]
    %v6143 = vld [vmem:[%s5 + $0x390] sm:$0xff]
    %v6144 = vld [vmem:[%s5 + $0x398] sm:$0xff]
    %v6145 = vld [vmem:[%s5 + $0x3a0] sm:$0xff]
    %v6146 = vld [vmem:[%s5 + $0x3a8] sm:$0xff]
    %v6147 = vld [vmem:[%s5 + $0x3b0] sm:$0xff]
    %v6148 = vld [vmem:[%s5 + $0x3b8] sm:$0xff]
    %v6149 = vld [vmem:[%s5 + $0x3c0] sm:$0xff]
    %v6150 = vld [vmem:[%s5 + $0x3c8] sm:$0xff]
    %v6151 = vld [vmem:[%s5 + $0x3d0] sm:$0xff]
    %v6152 = vld [vmem:[%s5 + $0x3d8] sm:$0xff]
    %v6153 = vld [vmem:[%s5 + $0x3e0] sm:$0xff]
    %v6154 = vld [vmem:[%s5 + $0x3e8] sm:$0xff]
    %v6155 = vld [vmem:[%s5 + $0x3f0] sm:$0xff]
    %v6156 = vld [vmem:[%s5 + $0x3f8] sm:$0xff]
    %v6157 = vld [vmem:[%s7] sm:$0xff]
    %v6158 = vld [vmem:[%s7 + $0x8] sm:$0xff]
    %v6159 = vld [vmem:[%s7 + $0x10] sm:$0xff]
    %v6160 = vld [vmem:[%s7 + $0x18] sm:$0xff]
    %v6161 = vld [vmem:[%s7 + $0x20] sm:$0xff]
    %v6162 = vld [vmem:[%s7 + $0x28] sm:$0xff]
    %v6163 = vld [vmem:[%s7 + $0x30] sm:$0xff]
    %v6164 = vld [vmem:[%s7 + $0x38] sm:$0xff]
    %v6165 = vld [vmem:[%s7 + $0x40] sm:$0xff]
    %v6166 = vld [vmem:[%s7 + $0x48] sm:$0xff]
    %v6167 = vld [vmem:[%s7 + $0x50] sm:$0xff]
    %v6168 = vld [vmem:[%s7 + $0x58] sm:$0xff]
    %v6169 = vld [vmem:[%s7 + $0x60] sm:$0xff]
    %v6170 = vld [vmem:[%s7 + $0x68] sm:$0xff]
    %v6171 = vld [vmem:[%s7 + $0x70] sm:$0xff]
    %v6172 = vld [vmem:[%s7 + $0x78] sm:$0xff]
    %v6173 = vld [vmem:[%s7 + $0x80] sm:$0xff]
    %v6174 = vld [vmem:[%s7 + $0x88] sm:$0xff]
    %v6175 = vld [vmem:[%s7 + $0x90] sm:$0xff]
    %v6176 = vld [vmem:[%s7 + $0x98] sm:$0xff]
    %v6177 = vld [vmem:[%s7 + $0xa0] sm:$0xff]
    %v6178 = vld [vmem:[%s7 + $0xa8] sm:$0xff]
    %v6179 = vld [vmem:[%s7 + $0xb0] sm:$0xff]
    %v6180 = vld [vmem:[%s7 + $0xb8] sm:$0xff]
    %v6181 = vld [vmem:[%s7 + $0xc0] sm:$0xff]
    %v6182 = vld [vmem:[%s7 + $0xc8] sm:$0xff]
    %v6183 = vld [vmem:[%s7 + $0xd0] sm:$0xff]
    %v6184 = vld [vmem:[%s7 + $0xd8] sm:$0xff]
    %v6185 = vld [vmem:[%s7 + $0xe0] sm:$0xff]
    %v6186 = vld [vmem:[%s7 + $0xe8] sm:$0xff]
    %v6187 = vld [vmem:[%s7 + $0xf0] sm:$0xff]
    %v6188 = vld [vmem:[%s7 + $0xf8] sm:$0xff]
    %v6189 = vld [vmem:[%s9] sm:$0xff]
    %v6190 = vld [vmem:[%s9 + $0x8] sm:$0xff]
    %v6191 = vld [vmem:[%s9 + $0x10] sm:$0xff]
    %v6192 = vld [vmem:[%s9 + $0x18] sm:$0xff]
    %v6193 = vld [vmem:[%s9 + $0x20] sm:$0xff]
    %v6194 = vld [vmem:[%s9 + $0x28] sm:$0xff]
    %v6195 = vld [vmem:[%s9 + $0x30] sm:$0xff]
    %v6196 = vld [vmem:[%s9 + $0x38] sm:$0xff]
    %v6197 = vld [vmem:[%s9 + $0x40] sm:$0xff]
    %v6198 = vld [vmem:[%s9 + $0x48] sm:$0xff]
    %v6199 = vld [vmem:[%s9 + $0x50] sm:$0xff]
    %v6200 = vld [vmem:[%s9 + $0x58] sm:$0xff]
    %v6201 = vld [vmem:[%s9 + $0x60] sm:$0xff]
    %v6202 = vld [vmem:[%s9 + $0x68] sm:$0xff]
    %v6203 = vld [vmem:[%s9 + $0x70] sm:$0xff]
    %v6204 = vld [vmem:[%s9 + $0x78] sm:$0xff]
    %v6205 = vld [vmem:[%s6] sm:$0x3]
    %v6206 = vld [vmem:[%s8] sm:$0x1]
    %v6207 = vld [vmem:[%s10] sm:$0x1]
    %v6209 = vrot.slane %v6027, 1
    %vm6210 = vcmask 261120
    %v6211 = vsel %vm6210, %v6209, 0
    %6213 = vmatprep.subr.mxu0 0.0
    %6214 = vmatpush1.msra.mxu0 0.0
    %6215 = vmatprep.subr.mxu0 0.0
    %6216 = vmatpush1.msra.mxu0 0.0
    %6217 = vmatprep.subr.mxu0 0.0
    %6218 = vmatpush1.msra.mxu0 0.0
    %6219 = vmatprep.subr.mxu0 0.0
    %6220 = vmatpush1.msra.mxu0 0.0
    %6221 = vmatprep.subr.mxu0 0.0
    %6222 = vmatpush1.msra.mxu0 0.0
    %6223 = vmatprep.subr.mxu0 0.0
    %6224 = vmatpush1.msra.mxu0 0.0
    %6225 = vmatprep.subr.mxu0 0.0
    %6226 = vmatpush1.msra.mxu0 0.0
    %6227 = vmatprep.subr.mxu0 0.0
    %6228 = vmatpush1.msra.mxu0 0.0
    %6229 = vmatprep.subr.mxu0 0.0
    %6230 = vmatpush1.msra.mxu0 0.0
    %6231 = vmatprep.subr.mxu0 0.0
    %6232 = vmatpush1.msra.mxu0 0.0
    %6233 = vmatprep.subr.mxu0 0.0
    %6234 = vmatpush1.msra.mxu0 0.0
    %6235 = vmatprep.subr.mxu0 0.0
    %6236 = vmatpush1.msra.mxu0 0.0
    %6237 = vmatprep.subr.mxu0 %v6044
    %6238 = vmatpush1.msra.mxu0 %v6043
    %6239 = vmatprep.subr.mxu0 %v6042
    %6240 = vmatpush1.msra.mxu0 %v6041
    %6241 = vmatprep.subr.mxu0 %v6040
    %6242 = vmatpush1.msra.mxu0 %v6039
    %6243 = vmatprep.subr.mxu0 %v6038
    %6244 = vmatpush1.msra.mxu0 %v6037
    %6245 = vmatprep.subr.mxu0 0.0
    %6246 = vmatpush2.msra.mxu0 0.0
    %6247 = vmatprep.subr.mxu0 0.0
    %6248 = vmatpush2.msra.mxu0 0.0
    %6249 = vmatprep.subr.mxu0 0.0
    %6250 = vmatpush2.msra.mxu0 0.0
    %6251 = vmatprep.subr.mxu0 0.0
    %6252 = vmatpush2.msra.mxu0 0.0
    %6253 = vmatprep.subr.mxu0 0.0
    %6254 = vmatpush2.msra.mxu0 0.0
    %6255 = vmatprep.subr.mxu0 0.0
    %6256 = vmatpush2.msra.mxu0 0.0
    %6257 = vmatprep.subr.mxu0 0.0
    %6258 = vmatpush2.msra.mxu0 0.0
    %6259 = vmatprep.subr.mxu0 0.0
    %6260 = vmatpush2.msra.mxu0 0.0
    %6261 = vmatprep.subr.mxu0 0.0
    %6262 = vmatpush2.msra.mxu0 0.0
    %6263 = vmatprep.subr.mxu0 0.0
    %6264 = vmatpush2.msra.mxu0 0.0
    %6265 = vmatprep.subr.mxu0 0.0
    %6266 = vmatpush2.msra.mxu0 0.0
    %6267 = vmatprep.subr.mxu0 0.0
    %6268 = vmatpush2.msra.mxu0 0.0
    %6269 = vmatprep.subr.mxu0 0.0
    %6270 = vmatpush2.msra.mxu0 0.0
    %6271 = vmatprep.subr.mxu0 0.0
    %6272 = vmatpush2.msra.mxu0 0.0
    %6273 = vmatprep.subr.mxu0 0.0
    %6274 = vmatpush2.msra.mxu0 0.0
    %6275 = vmatprep.subr.mxu0 0.0
    %6276 = vmatpush2.msra.mxu0 0.0
    %6277 = vmatprep.mubr.f32.mxu0 0.0
    %6278 = vmatmul.mubr.f32.gmra.mxu0 %v6211
    %v6279 = vpop.f32.mrf.mxu0
    %v6280 = vadd.f32 0.0, %v6279
    %v6281 = vpop.f32.mrf.mxu0
    %v6282 = vadd.f32 0.0, %v6281
    %6283 = vdwg.mxu0
    %v6284 = vsel %vm6210, %v6027, 0
    %6286 = vmatprep.subr.mxu0 0.0
    %6287 = vmatpush1.msra.mxu0 0.0
    %6288 = vmatprep.subr.mxu0 0.0
    %6289 = vmatpush1.msra.mxu0 0.0
    %6290 = vmatprep.subr.mxu0 0.0
    %6291 = vmatpush1.msra.mxu0 0.0
    %6292 = vmatprep.subr.mxu0 0.0
    %6293 = vmatpush1.msra.mxu0 0.0
    %6294 = vmatprep.subr.mxu0 0.0
    %6295 = vmatpush1.msra.mxu0 0.0
    %6296 = vmatprep.subr.mxu0 0.0
    %6297 = vmatpush1.msra.mxu0 0.0
    %6298 = vmatprep.subr.mxu0 0.0
    %6299 = vmatpush1.msra.mxu0 0.0
    %6300 = vmatprep.subr.mxu0 0.0
    %6301 = vmatpush1.msra.mxu0 0.0
    %6302 = vmatprep.subr.mxu0 0.0
    %6303 = vmatpush1.msra.mxu0 0.0
    %6304 = vmatprep.subr.mxu0 0.0
    %6305 = vmatpush1.msra.mxu0 0.0
    %6306 = vmatprep.subr.mxu0 0.0
    %6307 = vmatpush1.msra.mxu0 0.0
    %6308 = vmatprep.subr.mxu0 0.0
    %6309 = vmatpush1.msra.mxu0 0.0
    %6310 = vmatprep.subr.mxu0 %v6036
    %6311 = vmatpush1.msra.mxu0 %v6035
    %6312 = vmatprep.subr.mxu0 %v6034
    %6313 = vmatpush1.msra.mxu0 %v6033
    %6314 = vmatprep.subr.mxu0 %v6032
    %6315 = vmatpush1.msra.mxu0 %v6031
    %6316 = vmatprep.subr.mxu0 %v6030
    %6317 = vmatpush1.msra.mxu0 %v6029
    %6318 = vmatprep.subr.mxu0 0.0
    %6319 = vmatpush2.msra.mxu0 0.0
    %6320 = vmatprep.subr.mxu0 0.0
    %6321 = vmatpush2.msra.mxu0 0.0
    %6322 = vmatprep.subr.mxu0 0.0
    %6323 = vmatpush2.msra.mxu0 0.0
    %6324 = vmatprep.subr.mxu0 0.0
    %6325 = vmatpush2.msra.mxu0 0.0
    %6326 = vmatprep.subr.mxu0 0.0
    %6327 = vmatpush2.msra.mxu0 0.0
    %6328 = vmatprep.subr.mxu0 0.0
    %6329 = vmatpush2.msra.mxu0 0.0
    %6330 = vmatprep.subr.mxu0 0.0
    %6331 = vmatpush2.msra.mxu0 0.0
    %6332 = vmatprep.subr.mxu0 0.0
    %6333 = vmatpush2.msra.mxu0 0.0
    %6334 = vmatprep.subr.mxu0 0.0
    %6335 = vmatpush2.msra.mxu0 0.0
    %6336 = vmatprep.subr.mxu0 0.0
    %6337 = vmatpush2.msra.mxu0 0.0
    %6338 = vmatprep.subr.mxu0 0.0
    %6339 = vmatpush2.msra.mxu0 0.0
    %6340 = vmatprep.subr.mxu0 0.0
    %6341 = vmatpush2.msra.mxu0 0.0
    %6342 = vmatprep.subr.mxu0 0.0
    %6343 = vmatpush2.msra.mxu0 0.0
    %6344 = vmatprep.subr.mxu0 0.0
    %6345 = vmatpush2.msra.mxu0 0.0
    %6346 = vmatprep.subr.mxu0 0.0
    %6347 = vmatpush2.msra.mxu0 0.0
    %6348 = vmatprep.subr.mxu0 0.0
    %6349 = vmatpush2.msra.mxu0 0.0
    %6350 = vmatprep.mubr.f32.mxu0 0.0
    %6351 = vmatmul.mubr.f32.gmra.mxu0 %v6284
    %v6352 = vpop.f32.mrf.mxu0
    %v6353 = vadd.f32 %v6280, %v6352
    %v6354 = vpop.f32.mrf.mxu0
    %v6355 = vadd.f32 %v6282, %v6354
    %6356 = vdwg.mxu0
    %v6357 = vrot.slane %v6027, 2
    %v6358 = vsel %vm6210, %v6357, 0
    %6360 = vmatprep.subr.mxu0 0.0
    %6361 = vmatpush1.msra.mxu0 0.0
    %6362 = vmatprep.subr.mxu0 0.0
    %6363 = vmatpush1.msra.mxu0 0.0
    %6364 = vmatprep.subr.mxu0 0.0
    %6365 = vmatpush1.msra.mxu0 0.0
    %6366 = vmatprep.subr.mxu0 0.0
    %6367 = vmatpush1.msra.mxu0 0.0
    %6368 = vmatprep.subr.mxu0 0.0
    %6369 = vmatpush1.msra.mxu0 0.0
    %6370 = vmatprep.subr.mxu0 0.0
    %6371 = vmatpush1.msra.mxu0 0.0
    %6372 = vmatprep.subr.mxu0 0.0
    %6373 = vmatpush1.msra.mxu0 0.0
    %6374 = vmatprep.subr.mxu0 0.0
    %6375 = vmatpush1.msra.mxu0 0.0
    %6376 = vmatprep.subr.mxu0 0.0
    %6377 = vmatpush1.msra.mxu0 0.0
    %6378 = vmatprep.subr.mxu0 0.0
    %6379 = vmatpush1.msra.mxu0 0.0
    %6380 = vmatprep.subr.mxu0 0.0
    %6381 = vmatpush1.msra.mxu0 0.0
    %6382 = vmatprep.subr.mxu0 0.0
    %6383 = vmatpush1.msra.mxu0 0.0
    %6384 = vmatprep.subr.mxu0 %v6052
    %6385 = vmatpush1.msra.mxu0 %v6051
    %6386 = vmatprep.subr.mxu0 %v6050
    %6387 = vmatpush1.msra.mxu0 %v6049
    %6388 = vmatprep.subr.mxu0 %v6048
    %6389 = vmatpush1.msra.mxu0 %v6047
    %6390 = vmatprep.subr.mxu0 %v6046
    %6391 = vmatpush1.msra.mxu0 %v6045
    %6392 = vmatprep.subr.mxu0 0.0
    %6393 = vmatpush2.msra.mxu0 0.0
    %6394 = vmatprep.subr.mxu0 0.0
    %6395 = vmatpush2.msra.mxu0 0.0
    %6396 = vmatprep.subr.mxu0 0.0
    %6397 = vmatpush2.msra.mxu0 0.0
    %6398 = vmatprep.subr.mxu0 0.0
    %6399 = vmatpush2.msra.mxu0 0.0
    %6400 = vmatprep.subr.mxu0 0.0
    %6401 = vmatpush2.msra.mxu0 0.0
    %6402 = vmatprep.subr.mxu0 0.0
    %6403 = vmatpush2.msra.mxu0 0.0
    %6404 = vmatprep.subr.mxu0 0.0
    %6405 = vmatpush2.msra.mxu0 0.0
    %6406 = vmatprep.subr.mxu0 0.0
    %6407 = vmatpush2.msra.mxu0 0.0
    %6408 = vmatprep.subr.mxu0 0.0
    %6409 = vmatpush2.msra.mxu0 0.0
    %6410 = vmatprep.subr.mxu0 0.0
    %6411 = vmatpush2.msra.mxu0 0.0
    %6412 = vmatprep.subr.mxu0 0.0
    %6413 = vmatpush2.msra.mxu0 0.0
    %6414 = vmatprep.subr.mxu0 0.0
    %6415 = vmatpush2.msra.mxu0 0.0
    %6416 = vmatprep.subr.mxu0 0.0
    %6417 = vmatpush2.msra.mxu0 0.0
    %6418 = vmatprep.subr.mxu0 0.0
    %6419 = vmatpush2.msra.mxu0 0.0
    %6420 = vmatprep.subr.mxu0 0.0
    %6421 = vmatpush2.msra.mxu0 0.0
    %6422 = vmatprep.subr.mxu0 0.0
    %6423 = vmatpush2.msra.mxu0 0.0
    %6424 = vmatprep.mubr.f32.mxu0 0.0
    %6425 = vmatmul.mubr.f32.gmra.mxu0 %v6358
    %v6426 = vpop.f32.mrf.mxu0
    %v6427 = vadd.f32 0.0, %v6426
    %v6428 = vpop.f32.mrf.mxu0
    %v6429 = vadd.f32 0.0, %v6428
    %6430 = vdwg.mxu0
    %v6431 = vadd.f32 %v6353, %v6427
    %v6432 = vadd.f32 %v6355, %v6429
    %v6433 = vrot.slane %v6027, 3
    %v6434 = vsel %vm6210, %v6433, 0
    %6436 = vmatprep.subr.mxu0 0.0
    %6437 = vmatpush1.msra.mxu0 0.0
    %6438 = vmatprep.subr.mxu0 0.0
    %6439 = vmatpush1.msra.mxu0 0.0
    %6440 = vmatprep.subr.mxu0 0.0
    %6441 = vmatpush1.msra.mxu0 0.0
    %6442 = vmatprep.subr.mxu0 0.0
    %6443 = vmatpush1.msra.mxu0 0.0
    %6444 = vmatprep.subr.mxu0 0.0
    %6445 = vmatpush1.msra.mxu0 0.0
    %6446 = vmatprep.subr.mxu0 0.0
    %6447 = vmatpush1.msra.mxu0 0.0
    %6448 = vmatprep.subr.mxu0 0.0
    %6449 = vmatpush1.msra.mxu0 0.0
    %6450 = vmatprep.subr.mxu0 0.0
    %6451 = vmatpush1.msra.mxu0 0.0
    %6452 = vmatprep.subr.mxu0 0.0
    %6453 = vmatpush1.msra.mxu0 0.0
    %6454 = vmatprep.subr.mxu0 0.0
    %6455 = vmatpush1.msra.mxu0 0.0
    %6456 = vmatprep.subr.mxu0 0.0
    %6457 = vmatpush1.msra.mxu0 0.0
    %6458 = vmatprep.subr.mxu0 0.0
    %6459 = vmatpush1.msra.mxu0 0.0
    %6460 = vmatprep.subr.mxu0 %v6060
    %6461 = vmatpush1.msra.mxu0 %v6059
    %6462 = vmatprep.subr.mxu0 %v6058
    %6463 = vmatpush1.msra.mxu0 %v6057
    %6464 = vmatprep.subr.mxu0 %v6056
    %6465 = vmatpush1.msra.mxu0 %v6055
    %6466 = vmatprep.subr.mxu0 %v6054
    %6467 = vmatpush1.msra.mxu0 %v6053
    %6468 = vmatprep.subr.mxu0 0.0
    %6469 = vmatpush2.msra.mxu0 0.0
    %6470 = vmatprep.subr.mxu0 0.0
    %6471 = vmatpush2.msra.mxu0 0.0
    %6472 = vmatprep.subr.mxu0 0.0
    %6473 = vmatpush2.msra.mxu0 0.0
    %6474 = vmatprep.subr.mxu0 0.0
    %6475 = vmatpush2.msra.mxu0 0.0
    %6476 = vmatprep.subr.mxu0 0.0
    %6477 = vmatpush2.msra.mxu0 0.0
    %6478 = vmatprep.subr.mxu0 0.0
    %6479 = vmatpush2.msra.mxu0 0.0
    %6480 = vmatprep.subr.mxu0 0.0
    %6481 = vmatpush2.msra.mxu0 0.0
    %6482 = vmatprep.subr.mxu0 0.0
    %6483 = vmatpush2.msra.mxu0 0.0
    %6484 = vmatprep.subr.mxu0 0.0
    %6485 = vmatpush2.msra.mxu0 0.0
    %6486 = vmatprep.subr.mxu0 0.0
    %6487 = vmatpush2.msra.mxu0 0.0
    %6488 = vmatprep.subr.mxu0 0.0
    %6489 = vmatpush2.msra.mxu0 0.0
    %6490 = vmatprep.subr.mxu0 0.0
    %6491 = vmatpush2.msra.mxu0 0.0
    %6492 = vmatprep.subr.mxu0 0.0
    %6493 = vmatpush2.msra.mxu0 0.0
    %6494 = vmatprep.subr.mxu0 0.0
    %6495 = vmatpush2.msra.mxu0 0.0
    %6496 = vmatprep.subr.mxu0 0.0
    %6497 = vmatpush2.msra.mxu0 0.0
    %6498 = vmatprep.subr.mxu0 0.0
    %6499 = vmatpush2.msra.mxu0 0.0
    %6500 = vmatprep.mubr.f32.mxu0 0.0
    %6501 = vmatmul.mubr.f32.gmra.mxu0 %v6434
    %v6502 = vpop.f32.mrf.mxu0
    %v6503 = vadd.f32 0.0, %v6502
    %v6504 = vpop.f32.mrf.mxu0
    %v6505 = vadd.f32 0.0, %v6504
    %6506 = vdwg.mxu0
    %v6507 = vadd.f32 %v6431, %v6503
    %v6508 = vadd.f32 %v6432, %v6505
    %v6509 = vrot.slane %v6027, 4
    %v6510 = vsel %vm6210, %v6509, 0
    %6512 = vmatprep.subr.mxu0 0.0
    %6513 = vmatpush1.msra.mxu0 0.0
    %6514 = vmatprep.subr.mxu0 0.0
    %6515 = vmatpush1.msra.mxu0 0.0
    %6516 = vmatprep.subr.mxu0 0.0
    %6517 = vmatpush1.msra.mxu0 0.0
    %6518 = vmatprep.subr.mxu0 0.0
    %6519 = vmatpush1.msra.mxu0 0.0
    %6520 = vmatprep.subr.mxu0 0.0
    %6521 = vmatpush1.msra.mxu0 0.0
    %6522 = vmatprep.subr.mxu0 0.0
    %6523 = vmatpush1.msra.mxu0 0.0
    %6524 = vmatprep.subr.mxu0 0.0
    %6525 = vmatpush1.msra.mxu0 0.0
    %6526 = vmatprep.subr.mxu0 0.0
    %6527 = vmatpush1.msra.mxu0 0.0
    %6528 = vmatprep.subr.mxu0 0.0
    %6529 = vmatpush1.msra.mxu0 0.0
    %6530 = vmatprep.subr.mxu0 0.0
    %6531 = vmatpush1.msra.mxu0 0.0
    %6532 = vmatprep.subr.mxu0 0.0
    %6533 = vmatpush1.msra.mxu0 0.0
    %6534 = vmatprep.subr.mxu0 0.0
    %6535 = vmatpush1.msra.mxu0 0.0
    %6536 = vmatprep.subr.mxu0 %v6068
    %6537 = vmatpush1.msra.mxu0 %v6067
    %6538 = vmatprep.subr.mxu0 %v6066
    %6539 = vmatpush1.msra.mxu0 %v6065
    %6540 = vmatprep.subr.mxu0 %v6064
    %6541 = vmatpush1.msra.mxu0 %v6063
    %6542 = vmatprep.subr.mxu0 %v6062
    %6543 = vmatpush1.msra.mxu0 %v6061
    %6544 = vmatprep.subr.mxu0 0.0
    %6545 = vmatpush2.msra.mxu0 0.0
    %6546 = vmatprep.subr.mxu0 0.0
    %6547 = vmatpush2.msra.mxu0 0.0
    %6548 = vmatprep.subr.mxu0 0.0
    %6549 = vmatpush2.msra.mxu0 0.0
    %6550 = vmatprep.subr.mxu0 0.0
    %6551 = vmatpush2.msra.mxu0 0.0
    %6552 = vmatprep.subr.mxu0 0.0
    %6553 = vmatpush2.msra.mxu0 0.0
    %6554 = vmatprep.subr.mxu0 0.0
    %6555 = vmatpush2.msra.mxu0 0.0
    %6556 = vmatprep.subr.mxu0 0.0
    %6557 = vmatpush2.msra.mxu0 0.0
    %6558 = vmatprep.subr.mxu0 0.0
    %6559 = vmatpush2.msra.mxu0 0.0
    %6560 = vmatprep.subr.mxu0 0.0
    %6561 = vmatpush2.msra.mxu0 0.0
    %6562 = vmatprep.subr.mxu0 0.0
    %6563 = vmatpush2.msra.mxu0 0.0
    %6564 = vmatprep.subr.mxu0 0.0
    %6565 = vmatpush2.msra.mxu0 0.0
    %6566 = vmatprep.subr.mxu0 0.0
    %6567 = vmatpush2.msra.mxu0 0.0
    %6568 = vmatprep.subr.mxu0 0.0
    %6569 = vmatpush2.msra.mxu0 0.0
    %6570 = vmatprep.subr.mxu0 0.0
    %6571 = vmatpush2.msra.mxu0 0.0
    %6572 = vmatprep.subr.mxu0 0.0
    %6573 = vmatpush2.msra.mxu0 0.0
    %6574 = vmatprep.subr.mxu0 0.0
    %6575 = vmatpush2.msra.mxu0 0.0
    %6576 = vmatprep.mubr.f32.mxu0 0.0
    %6577 = vmatmul.mubr.f32.gmra.mxu0 %v6510
    %v6578 = vpop.f32.mrf.mxu0
    %v6579 = vadd.f32 0.0, %v6578
    %v6580 = vpop.f32.mrf.mxu0
    %v6581 = vadd.f32 0.0, %v6580
    %6582 = vdwg.mxu0
    %v6583 = vadd.f32 %v6507, %v6579
    %v6584 = vadd.f32 %v6508, %v6581
    %v6585 = vrot.slane %v6027, 5
    %v6586 = vsel %vm6210, %v6585, 0
    %6588 = vmatprep.subr.mxu0 0.0
    %6589 = vmatpush1.msra.mxu0 0.0
    %6590 = vmatprep.subr.mxu0 0.0
    %6591 = vmatpush1.msra.mxu0 0.0
    %6592 = vmatprep.subr.mxu0 0.0
    %6593 = vmatpush1.msra.mxu0 0.0
    %6594 = vmatprep.subr.mxu0 0.0
    %6595 = vmatpush1.msra.mxu0 0.0
    %6596 = vmatprep.subr.mxu0 0.0
    %6597 = vmatpush1.msra.mxu0 0.0
    %6598 = vmatprep.subr.mxu0 0.0
    %6599 = vmatpush1.msra.mxu0 0.0
    %6600 = vmatprep.subr.mxu0 0.0
    %6601 = vmatpush1.msra.mxu0 0.0
    %6602 = vmatprep.subr.mxu0 0.0
    %6603 = vmatpush1.msra.mxu0 0.0
    %6604 = vmatprep.subr.mxu0 0.0
    %6605 = vmatpush1.msra.mxu0 0.0
    %6606 = vmatprep.subr.mxu0 0.0
    %6607 = vmatpush1.msra.mxu0 0.0
    %6608 = vmatprep.subr.mxu0 0.0
    %6609 = vmatpush1.msra.mxu0 0.0
    %6610 = vmatprep.subr.mxu0 0.0
    %6611 = vmatpush1.msra.mxu0 0.0
    %6612 = vmatprep.subr.mxu0 %v6076
    %6613 = vmatpush1.msra.mxu0 %v6075
    %6614 = vmatprep.subr.mxu0 %v6074
    %6615 = vmatpush1.msra.mxu0 %v6073
    %6616 = vmatprep.subr.mxu0 %v6072
    %6617 = vmatpush1.msra.mxu0 %v6071
    %6618 = vmatprep.subr.mxu0 %v6070
    %6619 = vmatpush1.msra.mxu0 %v6069
    %6620 = vmatprep.subr.mxu0 0.0
    %6621 = vmatpush2.msra.mxu0 0.0
    %6622 = vmatprep.subr.mxu0 0.0
    %6623 = vmatpush2.msra.mxu0 0.0
    %6624 = vmatprep.subr.mxu0 0.0
    %6625 = vmatpush2.msra.mxu0 0.0
    %6626 = vmatprep.subr.mxu0 0.0
    %6627 = vmatpush2.msra.mxu0 0.0
    %6628 = vmatprep.subr.mxu0 0.0
    %6629 = vmatpush2.msra.mxu0 0.0
    %6630 = vmatprep.subr.mxu0 0.0
    %6631 = vmatpush2.msra.mxu0 0.0
    %6632 = vmatprep.subr.mxu0 0.0
    %6633 = vmatpush2.msra.mxu0 0.0
    %6634 = vmatprep.subr.mxu0 0.0
    %6635 = vmatpush2.msra.mxu0 0.0
    %6636 = vmatprep.subr.mxu0 0.0
    %6637 = vmatpush2.msra.mxu0 0.0
    %6638 = vmatprep.subr.mxu0 0.0
    %6639 = vmatpush2.msra.mxu0 0.0
    %6640 = vmatprep.subr.mxu0 0.0
    %6641 = vmatpush2.msra.mxu0 0.0
    %6642 = vmatprep.subr.mxu0 0.0
    %6643 = vmatpush2.msra.mxu0 0.0
    %6644 = vmatprep.subr.mxu0 0.0
    %6645 = vmatpush2.msra.mxu0 0.0
    %6646 = vmatprep.subr.mxu0 0.0
    %6647 = vmatpush2.msra.mxu0 0.0
    %6648 = vmatprep.subr.mxu0 0.0
    %6649 = vmatpush2.msra.mxu0 0.0
    %6650 = vmatprep.subr.mxu0 0.0
    %6651 = vmatpush2.msra.mxu0 0.0
    %6652 = vmatprep.mubr.f32.mxu0 0.0
    %6653 = vmatmul.mubr.f32.gmra.mxu0 %v6586
    %v6654 = vpop.f32.mrf.mxu0
    %v6655 = vadd.f32 0.0, %v6654
    %v6656 = vpop.f32.mrf.mxu0
    %v6657 = vadd.f32 0.0, %v6656
    %6658 = vdwg.mxu0
    %v6659 = vadd.f32 %v6583, %v6655
    %v6660 = vadd.f32 %v6584, %v6657
    %v6661 = vrot.slane %v6027, 6
    %v6662 = vsel %vm6210, %v6661, 0
    %6664 = vmatprep.subr.mxu0 0.0
    %6665 = vmatpush1.msra.mxu0 0.0
    %6666 = vmatprep.subr.mxu0 0.0
    %6667 = vmatpush1.msra.mxu0 0.0
    %6668 = vmatprep.subr.mxu0 0.0
    %6669 = vmatpush1.msra.mxu0 0.0
    %6670 = vmatprep.subr.mxu0 0.0
    %6671 = vmatpush1.msra.mxu0 0.0
    %6672 = vmatprep.subr.mxu0 0.0
    %6673 = vmatpush1.msra.mxu0 0.0
    %6674 = vmatprep.subr.mxu0 0.0
    %6675 = vmatpush1.msra.mxu0 0.0
    %6676 = vmatprep.subr.mxu0 0.0
    %6677 = vmatpush1.msra.mxu0 0.0
    %6678 = vmatprep.subr.mxu0 0.0
    %6679 = vmatpush1.msra.mxu0 0.0
    %6680 = vmatprep.subr.mxu0 0.0
    %6681 = vmatpush1.msra.mxu0 0.0
    %6682 = vmatprep.subr.mxu0 0.0
    %6683 = vmatpush1.msra.mxu0 0.0
    %6684 = vmatprep.subr.mxu0 0.0
    %6685 = vmatpush1.msra.mxu0 0.0
    %6686 = vmatprep.subr.mxu0 0.0
    %6687 = vmatpush1.msra.mxu0 0.0
    %6688 = vmatprep.subr.mxu0 %v6084
    %6689 = vmatpush1.msra.mxu0 %v6083
    %6690 = vmatprep.subr.mxu0 %v6082
    %6691 = vmatpush1.msra.mxu0 %v6081
    %6692 = vmatprep.subr.mxu0 %v6080
    %6693 = vmatpush1.msra.mxu0 %v6079
    %6694 = vmatprep.subr.mxu0 %v6078
    %6695 = vmatpush1.msra.mxu0 %v6077
    %6696 = vmatprep.subr.mxu0 0.0
    %6697 = vmatpush2.msra.mxu0 0.0
    %6698 = vmatprep.subr.mxu0 0.0
    %6699 = vmatpush2.msra.mxu0 0.0
    %6700 = vmatprep.subr.mxu0 0.0
    %6701 = vmatpush2.msra.mxu0 0.0
    %6702 = vmatprep.subr.mxu0 0.0
    %6703 = vmatpush2.msra.mxu0 0.0
    %6704 = vmatprep.subr.mxu0 0.0
    %6705 = vmatpush2.msra.mxu0 0.0
    %6706 = vmatprep.subr.mxu0 0.0
    %6707 = vmatpush2.msra.mxu0 0.0
    %6708 = vmatprep.subr.mxu0 0.0
    %6709 = vmatpush2.msra.mxu0 0.0
    %6710 = vmatprep.subr.mxu0 0.0
    %6711 = vmatpush2.msra.mxu0 0.0
    %6712 = vmatprep.subr.mxu0 0.0
    %6713 = vmatpush2.msra.mxu0 0.0
    %6714 = vmatprep.subr.mxu0 0.0
    %6715 = vmatpush2.msra.mxu0 0.0
    %6716 = vmatprep.subr.mxu0 0.0
    %6717 = vmatpush2.msra.mxu0 0.0
    %6718 = vmatprep.subr.mxu0 0.0
    %6719 = vmatpush2.msra.mxu0 0.0
    %6720 = vmatprep.subr.mxu0 0.0
    %6721 = vmatpush2.msra.mxu0 0.0
    %6722 = vmatprep.subr.mxu0 0.0
    %6723 = vmatpush2.msra.mxu0 0.0
    %6724 = vmatprep.subr.mxu0 0.0
    %6725 = vmatpush2.msra.mxu0 0.0
    %6726 = vmatprep.subr.mxu0 0.0
    %6727 = vmatpush2.msra.mxu0 0.0
    %6728 = vmatprep.mubr.f32.mxu0 0.0
    %6729 = vmatmul.mubr.f32.gmra.mxu0 %v6662
    %v6730 = vpop.f32.mrf.mxu0
    %v6731 = vadd.f32 0.0, %v6730
    %v6732 = vpop.f32.mrf.mxu0
    %v6733 = vadd.f32 0.0, %v6732
    %6734 = vdwg.mxu0
    %v6735 = vadd.f32 %v6659, %v6731
    %v6736 = vadd.f32 %v6660, %v6733
    %v6737 = vrot.slane %v6027, 7
    %v6738 = vsel %vm6210, %v6737, 0
    %6740 = vmatprep.subr.mxu0 0.0
    %6741 = vmatpush1.msra.mxu0 0.0
    %6742 = vmatprep.subr.mxu0 0.0
    %6743 = vmatpush1.msra.mxu0 0.0
    %6744 = vmatprep.subr.mxu0 0.0
    %6745 = vmatpush1.msra.mxu0 0.0
    %6746 = vmatprep.subr.mxu0 0.0
    %6747 = vmatpush1.msra.mxu0 0.0
    %6748 = vmatprep.subr.mxu0 0.0
    %6749 = vmatpush1.msra.mxu0 0.0
    %6750 = vmatprep.subr.mxu0 0.0
    %6751 = vmatpush1.msra.mxu0 0.0
    %6752 = vmatprep.subr.mxu0 0.0
    %6753 = vmatpush1.msra.mxu0 0.0
    %6754 = vmatprep.subr.mxu0 0.0
    %6755 = vmatpush1.msra.mxu0 0.0
    %6756 = vmatprep.subr.mxu0 0.0
    %6757 = vmatpush1.msra.mxu0 0.0
    %6758 = vmatprep.subr.mxu0 0.0
    %6759 = vmatpush1.msra.mxu0 0.0
    %6760 = vmatprep.subr.mxu0 0.0
    %6761 = vmatpush1.msra.mxu0 0.0
    %6762 = vmatprep.subr.mxu0 0.0
    %6763 = vmatpush1.msra.mxu0 0.0
    %6764 = vmatprep.subr.mxu0 %v6092
    %6765 = vmatpush1.msra.mxu0 %v6091
    %6766 = vmatprep.subr.mxu0 %v6090
    %6767 = vmatpush1.msra.mxu0 %v6089
    %6768 = vmatprep.subr.mxu0 %v6088
    %6769 = vmatpush1.msra.mxu0 %v6087
    %6770 = vmatprep.subr.mxu0 %v6086
    %6771 = vmatpush1.msra.mxu0 %v6085
    %6772 = vmatprep.subr.mxu0 0.0
    %6773 = vmatpush2.msra.mxu0 0.0
    %6774 = vmatprep.subr.mxu0 0.0
    %6775 = vmatpush2.msra.mxu0 0.0
    %6776 = vmatprep.subr.mxu0 0.0
    %6777 = vmatpush2.msra.mxu0 0.0
    %6778 = vmatprep.subr.mxu0 0.0
    %6779 = vmatpush2.msra.mxu0 0.0
    %6780 = vmatprep.subr.mxu0 0.0
    %6781 = vmatpush2.msra.mxu0 0.0
    %6782 = vmatprep.subr.mxu0 0.0
    %6783 = vmatpush2.msra.mxu0 0.0
    %6784 = vmatprep.subr.mxu0 0.0
    %6785 = vmatpush2.msra.mxu0 0.0
    %6786 = vmatprep.subr.mxu0 0.0
    %6787 = vmatpush2.msra.mxu0 0.0
    %6788 = vmatprep.subr.mxu0 0.0
    %6789 = vmatpush2.msra.mxu0 0.0
    %6790 = vmatprep.subr.mxu0 0.0
    %6791 = vmatpush2.msra.mxu0 0.0
    %6792 = vmatprep.subr.mxu0 0.0
    %6793 = vmatpush2.msra.mxu0 0.0
    %6794 = vmatprep.subr.mxu0 0.0
    %6795 = vmatpush2.msra.mxu0 0.0
    %6796 = vmatprep.subr.mxu0 0.0
    %6797 = vmatpush2.msra.mxu0 0.0
    %6798 = vmatprep.subr.mxu0 0.0
    %6799 = vmatpush2.msra.mxu0 0.0
    %6800 = vmatprep.subr.mxu0 0.0
    %6801 = vmatpush2.msra.mxu0 0.0
    %6802 = vmatprep.subr.mxu0 0.0
    %6803 = vmatpush2.msra.mxu0 0.0
    %6804 = vmatprep.mubr.f32.mxu0 0.0
    %6805 = vmatmul.mubr.f32.gmra.mxu0 %v6738
    %v6806 = vpop.f32.mrf.mxu0
    %v6807 = vadd.f32 0.0, %v6806
    %v6808 = vpop.f32.mrf.mxu0
    %v6809 = vadd.f32 0.0, %v6808
    %6810 = vdwg.mxu0
    %v6811 = vadd.f32 %v6735, %v6807
    %v6812 = vadd.f32 %v6736, %v6809
    %v6814 = vsel %vm6210, %v6028, 0
    %6816 = vmatprep.subr.mxu0 0.0
    %6817 = vmatpush1.msra.mxu0 0.0
    %6818 = vmatprep.subr.mxu0 0.0
    %6819 = vmatpush1.msra.mxu0 0.0
    %6820 = vmatprep.subr.mxu0 0.0
    %6821 = vmatpush1.msra.mxu0 0.0
    %6822 = vmatprep.subr.mxu0 0.0
    %6823 = vmatpush1.msra.mxu0 0.0
    %6824 = vmatprep.subr.mxu0 0.0
    %6825 = vmatpush1.msra.mxu0 0.0
    %6826 = vmatprep.subr.mxu0 0.0
    %6827 = vmatpush1.msra.mxu0 0.0
    %6828 = vmatprep.subr.mxu0 0.0
    %6829 = vmatpush1.msra.mxu0 0.0
    %6830 = vmatprep.subr.mxu0 0.0
    %6831 = vmatpush1.msra.mxu0 0.0
    %6832 = vmatprep.subr.mxu0 0.0
    %6833 = vmatpush1.msra.mxu0 0.0
    %6834 = vmatprep.subr.mxu0 0.0
    %6835 = vmatpush1.msra.mxu0 0.0
    %6836 = vmatprep.subr.mxu0 0.0
    %6837 = vmatpush1.msra.mxu0 0.0
    %6838 = vmatprep.subr.mxu0 0.0
    %6839 = vmatpush1.msra.mxu0 0.0
    %6840 = vmatprep.subr.mxu0 %v6100
    %6841 = vmatpush1.msra.mxu0 %v6099
    %6842 = vmatprep.subr.mxu0 %v6098
    %6843 = vmatpush1.msra.mxu0 %v6097
    %6844 = vmatprep.subr.mxu0 %v6096
    %6845 = vmatpush1.msra.mxu0 %v6095
    %6846 = vmatprep.subr.mxu0 %v6094
    %6847 = vmatpush1.msra.mxu0 %v6093
    %6848 = vmatprep.subr.mxu0 0.0
    %6849 = vmatpush2.msra.mxu0 0.0
    %6850 = vmatprep.subr.mxu0 0.0
    %6851 = vmatpush2.msra.mxu0 0.0
    %6852 = vmatprep.subr.mxu0 0.0
    %6853 = vmatpush2.msra.mxu0 0.0
    %6854 = vmatprep.subr.mxu0 0.0
    %6855 = vmatpush2.msra.mxu0 0.0
    %6856 = vmatprep.subr.mxu0 0.0
    %6857 = vmatpush2.msra.mxu0 0.0
    %6858 = vmatprep.subr.mxu0 0.0
    %6859 = vmatpush2.msra.mxu0 0.0
    %6860 = vmatprep.subr.mxu0 0.0
    %6861 = vmatpush2.msra.mxu0 0.0
    %6862 = vmatprep.subr.mxu0 0.0
    %6863 = vmatpush2.msra.mxu0 0.0
    %6864 = vmatprep.subr.mxu0 0.0
    %6865 = vmatpush2.msra.mxu0 0.0
    %6866 = vmatprep.subr.mxu0 0.0
    %6867 = vmatpush2.msra.mxu0 0.0
    %6868 = vmatprep.subr.mxu0 0.0
    %6869 = vmatpush2.msra.mxu0 0.0
    %6870 = vmatprep.subr.mxu0 0.0
    %6871 = vmatpush2.msra.mxu0 0.0
    %6872 = vmatprep.subr.mxu0 0.0
    %6873 = vmatpush2.msra.mxu0 0.0
    %6874 = vmatprep.subr.mxu0 0.0
    %6875 = vmatpush2.msra.mxu0 0.0
    %6876 = vmatprep.subr.mxu0 0.0
    %6877 = vmatpush2.msra.mxu0 0.0
    %6878 = vmatprep.subr.mxu0 0.0
    %6879 = vmatpush2.msra.mxu0 0.0
    %6880 = vmatprep.mubr.f32.mxu0 0.0
    %6881 = vmatmul.mubr.f32.gmra.mxu0 %v6814
    %v6882 = vpop.f32.mrf.mxu0
    %v6883 = vadd.f32 0.0, %v6882
    %v6884 = vpop.f32.mrf.mxu0
    %v6885 = vadd.f32 0.0, %v6884
    %6886 = vdwg.mxu0
    %v6887 = vadd.f32 %v6811, %v6883
    %v6888 = vadd.f32 %v6812, %v6885
    %v6889 = vrot.slane %v6028, 1
    %v6890 = vsel %vm6210, %v6889, 0
    %6892 = vmatprep.subr.mxu0 0.0
    %6893 = vmatpush1.msra.mxu0 0.0
    %6894 = vmatprep.subr.mxu0 0.0
    %6895 = vmatpush1.msra.mxu0 0.0
    %6896 = vmatprep.subr.mxu0 0.0
    %6897 = vmatpush1.msra.mxu0 0.0
    %6898 = vmatprep.subr.mxu0 0.0
    %6899 = vmatpush1.msra.mxu0 0.0
    %6900 = vmatprep.subr.mxu0 0.0
    %6901 = vmatpush1.msra.mxu0 0.0
    %6902 = vmatprep.subr.mxu0 0.0
    %6903 = vmatpush1.msra.mxu0 0.0
    %6904 = vmatprep.subr.mxu0 0.0
    %6905 = vmatpush1.msra.mxu0 0.0
    %6906 = vmatprep.subr.mxu0 0.0
    %6907 = vmatpush1.msra.mxu0 0.0
    %6908 = vmatprep.subr.mxu0 0.0
    %6909 = vmatpush1.msra.mxu0 0.0
    %6910 = vmatprep.subr.mxu0 0.0
    %6911 = vmatpush1.msra.mxu0 0.0
    %6912 = vmatprep.subr.mxu0 0.0
    %6913 = vmatpush1.msra.mxu0 0.0
    %6914 = vmatprep.subr.mxu0 0.0
    %6915 = vmatpush1.msra.mxu0 0.0
    %6916 = vmatprep.subr.mxu0 %v6108
    %6917 = vmatpush1.msra.mxu0 %v6107
    %6918 = vmatprep.subr.mxu0 %v6106
    %6919 = vmatpush1.msra.mxu0 %v6105
    %6920 = vmatprep.subr.mxu0 %v6104
    %6921 = vmatpush1.msra.mxu0 %v6103
    %6922 = vmatprep.subr.mxu0 %v6102
    %6923 = vmatpush1.msra.mxu0 %v6101
    %6924 = vmatprep.subr.mxu0 0.0
    %6925 = vmatpush2.msra.mxu0 0.0
    %6926 = vmatprep.subr.mxu0 0.0
    %6927 = vmatpush2.msra.mxu0 0.0
    %6928 = vmatprep.subr.mxu0 0.0
    %6929 = vmatpush2.msra.mxu0 0.0
    %6930 = vmatprep.subr.mxu0 0.0
    %6931 = vmatpush2.msra.mxu0 0.0
    %6932 = vmatprep.subr.mxu0 0.0
    %6933 = vmatpush2.msra.mxu0 0.0
    %6934 = vmatprep.subr.mxu0 0.0
    %6935 = vmatpush2.msra.mxu0 0.0
    %6936 = vmatprep.subr.mxu0 0.0
    %6937 = vmatpush2.msra.mxu0 0.0
    %6938 = vmatprep.subr.mxu0 0.0
    %6939 = vmatpush2.msra.mxu0 0.0
    %6940 = vmatprep.subr.mxu0 0.0
    %6941 = vmatpush2.msra.mxu0 0.0
    %6942 = vmatprep.subr.mxu0 0.0
    %6943 = vmatpush2.msra.mxu0 0.0
    %6944 = vmatprep.subr.mxu0 0.0
    %6945 = vmatpush2.msra.mxu0 0.0
    %6946 = vmatprep.subr.mxu0 0.0
    %6947 = vmatpush2.msra.mxu0 0.0
    %6948 = vmatprep.subr.mxu0 0.0
    %6949 = vmatpush2.msra.mxu0 0.0
    %6950 = vmatprep.subr.mxu0 0.0
    %6951 = vmatpush2.msra.mxu0 0.0
    %6952 = vmatprep.subr.mxu0 0.0
    %6953 = vmatpush2.msra.mxu0 0.0
    %6954 = vmatprep.subr.mxu0 0.0
    %6955 = vmatpush2.msra.mxu0 0.0
    %6956 = vmatprep.mubr.f32.mxu0 0.0
    %6957 = vmatmul.mubr.f32.gmra.mxu0 %v6890
    %v6958 = vpop.f32.mrf.mxu0
    %v6959 = vadd.f32 0.0, %v6958
    %v6960 = vpop.f32.mrf.mxu0
    %v6961 = vadd.f32 0.0, %v6960
    %6962 = vdwg.mxu0
    %v6963 = vadd.f32 %v6887, %v6959
    %v6964 = vadd.f32 %v6888, %v6961
    %v6965 = vrot.slane %v6028, 2
    %v6966 = vsel %vm6210, %v6965, 0
    %6968 = vmatprep.subr.mxu0 0.0
    %6969 = vmatpush1.msra.mxu0 0.0
    %6970 = vmatprep.subr.mxu0 0.0
    %6971 = vmatpush1.msra.mxu0 0.0
    %6972 = vmatprep.subr.mxu0 0.0
    %6973 = vmatpush1.msra.mxu0 0.0
    %6974 = vmatprep.subr.mxu0 0.0
    %6975 = vmatpush1.msra.mxu0 0.0
    %6976 = vmatprep.subr.mxu0 0.0
    %6977 = vmatpush1.msra.mxu0 0.0
    %6978 = vmatprep.subr.mxu0 0.0
    %6979 = vmatpush1.msra.mxu0 0.0
    %6980 = vmatprep.subr.mxu0 0.0
    %6981 = vmatpush1.msra.mxu0 0.0
    %6982 = vmatprep.subr.mxu0 0.0
    %6983 = vmatpush1.msra.mxu0 0.0
    %6984 = vmatprep.subr.mxu0 0.0
    %6985 = vmatpush1.msra.mxu0 0.0
    %6986 = vmatprep.subr.mxu0 0.0
    %6987 = vmatpush1.msra.mxu0 0.0
    %6988 = vmatprep.subr.mxu0 0.0
    %6989 = vmatpush1.msra.mxu0 0.0
    %6990 = vmatprep.subr.mxu0 0.0
    %6991 = vmatpush1.msra.mxu0 0.0
    %6992 = vmatprep.subr.mxu0 %v6116
    %6993 = vmatpush1.msra.mxu0 %v6115
    %6994 = vmatprep.subr.mxu0 %v6114
    %6995 = vmatpush1.msra.mxu0 %v6113
    %6996 = vmatprep.subr.mxu0 %v6112
    %6997 = vmatpush1.msra.mxu0 %v6111
    %6998 = vmatprep.subr.mxu0 %v6110
    %6999 = vmatpush1.msra.mxu0 %v6109
    %7000 = vmatprep.subr.mxu0 0.0
    %7001 = vmatpush2.msra.mxu0 0.0
    %7002 = vmatprep.subr.mxu0 0.0
    %7003 = vmatpush2.msra.mxu0 0.0
    %7004 = vmatprep.subr.mxu0 0.0
    %7005 = vmatpush2.msra.mxu0 0.0
    %7006 = vmatprep.subr.mxu0 0.0
    %7007 = vmatpush2.msra.mxu0 0.0
    %7008 = vmatprep.subr.mxu0 0.0
    %7009 = vmatpush2.msra.mxu0 0.0
    %7010 = vmatprep.subr.mxu0 0.0
    %7011 = vmatpush2.msra.mxu0 0.0
    %7012 = vmatprep.subr.mxu0 0.0
    %7013 = vmatpush2.msra.mxu0 0.0
    %7014 = vmatprep.subr.mxu0 0.0
    %7015 = vmatpush2.msra.mxu0 0.0
    %7016 = vmatprep.subr.mxu0 0.0
    %7017 = vmatpush2.msra.mxu0 0.0
    %7018 = vmatprep.subr.mxu0 0.0
    %7019 = vmatpush2.msra.mxu0 0.0
    %7020 = vmatprep.subr.mxu0 0.0
    %7021 = vmatpush2.msra.mxu0 0.0
    %7022 = vmatprep.subr.mxu0 0.0
    %7023 = vmatpush2.msra.mxu0 0.0
    %7024 = vmatprep.subr.mxu0 0.0
    %7025 = vmatpush2.msra.mxu0 0.0
    %7026 = vmatprep.subr.mxu0 0.0
    %7027 = vmatpush2.msra.mxu0 0.0
    %7028 = vmatprep.subr.mxu0 0.0
    %7029 = vmatpush2.msra.mxu0 0.0
    %7030 = vmatprep.subr.mxu0 0.0
    %7031 = vmatpush2.msra.mxu0 0.0
    %7032 = vmatprep.mubr.f32.mxu0 0.0
    %7033 = vmatmul.mubr.f32.gmra.mxu0 %v6966
    %v7034 = vpop.f32.mrf.mxu0
    %v7035 = vadd.f32 0.0, %v7034
    %v7036 = vpop.f32.mrf.mxu0
    %v7037 = vadd.f32 0.0, %v7036
    %7038 = vdwg.mxu0
    %v7039 = vadd.f32 %v6963, %v7035
    %v7040 = vadd.f32 %v6964, %v7037
    %v7041 = vrot.slane %v6028, 3
    %v7042 = vsel %vm6210, %v7041, 0
    %7044 = vmatprep.subr.mxu0 0.0
    %7045 = vmatpush1.msra.mxu0 0.0
    %7046 = vmatprep.subr.mxu0 0.0
    %7047 = vmatpush1.msra.mxu0 0.0
    %7048 = vmatprep.subr.mxu0 0.0
    %7049 = vmatpush1.msra.mxu0 0.0
    %7050 = vmatprep.subr.mxu0 0.0
    %7051 = vmatpush1.msra.mxu0 0.0
    %7052 = vmatprep.subr.mxu0 0.0
    %7053 = vmatpush1.msra.mxu0 0.0
    %7054 = vmatprep.subr.mxu0 0.0
    %7055 = vmatpush1.msra.mxu0 0.0
    %7056 = vmatprep.subr.mxu0 0.0
    %7057 = vmatpush1.msra.mxu0 0.0
    %7058 = vmatprep.subr.mxu0 0.0
    %7059 = vmatpush1.msra.mxu0 0.0
    %7060 = vmatprep.subr.mxu0 0.0
    %7061 = vmatpush1.msra.mxu0 0.0
    %7062 = vmatprep.subr.mxu0 0.0
    %7063 = vmatpush1.msra.mxu0 0.0
    %7064 = vmatprep.subr.mxu0 0.0
    %7065 = vmatpush1.msra.mxu0 0.0
    %7066 = vmatprep.subr.mxu0 0.0
    %7067 = vmatpush1.msra.mxu0 0.0
    %7068 = vmatprep.subr.mxu0 %v6124
    %7069 = vmatpush1.msra.mxu0 %v6123
    %7070 = vmatprep.subr.mxu0 %v6122
    %7071 = vmatpush1.msra.mxu0 %v6121
    %7072 = vmatprep.subr.mxu0 %v6120
    %7073 = vmatpush1.msra.mxu0 %v6119
    %7074 = vmatprep.subr.mxu0 %v6118
    %7075 = vmatpush1.msra.mxu0 %v6117
    %7076 = vmatprep.subr.mxu0 0.0
    %7077 = vmatpush2.msra.mxu0 0.0
    %7078 = vmatprep.subr.mxu0 0.0
    %7079 = vmatpush2.msra.mxu0 0.0
    %7080 = vmatprep.subr.mxu0 0.0
    %7081 = vmatpush2.msra.mxu0 0.0
    %7082 = vmatprep.subr.mxu0 0.0
    %7083 = vmatpush2.msra.mxu0 0.0
    %7084 = vmatprep.subr.mxu0 0.0
    %7085 = vmatpush2.msra.mxu0 0.0
    %7086 = vmatprep.subr.mxu0 0.0
    %7087 = vmatpush2.msra.mxu0 0.0
    %7088 = vmatprep.subr.mxu0 0.0
    %7089 = vmatpush2.msra.mxu0 0.0
    %7090 = vmatprep.subr.mxu0 0.0
    %7091 = vmatpush2.msra.mxu0 0.0
    %7092 = vmatprep.subr.mxu0 0.0
    %7093 = vmatpush2.msra.mxu0 0.0
    %7094 = vmatprep.subr.mxu0 0.0
    %7095 = vmatpush2.msra.mxu0 0.0
    %7096 = vmatprep.subr.mxu0 0.0
    %7097 = vmatpush2.msra.mxu0 0.0
    %7098 = vmatprep.subr.mxu0 0.0
    %7099 = vmatpush2.msra.mxu0 0.0
    %7100 = vmatprep.subr.mxu0 0.0
    %7101 = vmatpush2.msra.mxu0 0.0
    %7102 = vmatprep.subr.mxu0 0.0
    %7103 = vmatpush2.msra.mxu0 0.0
    %7104 = vmatprep.subr.mxu0 0.0
    %7105 = vmatpush2.msra.mxu0 0.0
    %7106 = vmatprep.subr.mxu0 0.0
    %7107 = vmatpush2.msra.mxu0 0.0
    %7108 = vmatprep.mubr.f32.mxu0 0.0
    %7109 = vmatmul.mubr.f32.gmra.mxu0 %v7042
    %v7110 = vpop.f32.mrf.mxu0
    %v7111 = vadd.f32 0.0, %v7110
    %v7112 = vpop.f32.mrf.mxu0
    %v7113 = vadd.f32 0.0, %v7112
    %7114 = vdwg.mxu0
    %v7115 = vadd.f32 %v7039, %v7111
    %v7116 = vadd.f32 %v7040, %v7113
    %v7117 = vrot.slane %v6028, 4
    %v7118 = vsel %vm6210, %v7117, 0
    %7120 = vmatprep.subr.mxu0 0.0
    %7121 = vmatpush1.msra.mxu0 0.0
    %7122 = vmatprep.subr.mxu0 0.0
    %7123 = vmatpush1.msra.mxu0 0.0
    %7124 = vmatprep.subr.mxu0 0.0
    %7125 = vmatpush1.msra.mxu0 0.0
    %7126 = vmatprep.subr.mxu0 0.0
    %7127 = vmatpush1.msra.mxu0 0.0
    %7128 = vmatprep.subr.mxu0 0.0
    %7129 = vmatpush1.msra.mxu0 0.0
    %7130 = vmatprep.subr.mxu0 0.0
    %7131 = vmatpush1.msra.mxu0 0.0
    %7132 = vmatprep.subr.mxu0 0.0
    %7133 = vmatpush1.msra.mxu0 0.0
    %7134 = vmatprep.subr.mxu0 0.0
    %7135 = vmatpush1.msra.mxu0 0.0
    %7136 = vmatprep.subr.mxu0 0.0
    %7137 = vmatpush1.msra.mxu0 0.0
    %7138 = vmatprep.subr.mxu0 0.0
    %7139 = vmatpush1.msra.mxu0 0.0
    %7140 = vmatprep.subr.mxu0 0.0
    %7141 = vmatpush1.msra.mxu0 0.0
    %7142 = vmatprep.subr.mxu0 0.0
    %7143 = vmatpush1.msra.mxu0 0.0
    %7144 = vmatprep.subr.mxu0 %v6132
    %7145 = vmatpush1.msra.mxu0 %v6131
    %7146 = vmatprep.subr.mxu0 %v6130
    %7147 = vmatpush1.msra.mxu0 %v6129
    %7148 = vmatprep.subr.mxu0 %v6128
    %7149 = vmatpush1.msra.mxu0 %v6127
    %7150 = vmatprep.subr.mxu0 %v6126
    %7151 = vmatpush1.msra.mxu0 %v6125
    %7152 = vmatprep.subr.mxu0 0.0
    %7153 = vmatpush2.msra.mxu0 0.0
    %7154 = vmatprep.subr.mxu0 0.0
    %7155 = vmatpush2.msra.mxu0 0.0
    %7156 = vmatprep.subr.mxu0 0.0
    %7157 = vmatpush2.msra.mxu0 0.0
    %7158 = vmatprep.subr.mxu0 0.0
    %7159 = vmatpush2.msra.mxu0 0.0
    %7160 = vmatprep.subr.mxu0 0.0
    %7161 = vmatpush2.msra.mxu0 0.0
    %7162 = vmatprep.subr.mxu0 0.0
    %7163 = vmatpush2.msra.mxu0 0.0
    %7164 = vmatprep.subr.mxu0 0.0
    %7165 = vmatpush2.msra.mxu0 0.0
    %7166 = vmatprep.subr.mxu0 0.0
    %7167 = vmatpush2.msra.mxu0 0.0
    %7168 = vmatprep.subr.mxu0 0.0
    %7169 = vmatpush2.msra.mxu0 0.0
    %7170 = vmatprep.subr.mxu0 0.0
    %7171 = vmatpush2.msra.mxu0 0.0
    %7172 = vmatprep.subr.mxu0 0.0
    %7173 = vmatpush2.msra.mxu0 0.0
    %7174 = vmatprep.subr.mxu0 0.0
    %7175 = vmatpush2.msra.mxu0 0.0
    %7176 = vmatprep.subr.mxu0 0.0
    %7177 = vmatpush2.msra.mxu0 0.0
    %7178 = vmatprep.subr.mxu0 0.0
    %7179 = vmatpush2.msra.mxu0 0.0
    %7180 = vmatprep.subr.mxu0 0.0
    %7181 = vmatpush2.msra.mxu0 0.0
    %7182 = vmatprep.subr.mxu0 0.0
    %7183 = vmatpush2.msra.mxu0 0.0
    %7184 = vmatprep.mubr.f32.mxu0 0.0
    %7185 = vmatmul.mubr.f32.gmra.mxu0 %v7118
    %v7186 = vpop.f32.mrf.mxu0
    %v7187 = vadd.f32 0.0, %v7186
    %v7188 = vpop.f32.mrf.mxu0
    %v7189 = vadd.f32 0.0, %v7188
    %7190 = vdwg.mxu0
    %v7191 = vadd.f32 %v7115, %v7187
    %v7192 = vadd.f32 %v7116, %v7189
    %v7193 = vrot.slane %v6028, 5
    %v7194 = vsel %vm6210, %v7193, 0
    %7196 = vmatprep.subr.mxu0 0.0
    %7197 = vmatpush1.msra.mxu0 0.0
    %7198 = vmatprep.subr.mxu0 0.0
    %7199 = vmatpush1.msra.mxu0 0.0
    %7200 = vmatprep.subr.mxu0 0.0
    %7201 = vmatpush1.msra.mxu0 0.0
    %7202 = vmatprep.subr.mxu0 0.0
    %7203 = vmatpush1.msra.mxu0 0.0
    %7204 = vmatprep.subr.mxu0 0.0
    %7205 = vmatpush1.msra.mxu0 0.0
    %7206 = vmatprep.subr.mxu0 0.0
    %7207 = vmatpush1.msra.mxu0 0.0
    %7208 = vmatprep.subr.mxu0 0.0
    %7209 = vmatpush1.msra.mxu0 0.0
    %7210 = vmatprep.subr.mxu0 0.0
    %7211 = vmatpush1.msra.mxu0 0.0
    %7212 = vmatprep.subr.mxu0 0.0
    %7213 = vmatpush1.msra.mxu0 0.0
    %7214 = vmatprep.subr.mxu0 0.0
    %7215 = vmatpush1.msra.mxu0 0.0
    %7216 = vmatprep.subr.mxu0 0.0
    %7217 = vmatpush1.msra.mxu0 0.0
    %7218 = vmatprep.subr.mxu0 0.0
    %7219 = vmatpush1.msra.mxu0 0.0
    %7220 = vmatprep.subr.mxu0 %v6140
    %7221 = vmatpush1.msra.mxu0 %v6139
    %7222 = vmatprep.subr.mxu0 %v6138
    %7223 = vmatpush1.msra.mxu0 %v6137
    %7224 = vmatprep.subr.mxu0 %v6136
    %7225 = vmatpush1.msra.mxu0 %v6135
    %7226 = vmatprep.subr.mxu0 %v6134
    %7227 = vmatpush1.msra.mxu0 %v6133
    %7228 = vmatprep.subr.mxu0 0.0
    %7229 = vmatpush2.msra.mxu0 0.0
    %7230 = vmatprep.subr.mxu0 0.0
    %7231 = vmatpush2.msra.mxu0 0.0
    %7232 = vmatprep.subr.mxu0 0.0
    %7233 = vmatpush2.msra.mxu0 0.0
    %7234 = vmatprep.subr.mxu0 0.0
    %7235 = vmatpush2.msra.mxu0 0.0
    %7236 = vmatprep.subr.mxu0 0.0
    %7237 = vmatpush2.msra.mxu0 0.0
    %7238 = vmatprep.subr.mxu0 0.0
    %7239 = vmatpush2.msra.mxu0 0.0
    %7240 = vmatprep.subr.mxu0 0.0
    %7241 = vmatpush2.msra.mxu0 0.0
    %7242 = vmatprep.subr.mxu0 0.0
    %7243 = vmatpush2.msra.mxu0 0.0
    %7244 = vmatprep.subr.mxu0 0.0
    %7245 = vmatpush2.msra.mxu0 0.0
    %7246 = vmatprep.subr.mxu0 0.0
    %7247 = vmatpush2.msra.mxu0 0.0
    %7248 = vmatprep.subr.mxu0 0.0
    %7249 = vmatpush2.msra.mxu0 0.0
    %7250 = vmatprep.subr.mxu0 0.0
    %7251 = vmatpush2.msra.mxu0 0.0
    %7252 = vmatprep.subr.mxu0 0.0
    %7253 = vmatpush2.msra.mxu0 0.0
    %7254 = vmatprep.subr.mxu0 0.0
    %7255 = vmatpush2.msra.mxu0 0.0
    %7256 = vmatprep.subr.mxu0 0.0
    %7257 = vmatpush2.msra.mxu0 0.0
    %7258 = vmatprep.subr.mxu0 0.0
    %7259 = vmatpush2.msra.mxu0 0.0
    %7260 = vmatprep.mubr.f32.mxu0 0.0
    %7261 = vmatmul.mubr.f32.gmra.mxu0 %v7194
    %v7262 = vpop.f32.mrf.mxu0
    %v7263 = vadd.f32 0.0, %v7262
    %v7264 = vpop.f32.mrf.mxu0
    %v7265 = vadd.f32 0.0, %v7264
    %7266 = vdwg.mxu0
    %v7267 = vadd.f32 %v7191, %v7263
    %v7268 = vadd.f32 %v7192, %v7265
    %v7269 = vrot.slane %v6028, 6
    %v7270 = vsel %vm6210, %v7269, 0
    %7272 = vmatprep.subr.mxu0 0.0
    %7273 = vmatpush1.msra.mxu0 0.0
    %7274 = vmatprep.subr.mxu0 0.0
    %7275 = vmatpush1.msra.mxu0 0.0
    %7276 = vmatprep.subr.mxu0 0.0
    %7277 = vmatpush1.msra.mxu0 0.0
    %7278 = vmatprep.subr.mxu0 0.0
    %7279 = vmatpush1.msra.mxu0 0.0
    %7280 = vmatprep.subr.mxu0 0.0
    %7281 = vmatpush1.msra.mxu0 0.0
    %7282 = vmatprep.subr.mxu0 0.0
    %7283 = vmatpush1.msra.mxu0 0.0
    %7284 = vmatprep.subr.mxu0 0.0
    %7285 = vmatpush1.msra.mxu0 0.0
    %7286 = vmatprep.subr.mxu0 0.0
    %7287 = vmatpush1.msra.mxu0 0.0
    %7288 = vmatprep.subr.mxu0 0.0
    %7289 = vmatpush1.msra.mxu0 0.0
    %7290 = vmatprep.subr.mxu0 0.0
    %7291 = vmatpush1.msra.mxu0 0.0
    %7292 = vmatprep.subr.mxu0 0.0
    %7293 = vmatpush1.msra.mxu0 0.0
    %7294 = vmatprep.subr.mxu0 0.0
    %7295 = vmatpush1.msra.mxu0 0.0
    %7296 = vmatprep.subr.mxu0 %v6148
    %7297 = vmatpush1.msra.mxu0 %v6147
    %7298 = vmatprep.subr.mxu0 %v6146
    %7299 = vmatpush1.msra.mxu0 %v6145
    %7300 = vmatprep.subr.mxu0 %v6144
    %7301 = vmatpush1.msra.mxu0 %v6143
    %7302 = vmatprep.subr.mxu0 %v6142
    %7303 = vmatpush1.msra.mxu0 %v6141
    %7304 = vmatprep.subr.mxu0 0.0
    %7305 = vmatpush2.msra.mxu0 0.0
    %7306 = vmatprep.subr.mxu0 0.0
    %7307 = vmatpush2.msra.mxu0 0.0
    %7308 = vmatprep.subr.mxu0 0.0
    %7309 = vmatpush2.msra.mxu0 0.0
    %7310 = vmatprep.subr.mxu0 0.0
    %7311 = vmatpush2.msra.mxu0 0.0
    %7312 = vmatprep.subr.mxu0 0.0
    %7313 = vmatpush2.msra.mxu0 0.0
    %7314 = vmatprep.subr.mxu0 0.0
    %7315 = vmatpush2.msra.mxu0 0.0
    %7316 = vmatprep.subr.mxu0 0.0
    %7317 = vmatpush2.msra.mxu0 0.0
    %7318 = vmatprep.subr.mxu0 0.0
    %7319 = vmatpush2.msra.mxu0 0.0
    %7320 = vmatprep.subr.mxu0 0.0
    %7321 = vmatpush2.msra.mxu0 0.0
    %7322 = vmatprep.subr.mxu0 0.0
    %7323 = vmatpush2.msra.mxu0 0.0
    %7324 = vmatprep.subr.mxu0 0.0
    %7325 = vmatpush2.msra.mxu0 0.0
    %7326 = vmatprep.subr.mxu0 0.0
    %7327 = vmatpush2.msra.mxu0 0.0
    %7328 = vmatprep.subr.mxu0 0.0
    %7329 = vmatpush2.msra.mxu0 0.0
    %7330 = vmatprep.subr.mxu0 0.0
    %7331 = vmatpush2.msra.mxu0 0.0
    %7332 = vmatprep.subr.mxu0 0.0
    %7333 = vmatpush2.msra.mxu0 0.0
    %7334 = vmatprep.subr.mxu0 0.0
    %7335 = vmatpush2.msra.mxu0 0.0
    %7336 = vmatprep.mubr.f32.mxu0 0.0
    %7337 = vmatmul.mubr.f32.gmra.mxu0 %v7270
    %v7338 = vpop.f32.mrf.mxu0
    %v7339 = vadd.f32 0.0, %v7338
    %v7340 = vpop.f32.mrf.mxu0
    %v7341 = vadd.f32 0.0, %v7340
    %7342 = vdwg.mxu0
    %v7343 = vadd.f32 %v7267, %v7339
    %v7344 = vadd.f32 %v7268, %v7341
    %v7345 = vrot.slane %v6028, 7
    %v7346 = vsel %vm6210, %v7345, 0
    %7348 = vmatprep.subr.mxu0 0.0
    %7349 = vmatpush1.msra.mxu0 0.0
    %7350 = vmatprep.subr.mxu0 0.0
    %7351 = vmatpush1.msra.mxu0 0.0
    %7352 = vmatprep.subr.mxu0 0.0
    %7353 = vmatpush1.msra.mxu0 0.0
    %7354 = vmatprep.subr.mxu0 0.0
    %7355 = vmatpush1.msra.mxu0 0.0
    %7356 = vmatprep.subr.mxu0 0.0
    %7357 = vmatpush1.msra.mxu0 0.0
    %7358 = vmatprep.subr.mxu0 0.0
    %7359 = vmatpush1.msra.mxu0 0.0
    %7360 = vmatprep.subr.mxu0 0.0
    %7361 = vmatpush1.msra.mxu0 0.0
    %7362 = vmatprep.subr.mxu0 0.0
    %7363 = vmatpush1.msra.mxu0 0.0
    %7364 = vmatprep.subr.mxu0 0.0
    %7365 = vmatpush1.msra.mxu0 0.0
    %7366 = vmatprep.subr.mxu0 0.0
    %7367 = vmatpush1.msra.mxu0 0.0
    %7368 = vmatprep.subr.mxu0 0.0
    %7369 = vmatpush1.msra.mxu0 0.0
    %7370 = vmatprep.subr.mxu0 0.0
    %7371 = vmatpush1.msra.mxu0 0.0
    %7372 = vmatprep.subr.mxu0 %v6156
    %7373 = vmatpush1.msra.mxu0 %v6155
    %7374 = vmatprep.subr.mxu0 %v6154
    %7375 = vmatpush1.msra.mxu0 %v6153
    %7376 = vmatprep.subr.mxu0 %v6152
    %7377 = vmatpush1.msra.mxu0 %v6151
    %7378 = vmatprep.subr.mxu0 %v6150
    %7379 = vmatpush1.msra.mxu0 %v6149
    %7380 = vmatprep.subr.mxu0 0.0
    %7381 = vmatpush2.msra.mxu0 0.0
    %7382 = vmatprep.subr.mxu0 0.0
    %7383 = vmatpush2.msra.mxu0 0.0
    %7384 = vmatprep.subr.mxu0 0.0
    %7385 = vmatpush2.msra.mxu0 0.0
    %7386 = vmatprep.subr.mxu0 0.0
    %7387 = vmatpush2.msra.mxu0 0.0
    %7388 = vmatprep.subr.mxu0 0.0
    %7389 = vmatpush2.msra.mxu0 0.0
    %7390 = vmatprep.subr.mxu0 0.0
    %7391 = vmatpush2.msra.mxu0 0.0
    %7392 = vmatprep.subr.mxu0 0.0
    %7393 = vmatpush2.msra.mxu0 0.0
    %7394 = vmatprep.subr.mxu0 0.0
    %7395 = vmatpush2.msra.mxu0 0.0
    %7396 = vmatprep.subr.mxu0 0.0
    %7397 = vmatpush2.msra.mxu0 0.0
    %7398 = vmatprep.subr.mxu0 0.0
    %7399 = vmatpush2.msra.mxu0 0.0
    %7400 = vmatprep.subr.mxu0 0.0
    %7401 = vmatpush2.msra.mxu0 0.0
    %7402 = vmatprep.subr.mxu0 0.0
    %7403 = vmatpush2.msra.mxu0 0.0
    %7404 = vmatprep.subr.mxu0 0.0
    %7405 = vmatpush2.msra.mxu0 0.0
    %7406 = vmatprep.subr.mxu0 0.0
    %7407 = vmatpush2.msra.mxu0 0.0
    %7408 = vmatprep.subr.mxu0 0.0
    %7409 = vmatpush2.msra.mxu0 0.0
    %7410 = vmatprep.subr.mxu0 0.0
    %7411 = vmatpush2.msra.mxu0 0.0
    %7412 = vmatprep.mubr.f32.mxu0 0.0
    %7413 = vmatmul.mubr.f32.gmra.mxu0 %v7346
    %v7414 = vpop.f32.mrf.mxu0
    %v7415 = vadd.f32 0.0, %v7414
    %v7416 = vpop.f32.mrf.mxu0
    %v7417 = vadd.f32 0.0, %v7416
    %7418 = vdwg.mxu0
    %v7419 = vadd.f32 %v7343, %v7415
    %v7420 = vadd.f32 %v7344, %v7417
    %v7422 = vlaneseq
    %v7423 = vshrl.u32 %v7422, 7
    %v7424 = vsub.s32 0, %v7423
    %v7425 = vrot.slane %v6205, %v7424
    %v7426 = vlaneseq
    %v7427 = vshrl.u32 %v7426, 7
    %v7428 = vsub.s32 1, %v7427
    %v7429 = vrot.slane %v6205, %v7428
    %v7432 = vadd.f32 %v7419, %v7425
    %v7433 = vadd.f32 %v7420, %v7429
    %v7434 = vmax.f32 %v7432, 0.0
    %v7435 = vmax.f32 %v7433, 0.0
    %7436 = vmatprep.subr.mxu0 0.0
    %7437 = vmatpush1.msra.mxu0 %v6172
    %7438 = vmatprep.subr.mxu0 0.0
    %7439 = vmatpush1.msra.mxu0 %v6171
    %7440 = vmatprep.subr.mxu0 0.0
    %7441 = vmatpush1.msra.mxu0 %v6170
    %7442 = vmatprep.subr.mxu0 0.0
    %7443 = vmatpush1.msra.mxu0 %v6169
    %7444 = vmatprep.subr.mxu0 0.0
    %7445 = vmatpush1.msra.mxu0 %v6168
    %7446 = vmatprep.subr.mxu0 0.0
    %7447 = vmatpush1.msra.mxu0 %v6167
    %7448 = vmatprep.subr.mxu0 0.0
    %7449 = vmatpush1.msra.mxu0 %v6166
    %7450 = vmatprep.subr.mxu0 0.0
    %7451 = vmatpush1.msra.mxu0 %v6165
    %7452 = vmatprep.subr.mxu0 0.0
    %7453 = vmatpush1.msra.mxu0 %v6164
    %7454 = vmatprep.subr.mxu0 0.0
    %7455 = vmatpush1.msra.mxu0 %v6163
    %7456 = vmatprep.subr.mxu0 0.0
    %7457 = vmatpush1.msra.mxu0 %v6162
    %7458 = vmatprep.subr.mxu0 0.0
    %7459 = vmatpush1.msra.mxu0 %v6161
    %7460 = vmatprep.subr.mxu0 0.0
    %7461 = vmatpush1.msra.mxu0 %v6160
    %7462 = vmatprep.subr.mxu0 0.0
    %7463 = vmatpush1.msra.mxu0 %v6159
    %7464 = vmatprep.subr.mxu0 0.0
    %7465 = vmatpush1.msra.mxu0 %v6158
    %7466 = vmatprep.subr.mxu0 0.0
    %7467 = vmatpush1.msra.mxu0 %v6157
    %7468 = vmatprep.subr.mxu0 0.0
    %7469 = vmatpush2.msra.mxu0 %v6188
    %7470 = vmatprep.subr.mxu0 0.0
    %7471 = vmatpush2.msra.mxu0 %v6187
    %7472 = vmatprep.subr.mxu0 0.0
    %7473 = vmatpush2.msra.mxu0 %v6186
    %7474 = vmatprep.subr.mxu0 0.0
    %7475 = vmatpush2.msra.mxu0 %v6185
    %7476 = vmatprep.subr.mxu0 0.0
    %7477 = vmatpush2.msra.mxu0 %v6184
    %7478 = vmatprep.subr.mxu0 0.0
    %7479 = vmatpush2.msra.mxu0 %v6183
    %7480 = vmatprep.subr.mxu0 0.0
    %7481 = vmatpush2.msra.mxu0 %v6182
    %7482 = vmatprep.subr.mxu0 0.0
    %7483 = vmatpush2.msra.mxu0 %v6181
    %7484 = vmatprep.subr.mxu0 0.0
    %7485 = vmatpush2.msra.mxu0 %v6180
    %7486 = vmatprep.subr.mxu0 0.0
    %7487 = vmatpush2.msra.mxu0 %v6179
    %7488 = vmatprep.subr.mxu0 0.0
    %7489 = vmatpush2.msra.mxu0 %v6178
    %7490 = vmatprep.subr.mxu0 0.0
    %7491 = vmatpush2.msra.mxu0 %v6177
    %7492 = vmatprep.subr.mxu0 0.0
    %7493 = vmatpush2.msra.mxu0 %v6176
    %7494 = vmatprep.subr.mxu0 0.0
    %7495 = vmatpush2.msra.mxu0 %v6175
    %7496 = vmatprep.subr.mxu0 0.0
    %7497 = vmatpush2.msra.mxu0 %v6174
    %7498 = vmatprep.subr.mxu0 0.0
    %7499 = vmatpush2.msra.mxu0 %v6173
    %7500 = vmatprep.mubr.f32.mxu0 %v7435
    %7501 = vmatmul.mubr.f32.gmra.mxu0 %v7434
    %v7502 = vpop.f32.mrf.mxu0
    %v7503 = vadd.f32 %v6206, %v7502
    %v7504 = vpop.f32.mrf.mxu0
    %7505 = vdwg.mxu0
    %v7506 = vmax.f32 %v7503, 0.0
    %7507 = vmatprep.subr.mxu0 0.0
    %7508 = vmatpush1.msra.mxu0 %v6204
    %7509 = vmatprep.subr.mxu0 0.0
    %7510 = vmatpush1.msra.mxu0 %v6203
    %7511 = vmatprep.subr.mxu0 0.0
    %7512 = vmatpush1.msra.mxu0 %v6202
    %7513 = vmatprep.subr.mxu0 0.0
    %7514 = vmatpush1.msra.mxu0 %v6201
    %7515 = vmatprep.subr.mxu0 0.0
    %7516 = vmatpush1.msra.mxu0 %v6200
    %7517 = vmatprep.subr.mxu0 0.0
    %7518 = vmatpush1.msra.mxu0 %v6199
    %7519 = vmatprep.subr.mxu0 0.0
    %7520 = vmatpush1.msra.mxu0 %v6198
    %7521 = vmatprep.subr.mxu0 0.0
    %7522 = vmatpush1.msra.mxu0 %v6197
    %7523 = vmatprep.subr.mxu0 0.0
    %7524 = vmatpush1.msra.mxu0 %v6196
    %7525 = vmatprep.subr.mxu0 0.0
    %7526 = vmatpush1.msra.mxu0 %v6195
    %7527 = vmatprep.subr.mxu0 0.0
    %7528 = vmatpush1.msra.mxu0 %v6194
    %7529 = vmatprep.subr.mxu0 0.0
    %7530 = vmatpush1.msra.mxu0 %v6193
    %7531 = vmatprep.subr.mxu0 0.0
    %7532 = vmatpush1.msra.mxu0 %v6192
    %7533 = vmatprep.subr.mxu0 0.0
    %7534 = vmatpush1.msra.mxu0 %v6191
    %7535 = vmatprep.subr.mxu0 0.0
    %7536 = vmatpush1.msra.mxu0 %v6190
    %7537 = vmatprep.subr.mxu0 0.0
    %7538 = vmatpush1.msra.mxu0 %v6189
    %7539 = vmatprep.subr.mxu0 0.0
    %7540 = vmatpush2.msra.mxu0 0.0
    %7541 = vmatprep.subr.mxu0 0.0
    %7542 = vmatpush2.msra.mxu0 0.0
    %7543 = vmatprep.subr.mxu0 0.0
    %7544 = vmatpush2.msra.mxu0 0.0
    %7545 = vmatprep.subr.mxu0 0.0
    %7546 = vmatpush2.msra.mxu0 0.0
    %7547 = vmatprep.subr.mxu0 0.0
    %7548 = vmatpush2.msra.mxu0 0.0
    %7549 = vmatprep.subr.mxu0 0.0
    %7550 = vmatpush2.msra.mxu0 0.0
    %7551 = vmatprep.subr.mxu0 0.0
    %7552 = vmatpush2.msra.mxu0 0.0
    %7553 = vmatprep.subr.mxu0 0.0
    %7554 = vmatpush2.msra.mxu0 0.0
    %7555 = vmatprep.subr.mxu0 0.0
    %7556 = vmatpush2.msra.mxu0 0.0
    %7557 = vmatprep.subr.mxu0 0.0
    %7558 = vmatpush2.msra.mxu0 0.0
    %7559 = vmatprep.subr.mxu0 0.0
    %7560 = vmatpush2.msra.mxu0 0.0
    %7561 = vmatprep.subr.mxu0 0.0
    %7562 = vmatpush2.msra.mxu0 0.0
    %7563 = vmatprep.subr.mxu0 0.0
    %7564 = vmatpush2.msra.mxu0 0.0
    %7565 = vmatprep.subr.mxu0 0.0
    %7566 = vmatpush2.msra.mxu0 0.0
    %7567 = vmatprep.subr.mxu0 0.0
    %7568 = vmatpush2.msra.mxu0 0.0
    %7569 = vmatprep.subr.mxu0 0.0
    %7570 = vmatpush2.msra.mxu0 0.0
    %7571 = vmatprep.mubr.f32.mxu0 0.0
    %7572 = vmatmul.mubr.f32.gmra.mxu0 %v7506
    %v7573 = vpop.f32.mrf.mxu0
    %v7574 = vadd.f32 %v6207, %v7573
    %v7575 = vpop.f32.mrf.mxu0
    %7576 = vdwg.mxu0
    %7577 = vst [vmem:[#allocation2] sm:$0x1] %v7574
    %7578 = vrot.lane.b32.xlu0 %v6209, 96
    %v7579 = vpop.permute.xlu0 %7578
    %v7580 = vsel %vm6210, %v7579, 0
    %7582 = vmatprep.subr.mxu0 0.0
    %7583 = vmatpush1.msra.mxu0 0.0
    %7584 = vmatprep.subr.mxu0 0.0
    %7585 = vmatpush1.msra.mxu0 0.0
    %7586 = vmatprep.subr.mxu0 0.0
    %7587 = vmatpush1.msra.mxu0 0.0
    %7588 = vmatprep.subr.mxu0 0.0
    %7589 = vmatpush1.msra.mxu0 0.0
    %7590 = vmatprep.subr.mxu0 0.0
    %7591 = vmatpush1.msra.mxu0 0.0
    %7592 = vmatprep.subr.mxu0 0.0
    %7593 = vmatpush1.msra.mxu0 0.0
    %7594 = vmatprep.subr.mxu0 0.0
    %7595 = vmatpush1.msra.mxu0 0.0
    %7596 = vmatprep.subr.mxu0 0.0
    %7597 = vmatpush1.msra.mxu0 0.0
    %7598 = vmatprep.subr.mxu0 0.0
    %7599 = vmatpush1.msra.mxu0 0.0
    %7600 = vmatprep.subr.mxu0 0.0
    %7601 = vmatpush1.msra.mxu0 0.0
    %7602 = vmatprep.subr.mxu0 0.0
    %7603 = vmatpush1.msra.mxu0 0.0
    %7604 = vmatprep.subr.mxu0 0.0
    %7605 = vmatpush1.msra.mxu0 0.0
    %7606 = vmatprep.subr.mxu0 %v6044
    %7607 = vmatpush1.msra.mxu0 %v6043
    %7608 = vmatprep.subr.mxu0 %v6042
    %7609 = vmatpush1.msra.mxu0 %v6041
    %7610 = vmatprep.subr.mxu0 %v6040
    %7611 = vmatpush1.msra.mxu0 %v6039
    %7612 = vmatprep.subr.mxu0 %v6038
    %7613 = vmatpush1.msra.mxu0 %v6037
    %7614 = vmatprep.subr.mxu0 0.0
    %7615 = vmatpush2.msra.mxu0 0.0
    %7616 = vmatprep.subr.mxu0 0.0
    %7617 = vmatpush2.msra.mxu0 0.0
    %7618 = vmatprep.subr.mxu0 0.0
    %7619 = vmatpush2.msra.mxu0 0.0
    %7620 = vmatprep.subr.mxu0 0.0
    %7621 = vmatpush2.msra.mxu0 0.0
    %7622 = vmatprep.subr.mxu0 0.0
    %7623 = vmatpush2.msra.mxu0 0.0
    %7624 = vmatprep.subr.mxu0 0.0
    %7625 = vmatpush2.msra.mxu0 0.0
    %7626 = vmatprep.subr.mxu0 0.0
    %7627 = vmatpush2.msra.mxu0 0.0
    %7628 = vmatprep.subr.mxu0 0.0
    %7629 = vmatpush2.msra.mxu0 0.0
    %7630 = vmatprep.subr.mxu0 0.0
    %7631 = vmatpush2.msra.mxu0 0.0
    %7632 = vmatprep.subr.mxu0 0.0
    %7633 = vmatpush2.msra.mxu0 0.0
    %7634 = vmatprep.subr.mxu0 0.0
    %7635 = vmatpush2.msra.mxu0 0.0
    %7636 = vmatprep.subr.mxu0 0.0
    %7637 = vmatpush2.msra.mxu0 0.0
    %7638 = vmatprep.subr.mxu0 0.0
    %7639 = vmatpush2.msra.mxu0 0.0
    %7640 = vmatprep.subr.mxu0 0.0
    %7641 = vmatpush2.msra.mxu0 0.0
    %7642 = vmatprep.subr.mxu0 0.0
    %7643 = vmatpush2.msra.mxu0 0.0
    %7644 = vmatprep.subr.mxu0 0.0
    %7645 = vmatpush2.msra.mxu0 0.0
    %7646 = vmatprep.mubr.f32.mxu0 0.0
    %7647 = vmatmul.mubr.f32.gmra.mxu0 %v7580
    %v7648 = vpop.f32.mrf.mxu0
    %v7649 = vadd.f32 0.0, %v7648
    %v7650 = vpop.f32.mrf.mxu0
    %v7651 = vadd.f32 0.0, %v7650
    %7652 = vdwg.mxu0
    %7653 = vrot.lane.b32.xlu0 %v6027, 96
    %v7654 = vpop.permute.xlu0 %7653
    %v7655 = vsel %vm6210, %v7654, 0
    %7657 = vmatprep.subr.mxu0 0.0
    %7658 = vmatpush1.msra.mxu0 0.0
    %7659 = vmatprep.subr.mxu0 0.0
    %7660 = vmatpush1.msra.mxu0 0.0
    %7661 = vmatprep.subr.mxu0 0.0
    %7662 = vmatpush1.msra.mxu0 0.0
    %7663 = vmatprep.subr.mxu0 0.0
    %7664 = vmatpush1.msra.mxu0 0.0
    %7665 = vmatprep.subr.mxu0 0.0
    %7666 = vmatpush1.msra.mxu0 0.0
    %7667 = vmatprep.subr.mxu0 0.0
    %7668 = vmatpush1.msra.mxu0 0.0
    %7669 = vmatprep.subr.mxu0 0.0
    %7670 = vmatpush1.msra.mxu0 0.0
    %7671 = vmatprep.subr.mxu0 0.0
    %7672 = vmatpush1.msra.mxu0 0.0
    %7673 = vmatprep.subr.mxu0 0.0
    %7674 = vmatpush1.msra.mxu0 0.0
    %7675 = vmatprep.subr.mxu0 0.0
    %7676 = vmatpush1.msra.mxu0 0.0
    %7677 = vmatprep.subr.mxu0 0.0
    %7678 = vmatpush1.msra.mxu0 0.0
    %7679 = vmatprep.subr.mxu0 0.0
    %7680 = vmatpush1.msra.mxu0 0.0
    %7681 = vmatprep.subr.mxu0 %v6036
    %7682 = vmatpush1.msra.mxu0 %v6035
    %7683 = vmatprep.subr.mxu0 %v6034
    %7684 = vmatpush1.msra.mxu0 %v6033
    %7685 = vmatprep.subr.mxu0 %v6032
    %7686 = vmatpush1.msra.mxu0 %v6031
    %7687 = vmatprep.subr.mxu0 %v6030
    %7688 = vmatpush1.msra.mxu0 %v6029
    %7689 = vmatprep.subr.mxu0 0.0
    %7690 = vmatpush2.msra.mxu0 0.0
    %7691 = vmatprep.subr.mxu0 0.0
    %7692 = vmatpush2.msra.mxu0 0.0
    %7693 = vmatprep.subr.mxu0 0.0
    %7694 = vmatpush2.msra.mxu0 0.0
    %7695 = vmatprep.subr.mxu0 0.0
    %7696 = vmatpush2.msra.mxu0 0.0
    %7697 = vmatprep.subr.mxu0 0.0
    %7698 = vmatpush2.msra.mxu0 0.0
    %7699 = vmatprep.subr.mxu0 0.0
    %7700 = vmatpush2.msra.mxu0 0.0
    %7701 = vmatprep.subr.mxu0 0.0
    %7702 = vmatpush2.msra.mxu0 0.0
    %7703 = vmatprep.subr.mxu0 0.0
    %7704 = vmatpush2.msra.mxu0 0.0
    %7705 = vmatprep.subr.mxu0 0.0
    %7706 = vmatpush2.msra.mxu0 0.0
    %7707 = vmatprep.subr.mxu0 0.0
    %7708 = vmatpush2.msra.mxu0 0.0
    %7709 = vmatprep.subr.mxu0 0.0
    %7710 = vmatpush2.msra.mxu0 0.0
    %7711 = vmatprep.subr.mxu0 0.0
    %7712 = vmatpush2.msra.mxu0 0.0
    %7713 = vmatprep.subr.mxu0 0.0
    %7714 = vmatpush2.msra.mxu0 0.0
    %7715 = vmatprep.subr.mxu0 0.0
    %7716 = vmatpush2.msra.mxu0 0.0
    %7717 = vmatprep.subr.mxu0 0.0
    %7718 = vmatpush2.msra.mxu0 0.0
    %7719 = vmatprep.subr.mxu0 0.0
    %7720 = vmatpush2.msra.mxu0 0.0
    %7721 = vmatprep.mubr.f32.mxu0 0.0
    %7722 = vmatmul.mubr.f32.gmra.mxu0 %v7655
    %v7723 = vpop.f32.mrf.mxu0
    %v7724 = vadd.f32 %v7649, %v7723
    %v7725 = vpop.f32.mrf.mxu0
    %v7726 = vadd.f32 %v7651, %v7725
    %7727 = vdwg.mxu0
    %7728 = vrot.lane.b32.xlu0 %v6357, 96
    %v7729 = vpop.permute.xlu0 %7728
    %v7730 = vsel %vm6210, %v7729, 0
    %7732 = vmatprep.subr.mxu0 0.0
    %7733 = vmatpush1.msra.mxu0 0.0
    %7734 = vmatprep.subr.mxu0 0.0
    %7735 = vmatpush1.msra.mxu0 0.0
    %7736 = vmatprep.subr.mxu0 0.0
    %7737 = vmatpush1.msra.mxu0 0.0
    %7738 = vmatprep.subr.mxu0 0.0
    %7739 = vmatpush1.msra.mxu0 0.0
    %7740 = vmatprep.subr.mxu0 0.0
    %7741 = vmatpush1.msra.mxu0 0.0
    %7742 = vmatprep.subr.mxu0 0.0
    %7743 = vmatpush1.msra.mxu0 0.0
    %7744 = vmatprep.subr.mxu0 0.0
    %7745 = vmatpush1.msra.mxu0 0.0
    %7746 = vmatprep.subr.mxu0 0.0
    %7747 = vmatpush1.msra.mxu0 0.0
    %7748 = vmatprep.subr.mxu0 0.0
    %7749 = vmatpush1.msra.mxu0 0.0
    %7750 = vmatprep.subr.mxu0 0.0
    %7751 = vmatpush1.msra.mxu0 0.0
    %7752 = vmatprep.subr.mxu0 0.0
    %7753 = vmatpush1.msra.mxu0 0.0
    %7754 = vmatprep.subr.mxu0 0.0
    %7755 = vmatpush1.msra.mxu0 0.0
    %7756 = vmatprep.subr.mxu0 %v6052
    %7757 = vmatpush1.msra.mxu0 %v6051
    %7758 = vmatprep.subr.mxu0 %v6050
    %7759 = vmatpush1.msra.mxu0 %v6049
    %7760 = vmatprep.subr.mxu0 %v6048
    %7761 = vmatpush1.msra.mxu0 %v6047
    %7762 = vmatprep.subr.mxu0 %v6046
    %7763 = vmatpush1.msra.mxu0 %v6045
    %7764 = vmatprep.subr.mxu0 0.0
    %7765 = vmatpush2.msra.mxu0 0.0
    %7766 = vmatprep.subr.mxu0 0.0
    %7767 = vmatpush2.msra.mxu0 0.0
    %7768 = vmatprep.subr.mxu0 0.0
    %7769 = vmatpush2.msra.mxu0 0.0
    %7770 = vmatprep.subr.mxu0 0.0
    %7771 = vmatpush2.msra.mxu0 0.0
    %7772 = vmatprep.subr.mxu0 0.0
    %7773 = vmatpush2.msra.mxu0 0.0
    %7774 = vmatprep.subr.mxu0 0.0
    %7775 = vmatpush2.msra.mxu0 0.0
    %7776 = vmatprep.subr.mxu0 0.0
    %7777 = vmatpush2.msra.mxu0 0.0
    %7778 = vmatprep.subr.mxu0 0.0
    %7779 = vmatpush2.msra.mxu0 0.0
    %7780 = vmatprep.subr.mxu0 0.0
    %7781 = vmatpush2.msra.mxu0 0.0
    %7782 = vmatprep.subr.mxu0 0.0
    %7783 = vmatpush2.msra.mxu0 0.0
    %7784 = vmatprep.subr.mxu0 0.0
    %7785 = vmatpush2.msra.mxu0 0.0
    %7786 = vmatprep.subr.mxu0 0.0
    %7787 = vmatpush2.msra.mxu0 0.0
    %7788 = vmatprep.subr.mxu0 0.0
    %7789 = vmatpush2.msra.mxu0 0.0
    %7790 = vmatprep.subr.mxu0 0.0
    %7791 = vmatpush2.msra.mxu0 0.0
    %7792 = vmatprep.subr.mxu0 0.0
    %7793 = vmatpush2.msra.mxu0 0.0
    %7794 = vmatprep.subr.mxu0 0.0
    %7795 = vmatpush2.msra.mxu0 0.0
    %7796 = vmatprep.mubr.f32.mxu0 0.0
    %7797 = vmatmul.mubr.f32.gmra.mxu0 %v7730
    %v7798 = vpop.f32.mrf.mxu0
    %v7799 = vadd.f32 0.0, %v7798
    %v7800 = vpop.f32.mrf.mxu0
    %v7801 = vadd.f32 0.0, %v7800
    %7802 = vdwg.mxu0
    %v7803 = vadd.f32 %v7724, %v7799
    %v7804 = vadd.f32 %v7726, %v7801
    %7805 = vrot.lane.b32.xlu0 %v6433, 96
    %v7806 = vpop.permute.xlu0 %7805
    %v7807 = vsel %vm6210, %v7806, 0
    %7809 = vmatprep.subr.mxu0 0.0
    %7810 = vmatpush1.msra.mxu0 0.0
    %7811 = vmatprep.subr.mxu0 0.0
    %7812 = vmatpush1.msra.mxu0 0.0
    %7813 = vmatprep.subr.mxu0 0.0
    %7814 = vmatpush1.msra.mxu0 0.0
    %7815 = vmatprep.subr.mxu0 0.0
    %7816 = vmatpush1.msra.mxu0 0.0
    %7817 = vmatprep.subr.mxu0 0.0
    %7818 = vmatpush1.msra.mxu0 0.0
    %7819 = vmatprep.subr.mxu0 0.0
    %7820 = vmatpush1.msra.mxu0 0.0
    %7821 = vmatprep.subr.mxu0 0.0
    %7822 = vmatpush1.msra.mxu0 0.0
    %7823 = vmatprep.subr.mxu0 0.0
    %7824 = vmatpush1.msra.mxu0 0.0
    %7825 = vmatprep.subr.mxu0 0.0
    %7826 = vmatpush1.msra.mxu0 0.0
    %7827 = vmatprep.subr.mxu0 0.0
    %7828 = vmatpush1.msra.mxu0 0.0
    %7829 = vmatprep.subr.mxu0 0.0
    %7830 = vmatpush1.msra.mxu0 0.0
    %7831 = vmatprep.subr.mxu0 0.0
    %7832 = vmatpush1.msra.mxu0 0.0
    %7833 = vmatprep.subr.mxu0 %v6060
    %7834 = vmatpush1.msra.mxu0 %v6059
    %7835 = vmatprep.subr.mxu0 %v6058
    %7836 = vmatpush1.msra.mxu0 %v6057
    %7837 = vmatprep.subr.mxu0 %v6056
    %7838 = vmatpush1.msra.mxu0 %v6055
    %7839 = vmatprep.subr.mxu0 %v6054
    %7840 = vmatpush1.msra.mxu0 %v6053
    %7841 = vmatprep.subr.mxu0 0.0
    %7842 = vmatpush2.msra.mxu0 0.0
    %7843 = vmatprep.subr.mxu0 0.0
    %7844 = vmatpush2.msra.mxu0 0.0
    %7845 = vmatprep.subr.mxu0 0.0
    %7846 = vmatpush2.msra.mxu0 0.0
    %7847 = vmatprep.subr.mxu0 0.0
    %7848 = vmatpush2.msra.mxu0 0.0
    %7849 = vmatprep.subr.mxu0 0.0
    %7850 = vmatpush2.msra.mxu0 0.0
    %7851 = vmatprep.subr.mxu0 0.0
    %7852 = vmatpush2.msra.mxu0 0.0
    %7853 = vmatprep.subr.mxu0 0.0
    %7854 = vmatpush2.msra.mxu0 0.0
    %7855 = vmatprep.subr.mxu0 0.0
    %7856 = vmatpush2.msra.mxu0 0.0
    %7857 = vmatprep.subr.mxu0 0.0
    %7858 = vmatpush2.msra.mxu0 0.0
    %7859 = vmatprep.subr.mxu0 0.0
    %7860 = vmatpush2.msra.mxu0 0.0
    %7861 = vmatprep.subr.mxu0 0.0
    %7862 = vmatpush2.msra.mxu0 0.0
    %7863 = vmatprep.subr.mxu0 0.0
    %7864 = vmatpush2.msra.mxu0 0.0
    %7865 = vmatprep.subr.mxu0 0.0
    %7866 = vmatpush2.msra.mxu0 0.0
    %7867 = vmatprep.subr.mxu0 0.0
    %7868 = vmatpush2.msra.mxu0 0.0
    %7869 = vmatprep.subr.mxu0 0.0
    %7870 = vmatpush2.msra.mxu0 0.0
    %7871 = vmatprep.subr.mxu0 0.0
    %7872 = vmatpush2.msra.mxu0 0.0
    %7873 = vmatprep.mubr.f32.mxu0 0.0
    %7874 = vmatmul.mubr.f32.gmra.mxu0 %v7807
    %v7875 = vpop.f32.mrf.mxu0
    %v7876 = vadd.f32 0.0, %v7875
    %v7877 = vpop.f32.mrf.mxu0
    %v7878 = vadd.f32 0.0, %v7877
    %7879 = vdwg.mxu0
    %v7880 = vadd.f32 %v7803, %v7876
    %v7881 = vadd.f32 %v7804, %v7878
    %7882 = vrot.lane.b32.xlu0 %v6509, 96
    %v7883 = vpop.permute.xlu0 %7882
    %v7884 = vsel %vm6210, %v7883, 0
    %7886 = vmatprep.subr.mxu0 0.0
    %7887 = vmatpush1.msra.mxu0 0.0
    %7888 = vmatprep.subr.mxu0 0.0
    %7889 = vmatpush1.msra.mxu0 0.0
    %7890 = vmatprep.subr.mxu0 0.0
    %7891 = vmatpush1.msra.mxu0 0.0
    %7892 = vmatprep.subr.mxu0 0.0
    %7893 = vmatpush1.msra.mxu0 0.0
    %7894 = vmatprep.subr.mxu0 0.0
    %7895 = vmatpush1.msra.mxu0 0.0
    %7896 = vmatprep.subr.mxu0 0.0
    %7897 = vmatpush1.msra.mxu0 0.0
    %7898 = vmatprep.subr.mxu0 0.0
    %7899 = vmatpush1.msra.mxu0 0.0
    %7900 = vmatprep.subr.mxu0 0.0
    %7901 = vmatpush1.msra.mxu0 0.0
    %7902 = vmatprep.subr.mxu0 0.0
    %7903 = vmatpush1.msra.mxu0 0.0
    %7904 = vmatprep.subr.mxu0 0.0
    %7905 = vmatpush1.msra.mxu0 0.0
    %7906 = vmatprep.subr.mxu0 0.0
    %7907 = vmatpush1.msra.mxu0 0.0
    %7908 = vmatprep.subr.mxu0 0.0
    %7909 = vmatpush1.msra.mxu0 0.0
    %7910 = vmatprep.subr.mxu0 %v6068
    %7911 = vmatpush1.msra.mxu0 %v6067
    %7912 = vmatprep.subr.mxu0 %v6066
    %7913 = vmatpush1.msra.mxu0 %v6065
    %7914 = vmatprep.subr.mxu0 %v6064
    %7915 = vmatpush1.msra.mxu0 %v6063
    %7916 = vmatprep.subr.mxu0 %v6062
    %7917 = vmatpush1.msra.mxu0 %v6061
    %7918 = vmatprep.subr.mxu0 0.0
    %7919 = vmatpush2.msra.mxu0 0.0
    %7920 = vmatprep.subr.mxu0 0.0
    %7921 = vmatpush2.msra.mxu0 0.0
    %7922 = vmatprep.subr.mxu0 0.0
    %7923 = vmatpush2.msra.mxu0 0.0
    %7924 = vmatprep.subr.mxu0 0.0
    %7925 = vmatpush2.msra.mxu0 0.0
    %7926 = vmatprep.subr.mxu0 0.0
    %7927 = vmatpush2.msra.mxu0 0.0
    %7928 = vmatprep.subr.mxu0 0.0
    %7929 = vmatpush2.msra.mxu0 0.0
    %7930 = vmatprep.subr.mxu0 0.0
    %7931 = vmatpush2.msra.mxu0 0.0
    %7932 = vmatprep.subr.mxu0 0.0
    %7933 = vmatpush2.msra.mxu0 0.0
    %7934 = vmatprep.subr.mxu0 0.0
    %7935 = vmatpush2.msra.mxu0 0.0
    %7936 = vmatprep.subr.mxu0 0.0
    %7937 = vmatpush2.msra.mxu0 0.0
    %7938 = vmatprep.subr.mxu0 0.0
    %7939 = vmatpush2.msra.mxu0 0.0
    %7940 = vmatprep.subr.mxu0 0.0
    %7941 = vmatpush2.msra.mxu0 0.0
    %7942 = vmatprep.subr.mxu0 0.0
    %7943 = vmatpush2.msra.mxu0 0.0
    %7944 = vmatprep.subr.mxu0 0.0
    %7945 = vmatpush2.msra.mxu0 0.0
    %7946 = vmatprep.subr.mxu0 0.0
    %7947 = vmatpush2.msra.mxu0 0.0
    %7948 = vmatprep.subr.mxu0 0.0
    %7949 = vmatpush2.msra.mxu0 0.0
    %7950 = vmatprep.mubr.f32.mxu0 0.0
    %7951 = vmatmul.mubr.f32.gmra.mxu0 %v7884
    %v7952 = vpop.f32.mrf.mxu0
    %v7953 = vadd.f32 0.0, %v7952
    %v7954 = vpop.f32.mrf.mxu0
    %v7955 = vadd.f32 0.0, %v7954
    %7956 = vdwg.mxu0
    %v7957 = vadd.f32 %v7880, %v7953
    %v7958 = vadd.f32 %v7881, %v7955
    %7959 = vrot.lane.b32.xlu0 %v6585, 96
    %v7960 = vpop.permute.xlu0 %7959
    %v7961 = vsel %vm6210, %v7960, 0
    %7963 = vmatprep.subr.mxu0 0.0
    %7964 = vmatpush1.msra.mxu0 0.0
    %7965 = vmatprep.subr.mxu0 0.0
    %7966 = vmatpush1.msra.mxu0 0.0
    %7967 = vmatprep.subr.mxu0 0.0
    %7968 = vmatpush1.msra.mxu0 0.0
    %7969 = vmatprep.subr.mxu0 0.0
    %7970 = vmatpush1.msra.mxu0 0.0
    %7971 = vmatprep.subr.mxu0 0.0
    %7972 = vmatpush1.msra.mxu0 0.0
    %7973 = vmatprep.subr.mxu0 0.0
    %7974 = vmatpush1.msra.mxu0 0.0
    %7975 = vmatprep.subr.mxu0 0.0
    %7976 = vmatpush1.msra.mxu0 0.0
    %7977 = vmatprep.subr.mxu0 0.0
    %7978 = vmatpush1.msra.mxu0 0.0
    %7979 = vmatprep.subr.mxu0 0.0
    %7980 = vmatpush1.msra.mxu0 0.0
    %7981 = vmatprep.subr.mxu0 0.0
    %7982 = vmatpush1.msra.mxu0 0.0
    %7983 = vmatprep.subr.mxu0 0.0
    %7984 = vmatpush1.msra.mxu0 0.0
    %7985 = vmatprep.subr.mxu0 0.0
    %7986 = vmatpush1.msra.mxu0 0.0
    %7987 = vmatprep.subr.mxu0 %v6076
    %7988 = vmatpush1.msra.mxu0 %v6075
    %7989 = vmatprep.subr.mxu0 %v6074
    %7990 = vmatpush1.msra.mxu0 %v6073
    %7991 = vmatprep.subr.mxu0 %v6072
    %7992 = vmatpush1.msra.mxu0 %v6071
    %7993 = vmatprep.subr.mxu0 %v6070
    %7994 = vmatpush1.msra.mxu0 %v6069
    %7995 = vmatprep.subr.mxu0 0.0
    %7996 = vmatpush2.msra.mxu0 0.0
    %7997 = vmatprep.subr.mxu0 0.0
    %7998 = vmatpush2.msra.mxu0 0.0
    %7999 = vmatprep.subr.mxu0 0.0
    %8000 = vmatpush2.msra.mxu0 0.0
    %8001 = vmatprep.subr.mxu0 0.0
    %8002 = vmatpush2.msra.mxu0 0.0
    %8003 = vmatprep.subr.mxu0 0.0
    %8004 = vmatpush2.msra.mxu0 0.0
    %8005 = vmatprep.subr.mxu0 0.0
    %8006 = vmatpush2.msra.mxu0 0.0
    %8007 = vmatprep.subr.mxu0 0.0
    %8008 = vmatpush2.msra.mxu0 0.0
    %8009 = vmatprep.subr.mxu0 0.0
    %8010 = vmatpush2.msra.mxu0 0.0
    %8011 = vmatprep.subr.mxu0 0.0
    %8012 = vmatpush2.msra.mxu0 0.0
    %8013 = vmatprep.subr.mxu0 0.0
    %8014 = vmatpush2.msra.mxu0 0.0
    %8015 = vmatprep.subr.mxu0 0.0
    %8016 = vmatpush2.msra.mxu0 0.0
    %8017 = vmatprep.subr.mxu0 0.0
    %8018 = vmatpush2.msra.mxu0 0.0
    %8019 = vmatprep.subr.mxu0 0.0
    %8020 = vmatpush2.msra.mxu0 0.0
    %8021 = vmatprep.subr.mxu0 0.0
    %8022 = vmatpush2.msra.mxu0 0.0
    %8023 = vmatprep.subr.mxu0 0.0
    %8024 = vmatpush2.msra.mxu0 0.0
    %8025 = vmatprep.subr.mxu0 0.0
    %8026 = vmatpush2.msra.mxu0 0.0
    %8027 = vmatprep.mubr.f32.mxu0 0.0
    %8028 = vmatmul.mubr.f32.gmra.mxu0 %v7961
    %v8029 = vpop.f32.mrf.mxu0
    %v8030 = vadd.f32 0.0, %v8029
    %v8031 = vpop.f32.mrf.mxu0
    %v8032 = vadd.f32 0.0, %v8031
    %8033 = vdwg.mxu0
    %v8034 = vadd.f32 %v7957, %v8030
    %v8035 = vadd.f32 %v7958, %v8032
    %8036 = vrot.lane.b32.xlu0 %v6661, 96
    %v8037 = vpop.permute.xlu0 %8036
    %v8038 = vsel %vm6210, %v8037, 0
    %8040 = vmatprep.subr.mxu0 0.0
    %8041 = vmatpush1.msra.mxu0 0.0
    %8042 = vmatprep.subr.mxu0 0.0
    %8043 = vmatpush1.msra.mxu0 0.0
    %8044 = vmatprep.subr.mxu0 0.0
    %8045 = vmatpush1.msra.mxu0 0.0
    %8046 = vmatprep.subr.mxu0 0.0
    %8047 = vmatpush1.msra.mxu0 0.0
    %8048 = vmatprep.subr.mxu0 0.0
    %8049 = vmatpush1.msra.mxu0 0.0
    %8050 = vmatprep.subr.mxu0 0.0
    %8051 = vmatpush1.msra.mxu0 0.0
    %8052 = vmatprep.subr.mxu0 0.0
    %8053 = vmatpush1.msra.mxu0 0.0
    %8054 = vmatprep.subr.mxu0 0.0
    %8055 = vmatpush1.msra.mxu0 0.0
    %8056 = vmatprep.subr.mxu0 0.0
    %8057 = vmatpush1.msra.mxu0 0.0
    %8058 = vmatprep.subr.mxu0 0.0
    %8059 = vmatpush1.msra.mxu0 0.0
    %8060 = vmatprep.subr.mxu0 0.0
    %8061 = vmatpush1.msra.mxu0 0.0
    %8062 = vmatprep.subr.mxu0 0.0
    %8063 = vmatpush1.msra.mxu0 0.0
    %8064 = vmatprep.subr.mxu0 %v6084
    %8065 = vmatpush1.msra.mxu0 %v6083
    %8066 = vmatprep.subr.mxu0 %v6082
    %8067 = vmatpush1.msra.mxu0 %v6081
    %8068 = vmatprep.subr.mxu0 %v6080
    %8069 = vmatpush1.msra.mxu0 %v6079
    %8070 = vmatprep.subr.mxu0 %v6078
    %8071 = vmatpush1.msra.mxu0 %v6077
    %8072 = vmatprep.subr.mxu0 0.0
    %8073 = vmatpush2.msra.mxu0 0.0
    %8074 = vmatprep.subr.mxu0 0.0
    %8075 = vmatpush2.msra.mxu0 0.0
    %8076 = vmatprep.subr.mxu0 0.0
    %8077 = vmatpush2.msra.mxu0 0.0
    %8078 = vmatprep.subr.mxu0 0.0
    %8079 = vmatpush2.msra.mxu0 0.0
    %8080 = vmatprep.subr.mxu0 0.0
    %8081 = vmatpush2.msra.mxu0 0.0
    %8082 = vmatprep.subr.mxu0 0.0
    %8083 = vmatpush2.msra.mxu0 0.0
    %8084 = vmatprep.subr.mxu0 0.0
    %8085 = vmatpush2.msra.mxu0 0.0
    %8086 = vmatprep.subr.mxu0 0.0
    %8087 = vmatpush2.msra.mxu0 0.0
    %8088 = vmatprep.subr.mxu0 0.0
    %8089 = vmatpush2.msra.mxu0 0.0
    %8090 = vmatprep.subr.mxu0 0.0
    %8091 = vmatpush2.msra.mxu0 0.0
    %8092 = vmatprep.subr.mxu0 0.0
    %8093 = vmatpush2.msra.mxu0 0.0
    %8094 = vmatprep.subr.mxu0 0.0
    %8095 = vmatpush2.msra.mxu0 0.0
    %8096 = vmatprep.subr.mxu0 0.0
    %8097 = vmatpush2.msra.mxu0 0.0
    %8098 = vmatprep.subr.mxu0 0.0
    %8099 = vmatpush2.msra.mxu0 0.0
    %8100 = vmatprep.subr.mxu0 0.0
    %8101 = vmatpush2.msra.mxu0 0.0
    %8102 = vmatprep.subr.mxu0 0.0
    %8103 = vmatpush2.msra.mxu0 0.0
    %8104 = vmatprep.mubr.f32.mxu0 0.0
    %8105 = vmatmul.mubr.f32.gmra.mxu0 %v8038
    %v8106 = vpop.f32.mrf.mxu0
    %v8107 = vadd.f32 0.0, %v8106
    %v8108 = vpop.f32.mrf.mxu0
    %v8109 = vadd.f32 0.0, %v8108
    %8110 = vdwg.mxu0
    %v8111 = vadd.f32 %v8034, %v8107
    %v8112 = vadd.f32 %v8035, %v8109
    %8113 = vrot.lane.b32.xlu0 %v6737, 96
    %v8114 = vpop.permute.xlu0 %8113
    %v8115 = vsel %vm6210, %v8114, 0
    %8117 = vmatprep.subr.mxu0 0.0
    %8118 = vmatpush1.msra.mxu0 0.0
    %8119 = vmatprep.subr.mxu0 0.0
    %8120 = vmatpush1.msra.mxu0 0.0
    %8121 = vmatprep.subr.mxu0 0.0
    %8122 = vmatpush1.msra.mxu0 0.0
    %8123 = vmatprep.subr.mxu0 0.0
    %8124 = vmatpush1.msra.mxu0 0.0
    %8125 = vmatprep.subr.mxu0 0.0
    %8126 = vmatpush1.msra.mxu0 0.0
    %8127 = vmatprep.subr.mxu0 0.0
    %8128 = vmatpush1.msra.mxu0 0.0
    %8129 = vmatprep.subr.mxu0 0.0
    %8130 = vmatpush1.msra.mxu0 0.0
    %8131 = vmatprep.subr.mxu0 0.0
    %8132 = vmatpush1.msra.mxu0 0.0
    %8133 = vmatprep.subr.mxu0 0.0
    %8134 = vmatpush1.msra.mxu0 0.0
    %8135 = vmatprep.subr.mxu0 0.0
    %8136 = vmatpush1.msra.mxu0 0.0
    %8137 = vmatprep.subr.mxu0 0.0
    %8138 = vmatpush1.msra.mxu0 0.0
    %8139 = vmatprep.subr.mxu0 0.0
    %8140 = vmatpush1.msra.mxu0 0.0
    %8141 = vmatprep.subr.mxu0 %v6092
    %8142 = vmatpush1.msra.mxu0 %v6091
    %8143 = vmatprep.subr.mxu0 %v6090
    %8144 = vmatpush1.msra.mxu0 %v6089
    %8145 = vmatprep.subr.mxu0 %v6088
    %8146 = vmatpush1.msra.mxu0 %v6087
    %8147 = vmatprep.subr.mxu0 %v6086
    %8148 = vmatpush1.msra.mxu0 %v6085
    %8149 = vmatprep.subr.mxu0 0.0
    %8150 = vmatpush2.msra.mxu0 0.0
    %8151 = vmatprep.subr.mxu0 0.0
    %8152 = vmatpush2.msra.mxu0 0.0
    %8153 = vmatprep.subr.mxu0 0.0
    %8154 = vmatpush2.msra.mxu0 0.0
    %8155 = vmatprep.subr.mxu0 0.0
    %8156 = vmatpush2.msra.mxu0 0.0
    %8157 = vmatprep.subr.mxu0 0.0
    %8158 = vmatpush2.msra.mxu0 0.0
    %8159 = vmatprep.subr.mxu0 0.0
    %8160 = vmatpush2.msra.mxu0 0.0
    %8161 = vmatprep.subr.mxu0 0.0
    %8162 = vmatpush2.msra.mxu0 0.0
    %8163 = vmatprep.subr.mxu0 0.0
    %8164 = vmatpush2.msra.mxu0 0.0
    %8165 = vmatprep.subr.mxu0 0.0
    %8166 = vmatpush2.msra.mxu0 0.0
    %8167 = vmatprep.subr.mxu0 0.0
    %8168 = vmatpush2.msra.mxu0 0.0
    %8169 = vmatprep.subr.mxu0 0.0
    %8170 = vmatpush2.msra.mxu0 0.0
    %8171 = vmatprep.subr.mxu0 0.0
    %8172 = vmatpush2.msra.mxu0 0.0
    %8173 = vmatprep.subr.mxu0 0.0
    %8174 = vmatpush2.msra.mxu0 0.0
    %8175 = vmatprep.subr.mxu0 0.0
    %8176 = vmatpush2.msra.mxu0 0.0
    %8177 = vmatprep.subr.mxu0 0.0
    %8178 = vmatpush2.msra.mxu0 0.0
    %8179 = vmatprep.subr.mxu0 0.0
    %8180 = vmatpush2.msra.mxu0 0.0
    %8181 = vmatprep.mubr.f32.mxu0 0.0
    %8182 = vmatmul.mubr.f32.gmra.mxu0 %v8115
    %v8183 = vpop.f32.mrf.mxu0
    %v8184 = vadd.f32 0.0, %v8183
    %v8185 = vpop.f32.mrf.mxu0
    %v8186 = vadd.f32 0.0, %v8185
    %8187 = vdwg.mxu0
    %v8188 = vadd.f32 %v8111, %v8184
    %v8189 = vadd.f32 %v8112, %v8186
    %8190 = vrot.lane.b32.xlu0 %v6028, 96
    %v8191 = vpop.permute.xlu0 %8190
    %v8192 = vsel %vm6210, %v8191, 0
    %8194 = vmatprep.subr.mxu0 0.0
    %8195 = vmatpush1.msra.mxu0 0.0
    %8196 = vmatprep.subr.mxu0 0.0
    %8197 = vmatpush1.msra.mxu0 0.0
    %8198 = vmatprep.subr.mxu0 0.0
    %8199 = vmatpush1.msra.mxu0 0.0
    %8200 = vmatprep.subr.mxu0 0.0
    %8201 = vmatpush1.msra.mxu0 0.0
    %8202 = vmatprep.subr.mxu0 0.0
    %8203 = vmatpush1.msra.mxu0 0.0
    %8204 = vmatprep.subr.mxu0 0.0
    %8205 = vmatpush1.msra.mxu0 0.0
    %8206 = vmatprep.subr.mxu0 0.0
    %8207 = vmatpush1.msra.mxu0 0.0
    %8208 = vmatprep.subr.mxu0 0.0
    %8209 = vmatpush1.msra.mxu0 0.0
    %8210 = vmatprep.subr.mxu0 0.0
    %8211 = vmatpush1.msra.mxu0 0.0
    %8212 = vmatprep.subr.mxu0 0.0
    %8213 = vmatpush1.msra.mxu0 0.0
    %8214 = vmatprep.subr.mxu0 0.0
    %8215 = vmatpush1.msra.mxu0 0.0
    %8216 = vmatprep.subr.mxu0 0.0
    %8217 = vmatpush1.msra.mxu0 0.0
    %8218 = vmatprep.subr.mxu0 %v6100
    %8219 = vmatpush1.msra.mxu0 %v6099
    %8220 = vmatprep.subr.mxu0 %v6098
    %8221 = vmatpush1.msra.mxu0 %v6097
    %8222 = vmatprep.subr.mxu0 %v6096
    %8223 = vmatpush1.msra.mxu0 %v6095
    %8224 = vmatprep.subr.mxu0 %v6094
    %8225 = vmatpush1.msra.mxu0 %v6093
    %8226 = vmatprep.subr.mxu0 0.0
    %8227 = vmatpush2.msra.mxu0 0.0
    %8228 = vmatprep.subr.mxu0 0.0
    %8229 = vmatpush2.msra.mxu0 0.0
    %8230 = vmatprep.subr.mxu0 0.0
    %8231 = vmatpush2.msra.mxu0 0.0
    %8232 = vmatprep.subr.mxu0 0.0
    %8233 = vmatpush2.msra.mxu0 0.0
    %8234 = vmatprep.subr.mxu0 0.0
    %8235 = vmatpush2.msra.mxu0 0.0
    %8236 = vmatprep.subr.mxu0 0.0
    %8237 = vmatpush2.msra.mxu0 0.0
    %8238 = vmatprep.subr.mxu0 0.0
    %8239 = vmatpush2.msra.mxu0 0.0
    %8240 = vmatprep.subr.mxu0 0.0
    %8241 = vmatpush2.msra.mxu0 0.0
    %8242 = vmatprep.subr.mxu0 0.0
    %8243 = vmatpush2.msra.mxu0 0.0
    %8244 = vmatprep.subr.mxu0 0.0
    %8245 = vmatpush2.msra.mxu0 0.0
    %8246 = vmatprep.subr.mxu0 0.0
    %8247 = vmatpush2.msra.mxu0 0.0
    %8248 = vmatprep.subr.mxu0 0.0
    %8249 = vmatpush2.msra.mxu0 0.0
    %8250 = vmatprep.subr.mxu0 0.0
    %8251 = vmatpush2.msra.mxu0 0.0
    %8252 = vmatprep.subr.mxu0 0.0
    %8253 = vmatpush2.msra.mxu0 0.0
    %8254 = vmatprep.subr.mxu0 0.0
    %8255 = vmatpush2.msra.mxu0 0.0
    %8256 = vmatprep.subr.mxu0 0.0
    %8257 = vmatpush2.msra.mxu0 0.0
    %8258 = vmatprep.mubr.f32.mxu0 0.0
    %8259 = vmatmul.mubr.f32.gmra.mxu0 %v8192
    %v8260 = vpop.f32.mrf.mxu0
    %v8261 = vadd.f32 0.0, %v8260
    %v8262 = vpop.f32.mrf.mxu0
    %v8263 = vadd.f32 0.0, %v8262
    %8264 = vdwg.mxu0
    %v8265 = vadd.f32 %v8188, %v8261
    %v8266 = vadd.f32 %v8189, %v8263
    %8267 = vrot.lane.b32.xlu0 %v6889, 96
    %v8268 = vpop.permute.xlu0 %8267
    %v8269 = vsel %vm6210, %v8268, 0
    %8271 = vmatprep.subr.mxu0 0.0
    %8272 = vmatpush1.msra.mxu0 0.0
    %8273 = vmatprep.subr.mxu0 0.0
    %8274 = vmatpush1.msra.mxu0 0.0
    %8275 = vmatprep.subr.mxu0 0.0
    %8276 = vmatpush1.msra.mxu0 0.0
    %8277 = vmatprep.subr.mxu0 0.0
    %8278 = vmatpush1.msra.mxu0 0.0
    %8279 = vmatprep.subr.mxu0 0.0
    %8280 = vmatpush1.msra.mxu0 0.0
    %8281 = vmatprep.subr.mxu0 0.0
    %8282 = vmatpush1.msra.mxu0 0.0
    %8283 = vmatprep.subr.mxu0 0.0
    %8284 = vmatpush1.msra.mxu0 0.0
    %8285 = vmatprep.subr.mxu0 0.0
    %8286 = vmatpush1.msra.mxu0 0.0
    %8287 = vmatprep.subr.mxu0 0.0
    %8288 = vmatpush1.msra.mxu0 0.0
    %8289 = vmatprep.subr.mxu0 0.0
    %8290 = vmatpush1.msra.mxu0 0.0
    %8291 = vmatprep.subr.mxu0 0.0
    %8292 = vmatpush1.msra.mxu0 0.0
    %8293 = vmatprep.subr.mxu0 0.0
    %8294 = vmatpush1.msra.mxu0 0.0
    %8295 = vmatprep.subr.mxu0 %v6108
    %8296 = vmatpush1.msra.mxu0 %v6107
    %8297 = vmatprep.subr.mxu0 %v6106
    %8298 = vmatpush1.msra.mxu0 %v6105
    %8299 = vmatprep.subr.mxu0 %v6104
    %8300 = vmatpush1.msra.mxu0 %v6103
    %8301 = vmatprep.subr.mxu0 %v6102
    %8302 = vmatpush1.msra.mxu0 %v6101
    %8303 = vmatprep.subr.mxu0 0.0
    %8304 = vmatpush2.msra.mxu0 0.0
    %8305 = vmatprep.subr.mxu0 0.0
    %8306 = vmatpush2.msra.mxu0 0.0
    %8307 = vmatprep.subr.mxu0 0.0
    %8308 = vmatpush2.msra.mxu0 0.0
    %8309 = vmatprep.subr.mxu0 0.0
    %8310 = vmatpush2.msra.mxu0 0.0
    %8311 = vmatprep.subr.mxu0 0.0
    %8312 = vmatpush2.msra.mxu0 0.0
    %8313 = vmatprep.subr.mxu0 0.0
    %8314 = vmatpush2.msra.mxu0 0.0
    %8315 = vmatprep.subr.mxu0 0.0
    %8316 = vmatpush2.msra.mxu0 0.0
    %8317 = vmatprep.subr.mxu0 0.0
    %8318 = vmatpush2.msra.mxu0 0.0
    %8319 = vmatprep.subr.mxu0 0.0
    %8320 = vmatpush2.msra.mxu0 0.0
    %8321 = vmatprep.subr.mxu0 0.0
    %8322 = vmatpush2.msra.mxu0 0.0
    %8323 = vmatprep.subr.mxu0 0.0
    %8324 = vmatpush2.msra.mxu0 0.0
    %8325 = vmatprep.subr.mxu0 0.0
    %8326 = vmatpush2.msra.mxu0 0.0
    %8327 = vmatprep.subr.mxu0 0.0
    %8328 = vmatpush2.msra.mxu0 0.0
    %8329 = vmatprep.subr.mxu0 0.0
    %8330 = vmatpush2.msra.mxu0 0.0
    %8331 = vmatprep.subr.mxu0 0.0
    %8332 = vmatpush2.msra.mxu0 0.0
    %8333 = vmatprep.subr.mxu0 0.0
    %8334 = vmatpush2.msra.mxu0 0.0
    %8335 = vmatprep.mubr.f32.mxu0 0.0
    %8336 = vmatmul.mubr.f32.gmra.mxu0 %v8269
    %v8337 = vpop.f32.mrf.mxu0
    %v8338 = vadd.f32 0.0, %v8337
    %v8339 = vpop.f32.mrf.mxu0
    %v8340 = vadd.f32 0.0, %v8339
    %8341 = vdwg.mxu0
    %v8342 = vadd.f32 %v8265, %v8338
    %v8343 = vadd.f32 %v8266, %v8340
    %8344 = vrot.lane.b32.xlu0 %v6965, 96
    %v8345 = vpop.permute.xlu0 %8344
    %v8346 = vsel %vm6210, %v8345, 0
    %8348 = vmatprep.subr.mxu0 0.0
    %8349 = vmatpush1.msra.mxu0 0.0
    %8350 = vmatprep.subr.mxu0 0.0
    %8351 = vmatpush1.msra.mxu0 0.0
    %8352 = vmatprep.subr.mxu0 0.0
    %8353 = vmatpush1.msra.mxu0 0.0
    %8354 = vmatprep.subr.mxu0 0.0
    %8355 = vmatpush1.msra.mxu0 0.0
    %8356 = vmatprep.subr.mxu0 0.0
    %8357 = vmatpush1.msra.mxu0 0.0
    %8358 = vmatprep.subr.mxu0 0.0
    %8359 = vmatpush1.msra.mxu0 0.0
    %8360 = vmatprep.subr.mxu0 0.0
    %8361 = vmatpush1.msra.mxu0 0.0
    %8362 = vmatprep.subr.mxu0 0.0
    %8363 = vmatpush1.msra.mxu0 0.0
    %8364 = vmatprep.subr.mxu0 0.0
    %8365 = vmatpush1.msra.mxu0 0.0
    %8366 = vmatprep.subr.mxu0 0.0
    %8367 = vmatpush1.msra.mxu0 0.0
    %8368 = vmatprep.subr.mxu0 0.0
    %8369 = vmatpush1.msra.mxu0 0.0
    %8370 = vmatprep.subr.mxu0 0.0
    %8371 = vmatpush1.msra.mxu0 0.0
    %8372 = vmatprep.subr.mxu0 %v6116
    %8373 = vmatpush1.msra.mxu0 %v6115
    %8374 = vmatprep.subr.mxu0 %v6114
    %8375 = vmatpush1.msra.mxu0 %v6113
    %8376 = vmatprep.subr.mxu0 %v6112
    %8377 = vmatpush1.msra.mxu0 %v6111
    %8378 = vmatprep.subr.mxu0 %v6110
    %8379 = vmatpush1.msra.mxu0 %v6109
    %8380 = vmatprep.subr.mxu0 0.0
    %8381 = vmatpush2.msra.mxu0 0.0
    %8382 = vmatprep.subr.mxu0 0.0
    %8383 = vmatpush2.msra.mxu0 0.0
    %8384 = vmatprep.subr.mxu0 0.0
    %8385 = vmatpush2.msra.mxu0 0.0
    %8386 = vmatprep.subr.mxu0 0.0
    %8387 = vmatpush2.msra.mxu0 0.0
    %8388 = vmatprep.subr.mxu0 0.0
    %8389 = vmatpush2.msra.mxu0 0.0
    %8390 = vmatprep.subr.mxu0 0.0
    %8391 = vmatpush2.msra.mxu0 0.0
    %8392 = vmatprep.subr.mxu0 0.0
    %8393 = vmatpush2.msra.mxu0 0.0
    %8394 = vmatprep.subr.mxu0 0.0
    %8395 = vmatpush2.msra.mxu0 0.0
    %8396 = vmatprep.subr.mxu0 0.0
    %8397 = vmatpush2.msra.mxu0 0.0
    %8398 = vmatprep.subr.mxu0 0.0
    %8399 = vmatpush2.msra.mxu0 0.0
    %8400 = vmatprep.subr.mxu0 0.0
    %8401 = vmatpush2.msra.mxu0 0.0
    %8402 = vmatprep.subr.mxu0 0.0
    %8403 = vmatpush2.msra.mxu0 0.0
    %8404 = vmatprep.subr.mxu0 0.0
    %8405 = vmatpush2.msra.mxu0 0.0
    %8406 = vmatprep.subr.mxu0 0.0
    %8407 = vmatpush2.msra.mxu0 0.0
    %8408 = vmatprep.subr.mxu0 0.0
    %8409 = vmatpush2.msra.mxu0 0.0
    %8410 = vmatprep.subr.mxu0 0.0
    %8411 = vmatpush2.msra.mxu0 0.0
    %8412 = vmatprep.mubr.f32.mxu0 0.0
    %8413 = vmatmul.mubr.f32.gmra.mxu0 %v8346
    %v8414 = vpop.f32.mrf.mxu0
    %v8415 = vadd.f32 0.0, %v8414
    %v8416 = vpop.f32.mrf.mxu0
    %v8417 = vadd.f32 0.0, %v8416
    %8418 = vdwg.mxu0
    %v8419 = vadd.f32 %v8342, %v8415
    %v8420 = vadd.f32 %v8343, %v8417
    %8421 = vrot.lane.b32.xlu0 %v7041, 96
    %v8422 = vpop.permute.xlu0 %8421
    %v8423 = vsel %vm6210, %v8422, 0
    %8425 = vmatprep.subr.mxu0 0.0
    %8426 = vmatpush1.msra.mxu0 0.0
    %8427 = vmatprep.subr.mxu0 0.0
    %8428 = vmatpush1.msra.mxu0 0.0
    %8429 = vmatprep.subr.mxu0 0.0
    %8430 = vmatpush1.msra.mxu0 0.0
    %8431 = vmatprep.subr.mxu0 0.0
    %8432 = vmatpush1.msra.mxu0 0.0
    %8433 = vmatprep.subr.mxu0 0.0
    %8434 = vmatpush1.msra.mxu0 0.0
    %8435 = vmatprep.subr.mxu0 0.0
    %8436 = vmatpush1.msra.mxu0 0.0
    %8437 = vmatprep.subr.mxu0 0.0
    %8438 = vmatpush1.msra.mxu0 0.0
    %8439 = vmatprep.subr.mxu0 0.0
    %8440 = vmatpush1.msra.mxu0 0.0
    %8441 = vmatprep.subr.mxu0 0.0
    %8442 = vmatpush1.msra.mxu0 0.0
    %8443 = vmatprep.subr.mxu0 0.0
    %8444 = vmatpush1.msra.mxu0 0.0
    %8445 = vmatprep.subr.mxu0 0.0
    %8446 = vmatpush1.msra.mxu0 0.0
    %8447 = vmatprep.subr.mxu0 0.0
    %8448 = vmatpush1.msra.mxu0 0.0
    %8449 = vmatprep.subr.mxu0 %v6124
    %8450 = vmatpush1.msra.mxu0 %v6123
    %8451 = vmatprep.subr.mxu0 %v6122
    %8452 = vmatpush1.msra.mxu0 %v6121
    %8453 = vmatprep.subr.mxu0 %v6120
    %8454 = vmatpush1.msra.mxu0 %v6119
    %8455 = vmatprep.subr.mxu0 %v6118
    %8456 = vmatpush1.msra.mxu0 %v6117
    %8457 = vmatprep.subr.mxu0 0.0
    %8458 = vmatpush2.msra.mxu0 0.0
    %8459 = vmatprep.subr.mxu0 0.0
    %8460 = vmatpush2.msra.mxu0 0.0
    %8461 = vmatprep.subr.mxu0 0.0
    %8462 = vmatpush2.msra.mxu0 0.0
    %8463 = vmatprep.subr.mxu0 0.0
    %8464 = vmatpush2.msra.mxu0 0.0
    %8465 = vmatprep.subr.mxu0 0.0
    %8466 = vmatpush2.msra.mxu0 0.0
    %8467 = vmatprep.subr.mxu0 0.0
    %8468 = vmatpush2.msra.mxu0 0.0
    %8469 = vmatprep.subr.mxu0 0.0
    %8470 = vmatpush2.msra.mxu0 0.0
    %8471 = vmatprep.subr.mxu0 0.0
    %8472 = vmatpush2.msra.mxu0 0.0
    %8473 = vmatprep.subr.mxu0 0.0
    %8474 = vmatpush2.msra.mxu0 0.0
    %8475 = vmatprep.subr.mxu0 0.0
    %8476 = vmatpush2.msra.mxu0 0.0
    %8477 = vmatprep.subr.mxu0 0.0
    %8478 = vmatpush2.msra.mxu0 0.0
    %8479 = vmatprep.subr.mxu0 0.0
    %8480 = vmatpush2.msra.mxu0 0.0
    %8481 = vmatprep.subr.mxu0 0.0
    %8482 = vmatpush2.msra.mxu0 0.0
    %8483 = vmatprep.subr.mxu0 0.0
    %8484 = vmatpush2.msra.mxu0 0.0
    %8485 = vmatprep.subr.mxu0 0.0
    %8486 = vmatpush2.msra.mxu0 0.0
    %8487 = vmatprep.subr.mxu0 0.0
    %8488 = vmatpush2.msra.mxu0 0.0
    %8489 = vmatprep.mubr.f32.mxu0 0.0
    %8490 = vmatmul.mubr.f32.gmra.mxu0 %v8423
    %v8491 = vpop.f32.mrf.mxu0
    %v8492 = vadd.f32 0.0, %v8491
    %v8493 = vpop.f32.mrf.mxu0
    %v8494 = vadd.f32 0.0, %v8493
    %8495 = vdwg.mxu0
    %v8496 = vadd.f32 %v8419, %v8492
    %v8497 = vadd.f32 %v8420, %v8494
    %8498 = vrot.lane.b32.xlu0 %v7117, 96
    %v8499 = vpop.permute.xlu0 %8498
    %v8500 = vsel %vm6210, %v8499, 0
    %8502 = vmatprep.subr.mxu0 0.0
    %8503 = vmatpush1.msra.mxu0 0.0
    %8504 = vmatprep.subr.mxu0 0.0
    %8505 = vmatpush1.msra.mxu0 0.0
    %8506 = vmatprep.subr.mxu0 0.0
    %8507 = vmatpush1.msra.mxu0 0.0
    %8508 = vmatprep.subr.mxu0 0.0
    %8509 = vmatpush1.msra.mxu0 0.0
    %8510 = vmatprep.subr.mxu0 0.0
    %8511 = vmatpush1.msra.mxu0 0.0
    %8512 = vmatprep.subr.mxu0 0.0
    %8513 = vmatpush1.msra.mxu0 0.0
    %8514 = vmatprep.subr.mxu0 0.0
    %8515 = vmatpush1.msra.mxu0 0.0
    %8516 = vmatprep.subr.mxu0 0.0
    %8517 = vmatpush1.msra.mxu0 0.0
    %8518 = vmatprep.subr.mxu0 0.0
    %8519 = vmatpush1.msra.mxu0 0.0
    %8520 = vmatprep.subr.mxu0 0.0
    %8521 = vmatpush1.msra.mxu0 0.0
    %8522 = vmatprep.subr.mxu0 0.0
    %8523 = vmatpush1.msra.mxu0 0.0
    %8524 = vmatprep.subr.mxu0 0.0
    %8525 = vmatpush1.msra.mxu0 0.0
    %8526 = vmatprep.subr.mxu0 %v6132
    %8527 = vmatpush1.msra.mxu0 %v6131
    %8528 = vmatprep.subr.mxu0 %v6130
    %8529 = vmatpush1.msra.mxu0 %v6129
    %8530 = vmatprep.subr.mxu0 %v6128
    %8531 = vmatpush1.msra.mxu0 %v6127
    %8532 = vmatprep.subr.mxu0 %v6126
    %8533 = vmatpush1.msra.mxu0 %v6125
    %8534 = vmatprep.subr.mxu0 0.0
    %8535 = vmatpush2.msra.mxu0 0.0
    %8536 = vmatprep.subr.mxu0 0.0
    %8537 = vmatpush2.msra.mxu0 0.0
    %8538 = vmatprep.subr.mxu0 0.0
    %8539 = vmatpush2.msra.mxu0 0.0
    %8540 = vmatprep.subr.mxu0 0.0
    %8541 = vmatpush2.msra.mxu0 0.0
    %8542 = vmatprep.subr.mxu0 0.0
    %8543 = vmatpush2.msra.mxu0 0.0
    %8544 = vmatprep.subr.mxu0 0.0
    %8545 = vmatpush2.msra.mxu0 0.0
    %8546 = vmatprep.subr.mxu0 0.0
    %8547 = vmatpush2.msra.mxu0 0.0
    %8548 = vmatprep.subr.mxu0 0.0
    %8549 = vmatpush2.msra.mxu0 0.0
    %8550 = vmatprep.subr.mxu0 0.0
    %8551 = vmatpush2.msra.mxu0 0.0
    %8552 = vmatprep.subr.mxu0 0.0
    %8553 = vmatpush2.msra.mxu0 0.0
    %8554 = vmatprep.subr.mxu0 0.0
    %8555 = vmatpush2.msra.mxu0 0.0
    %8556 = vmatprep.subr.mxu0 0.0
    %8557 = vmatpush2.msra.mxu0 0.0
    %8558 = vmatprep.subr.mxu0 0.0
    %8559 = vmatpush2.msra.mxu0 0.0
    %8560 = vmatprep.subr.mxu0 0.0
    %8561 = vmatpush2.msra.mxu0 0.0
    %8562 = vmatprep.subr.mxu0 0.0
    %8563 = vmatpush2.msra.mxu0 0.0
    %8564 = vmatprep.subr.mxu0 0.0
    %8565 = vmatpush2.msra.mxu0 0.0
    %8566 = vmatprep.mubr.f32.mxu0 0.0
    %8567 = vmatmul.mubr.f32.gmra.mxu0 %v8500
    %v8568 = vpop.f32.mrf.mxu0
    %v8569 = vadd.f32 0.0, %v8568
    %v8570 = vpop.f32.mrf.mxu0
    %v8571 = vadd.f32 0.0, %v8570
    %8572 = vdwg.mxu0
    %v8573 = vadd.f32 %v8496, %v8569
    %v8574 = vadd.f32 %v8497, %v8571
    %8575 = vrot.lane.b32.xlu0 %v7193, 96
    %v8576 = vpop.permute.xlu0 %8575
    %v8577 = vsel %vm6210, %v8576, 0
    %8579 = vmatprep.subr.mxu0 0.0
    %8580 = vmatpush1.msra.mxu0 0.0
    %8581 = vmatprep.subr.mxu0 0.0
    %8582 = vmatpush1.msra.mxu0 0.0
    %8583 = vmatprep.subr.mxu0 0.0
    %8584 = vmatpush1.msra.mxu0 0.0
    %8585 = vmatprep.subr.mxu0 0.0
    %8586 = vmatpush1.msra.mxu0 0.0
    %8587 = vmatprep.subr.mxu0 0.0
    %8588 = vmatpush1.msra.mxu0 0.0
    %8589 = vmatprep.subr.mxu0 0.0
    %8590 = vmatpush1.msra.mxu0 0.0
    %8591 = vmatprep.subr.mxu0 0.0
    %8592 = vmatpush1.msra.mxu0 0.0
    %8593 = vmatprep.subr.mxu0 0.0
    %8594 = vmatpush1.msra.mxu0 0.0
    %8595 = vmatprep.subr.mxu0 0.0
    %8596 = vmatpush1.msra.mxu0 0.0
    %8597 = vmatprep.subr.mxu0 0.0
    %8598 = vmatpush1.msra.mxu0 0.0
    %8599 = vmatprep.subr.mxu0 0.0
    %8600 = vmatpush1.msra.mxu0 0.0
    %8601 = vmatprep.subr.mxu0 0.0
    %8602 = vmatpush1.msra.mxu0 0.0
    %8603 = vmatprep.subr.mxu0 %v6140
    %8604 = vmatpush1.msra.mxu0 %v6139
    %8605 = vmatprep.subr.mxu0 %v6138
    %8606 = vmatpush1.msra.mxu0 %v6137
    %8607 = vmatprep.subr.mxu0 %v6136
    %8608 = vmatpush1.msra.mxu0 %v6135
    %8609 = vmatprep.subr.mxu0 %v6134
    %8610 = vmatpush1.msra.mxu0 %v6133
    %8611 = vmatprep.subr.mxu0 0.0
    %8612 = vmatpush2.msra.mxu0 0.0
    %8613 = vmatprep.subr.mxu0 0.0
    %8614 = vmatpush2.msra.mxu0 0.0
    %8615 = vmatprep.subr.mxu0 0.0
    %8616 = vmatpush2.msra.mxu0 0.0
    %8617 = vmatprep.subr.mxu0 0.0
    %8618 = vmatpush2.msra.mxu0 0.0
    %8619 = vmatprep.subr.mxu0 0.0
    %8620 = vmatpush2.msra.mxu0 0.0
    %8621 = vmatprep.subr.mxu0 0.0
    %8622 = vmatpush2.msra.mxu0 0.0
    %8623 = vmatprep.subr.mxu0 0.0
    %8624 = vmatpush2.msra.mxu0 0.0
    %8625 = vmatprep.subr.mxu0 0.0
    %8626 = vmatpush2.msra.mxu0 0.0
    %8627 = vmatprep.subr.mxu0 0.0
    %8628 = vmatpush2.msra.mxu0 0.0
    %8629 = vmatprep.subr.mxu0 0.0
    %8630 = vmatpush2.msra.mxu0 0.0
    %8631 = vmatprep.subr.mxu0 0.0
    %8632 = vmatpush2.msra.mxu0 0.0
    %8633 = vmatprep.subr.mxu0 0.0
    %8634 = vmatpush2.msra.mxu0 0.0
    %8635 = vmatprep.subr.mxu0 0.0
    %8636 = vmatpush2.msra.mxu0 0.0
    %8637 = vmatprep.subr.mxu0 0.0
    %8638 = vmatpush2.msra.mxu0 0.0
    %8639 = vmatprep.subr.mxu0 0.0
    %8640 = vmatpush2.msra.mxu0 0.0
    %8641 = vmatprep.subr.mxu0 0.0
    %8642 = vmatpush2.msra.mxu0 0.0
    %8643 = vmatprep.mubr.f32.mxu0 0.0
    %8644 = vmatmul.mubr.f32.gmra.mxu0 %v8577
    %v8645 = vpop.f32.mrf.mxu0
    %v8646 = vadd.f32 0.0, %v8645
    %v8647 = vpop.f32.mrf.mxu0
    %v8648 = vadd.f32 0.0, %v8647
    %8649 = vdwg.mxu0
    %v8650 = vadd.f32 %v8573, %v8646
    %v8651 = vadd.f32 %v8574, %v8648
    %8652 = vrot.lane.b32.xlu0 %v7269, 96
    %v8653 = vpop.permute.xlu0 %8652
    %v8654 = vsel %vm6210, %v8653, 0
    %8656 = vmatprep.subr.mxu0 0.0
    %8657 = vmatpush1.msra.mxu0 0.0
    %8658 = vmatprep.subr.mxu0 0.0
    %8659 = vmatpush1.msra.mxu0 0.0
    %8660 = vmatprep.subr.mxu0 0.0
    %8661 = vmatpush1.msra.mxu0 0.0
    %8662 = vmatprep.subr.mxu0 0.0
    %8663 = vmatpush1.msra.mxu0 0.0
    %8664 = vmatprep.subr.mxu0 0.0
    %8665 = vmatpush1.msra.mxu0 0.0
    %8666 = vmatprep.subr.mxu0 0.0
    %8667 = vmatpush1.msra.mxu0 0.0
    %8668 = vmatprep.subr.mxu0 0.0
    %8669 = vmatpush1.msra.mxu0 0.0
    %8670 = vmatprep.subr.mxu0 0.0
    %8671 = vmatpush1.msra.mxu0 0.0
    %8672 = vmatprep.subr.mxu0 0.0
    %8673 = vmatpush1.msra.mxu0 0.0
    %8674 = vmatprep.subr.mxu0 0.0
    %8675 = vmatpush1.msra.mxu0 0.0
    %8676 = vmatprep.subr.mxu0 0.0
    %8677 = vmatpush1.msra.mxu0 0.0
    %8678 = vmatprep.subr.mxu0 0.0
    %8679 = vmatpush1.msra.mxu0 0.0
    %8680 = vmatprep.subr.mxu0 %v6148
    %8681 = vmatpush1.msra.mxu0 %v6147
    %8682 = vmatprep.subr.mxu0 %v6146
    %8683 = vmatpush1.msra.mxu0 %v6145
    %8684 = vmatprep.subr.mxu0 %v6144
    %8685 = vmatpush1.msra.mxu0 %v6143
    %8686 = vmatprep.subr.mxu0 %v6142
    %8687 = vmatpush1.msra.mxu0 %v6141
    %8688 = vmatprep.subr.mxu0 0.0
    %8689 = vmatpush2.msra.mxu0 0.0
    %8690 = vmatprep.subr.mxu0 0.0
    %8691 = vmatpush2.msra.mxu0 0.0
    %8692 = vmatprep.subr.mxu0 0.0
    %8693 = vmatpush2.msra.mxu0 0.0
    %8694 = vmatprep.subr.mxu0 0.0
    %8695 = vmatpush2.msra.mxu0 0.0
    %8696 = vmatprep.subr.mxu0 0.0
    %8697 = vmatpush2.msra.mxu0 0.0
    %8698 = vmatprep.subr.mxu0 0.0
    %8699 = vmatpush2.msra.mxu0 0.0
    %8700 = vmatprep.subr.mxu0 0.0
    %8701 = vmatpush2.msra.mxu0 0.0
    %8702 = vmatprep.subr.mxu0 0.0
    %8703 = vmatpush2.msra.mxu0 0.0
    %8704 = vmatprep.subr.mxu0 0.0
    %8705 = vmatpush2.msra.mxu0 0.0
    %8706 = vmatprep.subr.mxu0 0.0
    %8707 = vmatpush2.msra.mxu0 0.0
    %8708 = vmatprep.subr.mxu0 0.0
    %8709 = vmatpush2.msra.mxu0 0.0
    %8710 = vmatprep.subr.mxu0 0.0
    %8711 = vmatpush2.msra.mxu0 0.0
    %8712 = vmatprep.subr.mxu0 0.0
    %8713 = vmatpush2.msra.mxu0 0.0
    %8714 = vmatprep.subr.mxu0 0.0
    %8715 = vmatpush2.msra.mxu0 0.0
    %8716 = vmatprep.subr.mxu0 0.0
    %8717 = vmatpush2.msra.mxu0 0.0
    %8718 = vmatprep.subr.mxu0 0.0
    %8719 = vmatpush2.msra.mxu0 0.0
    %8720 = vmatprep.mubr.f32.mxu0 0.0
    %8721 = vmatmul.mubr.f32.gmra.mxu0 %v8654
    %v8722 = vpop.f32.mrf.mxu0
    %v8723 = vadd.f32 0.0, %v8722
    %v8724 = vpop.f32.mrf.mxu0
    %v8725 = vadd.f32 0.0, %v8724
    %8726 = vdwg.mxu0
    %v8727 = vadd.f32 %v8650, %v8723
    %v8728 = vadd.f32 %v8651, %v8725
    %8729 = vrot.lane.b32.xlu0 %v7345, 96
    %v8730 = vpop.permute.xlu0 %8729
    %v8731 = vsel %vm6210, %v8730, 0
    %8733 = vmatprep.subr.mxu0 0.0
    %8734 = vmatpush1.msra.mxu0 0.0
    %8735 = vmatprep.subr.mxu0 0.0
    %8736 = vmatpush1.msra.mxu0 0.0
    %8737 = vmatprep.subr.mxu0 0.0
    %8738 = vmatpush1.msra.mxu0 0.0
    %8739 = vmatprep.subr.mxu0 0.0
    %8740 = vmatpush1.msra.mxu0 0.0
    %8741 = vmatprep.subr.mxu0 0.0
    %8742 = vmatpush1.msra.mxu0 0.0
    %8743 = vmatprep.subr.mxu0 0.0
    %8744 = vmatpush1.msra.mxu0 0.0
    %8745 = vmatprep.subr.mxu0 0.0
    %8746 = vmatpush1.msra.mxu0 0.0
    %8747 = vmatprep.subr.mxu0 0.0
    %8748 = vmatpush1.msra.mxu0 0.0
    %8749 = vmatprep.subr.mxu0 0.0
    %8750 = vmatpush1.msra.mxu0 0.0
    %8751 = vmatprep.subr.mxu0 0.0
    %8752 = vmatpush1.msra.mxu0 0.0
    %8753 = vmatprep.subr.mxu0 0.0
    %8754 = vmatpush1.msra.mxu0 0.0
    %8755 = vmatprep.subr.mxu0 0.0
    %8756 = vmatpush1.msra.mxu0 0.0
    %8757 = vmatprep.subr.mxu0 %v6156
    %8758 = vmatpush1.msra.mxu0 %v6155
    %8759 = vmatprep.subr.mxu0 %v6154
    %8760 = vmatpush1.msra.mxu0 %v6153
    %8761 = vmatprep.subr.mxu0 %v6152
    %8762 = vmatpush1.msra.mxu0 %v6151
    %8763 = vmatprep.subr.mxu0 %v6150
    %8764 = vmatpush1.msra.mxu0 %v6149
    %8765 = vmatprep.subr.mxu0 0.0
    %8766 = vmatpush2.msra.mxu0 0.0
    %8767 = vmatprep.subr.mxu0 0.0
    %8768 = vmatpush2.msra.mxu0 0.0
    %8769 = vmatprep.subr.mxu0 0.0
    %8770 = vmatpush2.msra.mxu0 0.0
    %8771 = vmatprep.subr.mxu0 0.0
    %8772 = vmatpush2.msra.mxu0 0.0
    %8773 = vmatprep.subr.mxu0 0.0
    %8774 = vmatpush2.msra.mxu0 0.0
    %8775 = vmatprep.subr.mxu0 0.0
    %8776 = vmatpush2.msra.mxu0 0.0
    %8777 = vmatprep.subr.mxu0 0.0
    %8778 = vmatpush2.msra.mxu0 0.0
    %8779 = vmatprep.subr.mxu0 0.0
    %8780 = vmatpush2.msra.mxu0 0.0
    %8781 = vmatprep.subr.mxu0 0.0
    %8782 = vmatpush2.msra.mxu0 0.0
    %8783 = vmatprep.subr.mxu0 0.0
    %8784 = vmatpush2.msra.mxu0 0.0
    %8785 = vmatprep.subr.mxu0 0.0
    %8786 = vmatpush2.msra.mxu0 0.0
    %8787 = vmatprep.subr.mxu0 0.0
    %8788 = vmatpush2.msra.mxu0 0.0
    %8789 = vmatprep.subr.mxu0 0.0
    %8790 = vmatpush2.msra.mxu0 0.0
    %8791 = vmatprep.subr.mxu0 0.0
    %8792 = vmatpush2.msra.mxu0 0.0
    %8793 = vmatprep.subr.mxu0 0.0
    %8794 = vmatpush2.msra.mxu0 0.0
    %8795 = vmatprep.subr.mxu0 0.0
    %8796 = vmatpush2.msra.mxu0 0.0
    %8797 = vmatprep.mubr.f32.mxu0 0.0
    %8798 = vmatmul.mubr.f32.gmra.mxu0 %v8731
    %v8799 = vpop.f32.mrf.mxu0
    %v8800 = vadd.f32 0.0, %v8799
    %v8801 = vpop.f32.mrf.mxu0
    %v8802 = vadd.f32 0.0, %v8801
    %8803 = vdwg.mxu0
    %v8804 = vadd.f32 %v8727, %v8800
    %v8805 = vadd.f32 %v8728, %v8802
    %v8806 = vadd.f32 %v8804, %v7425
    %v8807 = vadd.f32 %v8805, %v7429
    %v8808 = vmax.f32 %v8806, 0.0
    %v8809 = vmax.f32 %v8807, 0.0
    %8810 = vmatprep.subr.mxu0 0.0
    %8811 = vmatpush1.msra.mxu0 %v6172
    %8812 = vmatprep.subr.mxu0 0.0
    %8813 = vmatpush1.msra.mxu0 %v6171
    %8814 = vmatprep.subr.mxu0 0.0
    %8815 = vmatpush1.msra.mxu0 %v6170
    %8816 = vmatprep.subr.mxu0 0.0
    %8817 = vmatpush1.msra.mxu0 %v6169
    %8818 = vmatprep.subr.mxu0 0.0
    %8819 = vmatpush1.msra.mxu0 %v6168
    %8820 = vmatprep.subr.mxu0 0.0
    %8821 = vmatpush1.msra.mxu0 %v6167
    %8822 = vmatprep.subr.mxu0 0.0
    %8823 = vmatpush1.msra.mxu0 %v6166
    %8824 = vmatprep.subr.mxu0 0.0
    %8825 = vmatpush1.msra.mxu0 %v6165
    %8826 = vmatprep.subr.mxu0 0.0
    %8827 = vmatpush1.msra.mxu0 %v6164
    %8828 = vmatprep.subr.mxu0 0.0
    %8829 = vmatpush1.msra.mxu0 %v6163
    %8830 = vmatprep.subr.mxu0 0.0
    %8831 = vmatpush1.msra.mxu0 %v6162
    %8832 = vmatprep.subr.mxu0 0.0
    %8833 = vmatpush1.msra.mxu0 %v6161
    %8834 = vmatprep.subr.mxu0 0.0
    %8835 = vmatpush1.msra.mxu0 %v6160
    %8836 = vmatprep.subr.mxu0 0.0
    %8837 = vmatpush1.msra.mxu0 %v6159
    %8838 = vmatprep.subr.mxu0 0.0
    %8839 = vmatpush1.msra.mxu0 %v6158
    %8840 = vmatprep.subr.mxu0 0.0
    %8841 = vmatpush1.msra.mxu0 %v6157
    %8842 = vmatprep.subr.mxu0 0.0
    %8843 = vmatpush2.msra.mxu0 %v6188
    %8844 = vmatprep.subr.mxu0 0.0
    %8845 = vmatpush2.msra.mxu0 %v6187
    %8846 = vmatprep.subr.mxu0 0.0
    %8847 = vmatpush2.msra.mxu0 %v6186
    %8848 = vmatprep.subr.mxu0 0.0
    %8849 = vmatpush2.msra.mxu0 %v6185
    %8850 = vmatprep.subr.mxu0 0.0
    %8851 = vmatpush2.msra.mxu0 %v6184
    %8852 = vmatprep.subr.mxu0 0.0
    %8853 = vmatpush2.msra.mxu0 %v6183
    %8854 = vmatprep.subr.mxu0 0.0
    %8855 = vmatpush2.msra.mxu0 %v6182
    %8856 = vmatprep.subr.mxu0 0.0
    %8857 = vmatpush2.msra.mxu0 %v6181
    %8858 = vmatprep.subr.mxu0 0.0
    %8859 = vmatpush2.msra.mxu0 %v6180
    %8860 = vmatprep.subr.mxu0 0.0
    %8861 = vmatpush2.msra.mxu0 %v6179
    %8862 = vmatprep.subr.mxu0 0.0
    %8863 = vmatpush2.msra.mxu0 %v6178
    %8864 = vmatprep.subr.mxu0 0.0
    %8865 = vmatpush2.msra.mxu0 %v6177
    %8866 = vmatprep.subr.mxu0 0.0
    %8867 = vmatpush2.msra.mxu0 %v6176
    %8868 = vmatprep.subr.mxu0 0.0
    %8869 = vmatpush2.msra.mxu0 %v6175
    %8870 = vmatprep.subr.mxu0 0.0
    %8871 = vmatpush2.msra.mxu0 %v6174
    %8872 = vmatprep.subr.mxu0 0.0
    %8873 = vmatpush2.msra.mxu0 %v6173
    %8874 = vmatprep.mubr.f32.mxu0 %v8809
    %8875 = vmatmul.mubr.f32.gmra.mxu0 %v8808
    %v8876 = vpop.f32.mrf.mxu0
    %v8877 = vadd.f32 %v6206, %v8876
    %v8878 = vpop.f32.mrf.mxu0
    %8879 = vdwg.mxu0
    %v8880 = vmax.f32 %v8877, 0.0
    %8881 = vmatprep.subr.mxu0 0.0
    %8882 = vmatpush1.msra.mxu0 %v6204
    %8883 = vmatprep.subr.mxu0 0.0
    %8884 = vmatpush1.msra.mxu0 %v6203
    %8885 = vmatprep.subr.mxu0 0.0
    %8886 = vmatpush1.msra.mxu0 %v6202
    %8887 = vmatprep.subr.mxu0 0.0
    %8888 = vmatpush1.msra.mxu0 %v6201
    %8889 = vmatprep.subr.mxu0 0.0
    %8890 = vmatpush1.msra.mxu0 %v6200
    %8891 = vmatprep.subr.mxu0 0.0
    %8892 = vmatpush1.msra.mxu0 %v6199
    %8893 = vmatprep.subr.mxu0 0.0
    %8894 = vmatpush1.msra.mxu0 %v6198
    %8895 = vmatprep.subr.mxu0 0.0
    %8896 = vmatpush1.msra.mxu0 %v6197
    %8897 = vmatprep.subr.mxu0 0.0
    %8898 = vmatpush1.msra.mxu0 %v6196
    %8899 = vmatprep.subr.mxu0 0.0
    %8900 = vmatpush1.msra.mxu0 %v6195
    %8901 = vmatprep.subr.mxu0 0.0
    %8902 = vmatpush1.msra.mxu0 %v6194
    %8903 = vmatprep.subr.mxu0 0.0
    %8904 = vmatpush1.msra.mxu0 %v6193
    %8905 = vmatprep.subr.mxu0 0.0
    %8906 = vmatpush1.msra.mxu0 %v6192
    %8907 = vmatprep.subr.mxu0 0.0
    %8908 = vmatpush1.msra.mxu0 %v6191
    %8909 = vmatprep.subr.mxu0 0.0
    %8910 = vmatpush1.msra.mxu0 %v6190
    %8911 = vmatprep.subr.mxu0 0.0
    %8912 = vmatpush1.msra.mxu0 %v6189
    %8913 = vmatprep.subr.mxu0 0.0
    %8914 = vmatpush2.msra.mxu0 0.0
    %8915 = vmatprep.subr.mxu0 0.0
    %8916 = vmatpush2.msra.mxu0 0.0
    %8917 = vmatprep.subr.mxu0 0.0
    %8918 = vmatpush2.msra.mxu0 0.0
    %8919 = vmatprep.subr.mxu0 0.0
    %8920 = vmatpush2.msra.mxu0 0.0
    %8921 = vmatprep.subr.mxu0 0.0
    %8922 = vmatpush2.msra.mxu0 0.0
    %8923 = vmatprep.subr.mxu0 0.0
    %8924 = vmatpush2.msra.mxu0 0.0
    %8925 = vmatprep.subr.mxu0 0.0
    %8926 = vmatpush2.msra.mxu0 0.0
    %8927 = vmatprep.subr.mxu0 0.0
    %8928 = vmatpush2.msra.mxu0 0.0
    %8929 = vmatprep.subr.mxu0 0.0
    %8930 = vmatpush2.msra.mxu0 0.0
    %8931 = vmatprep.subr.mxu0 0.0
    %8932 = vmatpush2.msra.mxu0 0.0
    %8933 = vmatprep.subr.mxu0 0.0
    %8934 = vmatpush2.msra.mxu0 0.0
    %8935 = vmatprep.subr.mxu0 0.0
    %8936 = vmatpush2.msra.mxu0 0.0
    %8937 = vmatprep.subr.mxu0 0.0
    %8938 = vmatpush2.msra.mxu0 0.0
    %8939 = vmatprep.subr.mxu0 0.0
    %8940 = vmatpush2.msra.mxu0 0.0
    %8941 = vmatprep.subr.mxu0 0.0
    %8942 = vmatpush2.msra.mxu0 0.0
    %8943 = vmatprep.subr.mxu0 0.0
    %8944 = vmatpush2.msra.mxu0 0.0
    %8945 = vmatprep.mubr.f32.mxu0 0.0
    %8946 = vmatmul.mubr.f32.gmra.mxu0 %v8880
    %v8947 = vpop.f32.mrf.mxu0
    %v8948 = vadd.f32 %v6207, %v8947
    %v8949 = vpop.f32.mrf.mxu0
    %8950 = vdwg.mxu0
    %8951 = vst [vmem:[#allocation2 + $0x1] sm:$0x1] %v8948
    // Predicated region
    $region46: #{nn2d_forward.1} parent=1 // pred_check
      _
    $region47: #{nn2d_forward.1} parent=1 // pred_check_branch
      %8953 = sbr.rel (0) target = $region49
    $region48: #{nn2d_forward.1} parent=1 // pred_region
      %s8955 = ssub.s32 32, 32
      %8956 = vsyncadd [#allocation3], %s8955
      %s8958 = sshll.u32 [#allocation2], 4
      %s8959 = int_to_ptr.vmem [resolvable:$true] %s8958
      %8961 = dma.vmem_to_hbm [thread:$0]  %s8959, 32, %s11, [#allocation3]
    $region49: #{nn2d_forward.1} parent=1 // pred_fallthru
      _
    // Predicated region
    $region50: #{nn2d_forward.1} parent=1 // pred_check
      _
    $region51: #{nn2d_forward.1} parent=1 // pred_check_branch
      %8963 = sbr.rel (0) target = $region53
    $region52: #{nn2d_forward.1} parent=1 // pred_region
      %8964 = dma.done [#allocation3], 32
    $region53: #{nn2d_forward.1} parent=1 // pred_fallthru
      _
    %8965 = vsyncpa [#allocation3], 1

</llo_original>
